<compile_context>
chip_gen: v5e
topology: v5e:2x2
jax: 0.10.0
libtpu: 0.0.40
codegen_flags: <defaults>
</compile_context>

<pallas_src>
import functools

import jax
import jax.numpy as jnp
from jax.experimental import pallas as pl
from jax.experimental.pallas import tpu as pltpu

NUM_HEADS = 4


# ----------------------------------------------------------------------------
# Small helpers
# ----------------------------------------------------------------------------
def _pick_tile(n, pref):
    """Largest tile <= pref that divides n and is a multiple of 8 (else n)."""
    if n <= pref:
        return n
    t = (pref // 8) * 8
    while t >= 8:
        if n % t == 0:
            return t
        t -= 8
    return n


def _vmem_limit_bytes(estimate):
    return int(min(100 * 1024 * 1024, max(32 * 1024 * 1024, estimate + (4 << 20))))


def _head_major_rows(w, num_heads):
    """Reorder conv-weight rows from channel index c=d*H+h to head-major r=h*dph+d."""
    D = w.shape[0]
    dph = D // num_heads
    return w.reshape(dph, num_heads, -1).transpose(1, 0, 2).reshape(D, -1)


def _head_major_vec(b, num_heads):
    D = b.shape[0]
    dph = D // num_heads
    return b.reshape(dph, num_heads).T.reshape(D)


# ----------------------------------------------------------------------------
# Pallas kernels
# ----------------------------------------------------------------------------
def _mha_kernel(x_ref, src_ref, wq_ref, bq_ref, wkv_ref, bkv_ref, wm_ref, bm_ref,
                o_ref, *, num_heads, topk):
    """Fused multi-head attention for one (stream, batch, query-tile) grid step.

    Layout: points on sublanes, channels on lanes; all weights pre-cast to bf16,
    head-major on the projection output axis, score scale folded into wq/bq.
      x_ref   : (1, 1, tq, D) bf16     src_ref : (1, 1, M, D) bf16
      wq_ref  : (D, D) bf16            bq_ref  : (1, D)  f32
      wkv_ref : (D, 2D) bf16 [K | V]   bkv_ref : (1, 2D) f32
      wm_ref  : (D, D) bf16 (merge)    bm_ref  : (1, D)  f32
      o_ref   : (1, 1, tq, D) bf16     (attention "message")
    """
    f32, bf16 = jnp.float32, jnp.bfloat16
    D = x_ref.shape[-1]
    M = src_ref.shape[-2]
    H = num_heads
    dph = D // H

    x = x_ref[0, 0]        # (tq, D) bf16
    s = src_ref[0, 0]      # (M,  D) bf16

    # Fat projections (bf16 in, f32 acc); 1/sqrt(dph) already folded into wq/bq.
    q = jnp.dot(x, wq_ref[...], preferred_element_type=f32) + bq_ref[...]      # (tq, D)
    kv = jnp.dot(s, wkv_ref[...], preferred_element_type=f32) + bkv_ref[...]   # (M, 2D)
    wm = wm_ref[...]                                                           # (D, D) bf16

    acc = None
    for h in range(H):     # static unroll over heads
        sl = slice(h * dph, (h + 1) * dph)
        qh = q[:, sl].astype(bf16)                                   # (tq, dph)
        kh = kv[:, sl].astype(bf16)                                  # (M, dph)
        vh = kv[:, D + h * dph: D + (h + 1) * dph].astype(bf16)      # (M, dph)

        # scores[n, m] = <qh[n], kh[m]>
        sc = jax.lax.dot_general(qh, kh, (((1,), (1,)), ((), ())),
                                 preferred_element_type=f32)         # (tq, M) f32

        if topk is not None and 0 < topk < M:
            # dynamic_attention: keep only the top-k scores per query row.
            # Round-0 max doubles as the softmax row max; the keep-mask is folded
            # into the exp so no masked score copy is materialized (only sc + work
            # stay live).
            # TODO(synk): ties at the k-th value keep >k entries (torch.topk keeps k).
            thr = jnp.max(sc, axis=-1, keepdims=True)
            mx = thr
            work = sc
            for _ in range(topk - 1):
                work = jnp.where(work >= thr, -jnp.inf, work)
                thr = jnp.max(work, axis=-1, keepdims=True)
            e = jnp.where(sc >= thr, jnp.exp(sc - mx), 0.0)
        else:
            mx = jnp.max(sc, axis=-1, keepdims=True)
            e = jnp.exp(sc - mx)

        p = e * pl.reciprocal(jnp.sum(e, axis=-1, keepdims=True), approx=True)
        out_h = jnp.dot(p.astype(bf16), vh, preferred_element_type=f32)        # (tq, dph)
        # Accumulate the merge conv per head (no lane-axis concat of dph chunks).
        contrib = jnp.dot(out_h.astype(bf16), wm[sl, :],
                          preferred_element_type=f32)                          # (tq, D)
        acc = contrib if acc is None else acc + contrib

    o_ref[0, 0] = (acc + bm_ref[...]).astype(o_ref.dtype)


def _mlp_kernel(xs_ref, ms_ref, w1a_ref, w1b_ref, b1_ref, g_ref, beta_ref,
                w2_ref, b2_ref, o_ref, obf_ref, sum_ref, ssq_ref, *, eps, rows):
    """Fused Conv1d(2D->2D) + two-pass BatchNorm1d + ReLU + Conv1d(2D->D) + residual.

    Grid = (stream, pass, row-tile).  Pass 0 accumulates per-channel sum / sum-sq
    of h into VMEM scratch (per stream); pass 1 normalizes, applies ReLU, the
    second conv, and the residual add, emitting f32 + bf16 descriptors.
      xs_ref : (1, tr, D)  f32  descriptors (conv input half 1 AND residual)
      ms_ref : (1, tr, D)  bf16 attention message (conv input half 2)
      w1a/w1b: (D, 2D) bf16     w2 : (2D, D) bf16
      b1/g/beta : (1, 2D) f32   b2 : (1, D) f32
      o_ref  : (1, tr, D) f32   obf_ref : (1, tr, D) bf16
    """
    f32, bf16 = jnp.float32, jnp.bfloat16
    pass_idx = pl.program_id(1)
    tile_idx = pl.program_id(2)

    xs = xs_ref[0]                                                   # (tr, D) f32
    h = (jnp.dot(xs.astype(bf16), w1a_ref[...], preferred_element_type=f32)
         + jnp.dot(ms_ref[0], w1b_ref[...], preferred_element_type=f32)
         + b1_ref[...])                                              # (tr, 2D) f32

    @pl.when(jnp.logical_and(pass_idx == 0, tile_idx == 0))
    def _():
        sum_ref[...] = jnp.zeros_like(sum_ref)
        ssq_ref[...] = jnp.zeros_like(ssq_ref)

    @pl.when(pass_idx == 0)
    def _():
        # Single fused stats pass: sum and sum-of-squares per channel.
        sum_ref[...] += jnp.sum(h, axis=0, keepdims=True)
        ssq_ref[...] += jnp.sum(h * h, axis=0, keepdims=True)

    @pl.when(pass_idx == 1)
    def _():
        mean = sum_ref[...] * (1.0 / rows)
        var = ssq_ref[...] * (1.0 / rows) - mean * mean              # biased variance
        hn = (h - mean) * jax.lax.rsqrt(var + eps) * g_ref[...] + beta_ref[...]
        hn = jnp.maximum(hn, 0.0)
        delta = (jnp.dot(hn.astype(bf16), w2_ref[...], preferred_element_type=f32)
                 + b2_ref[...])                                      # (tr, D)
        out = xs + delta                                             # fused residual
        o_ref[0] = out
        obf_ref[0] = out.astype(bf16)


# ----------------------------------------------------------------------------
# Wrappers
# ----------------------------------------------------------------------------
def fused_mha(d_bf, prm, k, *, cross, num_heads=NUM_HEADS):
    """MultiHeadedAttention for both streams.  d_bf: (2, B, N, D) bf16 -> bf16."""
    _, B, N, D = d_bf.shape
    tq = _pick_tile(N, 128)
    nq = N // tq
    kk = None if k is None else int(min(k, N))

    if cross:
        src_map = lambda s, b, qi: (1 - s, b, 0, 0)   # swap streams for 'cross'
    else:
        src_map = lambda s, b, qi: (s, b, 0, 0)

    est = (4 * tq * D * 2 + 2 * N * D * 2              # x/out + source blocks (bf16, dbl-buf)
           + 2 * (4 * D * D) * 2                       # wq + wm + wkv (bf16, dbl-buf)
           + tq * D * 4 + N * 2 * D * 4                # q, kv (f32)
           + 3 * tq * N * 4 + 2 * tq * D * 4)          # scores / top-k work / merge acc

    kernel = functools.partial(_mha_kernel, num_heads=num_heads, topk=kk)
    return pl.pallas_call(
        kernel,
        out_shape=jax.ShapeDtypeStruct((2, B, N, D), jnp.bfloat16),
        grid=(2, B, nq),
        in_specs=[
            pl.BlockSpec((1, 1, tq, D), lambda s, b, qi: (s, b, qi, 0)),   # x
            pl.BlockSpec((1, 1, N, D), src_map),                           # source
            pl.BlockSpec((D, D), lambda s, b, qi: (0, 0)),                 # wq
            pl.BlockSpec((1, D), lambda s, b, qi: (0, 0)),                 # bq
            pl.BlockSpec((D, 2 * D), lambda s, b, qi: (0, 0)),             # wkv
            pl.BlockSpec((1, 2 * D), lambda s, b, qi: (0, 0)),             # bkv
            pl.BlockSpec((D, D), lambda s, b, qi: (0, 0)),                 # wm
            pl.BlockSpec((1, D), lambda s, b, qi: (0, 0)),                 # bm
        ],
        out_specs=pl.BlockSpec((1, 1, tq, D), lambda s, b, qi: (s, b, qi, 0)),
        compiler_params=pltpu.CompilerParams(
            dimension_semantics=("parallel", "parallel", "parallel"),
            vmem_limit_bytes=_vmem_limit_bytes(est)),
    )(d_bf, d_bf, prm['wq_t'], prm['bq'], prm['wkv_t'], prm['bkv'],
      prm['wm_t'], prm['bm'])


def fused_mlp(d, msg, prm):
    """MLP([2D,2D,D]) on cat([d, message]) + residual, both streams in one call.

    d: (2, B, N, D) f32, msg: (2, B, N, D) bf16 -> (d_new_f32, d_new_bf16).
    """
    _, B, N, D = d.shape
    rows = B * N                       # BN stats are per-stream (matches PyTorch)
    xs = d.reshape(2, rows, D)         # pure reshape in (.., N, D) layout
    ms = msg.reshape(2, rows, D)
    tr = _pick_tile(rows, 256)
    nt = rows // tr

    est = (2 * tr * D * (4 + 2)                        # xs + ms blocks (dbl-buf)
           + 2 * tr * D * (4 + 2)                      # f32 + bf16 output blocks
           + 2 * (2 * D * 2 * D + 2 * D * D) * 2       # w1a + w1b + w2 (bf16)
           + 3 * tr * 2 * D * 4)                       # h / hn temporaries

    kernel = functools.partial(_mlp_kernel, eps=1e-5, rows=rows)
    out_f32, out_bf16 = pl.pallas_call(
        kernel,
        out_shape=(jax.ShapeDtypeStruct((2, rows, D), jnp.float32),
                   jax.ShapeDtypeStruct((2, rows, D), jnp.bfloat16)),
        grid=(2, 2, nt),                               # (stream, pass, row tile)
        in_specs=[
            pl.BlockSpec((1, tr, D), lambda s, pp, t: (s, t, 0)),          # xs
            pl.BlockSpec((1, tr, D), lambda s, pp, t: (s, t, 0)),          # ms
            pl.BlockSpec((D, 2 * D), lambda s, pp, t: (0, 0)),             # w1a
            pl.BlockSpec((D, 2 * D), lambda s, pp, t: (0, 0)),             # w1b
            pl.BlockSpec((1, 2 * D), lambda s, pp, t: (0, 0)),             # b1
            pl.BlockSpec((1, 2 * D), lambda s, pp, t: (0, 0)),             # gamma
            pl.BlockSpec((1, 2 * D), lambda s, pp, t: (0, 0)),             # beta
            pl.BlockSpec((2 * D, D), lambda s, pp, t: (0, 0)),             # w2
            pl.BlockSpec((1, D), lambda s, pp, t: (0, 0)),                 # b2
        ],
        # pp*t keeps the output block index pinned during pass 0, so every output
        # block is written back exactly once (with valid pass-1 data).
        out_specs=(pl.BlockSpec((1, tr, D), lambda s, pp, t: (s, pp * t, 0)),
                   pl.BlockSpec((1, tr, D), lambda s, pp, t: (s, pp * t, 0))),
        scratch_shapes=[pltpu.VMEM((1, 2 * D), jnp.float32),
                        pltpu.VMEM((1, 2 * D), jnp.float32)],
        compiler_params=pltpu.CompilerParams(
            dimension_semantics=("parallel", "arbitrary", "arbitrary"),
            vmem_limit_bytes=_vmem_limit_bytes(est)),
    )(xs, ms, prm['w1a_t'], prm['w1b_t'], prm['b1'], prm['gamma'], prm['beta'],
      prm['w2_t'], prm['b2'])
    return out_f32.reshape(2, B, N, D), out_bf16.reshape(2, B, N, D)


# ----------------------------------------------------------------------------
# Model forward (thin glue around the two fused kernels)
# ----------------------------------------------------------------------------
@functools.partial(jax.jit, static_argnums=(3, 4, 5))
def attentional_gnn(desc0, desc1, prepared_params, names, k_list, L):
    """desc0, desc1: (B, D, N) in the PyTorch layout; returns the same layout."""
    d = jnp.stack([desc0.transpose(0, 2, 1),
                   desc1.transpose(0, 2, 1)], axis=0)   # (2, B, N, D) f32
    d_bf = d.astype(jnp.bfloat16)                        # bf16 twin feeds the MHA kernel
    for i, (prm, name) in enumerate(zip(prepared_params, names)):
        if i > 2 * L - 1 - len(k_list):
            k = k_list[i - 2 * L + len(k_list)]
        else:
            k = None
        msg = fused_mha(d_bf, prm, k, cross=(name == 'cross'))   # (2,B,N,D) bf16
        d, d_bf = fused_mlp(d, msg, prm)                          # residual fused in-kernel
    return d[0].transpose(0, 2, 1), d[1].transpose(0, 2, 1)


# ----------------------------------------------------------------------------
# Parameter construction / one-time kernel-friendly re-layout
# ----------------------------------------------------------------------------
def init_params(key, D, num_layers):
    params_list = []
    for lk in jax.random.split(key, num_layers):
        ks = jax.random.split(lk, 12)
        w = lambda kk, shape: (jax.random.normal(kk, shape, jnp.float32) * 0.1)
        attn = {
            'wq': w(ks[0], (D, D)), 'bq': w(ks[1], (D,)),
            'wk': w(ks[2], (D, D)), 'bk': w(ks[3], (D,)),
            'wv': w(ks[4], (D, D)), 'bv': w(ks[5], (D,)),
            'wm': w(ks[6], (D, D)), 'bm': w(ks[7], (D,)),
        }
        params_list.append({
            'attn': attn,
            'mlp_w1': w(ks[8], (2 * D, 2 * D)), 'mlp_b1': w(ks[9], (2 * D,)),
            'bn_gamma': jnp.ones((2 * D,), jnp.float32),
            'bn_beta': jnp.zeros((2 * D,), jnp.float32),
            'mlp_w2': w(ks[10], (D, 2 * D)),
            'mlp_b2': jnp.zeros((D,), jnp.float32),  # nn.init.constant_(mlp[-1].bias, 0.)
        })
    return params_list


def prepare_params(params_list, num_heads=NUM_HEADS):
    """One-time re-layout: head-major rows, transposes, K|V stack, scale folding, bf16."""
    bf16, f32 = jnp.bfloat16, jnp.float32
    prepared = []
    for p in params_list:
        a = p['attn']
        D = a['wq'].shape[0]
        dph = D // num_heads
        scale = 1.0 / (dph ** 0.5)
        wq_t = (_head_major_rows(a['wq'], num_heads) * scale).T            # (D, D)
        bq = (_head_major_vec(a['bq'], num_heads) * scale).reshape(1, D)
        wkv_t = jnp.concatenate([_head_major_rows(a['wk'], num_heads).T,
                                 _head_major_rows(a['wv'], num_heads).T], axis=1)
        bkv = jnp.concatenate([_head_major_vec(a['bk'], num_heads),
                               _head_major_vec(a['bv'], num_heads)]).reshape(1, 2 * D)
        wm_t = a['wm'].reshape(D, dph, num_heads).transpose(0, 2, 1).reshape(D, D).T
        w1 = p['mlp_w1']
        prepared.append({
            'wq_t': wq_t.astype(bf16), 'bq': bq.astype(f32),
            'wkv_t': wkv_t.astype(bf16), 'bkv': bkv.astype(f32),
            'wm_t': wm_t.astype(bf16), 'bm': a['bm'].reshape(1, D).astype(f32),
            'w1a_t': w1[:, :D].T.astype(bf16), 'w1b_t': w1[:, D:].T.astype(bf16),
            'b1': p['mlp_b1'].reshape(1, 2 * D).astype(f32),
            'gamma': p['bn_gamma'].reshape(1, 2 * D).astype(f32),
            'beta': p['bn_beta'].reshape(1, 2 * D).astype(f32),
            'w2_t': p['mlp_w2'].T.astype(bf16),
            'b2': p['mlp_b2'].reshape(1, D).astype(f32),
        })
    return prepared


if __name__ == "__main__":
    B, D, N = 2, 32, 8              # batch, feature_dim, num points (D % num_heads == 0)
    layer_names = ('self', 'cross', 'self', 'cross')
    L = 2                            # 2*L == number of layers
    k_list = (4,)                    # last layer uses dynamic (top-k) attention

    key = jax.random.PRNGKey(0)
    k0, k1, kp = jax.random.split(key, 3)
    desc0 = jax.random.normal(k0, (B, D, N), jnp.float32)
    desc1 = jax.random.normal(k1, (B, D, N), jnp.float32)
    params_list = init_params(kp, D, len(layer_names))
    prepared = prepare_params(params_list, NUM_HEADS)

    out0, out1 = attentional_gnn(desc0, desc1, prepared, layer_names, k_list, L)
    jax.block_until_ready((out0, out1))
    assert out0.shape == (B, D, N) and out1.shape == (B, D, N)
    assert jnp.all(jnp.isfinite(out0)) and jnp.all(jnp.isfinite(out1))
    print("KERNEL_OK")
</pallas_src>

<mosaic_0001>
module attributes {stable_mosaic.version = 11 : i64} {
  func.func @_mha_kernel(%arg0: i32, %arg1: i32, %arg2: i32, %arg3: memref<1x1x8x32xbf16, #tpu.memory_space<vmem>>, %arg4: memref<1x1x8x32xbf16, #tpu.memory_space<vmem>>, %arg5: memref<32x32xbf16, #tpu.memory_space<vmem>>, %arg6: memref<1x32xf32, #tpu.memory_space<vmem>>, %arg7: memref<32x64xbf16, #tpu.memory_space<vmem>>, %arg8: memref<1x64xf32, #tpu.memory_space<vmem>>, %arg9: memref<32x32xbf16, #tpu.memory_space<vmem>>, %arg10: memref<1x32xf32, #tpu.memory_space<vmem>>, %arg11: memref<1x1x8x32xbf16, #tpu.memory_space<vmem>>) attributes {dimension_semantics = [#tpu.dimension_semantics<parallel>, #tpu.dimension_semantics<parallel>, #tpu.dimension_semantics<parallel>], iteration_bounds = array<i64: 2, 2, 1>, scalar_prefetch = 0 : i64, scratch_operands = 0 : i64, tpu.core_type = #tpu.core_type<tc>, window_params = [{transform_indices = @transform_0, window_bounds = array<i64: 1, 1, 8, 32>}, {transform_indices = @transform_1, window_bounds = array<i64: 1, 1, 8, 32>}, {pipeline_mode = #tpu.pipeline_mode<synchronous>, transform_indices = @transform_2, window_bounds = array<i64: 32, 32>}, {pipeline_mode = #tpu.pipeline_mode<synchronous>, transform_indices = @transform_3, window_bounds = array<i64: 1, 32>}, {pipeline_mode = #tpu.pipeline_mode<synchronous>, transform_indices = @transform_4, window_bounds = array<i64: 32, 64>}, {pipeline_mode = #tpu.pipeline_mode<synchronous>, transform_indices = @transform_5, window_bounds = array<i64: 1, 64>}, {pipeline_mode = #tpu.pipeline_mode<synchronous>, transform_indices = @transform_6, window_bounds = array<i64: 32, 32>}, {pipeline_mode = #tpu.pipeline_mode<synchronous>, transform_indices = @transform_7, window_bounds = array<i64: 1, 32>}, {transform_indices = @transform_8, window_bounds = array<i64: 1, 1, 8, 32>}]} {
    %c0 = arith.constant 0 : index
    %c0_0 = arith.constant 0 : index
    %c0_1 = arith.constant 0 : index
    %c0_2 = arith.constant 0 : index
    %0 = vector.load %arg3[%c0, %c0_0, %c0_1, %c0_2] : memref<1x1x8x32xbf16, #tpu.memory_space<vmem>>, vector<1x1x8x32xbf16>
    %1 = vector.shape_cast %0 : vector<1x1x8x32xbf16> to vector<8x32xbf16>
    %c0_3 = arith.constant 0 : index
    %c0_4 = arith.constant 0 : index
    %c0_5 = arith.constant 0 : index
    %c0_6 = arith.constant 0 : index
    %2 = vector.load %arg4[%c0_3, %c0_4, %c0_5, %c0_6] : memref<1x1x8x32xbf16, #tpu.memory_space<vmem>>, vector<1x1x8x32xbf16>
    %3 = vector.shape_cast %2 : vector<1x1x8x32xbf16> to vector<8x32xbf16>
    %c0_7 = arith.constant 0 : index
    %c0_8 = arith.constant 0 : index
    %4 = vector.load %arg5[%c0_7, %c0_8] : memref<32x32xbf16, #tpu.memory_space<vmem>>, vector<32x32xbf16>
    %cst = arith.constant dense<0.000000e+00> : vector<8x32xf32>
    %5 = tpu.matmul %1, %4, %cst {dimension_numbers = #tpu.dot_dimension_numbers<[1], [0], [0], [1], [0, 0, 1, 1], [], []>} : vector<8x32xbf16>, vector<32x32xbf16>, vector<8x32xf32> -> vector<8x32xf32>
    %c0_9 = arith.constant 0 : index
    %c0_10 = arith.constant 0 : index
    %6 = vector.load %arg6[%c0_9, %c0_10] : memref<1x32xf32, #tpu.memory_space<vmem>>, vector<1x32xf32>
    %7 = vector.broadcast %6 : vector<1x32xf32> to vector<8x32xf32>
    %8 = arith.addf %5, %7 : vector<8x32xf32>
    %c0_11 = arith.constant 0 : index
    %c0_12 = arith.constant 0 : index
    %9 = vector.load %arg7[%c0_11, %c0_12] : memref<32x64xbf16, #tpu.memory_space<vmem>>, vector<32x64xbf16>
    %cst_13 = arith.constant dense<0.000000e+00> : vector<8x64xf32>
    %10 = tpu.matmul %3, %9, %cst_13 {dimension_numbers = #tpu.dot_dimension_numbers<[1], [0], [0], [1], [0, 0, 1, 1], [], []>} : vector<8x32xbf16>, vector<32x64xbf16>, vector<8x64xf32> -> vector<8x64xf32>
    %c0_14 = arith.constant 0 : index
    %c0_15 = arith.constant 0 : index
    %11 = vector.load %arg8[%c0_14, %c0_15] : memref<1x64xf32, #tpu.memory_space<vmem>>, vector<1x64xf32>
    %12 = vector.broadcast %11 : vector<1x64xf32> to vector<8x64xf32>
    %13 = arith.addf %10, %12 : vector<8x64xf32>
    %c0_16 = arith.constant 0 : index
    %c0_17 = arith.constant 0 : index
    %14 = vector.load %arg9[%c0_16, %c0_17] : memref<32x32xbf16, #tpu.memory_space<vmem>>, vector<32x32xbf16>
    %15 = vector.extract_strided_slice %8 {offsets = [0, 0], sizes = [8, 8], strides = [1, 1]} : vector<8x32xf32> to vector<8x8xf32>
    %16 = arith.truncf %15 : vector<8x8xf32> to vector<8x8xbf16>
    %17 = vector.extract_strided_slice %13 {offsets = [0, 0], sizes = [8, 8], strides = [1, 1]} : vector<8x64xf32> to vector<8x8xf32>
    %18 = arith.truncf %17 : vector<8x8xf32> to vector<8x8xbf16>
    %19 = vector.extract_strided_slice %13 {offsets = [0, 32], sizes = [8, 8], strides = [1, 1]} : vector<8x64xf32> to vector<8x8xf32>
    %20 = arith.truncf %19 : vector<8x8xf32> to vector<8x8xbf16>
    %cst_18 = arith.constant dense<0.000000e+00> : vector<8x8xf32>
    %21 = tpu.matmul %16, %18, %cst_18 {dimension_numbers = #tpu.dot_dimension_numbers<[1], [1], [0], [0], [0, 0, 1, 0], [], []>} : vector<8x8xbf16>, vector<8x8xbf16>, vector<8x8xf32> -> vector<8x8xf32>
    %cst_19 = arith.constant dense<0xFF800000> : vector<8xf32>
    %22 = vector.multi_reduction <maximumf>, %21, %cst_19 [1] : vector<8x8xf32> to vector<8xf32>
    %23 = vector.shape_cast %22 : vector<8xf32> to vector<8x1xf32>
    %24 = vector.broadcast %23 : vector<8x1xf32> to vector<8x8xf32>
    %25 = arith.subf %21, %24 : vector<8x8xf32>
    %26 = math.exp %25 : vector<8x8xf32>
    %cst_20 = arith.constant dense<0.000000e+00> : vector<8xf32>
    %27 = vector.multi_reduction <add>, %26, %cst_20 [1] : vector<8x8xf32> to vector<8xf32>
    %28 = vector.shape_cast %27 : vector<8xf32> to vector<8x1xf32>
    %29 = tpu.reciprocal %28 {approx = true} : vector<8x1xf32> -> vector<8x1xf32>
    %30 = vector.broadcast %29 : vector<8x1xf32> to vector<8x8xf32>
    %31 = arith.mulf %26, %30 : vector<8x8xf32>
    %32 = arith.truncf %31 : vector<8x8xf32> to vector<8x8xbf16>
    %cst_21 = arith.constant dense<0.000000e+00> : vector<8x8xf32>
    %33 = tpu.matmul %32, %20, %cst_21 {dimension_numbers = #tpu.dot_dimension_numbers<[1], [0], [0], [1], [0, 0, 1, 1], [], []>} : vector<8x8xbf16>, vector<8x8xbf16>, vector<8x8xf32> -> vector<8x8xf32>
    %34 = arith.truncf %33 : vector<8x8xf32> to vector<8x8xbf16>
    %35 = vector.extract_strided_slice %14 {offsets = [0, 0], sizes = [8, 32], strides = [1, 1]} : vector<32x32xbf16> to vector<8x32xbf16>
    %cst_22 = arith.constant dense<0.000000e+00> : vector<8x32xf32>
    %36 = tpu.matmul %34, %35, %cst_22 {dimension_numbers = #tpu.dot_dimension_numbers<[1], [0], [0], [1], [0, 0, 1, 1], [], []>} : vector<8x8xbf16>, vector<8x32xbf16>, vector<8x32xf32> -> vector<8x32xf32>
    %37 = vector.extract_strided_slice %8 {offsets = [0, 8], sizes = [8, 8], strides = [1, 1]} : vector<8x32xf32> to vector<8x8xf32>
    %38 = arith.truncf %37 : vector<8x8xf32> to vector<8x8xbf16>
    %39 = vector.extract_strided_slice %13 {offsets = [0, 8], sizes = [8, 8], strides = [1, 1]} : vector<8x64xf32> to vector<8x8xf32>
    %40 = arith.truncf %39 : vector<8x8xf32> to vector<8x8xbf16>
    %41 = vector.extract_strided_slice %13 {offsets = [0, 40], sizes = [8, 8], strides = [1, 1]} : vector<8x64xf32> to vector<8x8xf32>
    %42 = arith.truncf %41 : vector<8x8xf32> to vector<8x8xbf16>
    %cst_23 = arith.constant dense<0.000000e+00> : vector<8x8xf32>
    %43 = tpu.matmul %38, %40, %cst_23 {dimension_numbers = #tpu.dot_dimension_numbers<[1], [1], [0], [0], [0, 0, 1, 0], [], []>} : vector<8x8xbf16>, vector<8x8xbf16>, vector<8x8xf32> -> vector<8x8xf32>
    %cst_24 = arith.constant dense<0xFF800000> : vector<8xf32>
    %44 = vector.multi_reduction <maximumf>, %43, %cst_24 [1] : vector<8x8xf32> to vector<8xf32>
    %45 = vector.shape_cast %44 : vector<8xf32> to vector<8x1xf32>
    %46 = vector.broadcast %45 : vector<8x1xf32> to vector<8x8xf32>
    %47 = arith.subf %43, %46 : vector<8x8xf32>
    %48 = math.exp %47 : vector<8x8xf32>
    %cst_25 = arith.constant dense<0.000000e+00> : vector<8xf32>
    %49 = vector.multi_reduction <add>, %48, %cst_25 [1] : vector<8x8xf32> to vector<8xf32>
    %50 = vector.shape_cast %49 : vector<8xf32> to vector<8x1xf32>
    %51 = tpu.reciprocal %50 {approx = true} : vector<8x1xf32> -> vector<8x1xf32>
    %52 = vector.broadcast %51 : vector<8x1xf32> to vector<8x8xf32>
    %53 = arith.mulf %48, %52 : vector<8x8xf32>
    %54 = arith.truncf %53 : vector<8x8xf32> to vector<8x8xbf16>
    %cst_26 = arith.constant dense<0.000000e+00> : vector<8x8xf32>
    %55 = tpu.matmul %54, %42, %cst_26 {dimension_numbers = #tpu.dot_dimension_numbers<[1], [0], [0], [1], [0, 0, 1, 1], [], []>} : vector<8x8xbf16>, vector<8x8xbf16>, vector<8x8xf32> -> vector<8x8xf32>
    %56 = arith.truncf %55 : vector<8x8xf32> to vector<8x8xbf16>
    %57 = vector.extract_strided_slice %14 {offsets = [8, 0], sizes = [8, 32], strides = [1, 1]} : vector<32x32xbf16> to vector<8x32xbf16>
    %cst_27 = arith.constant dense<0.000000e+00> : vector<8x32xf32>
    %58 = tpu.matmul %56, %57, %cst_27 {dimension_numbers = #tpu.dot_dimension_numbers<[1], [0], [0], [1], [0, 0, 1, 1], [], []>} : vector<8x8xbf16>, vector<8x32xbf16>, vector<8x32xf32> -> vector<8x32xf32>
    %59 = arith.addf %36, %58 : vector<8x32xf32>
    %60 = vector.extract_strided_slice %8 {offsets = [0, 16], sizes = [8, 8], strides = [1, 1]} : vector<8x32xf32> to vector<8x8xf32>
    %61 = arith.truncf %60 : vector<8x8xf32> to vector<8x8xbf16>
    %62 = vector.extract_strided_slice %13 {offsets = [0, 16], sizes = [8, 8], strides = [1, 1]} : vector<8x64xf32> to vector<8x8xf32>
    %63 = arith.truncf %62 : vector<8x8xf32> to vector<8x8xbf16>
    %64 = vector.extract_strided_slice %13 {offsets = [0, 48], sizes = [8, 8], strides = [1, 1]} : vector<8x64xf32> to vector<8x8xf32>
    %65 = arith.truncf %64 : vector<8x8xf32> to vector<8x8xbf16>
    %cst_28 = arith.constant dense<0.000000e+00> : vector<8x8xf32>
    %66 = tpu.matmul %61, %63, %cst_28 {dimension_numbers = #tpu.dot_dimension_numbers<[1], [1], [0], [0], [0, 0, 1, 0], [], []>} : vector<8x8xbf16>, vector<8x8xbf16>, vector<8x8xf32> -> vector<8x8xf32>
    %cst_29 = arith.constant dense<0xFF800000> : vector<8xf32>
    %67 = vector.multi_reduction <maximumf>, %66, %cst_29 [1] : vector<8x8xf32> to vector<8xf32>
    %68 = vector.shape_cast %67 : vector<8xf32> to vector<8x1xf32>
    %69 = vector.broadcast %68 : vector<8x1xf32> to vector<8x8xf32>
    %70 = arith.subf %66, %69 : vector<8x8xf32>
    %71 = math.exp %70 : vector<8x8xf32>
    %cst_30 = arith.constant dense<0.000000e+00> : vector<8xf32>
    %72 = vector.multi_reduction <add>, %71, %cst_30 [1] : vector<8x8xf32> to vector<8xf32>
    %73 = vector.shape_cast %72 : vector<8xf32> to vector<8x1xf32>
    %74 = tpu.reciprocal %73 {approx = true} : vector<8x1xf32> -> vector<8x1xf32>
    %75 = vector.broadcast %74 : vector<8x1xf32> to vector<8x8xf32>
    %76 = arith.mulf %71, %75 : vector<8x8xf32>
    %77 = arith.truncf %76 : vector<8x8xf32> to vector<8x8xbf16>
    %cst_31 = arith.constant dense<0.000000e+00> : vector<8x8xf32>
    %78 = tpu.matmul %77, %65, %cst_31 {dimension_numbers = #tpu.dot_dimension_numbers<[1], [0], [0], [1], [0, 0, 1, 1], [], []>} : vector<8x8xbf16>, vector<8x8xbf16>, vector<8x8xf32> -> vector<8x8xf32>
    %79 = arith.truncf %78 : vector<8x8xf32> to vector<8x8xbf16>
    %80 = vector.extract_strided_slice %14 {offsets = [16, 0], sizes = [8, 32], strides = [1, 1]} : vector<32x32xbf16> to vector<8x32xbf16>
    %cst_32 = arith.constant dense<0.000000e+00> : vector<8x32xf32>
    %81 = tpu.matmul %79, %80, %cst_32 {dimension_numbers = #tpu.dot_dimension_numbers<[1], [0], [0], [1], [0, 0, 1, 1], [], []>} : vector<8x8xbf16>, vector<8x32xbf16>, vector<8x32xf32> -> vector<8x32xf32>
    %82 = arith.addf %59, %81 : vector<8x32xf32>
    %83 = vector.extract_strided_slice %8 {offsets = [0, 24], sizes = [8, 8], strides = [1, 1]} : vector<8x32xf32> to vector<8x8xf32>
    %84 = arith.truncf %83 : vector<8x8xf32> to vector<8x8xbf16>
    %85 = vector.extract_strided_slice %13 {offsets = [0, 24], sizes = [8, 8], strides = [1, 1]} : vector<8x64xf32> to vector<8x8xf32>
    %86 = arith.truncf %85 : vector<8x8xf32> to vector<8x8xbf16>
    %87 = vector.extract_strided_slice %13 {offsets = [0, 56], sizes = [8, 8], strides = [1, 1]} : vector<8x64xf32> to vector<8x8xf32>
    %88 = arith.truncf %87 : vector<8x8xf32> to vector<8x8xbf16>
    %cst_33 = arith.constant dense<0.000000e+00> : vector<8x8xf32>
    %89 = tpu.matmul %84, %86, %cst_33 {dimension_numbers = #tpu.dot_dimension_numbers<[1], [1], [0], [0], [0, 0, 1, 0], [], []>} : vector<8x8xbf16>, vector<8x8xbf16>, vector<8x8xf32> -> vector<8x8xf32>
    %cst_34 = arith.constant dense<0xFF800000> : vector<8xf32>
    %90 = vector.multi_reduction <maximumf>, %89, %cst_34 [1] : vector<8x8xf32> to vector<8xf32>
    %91 = vector.shape_cast %90 : vector<8xf32> to vector<8x1xf32>
    %92 = vector.broadcast %91 : vector<8x1xf32> to vector<8x8xf32>
    %93 = arith.subf %89, %92 : vector<8x8xf32>
    %94 = math.exp %93 : vector<8x8xf32>
    %cst_35 = arith.constant dense<0.000000e+00> : vector<8xf32>
    %95 = vector.multi_reduction <add>, %94, %cst_35 [1] : vector<8x8xf32> to vector<8xf32>
    %96 = vector.shape_cast %95 : vector<8xf32> to vector<8x1xf32>
    %97 = tpu.reciprocal %96 {approx = true} : vector<8x1xf32> -> vector<8x1xf32>
    %98 = vector.broadcast %97 : vector<8x1xf32> to vector<8x8xf32>
    %99 = arith.mulf %94, %98 : vector<8x8xf32>
    %100 = arith.truncf %99 : vector<8x8xf32> to vector<8x8xbf16>
    %cst_36 = arith.constant dense<0.000000e+00> : vector<8x8xf32>
    %101 = tpu.matmul %100, %88, %cst_36 {dimension_numbers = #tpu.dot_dimension_numbers<[1], [0], [0], [1], [0, 0, 1, 1], [], []>} : vector<8x8xbf16>, vector<8x8xbf16>, vector<8x8xf32> -> vector<8x8xf32>
    %102 = arith.truncf %101 : vector<8x8xf32> to vector<8x8xbf16>
    %103 = vector.extract_strided_slice %14 {offsets = [24, 0], sizes = [8, 32], strides = [1, 1]} : vector<32x32xbf16> to vector<8x32xbf16>
    %cst_37 = arith.constant dense<0.000000e+00> : vector<8x32xf32>
    %104 = tpu.matmul %102, %103, %cst_37 {dimension_numbers = #tpu.dot_dimension_numbers<[1], [0], [0], [1], [0, 0, 1, 1], [], []>} : vector<8x8xbf16>, vector<8x32xbf16>, vector<8x32xf32> -> vector<8x32xf32>
    %105 = arith.addf %82, %104 : vector<8x32xf32>
    %c0_38 = arith.constant 0 : index
    %c0_39 = arith.constant 0 : index
    %106 = vector.load %arg10[%c0_38, %c0_39] : memref<1x32xf32, #tpu.memory_space<vmem>>, vector<1x32xf32>
    %107 = vector.broadcast %106 : vector<1x32xf32> to vector<8x32xf32>
    %108 = arith.addf %105, %107 : vector<8x32xf32>
    %109 = arith.truncf %108 : vector<8x32xf32> to vector<8x32xbf16>
    %c0_40 = arith.constant 0 : index
    %c0_41 = arith.constant 0 : index
    %c0_42 = arith.constant 0 : index
    %c0_43 = arith.constant 0 : index
    %110 = vector.load %arg11[%c0_40, %c0_41, %c0_42, %c0_43] : memref<1x1x8x32xbf16, #tpu.memory_space<vmem>>, vector<1x1x8x32xbf16>
    %111 = vector.shape_cast %110 : vector<1x1x8x32xbf16> to vector<8x32xbf16>
    %112 = vector.shape_cast %109 : vector<8x32xbf16> to vector<1x1x8x32xbf16>
    tpu.vector_store %arg11[%c0_40, %c0_41, %c0_42, %c0_43], %112 {strides = array<i32>} : memref<1x1x8x32xbf16, #tpu.memory_space<vmem>>, vector<1x1x8x32xbf16>,
    return
  }
  func.func @transform_0(%arg0: i32, %arg1: i32, %arg2: i32) -> (i32, i32, i32, i32) {
    %c0_i32 = arith.constant 0 : i32
    %c0_i32_0 = arith.constant 0 : i32
    return %arg0, %arg1, %arg2, %c0_i32 : i32, i32, i32, i32
  }
  func.func @transform_1(%arg0: i32, %arg1: i32, %arg2: i32) -> (i32, i32, i32, i32) {
    %c0_i32 = arith.constant 0 : i32
    %c0_i32_0 = arith.constant 0 : i32
    %c0_i32_1 = arith.constant 0 : i32
    return %arg0, %arg1, %c0_i32, %c0_i32_0 : i32, i32, i32, i32
  }
  func.func @transform_2(%arg0: i32, %arg1: i32, %arg2: i32) -> (i32, i32) {
    %c0_i32 = arith.constant 0 : i32
    %c0_i32_0 = arith.constant 0 : i32
    %c0_i32_1 = arith.constant 0 : i32
    return %c0_i32, %c0_i32_0 : i32, i32
  }
  func.func @transform_3(%arg0: i32, %arg1: i32, %arg2: i32) -> (i32, i32) {
    %c0_i32 = arith.constant 0 : i32
    %c0_i32_0 = arith.constant 0 : i32
    %c0_i32_1 = arith.constant 0 : i32
    return %c0_i32, %c0_i32_0 : i32, i32
  }
  func.func @transform_4(%arg0: i32, %arg1: i32, %arg2: i32) -> (i32, i32) {
    %c0_i32 = arith.constant 0 : i32
    %c0_i32_0 = arith.constant 0 : i32
    %c0_i32_1 = arith.constant 0 : i32
    return %c0_i32, %c0_i32_0 : i32, i32
  }
  func.func @transform_5(%arg0: i32, %arg1: i32, %arg2: i32) -> (i32, i32) {
    %c0_i32 = arith.constant 0 : i32
    %c0_i32_0 = arith.constant 0 : i32
    %c0_i32_1 = arith.constant 0 : i32
    return %c0_i32, %c0_i32_0 : i32, i32
  }
  func.func @transform_6(%arg0: i32, %arg1: i32, %arg2: i32) -> (i32, i32) {
    %c0_i32 = arith.constant 0 : i32
    %c0_i32_0 = arith.constant 0 : i32
    %c0_i32_1 = arith.constant 0 : i32
    return %c0_i32, %c0_i32_0 : i32, i32
  }
  func.func @transform_7(%arg0: i32, %arg1: i32, %arg2: i32) -> (i32, i32) {
    %c0_i32 = arith.constant 0 : i32
    %c0_i32_0 = arith.constant 0 : i32
    %c0_i32_1 = arith.constant 0 : i32
    return %c0_i32, %c0_i32_0 : i32, i32
  }
  func.func @transform_8(%arg0: i32, %arg1: i32, %arg2: i32) -> (i32, i32, i32, i32) {
    %c0_i32 = arith.constant 0 : i32
    %c0_i32_0 = arith.constant 0 : i32
    return %arg0, %arg1, %arg2, %c0_i32 : i32, i32, i32, i32
  }
}

module attributes {stable_mosaic.version = 11 : i64} {
  func.func @_mha_kernel(%arg0: i32, %arg1: i32, %arg2: i32, %arg3: memref<1x1x8x32xbf16, #tpu.memory_space<vmem>>, %arg4: memref<1x1x8x32xbf16, #tpu.memory_space<vmem>>, %arg5: memref<32x32xbf16, #tpu.memory_space<vmem>>, %arg6: memref<1x32xf32, #tpu.memory_space<vmem>>, %arg7: memref<32x64xbf16, #tpu.memory_space<vmem>>, %arg8: memref<1x64xf32, #tpu.memory_space<vmem>>, %arg9: memref<32x32xbf16, #tpu.memory_space<vmem>>, %arg10: memref<1x32xf32, #tpu.memory_space<vmem>>, %arg11: memref<1x1x8x32xbf16, #tpu.memory_space<vmem>>) attributes {dimension_semantics = [#tpu.dimension_semantics<parallel>, #tpu.dimension_semantics<parallel>, #tpu.dimension_semantics<parallel>], iteration_bounds = array<i64: 2, 2, 1>, scalar_prefetch = 0 : i64, scratch_operands = 0 : i64, tpu.core_type = #tpu.core_type<tc>, window_params = [{transform_indices = @transform_0, window_bounds = array<i64: 1, 1, 8, 32>}, {transform_indices = @transform_1, window_bounds = array<i64: 1, 1, 8, 32>}, {pipeline_mode = #tpu.pipeline_mode<synchronous>, transform_indices = @transform_2, window_bounds = array<i64: 32, 32>}, {pipeline_mode = #tpu.pipeline_mode<synchronous>, transform_indices = @transform_3, window_bounds = array<i64: 1, 32>}, {pipeline_mode = #tpu.pipeline_mode<synchronous>, transform_indices = @transform_4, window_bounds = array<i64: 32, 64>}, {pipeline_mode = #tpu.pipeline_mode<synchronous>, transform_indices = @transform_5, window_bounds = array<i64: 1, 64>}, {pipeline_mode = #tpu.pipeline_mode<synchronous>, transform_indices = @transform_6, window_bounds = array<i64: 32, 32>}, {pipeline_mode = #tpu.pipeline_mode<synchronous>, transform_indices = @transform_7, window_bounds = array<i64: 1, 32>}, {transform_indices = @transform_8, window_bounds = array<i64: 1, 1, 8, 32>}]} {
    %c0 = arith.constant 0 : index
    %c0_0 = arith.constant 0 : index
    %c0_1 = arith.constant 0 : index
    %c0_2 = arith.constant 0 : index
    %0 = vector.load %arg3[%c0, %c0_0, %c0_1, %c0_2] : memref<1x1x8x32xbf16, #tpu.memory_space<vmem>>, vector<1x1x8x32xbf16>
    %1 = vector.shape_cast %0 : vector<1x1x8x32xbf16> to vector<8x32xbf16>
    %c0_3 = arith.constant 0 : index
    %c0_4 = arith.constant 0 : index
    %c0_5 = arith.constant 0 : index
    %c0_6 = arith.constant 0 : index
    %2 = vector.load %arg4[%c0_3, %c0_4, %c0_5, %c0_6] : memref<1x1x8x32xbf16, #tpu.memory_space<vmem>>, vector<1x1x8x32xbf16>
    %3 = vector.shape_cast %2 : vector<1x1x8x32xbf16> to vector<8x32xbf16>
    %c0_7 = arith.constant 0 : index
    %c0_8 = arith.constant 0 : index
    %4 = vector.load %arg5[%c0_7, %c0_8] : memref<32x32xbf16, #tpu.memory_space<vmem>>, vector<32x32xbf16>
    %cst = arith.constant dense<0.000000e+00> : vector<8x32xf32>
    %5 = tpu.matmul %1, %4, %cst {dimension_numbers = #tpu.dot_dimension_numbers<[1], [0], [0], [1], [0, 0, 1, 1], [], []>} : vector<8x32xbf16>, vector<32x32xbf16>, vector<8x32xf32> -> vector<8x32xf32>
    %c0_9 = arith.constant 0 : index
    %c0_10 = arith.constant 0 : index
    %6 = vector.load %arg6[%c0_9, %c0_10] : memref<1x32xf32, #tpu.memory_space<vmem>>, vector<1x32xf32>
    %7 = vector.broadcast %6 : vector<1x32xf32> to vector<8x32xf32>
    %8 = arith.addf %5, %7 : vector<8x32xf32>
    %c0_11 = arith.constant 0 : index
    %c0_12 = arith.constant 0 : index
    %9 = vector.load %arg7[%c0_11, %c0_12] : memref<32x64xbf16, #tpu.memory_space<vmem>>, vector<32x64xbf16>
    %cst_13 = arith.constant dense<0.000000e+00> : vector<8x64xf32>
    %10 = tpu.matmul %3, %9, %cst_13 {dimension_numbers = #tpu.dot_dimension_numbers<[1], [0], [0], [1], [0, 0, 1, 1], [], []>} : vector<8x32xbf16>, vector<32x64xbf16>, vector<8x64xf32> -> vector<8x64xf32>
    %c0_14 = arith.constant 0 : index
    %c0_15 = arith.constant 0 : index
    %11 = vector.load %arg8[%c0_14, %c0_15] : memref<1x64xf32, #tpu.memory_space<vmem>>, vector<1x64xf32>
    %12 = vector.broadcast %11 : vector<1x64xf32> to vector<8x64xf32>
    %13 = arith.addf %10, %12 : vector<8x64xf32>
    %c0_16 = arith.constant 0 : index
    %c0_17 = arith.constant 0 : index
    %14 = vector.load %arg9[%c0_16, %c0_17] : memref<32x32xbf16, #tpu.memory_space<vmem>>, vector<32x32xbf16>
    %15 = vector.extract_strided_slice %8 {offsets = [0, 0], sizes = [8, 8], strides = [1, 1]} : vector<8x32xf32> to vector<8x8xf32>
    %16 = arith.truncf %15 : vector<8x8xf32> to vector<8x8xbf16>
    %17 = vector.extract_strided_slice %13 {offsets = [0, 0], sizes = [8, 8], strides = [1, 1]} : vector<8x64xf32> to vector<8x8xf32>
    %18 = arith.truncf %17 : vector<8x8xf32> to vector<8x8xbf16>
    %19 = vector.extract_strided_slice %13 {offsets = [0, 32], sizes = [8, 8], strides = [1, 1]} : vector<8x64xf32> to vector<8x8xf32>
    %20 = arith.truncf %19 : vector<8x8xf32> to vector<8x8xbf16>
    %cst_18 = arith.constant dense<0.000000e+00> : vector<8x8xf32>
    %21 = tpu.matmul %16, %18, %cst_18 {dimension_numbers = #tpu.dot_dimension_numbers<[1], [1], [0], [0], [0, 0, 1, 0], [], []>} : vector<8x8xbf16>, vector<8x8xbf16>, vector<8x8xf32> -> vector<8x8xf32>
    %cst_19 = arith.constant dense<0xFF800000> : vector<8xf32>
    %22 = vector.multi_reduction <maximumf>, %21, %cst_19 [1] : vector<8x8xf32> to vector<8xf32>
    %23 = vector.shape_cast %22 : vector<8xf32> to vector<8x1xf32>
    %24 = vector.broadcast %23 : vector<8x1xf32> to vector<8x8xf32>
    %25 = arith.subf %21, %24 : vector<8x8xf32>
    %26 = math.exp %25 : vector<8x8xf32>
    %cst_20 = arith.constant dense<0.000000e+00> : vector<8xf32>
    %27 = vector.multi_reduction <add>, %26, %cst_20 [1] : vector<8x8xf32> to vector<8xf32>
    %28 = vector.shape_cast %27 : vector<8xf32> to vector<8x1xf32>
    %29 = tpu.reciprocal %28 {approx = true} : vector<8x1xf32> -> vector<8x1xf32>
    %30 = vector.broadcast %29 : vector<8x1xf32> to vector<8x8xf32>
    %31 = arith.mulf %26, %30 : vector<8x8xf32>
    %32 = arith.truncf %31 : vector<8x8xf32> to vector<8x8xbf16>
    %cst_21 = arith.constant dense<0.000000e+00> : vector<8x8xf32>
    %33 = tpu.matmul %32, %20, %cst_21 {dimension_numbers = #tpu.dot_dimension_numbers<[1], [0], [0], [1], [0, 0, 1, 1], [], []>} : vector<8x8xbf16>, vector<8x8xbf16>, vector<8x8xf32> -> vector<8x8xf32>
    %34 = arith.truncf %33 : vector<8x8xf32> to vector<8x8xbf16>
    %35 = vector.extract_strided_slice %14 {offsets = [0, 0], sizes = [8, 32], strides = [1, 1]} : vector<32x32xbf16> to vector<8x32xbf16>
    %cst_22 = arith.constant dense<0.000000e+00> : vector<8x32xf32>
    %36 = tpu.matmul %34, %35, %cst_22 {dimension_numbers = #tpu.dot_dimension_numbers<[1], [0], [0], [1], [0, 0, 1, 1], [], []>} : vector<8x8xbf16>, vector<8x32xbf16>, vector<8x32xf32> -> vector<8x32xf32>
    %37 = vector.extract_strided_slice %8 {offsets = [0, 8], sizes = [8, 8], strides = [1, 1]} : vector<8x32xf32> to vector<8x8xf32>
    %38 = arith.truncf %37 : vector<8x8xf32> to vector<8x8xbf16>
    %39 = vector.extract_strided_slice %13 {offsets = [0, 8], sizes = [8, 8], strides = [1, 1]} : vector<8x64xf32> to vector<8x8xf32>
    %40 = arith.truncf %39 : vector<8x8xf32> to vector<8x8xbf16>
    %41 = vector.extract_strided_slice %13 {offsets = [0, 40], sizes = [8, 8], strides = [1, 1]} : vector<8x64xf32> to vector<8x8xf32>
    %42 = arith.truncf %41 : vector<8x8xf32> to vector<8x8xbf16>
    %cst_23 = arith.constant dense<0.000000e+00> : vector<8x8xf32>
    %43 = tpu.matmul %38, %40, %cst_23 {dimension_numbers = #tpu.dot_dimension_numbers<[1], [1], [0], [0], [0, 0, 1, 0], [], []>} : vector<8x8xbf16>, vector<8x8xbf16>, vector<8x8xf32> -> vector<8x8xf32>
    %cst_24 = arith.constant dense<0xFF800000> : vector<8xf32>
    %44 = vector.multi_reduction <maximumf>, %43, %cst_24 [1] : vector<8x8xf32> to vector<8xf32>
    %45 = vector.shape_cast %44 : vector<8xf32> to vector<8x1xf32>
    %46 = vector.broadcast %45 : vector<8x1xf32> to vector<8x8xf32>
    %47 = arith.subf %43, %46 : vector<8x8xf32>
    %48 = math.exp %47 : vector<8x8xf32>
    %cst_25 = arith.constant dense<0.000000e+00> : vector<8xf32>
    %49 = vector.multi_reduction <add>, %48, %cst_25 [1] : vector<8x8xf32> to vector<8xf32>
    %50 = vector.shape_cast %49 : vector<8xf32> to vector<8x1xf32>
    %51 = tpu.reciprocal %50 {approx = true} : vector<8x1xf32> -> vector<8x1xf32>
    %52 = vector.broadcast %51 : vector<8x1xf32> to vector<8x8xf32>
    %53 = arith.mulf %48, %52 : vector<8x8xf32>
    %54 = arith.truncf %53 : vector<8x8xf32> to vector<8x8xbf16>
    %cst_26 = arith.constant dense<0.000000e+00> : vector<8x8xf32>
    %55 = tpu.matmul %54, %42, %cst_26 {dimension_numbers = #tpu.dot_dimension_numbers<[1], [0], [0], [1], [0, 0, 1, 1], [], []>} : vector<8x8xbf16>, vector<8x8xbf16>, vector<8x8xf32> -> vector<8x8xf32>
    %56 = arith.truncf %55 : vector<8x8xf32> to vector<8x8xbf16>
    %57 = vector.extract_strided_slice %14 {offsets = [8, 0], sizes = [8, 32], strides = [1, 1]} : vector<32x32xbf16> to vector<8x32xbf16>
    %cst_27 = arith.constant dense<0.000000e+00> : vector<8x32xf32>
    %58 = tpu.matmul %56, %57, %cst_27 {dimension_numbers = #tpu.dot_dimension_numbers<[1], [0], [0], [1], [0, 0, 1, 1], [], []>} : vector<8x8xbf16>, vector<8x32xbf16>, vector<8x32xf32> -> vector<8x32xf32>
    %59 = arith.addf %36, %58 : vector<8x32xf32>
    %60 = vector.extract_strided_slice %8 {offsets = [0, 16], sizes = [8, 8], strides = [1, 1]} : vector<8x32xf32> to vector<8x8xf32>
    %61 = arith.truncf %60 : vector<8x8xf32> to vector<8x8xbf16>
    %62 = vector.extract_strided_slice %13 {offsets = [0, 16], sizes = [8, 8], strides = [1, 1]} : vector<8x64xf32> to vector<8x8xf32>
    %63 = arith.truncf %62 : vector<8x8xf32> to vector<8x8xbf16>
    %64 = vector.extract_strided_slice %13 {offsets = [0, 48], sizes = [8, 8], strides = [1, 1]} : vector<8x64xf32> to vector<8x8xf32>
    %65 = arith.truncf %64 : vector<8x8xf32> to vector<8x8xbf16>
    %cst_28 = arith.constant dense<0.000000e+00> : vector<8x8xf32>
    %66 = tpu.matmul %61, %63, %cst_28 {dimension_numbers = #tpu.dot_dimension_numbers<[1], [1], [0], [0], [0, 0, 1, 0], [], []>} : vector<8x8xbf16>, vector<8x8xbf16>, vector<8x8xf32> -> vector<8x8xf32>
    %cst_29 = arith.constant dense<0xFF800000> : vector<8xf32>
    %67 = vector.multi_reduction <maximumf>, %66, %cst_29 [1] : vector<8x8xf32> to vector<8xf32>
    %68 = vector.shape_cast %67 : vector<8xf32> to vector<8x1xf32>
    %69 = vector.broadcast %68 : vector<8x1xf32> to vector<8x8xf32>
    %70 = arith.subf %66, %69 : vector<8x8xf32>
    %71 = math.exp %70 : vector<8x8xf32>
    %cst_30 = arith.constant dense<0.000000e+00> : vector<8xf32>
    %72 = vector.multi_reduction <add>, %71, %cst_30 [1] : vector<8x8xf32> to vector<8xf32>
    %73 = vector.shape_cast %72 : vector<8xf32> to vector<8x1xf32>
    %74 = tpu.reciprocal %73 {approx = true} : vector<8x1xf32> -> vector<8x1xf32>
    %75 = vector.broadcast %74 : vector<8x1xf32> to vector<8x8xf32>
    %76 = arith.mulf %71, %75 : vector<8x8xf32>
    %77 = arith.truncf %76 : vector<8x8xf32> to vector<8x8xbf16>
    %cst_31 = arith.constant dense<0.000000e+00> : vector<8x8xf32>
    %78 = tpu.matmul %77, %65, %cst_31 {dimension_numbers = #tpu.dot_dimension_numbers<[1], [0], [0], [1], [0, 0, 1, 1], [], []>} : vector<8x8xbf16>, vector<8x8xbf16>, vector<8x8xf32> -> vector<8x8xf32>
    %79 = arith.truncf %78 : vector<8x8xf32> to vector<8x8xbf16>
    %80 = vector.extract_strided_slice %14 {offsets = [16, 0], sizes = [8, 32], strides = [1, 1]} : vector<32x32xbf16> to vector<8x32xbf16>
    %cst_32 = arith.constant dense<0.000000e+00> : vector<8x32xf32>
    %81 = tpu.matmul %79, %80, %cst_32 {dimension_numbers = #tpu.dot_dimension_numbers<[1], [0], [0], [1], [0, 0, 1, 1], [], []>} : vector<8x8xbf16>, vector<8x32xbf16>, vector<8x32xf32> -> vector<8x32xf32>
    %82 = arith.addf %59, %81 : vector<8x32xf32>
    %83 = vector.extract_strided_slice %8 {offsets = [0, 24], sizes = [8, 8], strides = [1, 1]} : vector<8x32xf32> to vector<8x8xf32>
    %84 = arith.truncf %83 : vector<8x8xf32> to vector<8x8xbf16>
    %85 = vector.extract_strided_slice %13 {offsets = [0, 24], sizes = [8, 8], strides = [1, 1]} : vector<8x64xf32> to vector<8x8xf32>
    %86 = arith.truncf %85 : vector<8x8xf32> to vector<8x8xbf16>
    %87 = vector.extract_strided_slice %13 {offsets = [0, 56], sizes = [8, 8], strides = [1, 1]} : vector<8x64xf32> to vector<8x8xf32>
    %88 = arith.truncf %87 : vector<8x8xf32> to vector<8x8xbf16>
    %cst_33 = arith.constant dense<0.000000e+00> : vector<8x8xf32>
    %89 = tpu.matmul %84, %86, %cst_33 {dimension_numbers = #tpu.dot_dimension_numbers<[1], [1], [0], [0], [0, 0, 1, 0], [], []>} : vector<8x8xbf16>, vector<8x8xbf16>, vector<8x8xf32> -> vector<8x8xf32>
    %cst_34 = arith.constant dense<0xFF800000> : vector<8xf32>
    %90 = vector.multi_reduction <maximumf>, %89, %cst_34 [1] : vector<8x8xf32> to vector<8xf32>
    %91 = vector.shape_cast %90 : vector<8xf32> to vector<8x1xf32>
    %92 = vector.broadcast %91 : vector<8x1xf32> to vector<8x8xf32>
    %93 = arith.subf %89, %92 : vector<8x8xf32>
    %94 = math.exp %93 : vector<8x8xf32>
    %cst_35 = arith.constant dense<0.000000e+00> : vector<8xf32>
    %95 = vector.multi_reduction <add>, %94, %cst_35 [1] : vector<8x8xf32> to vector<8xf32>
    %96 = vector.shape_cast %95 : vector<8xf32> to vector<8x1xf32>
    %97 = tpu.reciprocal %96 {approx = true} : vector<8x1xf32> -> vector<8x1xf32>
    %98 = vector.broadcast %97 : vector<8x1xf32> to vector<8x8xf32>
    %99 = arith.mulf %94, %98 : vector<8x8xf32>
    %100 = arith.truncf %99 : vector<8x8xf32> to vector<8x8xbf16>
    %cst_36 = arith.constant dense<0.000000e+00> : vector<8x8xf32>
    %101 = tpu.matmul %100, %88, %cst_36 {dimension_numbers = #tpu.dot_dimension_numbers<[1], [0], [0], [1], [0, 0, 1, 1], [], []>} : vector<8x8xbf16>, vector<8x8xbf16>, vector<8x8xf32> -> vector<8x8xf32>
    %102 = arith.truncf %101 : vector<8x8xf32> to vector<8x8xbf16>
    %103 = vector.extract_strided_slice %14 {offsets = [24, 0], sizes = [8, 32], strides = [1, 1]} : vector<32x32xbf16> to vector<8x32xbf16>
    %cst_37 = arith.constant dense<0.000000e+00> : vector<8x32xf32>
    %104 = tpu.matmul %102, %103, %cst_37 {dimension_numbers = #tpu.dot_dimension_numbers<[1], [0], [0], [1], [0, 0, 1, 1], [], []>} : vector<8x8xbf16>, vector<8x32xbf16>, vector<8x32xf32> -> vector<8x32xf32>
    %105 = arith.addf %82, %104 : vector<8x32xf32>
    %c0_38 = arith.constant 0 : index
    %c0_39 = arith.constant 0 : index
    %106 = vector.load %arg10[%c0_38, %c0_39] : memref<1x32xf32, #tpu.memory_space<vmem>>, vector<1x32xf32>
    %107 = vector.broadcast %106 : vector<1x32xf32> to vector<8x32xf32>
    %108 = arith.addf %105, %107 : vector<8x32xf32>
    %109 = arith.truncf %108 : vector<8x32xf32> to vector<8x32xbf16>
    %c0_40 = arith.constant 0 : index
    %c0_41 = arith.constant 0 : index
    %c0_42 = arith.constant 0 : index
    %c0_43 = arith.constant 0 : index
    %110 = vector.load %arg11[%c0_40, %c0_41, %c0_42, %c0_43] : memref<1x1x8x32xbf16, #tpu.memory_space<vmem>>, vector<1x1x8x32xbf16>
    %111 = vector.shape_cast %110 : vector<1x1x8x32xbf16> to vector<8x32xbf16>
    %112 = vector.shape_cast %109 : vector<8x32xbf16> to vector<1x1x8x32xbf16>
    tpu.vector_store %arg11[%c0_40, %c0_41, %c0_42, %c0_43], %112 {strides = array<i32>} : memref<1x1x8x32xbf16, #tpu.memory_space<vmem>>, vector<1x1x8x32xbf16>,
    return
  }
  func.func @transform_0(%arg0: i32, %arg1: i32, %arg2: i32) -> (i32, i32, i32, i32) {
    %c0_i32 = arith.constant 0 : i32
    %c0_i32_0 = arith.constant 0 : i32
    return %arg0, %arg1, %arg2, %c0_i32 : i32, i32, i32, i32
  }
  func.func @transform_1(%arg0: i32, %arg1: i32, %arg2: i32) -> (i32, i32, i32, i32) {
    %c1_i32 = arith.constant 1 : i32
    %0 = arith.subi %c1_i32, %arg0 : i32
    %c0_i32 = arith.constant 0 : i32
    %c0_i32_0 = arith.constant 0 : i32
    %c0_i32_1 = arith.constant 0 : i32
    return %0, %arg1, %c0_i32, %c0_i32_0 : i32, i32, i32, i32
  }
  func.func @transform_2(%arg0: i32, %arg1: i32, %arg2: i32) -> (i32, i32) {
    %c0_i32 = arith.constant 0 : i32
    %c0_i32_0 = arith.constant 0 : i32
    %c0_i32_1 = arith.constant 0 : i32
    return %c0_i32, %c0_i32_0 : i32, i32
  }
  func.func @transform_3(%arg0: i32, %arg1: i32, %arg2: i32) -> (i32, i32) {
    %c0_i32 = arith.constant 0 : i32
    %c0_i32_0 = arith.constant 0 : i32
    %c0_i32_1 = arith.constant 0 : i32
    return %c0_i32, %c0_i32_0 : i32, i32
  }
  func.func @transform_4(%arg0: i32, %arg1: i32, %arg2: i32) -> (i32, i32) {
    %c0_i32 = arith.constant 0 : i32
    %c0_i32_0 = arith.constant 0 : i32
    %c0_i32_1 = arith.constant 0 : i32
    return %c0_i32, %c0_i32_0 : i32, i32
  }
  func.func @transform_5(%arg0: i32, %arg1: i32, %arg2: i32) -> (i32, i32) {
    %c0_i32 = arith.constant 0 : i32
    %c0_i32_0 = arith.constant 0 : i32
    %c0_i32_1 = arith.constant 0 : i32
    return %c0_i32, %c0_i32_0 : i32, i32
  }
  func.func @transform_6(%arg0: i32, %arg1: i32, %arg2: i32) -> (i32, i32) {
    %c0_i32 = arith.constant 0 : i32
    %c0_i32_0 = arith.constant 0 : i32
    %c0_i32_1 = arith.constant 0 : i32
    return %c0_i32, %c0_i32_0 : i32, i32
  }
  func.func @transform_7(%arg0: i32, %arg1: i32, %arg2: i32) -> (i32, i32) {
    %c0_i32 = arith.constant 0 : i32
    %c0_i32_0 = arith.constant 0 : i32
    %c0_i32_1 = arith.constant 0 : i32
    return %c0_i32, %c0_i32_0 : i32, i32
  }
  func.func @transform_8(%arg0: i32, %arg1: i32, %arg2: i32) -> (i32, i32, i32, i32) {
    %c0_i32 = arith.constant 0 : i32
    %c0_i32_0 = arith.constant 0 : i32
    return %arg0, %arg1, %arg2, %c0_i32 : i32, i32, i32, i32
  }
}

module attributes {stable_mosaic.version = 11 : i64} {
  func.func @_mlp_kernel(%arg0: i32, %arg1: i32, %arg2: i32, %arg3: memref<1x16x32xf32, #tpu.memory_space<vmem>>, %arg4: memref<1x16x32xbf16, #tpu.memory_space<vmem>>, %arg5: memref<32x64xbf16, #tpu.memory_space<vmem>>, %arg6: memref<32x64xbf16, #tpu.memory_space<vmem>>, %arg7: memref<1x64xf32, #tpu.memory_space<vmem>>, %arg8: memref<1x64xf32, #tpu.memory_space<vmem>>, %arg9: memref<1x64xf32, #tpu.memory_space<vmem>>, %arg10: memref<64x32xbf16, #tpu.memory_space<vmem>>, %arg11: memref<1x32xf32, #tpu.memory_space<vmem>>, %arg12: memref<1x16x32xf32, #tpu.memory_space<vmem>>, %arg13: memref<1x16x32xbf16, #tpu.memory_space<vmem>>, %arg14: memref<1x64xf32, #tpu.memory_space<vmem>>, %arg15: memref<1x64xf32, #tpu.memory_space<vmem>>) attributes {dimension_semantics = [#tpu.dimension_semantics<parallel>, #tpu.dimension_semantics<arbitrary>, #tpu.dimension_semantics<arbitrary>], iteration_bounds = array<i64: 2, 2, 1>, scalar_prefetch = 0 : i64, scratch_operands = 2 : i64, tpu.core_type = #tpu.core_type<tc>, window_params = [{transform_indices = @transform_0, window_bounds = array<i64: 1, 16, 32>}, {transform_indices = @transform_1, window_bounds = array<i64: 1, 16, 32>}, {pipeline_mode = #tpu.pipeline_mode<synchronous>, transform_indices = @transform_2, window_bounds = array<i64: 32, 64>}, {pipeline_mode = #tpu.pipeline_mode<synchronous>, transform_indices = @transform_3, window_bounds = array<i64: 32, 64>}, {pipeline_mode = #tpu.pipeline_mode<synchronous>, transform_indices = @transform_4, window_bounds = array<i64: 1, 64>}, {pipeline_mode = #tpu.pipeline_mode<synchronous>, transform_indices = @transform_5, window_bounds = array<i64: 1, 64>}, {pipeline_mode = #tpu.pipeline_mode<synchronous>, transform_indices = @transform_6, window_bounds = array<i64: 1, 64>}, {pipeline_mode = #tpu.pipeline_mode<synchronous>, transform_indices = @transform_7, window_bounds = array<i64: 64, 32>}, {pipeline_mode = #tpu.pipeline_mode<synchronous>, transform_indices = @transform_8, window_bounds = array<i64: 1, 32>}, {transform_indices = @transform_9, window_bounds = array<i64: 1, 16, 32>}, {transform_indices = @transform_10, window_bounds = array<i64: 1, 16, 32>}]} {
    %c0 = arith.constant 0 : index
    %c0_0 = arith.constant 0 : index
    %c0_1 = arith.constant 0 : index
    %0 = vector.load %arg3[%c0, %c0_0, %c0_1] : memref<1x16x32xf32, #tpu.memory_space<vmem>>, vector<1x16x32xf32>
    %1 = vector.shape_cast %0 : vector<1x16x32xf32> to vector<16x32xf32>
    %2 = arith.truncf %1 : vector<16x32xf32> to vector<16x32xbf16>
    %c0_2 = arith.constant 0 : index
    %c0_3 = arith.constant 0 : index
    %3 = vector.load %arg5[%c0_2, %c0_3] : memref<32x64xbf16, #tpu.memory_space<vmem>>, vector<32x64xbf16>
    %cst = arith.constant dense<0.000000e+00> : vector<16x64xf32>
    %4 = tpu.matmul %2, %3, %cst {dimension_numbers = #tpu.dot_dimension_numbers<[1], [0], [0], [1], [0, 0, 1, 1], [], []>} : vector<16x32xbf16>, vector<32x64xbf16>, vector<16x64xf32> -> vector<16x64xf32>
    %c0_4 = arith.constant 0 : index
    %c0_5 = arith.constant 0 : index
    %c0_6 = arith.constant 0 : index
    %5 = vector.load %arg4[%c0_4, %c0_5, %c0_6] : memref<1x16x32xbf16, #tpu.memory_space<vmem>>, vector<1x16x32xbf16>
    %6 = vector.shape_cast %5 : vector<1x16x32xbf16> to vector<16x32xbf16>
    %c0_7 = arith.constant 0 : index
    %c0_8 = arith.constant 0 : index
    %7 = vector.load %arg6[%c0_7, %c0_8] : memref<32x64xbf16, #tpu.memory_space<vmem>>, vector<32x64xbf16>
    %cst_9 = arith.constant dense<0.000000e+00> : vector<16x64xf32>
    %8 = tpu.matmul %6, %7, %cst_9 {dimension_numbers = #tpu.dot_dimension_numbers<[1], [0], [0], [1], [0, 0, 1, 1], [], []>} : vector<16x32xbf16>, vector<32x64xbf16>, vector<16x64xf32> -> vector<16x64xf32>
    %9 = arith.addf %4, %8 : vector<16x64xf32>
    %c0_10 = arith.constant 0 : index
    %c0_11 = arith.constant 0 : index
    %10 = vector.load %arg7[%c0_10, %c0_11] : memref<1x64xf32, #tpu.memory_space<vmem>>, vector<1x64xf32>
    %11 = vector.broadcast %10 : vector<1x64xf32> to vector<16x64xf32>
    %12 = arith.addf %9, %11 : vector<16x64xf32>
    %c0_i32 = arith.constant 0 : i32
    %13 = arith.cmpi eq, %arg1, %c0_i32 : i32
    %c0_i32_12 = arith.constant 0 : i32
    %14 = arith.cmpi eq, %arg2, %c0_i32_12 : i32
    %15 = arith.andi %13, %14 : i1
    %16 = arith.extui %15 : i1 to i32
    %c0_i32_13 = arith.constant 0 : i32
    %17 = arith.cmpi ne, %16, %c0_i32_13 : i32
    scf.if %17 {
      %cst_17 = arith.constant 0.000000e+00 : f32
      %24 = vector.broadcast %cst_17 : f32 to vector<1x64xf32>
      %c0_18 = arith.constant 0 : index
      %c0_19 = arith.constant 0 : index
      %25 = vector.load %arg14[%c0_18, %c0_19] : memref<1x64xf32, #tpu.memory_space<vmem>>, vector<1x64xf32>
      tpu.vector_store %arg14[%c0_18, %c0_19], %24 {strides = array<i32>} : memref<1x64xf32, #tpu.memory_space<vmem>>, vector<1x64xf32>,
      %cst_20 = arith.constant 0.000000e+00 : f32
      %26 = vector.broadcast %cst_20 : f32 to vector<1x64xf32>
      %c0_21 = arith.constant 0 : index
      %c0_22 = arith.constant 0 : index
      %27 = vector.load %arg15[%c0_21, %c0_22] : memref<1x64xf32, #tpu.memory_space<vmem>>, vector<1x64xf32>
      tpu.vector_store %arg15[%c0_21, %c0_22], %26 {strides = array<i32>} : memref<1x64xf32, #tpu.memory_space<vmem>>, vector<1x64xf32>,
    } else {
    }
    %c0_i32_14 = arith.constant 0 : i32
    %18 = arith.cmpi eq, %arg1, %c0_i32_14 : i32
    %19 = arith.extui %18 : i1 to i32
    %c0_i32_15 = arith.constant 0 : i32
    %20 = arith.cmpi ne, %19, %c0_i32_15 : i32
    scf.if %20 {
      %c0_17 = arith.constant 0 : index
      %c0_18 = arith.constant 0 : index
      %24 = vector.load %arg14[%c0_17, %c0_18] : memref<1x64xf32, #tpu.memory_space<vmem>>, vector<1x64xf32>
      %cst_19 = arith.constant dense<0.000000e+00> : vector<64xf32>
      %25 = vector.multi_reduction <add>, %12, %cst_19 [0] : vector<16x64xf32> to vector<64xf32>
      %26 = vector.shape_cast %25 : vector<64xf32> to vector<1x64xf32>
      %27 = arith.addf %24, %26 : vector<1x64xf32>
      %c0_20 = arith.constant 0 : index
      %c0_21 = arith.constant 0 : index
      %28 = vector.load %arg14[%c0_20, %c0_21] : memref<1x64xf32, #tpu.memory_space<vmem>>, vector<1x64xf32>
      tpu.vector_store %arg14[%c0_20, %c0_21], %27 {strides = array<i32>} : memref<1x64xf32, #tpu.memory_space<vmem>>, vector<1x64xf32>,
      %c0_22 = arith.constant 0 : index
      %c0_23 = arith.constant 0 : index
      %29 = vector.load %arg15[%c0_22, %c0_23] : memref<1x64xf32, #tpu.memory_space<vmem>>, vector<1x64xf32>
      %30 = arith.mulf %12, %12 : vector<16x64xf32>
      %cst_24 = arith.constant dense<0.000000e+00> : vector<64xf32>
      %31 = vector.multi_reduction <add>, %30, %cst_24 [0] : vector<16x64xf32> to vector<64xf32>
      %32 = vector.shape_cast %31 : vector<64xf32> to vector<1x64xf32>
      %33 = arith.addf %29, %32 : vector<1x64xf32>
      %c0_25 = arith.constant 0 : index
      %c0_26 = arith.constant 0 : index
      %34 = vector.load %arg15[%c0_25, %c0_26] : memref<1x64xf32, #tpu.memory_space<vmem>>, vector<1x64xf32>
      tpu.vector_store %arg15[%c0_25, %c0_26], %33 {strides = array<i32>} : memref<1x64xf32, #tpu.memory_space<vmem>>, vector<1x64xf32>,
    } else {
    }
    %c1_i32 = arith.constant 1 : i32
    %21 = arith.cmpi eq, %arg1, %c1_i32 : i32
    %22 = arith.extui %21 : i1 to i32
    %c0_i32_16 = arith.constant 0 : i32
    %23 = arith.cmpi ne, %22, %c0_i32_16 : i32
    scf.if %23 {
      %c0_17 = arith.constant 0 : index
      %c0_18 = arith.constant 0 : index
      %24 = vector.load %arg14[%c0_17, %c0_18] : memref<1x64xf32, #tpu.memory_space<vmem>>, vector<1x64xf32>
      %cst_19 = arith.constant 6.250000e-02 : f32
      %25 = vector.broadcast %cst_19 : f32 to vector<1x64xf32>
      %26 = arith.mulf %24, %25 : vector<1x64xf32>
      %c0_20 = arith.constant 0 : index
      %c0_21 = arith.constant 0 : index
      %27 = vector.load %arg15[%c0_20, %c0_21] : memref<1x64xf32, #tpu.memory_space<vmem>>, vector<1x64xf32>
      %cst_22 = arith.constant 6.250000e-02 : f32
      %28 = vector.broadcast %cst_22 : f32 to vector<1x64xf32>
      %29 = arith.mulf %27, %28 : vector<1x64xf32>
      %30 = arith.mulf %26, %26 : vector<1x64xf32>
      %31 = arith.subf %29, %30 : vector<1x64xf32>
      %32 = vector.broadcast %26 : vector<1x64xf32> to vector<16x64xf32>
      %33 = arith.subf %12, %32 : vector<16x64xf32>
      %cst_23 = arith.constant 9.99999974E-6 : f32
      %34 = vector.broadcast %cst_23 : f32 to vector<1x64xf32>
      %35 = arith.addf %31, %34 : vector<1x64xf32>
      %36 = math.rsqrt %35 : vector<1x64xf32>
      %37 = vector.broadcast %36 : vector<1x64xf32> to vector<16x64xf32>
      %38 = arith.mulf %33, %37 : vector<16x64xf32>
      %c0_24 = arith.constant 0 : index
      %c0_25 = arith.constant 0 : index
      %39 = vector.load %arg8[%c0_24, %c0_25] : memref<1x64xf32, #tpu.memory_space<vmem>>, vector<1x64xf32>
      %40 = vector.broadcast %39 : vector<1x64xf32> to vector<16x64xf32>
      %41 = arith.mulf %38, %40 : vector<16x64xf32>
      %c0_26 = arith.constant 0 : index
      %c0_27 = arith.constant 0 : index
      %42 = vector.load %arg9[%c0_26, %c0_27] : memref<1x64xf32, #tpu.memory_space<vmem>>, vector<1x64xf32>
      %43 = vector.broadcast %42 : vector<1x64xf32> to vector<16x64xf32>
      %44 = arith.addf %41, %43 : vector<16x64xf32>
      %cst_28 = arith.constant 0.000000e+00 : f32
      %45 = vector.broadcast %cst_28 : f32 to vector<16x64xf32>
      %46 = arith.maximumf %44, %45 : vector<16x64xf32>
      %47 = arith.truncf %46 : vector<16x64xf32> to vector<16x64xbf16>
      %c0_29 = arith.constant 0 : index
      %c0_30 = arith.constant 0 : index
      %48 = vector.load %arg10[%c0_29, %c0_30] : memref<64x32xbf16, #tpu.memory_space<vmem>>, vector<64x32xbf16>
      %cst_31 = arith.constant dense<0.000000e+00> : vector<16x32xf32>
      %49 = tpu.matmul %47, %48, %cst_31 {dimension_numbers = #tpu.dot_dimension_numbers<[1], [0], [0], [1], [0, 0, 1, 1], [], []>} : vector<16x64xbf16>, vector<64x32xbf16>, vector<16x32xf32> -> vector<16x32xf32>
      %c0_32 = arith.constant 0 : index
      %c0_33 = arith.constant 0 : index
      %50 = vector.load %arg11[%c0_32, %c0_33] : memref<1x32xf32, #tpu.memory_space<vmem>>, vector<1x32xf32>
      %51 = vector.broadcast %50 : vector<1x32xf32> to vector<16x32xf32>
      %52 = arith.addf %49, %51 : vector<16x32xf32>
      %53 = arith.addf %1, %52 : vector<16x32xf32>
      %c0_34 = arith.constant 0 : index
      %c0_35 = arith.constant 0 : index
      %c0_36 = arith.constant 0 : index
      %54 = vector.load %arg12[%c0_34, %c0_35, %c0_36] : memref<1x16x32xf32, #tpu.memory_space<vmem>>, vector<1x16x32xf32>
      %55 = vector.shape_cast %54 : vector<1x16x32xf32> to vector<16x32xf32>
      %56 = vector.shape_cast %53 : vector<16x32xf32> to vector<1x16x32xf32>
      tpu.vector_store %arg12[%c0_34, %c0_35, %c0_36], %56 {strides = array<i32>} : memref<1x16x32xf32, #tpu.memory_space<vmem>>, vector<1x16x32xf32>,
      %57 = arith.truncf %53 : vector<16x32xf32> to vector<16x32xbf16>
      %c0_37 = arith.constant 0 : index
      %c0_38 = arith.constant 0 : index
      %c0_39 = arith.constant 0 : index
      %58 = vector.load %arg13[%c0_37, %c0_38, %c0_39] : memref<1x16x32xbf16, #tpu.memory_space<vmem>>, vector<1x16x32xbf16>
      %59 = vector.shape_cast %58 : vector<1x16x32xbf16> to vector<16x32xbf16>
      %60 = vector.shape_cast %57 : vector<16x32xbf16> to vector<1x16x32xbf16>
      tpu.vector_store %arg13[%c0_37, %c0_38, %c0_39], %60 {strides = array<i32>} : memref<1x16x32xbf16, #tpu.memory_space<vmem>>, vector<1x16x32xbf16>,
    } else {
    }
    return
  }
  func.func @transform_0(%arg0: i32, %arg1: i32, %arg2: i32) -> (i32, i32, i32) {
    %c0_i32 = arith.constant 0 : i32
    %c0_i32_0 = arith.constant 0 : i32
    return %arg0, %arg2, %c0_i32 : i32, i32, i32
  }
  func.func @transform_1(%arg0: i32, %arg1: i32, %arg2: i32) -> (i32, i32, i32) {
    %c0_i32 = arith.constant 0 : i32
    %c0_i32_0 = arith.constant 0 : i32
    return %arg0, %arg2, %c0_i32 : i32, i32, i32
  }
  func.func @transform_2(%arg0: i32, %arg1: i32, %arg2: i32) -> (i32, i32) {
    %c0_i32 = arith.constant 0 : i32
    %c0_i32_0 = arith.constant 0 : i32
    %c0_i32_1 = arith.constant 0 : i32
    return %c0_i32, %c0_i32_0 : i32, i32
  }
  func.func @transform_3(%arg0: i32, %arg1: i32, %arg2: i32) -> (i32, i32) {
    %c0_i32 = arith.constant 0 : i32
    %c0_i32_0 = arith.constant 0 : i32
    %c0_i32_1 = arith.constant 0 : i32
    return %c0_i32, %c0_i32_0 : i32, i32
  }
  func.func @transform_4(%arg0: i32, %arg1: i32, %arg2: i32) -> (i32, i32) {
    %c0_i32 = arith.constant 0 : i32
    %c0_i32_0 = arith.constant 0 : i32
    %c0_i32_1 = arith.constant 0 : i32
    return %c0_i32, %c0_i32_0 : i32, i32
  }
  func.func @transform_5(%arg0: i32, %arg1: i32, %arg2: i32) -> (i32, i32) {
    %c0_i32 = arith.constant 0 : i32
    %c0_i32_0 = arith.constant 0 : i32
    %c0_i32_1 = arith.constant 0 : i32
    return %c0_i32, %c0_i32_0 : i32, i32
  }
  func.func @transform_6(%arg0: i32, %arg1: i32, %arg2: i32) -> (i32, i32) {
    %c0_i32 = arith.constant 0 : i32
    %c0_i32_0 = arith.constant 0 : i32
    %c0_i32_1 = arith.constant 0 : i32
    return %c0_i32, %c0_i32_0 : i32, i32
  }
  func.func @transform_7(%arg0: i32, %arg1: i32, %arg2: i32) -> (i32, i32) {
    %c0_i32 = arith.constant 0 : i32
    %c0_i32_0 = arith.constant 0 : i32
    %c0_i32_1 = arith.constant 0 : i32
    return %c0_i32, %c0_i32_0 : i32, i32
  }
  func.func @transform_8(%arg0: i32, %arg1: i32, %arg2: i32) -> (i32, i32) {
    %c0_i32 = arith.constant 0 : i32
    %c0_i32_0 = arith.constant 0 : i32
    %c0_i32_1 = arith.constant 0 : i32
    return %c0_i32, %c0_i32_0 : i32, i32
  }
  func.func @transform_9(%arg0: i32, %arg1: i32, %arg2: i32) -> (i32, i32, i32) {
    %0 = arith.muli %arg1, %arg2 : i32
    %c0_i32 = arith.constant 0 : i32
    %c0_i32_0 = arith.constant 0 : i32
    return %arg0, %0, %c0_i32 : i32, i32, i32
  }
  func.func @transform_10(%arg0: i32, %arg1: i32, %arg2: i32) -> (i32, i32, i32) {
    %0 = arith.muli %arg1, %arg2 : i32
    %c0_i32 = arith.constant 0 : i32
    %c0_i32_0 = arith.constant 0 : i32
    return %arg0, %0, %c0_i32 : i32, i32, i32
  }
}

module attributes {stable_mosaic.version = 11 : i64} {
  func.func @_mha_kernel(%arg0: i32, %arg1: i32, %arg2: i32, %arg3: memref<1x1x8x32xbf16, #tpu.memory_space<vmem>>, %arg4: memref<1x1x8x32xbf16, #tpu.memory_space<vmem>>, %arg5: memref<32x32xbf16, #tpu.memory_space<vmem>>, %arg6: memref<1x32xf32, #tpu.memory_space<vmem>>, %arg7: memref<32x64xbf16, #tpu.memory_space<vmem>>, %arg8: memref<1x64xf32, #tpu.memory_space<vmem>>, %arg9: memref<32x32xbf16, #tpu.memory_space<vmem>>, %arg10: memref<1x32xf32, #tpu.memory_space<vmem>>, %arg11: memref<1x1x8x32xbf16, #tpu.memory_space<vmem>>) attributes {dimension_semantics = [#tpu.dimension_semantics<parallel>, #tpu.dimension_semantics<parallel>, #tpu.dimension_semantics<parallel>], iteration_bounds = array<i64: 2, 2, 1>, scalar_prefetch = 0 : i64, scratch_operands = 0 : i64, tpu.core_type = #tpu.core_type<tc>, window_params = [{transform_indices = @transform_0, window_bounds = array<i64: 1, 1, 8, 32>}, {transform_indices = @transform_1, window_bounds = array<i64: 1, 1, 8, 32>}, {pipeline_mode = #tpu.pipeline_mode<synchronous>, transform_indices = @transform_2, window_bounds = array<i64: 32, 32>}, {pipeline_mode = #tpu.pipeline_mode<synchronous>, transform_indices = @transform_3, window_bounds = array<i64: 1, 32>}, {pipeline_mode = #tpu.pipeline_mode<synchronous>, transform_indices = @transform_4, window_bounds = array<i64: 32, 64>}, {pipeline_mode = #tpu.pipeline_mode<synchronous>, transform_indices = @transform_5, window_bounds = array<i64: 1, 64>}, {pipeline_mode = #tpu.pipeline_mode<synchronous>, transform_indices = @transform_6, window_bounds = array<i64: 32, 32>}, {pipeline_mode = #tpu.pipeline_mode<synchronous>, transform_indices = @transform_7, window_bounds = array<i64: 1, 32>}, {transform_indices = @transform_8, window_bounds = array<i64: 1, 1, 8, 32>}]} {
    %c0 = arith.constant 0 : index
    %c0_0 = arith.constant 0 : index
    %c0_1 = arith.constant 0 : index
    %c0_2 = arith.constant 0 : index
    %0 = vector.load %arg3[%c0, %c0_0, %c0_1, %c0_2] : memref<1x1x8x32xbf16, #tpu.memory_space<vmem>>, vector<1x1x8x32xbf16>
    %1 = vector.shape_cast %0 : vector<1x1x8x32xbf16> to vector<8x32xbf16>
    %c0_3 = arith.constant 0 : index
    %c0_4 = arith.constant 0 : index
    %c0_5 = arith.constant 0 : index
    %c0_6 = arith.constant 0 : index
    %2 = vector.load %arg4[%c0_3, %c0_4, %c0_5, %c0_6] : memref<1x1x8x32xbf16, #tpu.memory_space<vmem>>, vector<1x1x8x32xbf16>
    %3 = vector.shape_cast %2 : vector<1x1x8x32xbf16> to vector<8x32xbf16>
    %c0_7 = arith.constant 0 : index
    %c0_8 = arith.constant 0 : index
    %4 = vector.load %arg5[%c0_7, %c0_8] : memref<32x32xbf16, #tpu.memory_space<vmem>>, vector<32x32xbf16>
    %cst = arith.constant dense<0.000000e+00> : vector<8x32xf32>
    %5 = tpu.matmul %1, %4, %cst {dimension_numbers = #tpu.dot_dimension_numbers<[1], [0], [0], [1], [0, 0, 1, 1], [], []>} : vector<8x32xbf16>, vector<32x32xbf16>, vector<8x32xf32> -> vector<8x32xf32>
    %c0_9 = arith.constant 0 : index
    %c0_10 = arith.constant 0 : index
    %6 = vector.load %arg6[%c0_9, %c0_10] : memref<1x32xf32, #tpu.memory_space<vmem>>, vector<1x32xf32>
    %7 = vector.broadcast %6 : vector<1x32xf32> to vector<8x32xf32>
    %8 = arith.addf %5, %7 : vector<8x32xf32>
    %c0_11 = arith.constant 0 : index
    %c0_12 = arith.constant 0 : index
    %9 = vector.load %arg7[%c0_11, %c0_12] : memref<32x64xbf16, #tpu.memory_space<vmem>>, vector<32x64xbf16>
    %cst_13 = arith.constant dense<0.000000e+00> : vector<8x64xf32>
    %10 = tpu.matmul %3, %9, %cst_13 {dimension_numbers = #tpu.dot_dimension_numbers<[1], [0], [0], [1], [0, 0, 1, 1], [], []>} : vector<8x32xbf16>, vector<32x64xbf16>, vector<8x64xf32> -> vector<8x64xf32>
    %c0_14 = arith.constant 0 : index
    %c0_15 = arith.constant 0 : index
    %11 = vector.load %arg8[%c0_14, %c0_15] : memref<1x64xf32, #tpu.memory_space<vmem>>, vector<1x64xf32>
    %12 = vector.broadcast %11 : vector<1x64xf32> to vector<8x64xf32>
    %13 = arith.addf %10, %12 : vector<8x64xf32>
    %c0_16 = arith.constant 0 : index
    %c0_17 = arith.constant 0 : index
    %14 = vector.load %arg9[%c0_16, %c0_17] : memref<32x32xbf16, #tpu.memory_space<vmem>>, vector<32x32xbf16>
    %15 = vector.extract_strided_slice %8 {offsets = [0, 0], sizes = [8, 8], strides = [1, 1]} : vector<8x32xf32> to vector<8x8xf32>
    %16 = arith.truncf %15 : vector<8x8xf32> to vector<8x8xbf16>
    %17 = vector.extract_strided_slice %13 {offsets = [0, 0], sizes = [8, 8], strides = [1, 1]} : vector<8x64xf32> to vector<8x8xf32>
    %18 = arith.truncf %17 : vector<8x8xf32> to vector<8x8xbf16>
    %19 = vector.extract_strided_slice %13 {offsets = [0, 32], sizes = [8, 8], strides = [1, 1]} : vector<8x64xf32> to vector<8x8xf32>
    %20 = arith.truncf %19 : vector<8x8xf32> to vector<8x8xbf16>
    %cst_18 = arith.constant dense<0.000000e+00> : vector<8x8xf32>
    %21 = tpu.matmul %16, %18, %cst_18 {dimension_numbers = #tpu.dot_dimension_numbers<[1], [1], [0], [0], [0, 0, 1, 0], [], []>} : vector<8x8xbf16>, vector<8x8xbf16>, vector<8x8xf32> -> vector<8x8xf32>
    %cst_19 = arith.constant dense<0xFF800000> : vector<8xf32>
    %22 = vector.multi_reduction <maximumf>, %21, %cst_19 [1] : vector<8x8xf32> to vector<8xf32>
    %23 = vector.shape_cast %22 : vector<8xf32> to vector<8x1xf32>
    %24 = vector.broadcast %23 : vector<8x1xf32> to vector<8x8xf32>
    %25 = arith.subf %21, %24 : vector<8x8xf32>
    %26 = math.exp %25 : vector<8x8xf32>
    %cst_20 = arith.constant dense<0.000000e+00> : vector<8xf32>
    %27 = vector.multi_reduction <add>, %26, %cst_20 [1] : vector<8x8xf32> to vector<8xf32>
    %28 = vector.shape_cast %27 : vector<8xf32> to vector<8x1xf32>
    %29 = tpu.reciprocal %28 {approx = true} : vector<8x1xf32> -> vector<8x1xf32>
    %30 = vector.broadcast %29 : vector<8x1xf32> to vector<8x8xf32>
    %31 = arith.mulf %26, %30 : vector<8x8xf32>
    %32 = arith.truncf %31 : vector<8x8xf32> to vector<8x8xbf16>
    %cst_21 = arith.constant dense<0.000000e+00> : vector<8x8xf32>
    %33 = tpu.matmul %32, %20, %cst_21 {dimension_numbers = #tpu.dot_dimension_numbers<[1], [0], [0], [1], [0, 0, 1, 1], [], []>} : vector<8x8xbf16>, vector<8x8xbf16>, vector<8x8xf32> -> vector<8x8xf32>
    %34 = arith.truncf %33 : vector<8x8xf32> to vector<8x8xbf16>
    %35 = vector.extract_strided_slice %14 {offsets = [0, 0], sizes = [8, 32], strides = [1, 1]} : vector<32x32xbf16> to vector<8x32xbf16>
    %cst_22 = arith.constant dense<0.000000e+00> : vector<8x32xf32>
    %36 = tpu.matmul %34, %35, %cst_22 {dimension_numbers = #tpu.dot_dimension_numbers<[1], [0], [0], [1], [0, 0, 1, 1], [], []>} : vector<8x8xbf16>, vector<8x32xbf16>, vector<8x32xf32> -> vector<8x32xf32>
    %37 = vector.extract_strided_slice %8 {offsets = [0, 8], sizes = [8, 8], strides = [1, 1]} : vector<8x32xf32> to vector<8x8xf32>
    %38 = arith.truncf %37 : vector<8x8xf32> to vector<8x8xbf16>
    %39 = vector.extract_strided_slice %13 {offsets = [0, 8], sizes = [8, 8], strides = [1, 1]} : vector<8x64xf32> to vector<8x8xf32>
    %40 = arith.truncf %39 : vector<8x8xf32> to vector<8x8xbf16>
    %41 = vector.extract_strided_slice %13 {offsets = [0, 40], sizes = [8, 8], strides = [1, 1]} : vector<8x64xf32> to vector<8x8xf32>
    %42 = arith.truncf %41 : vector<8x8xf32> to vector<8x8xbf16>
    %cst_23 = arith.constant dense<0.000000e+00> : vector<8x8xf32>
    %43 = tpu.matmul %38, %40, %cst_23 {dimension_numbers = #tpu.dot_dimension_numbers<[1], [1], [0], [0], [0, 0, 1, 0], [], []>} : vector<8x8xbf16>, vector<8x8xbf16>, vector<8x8xf32> -> vector<8x8xf32>
    %cst_24 = arith.constant dense<0xFF800000> : vector<8xf32>
    %44 = vector.multi_reduction <maximumf>, %43, %cst_24 [1] : vector<8x8xf32> to vector<8xf32>
    %45 = vector.shape_cast %44 : vector<8xf32> to vector<8x1xf32>
    %46 = vector.broadcast %45 : vector<8x1xf32> to vector<8x8xf32>
    %47 = arith.subf %43, %46 : vector<8x8xf32>
    %48 = math.exp %47 : vector<8x8xf32>
    %cst_25 = arith.constant dense<0.000000e+00> : vector<8xf32>
    %49 = vector.multi_reduction <add>, %48, %cst_25 [1] : vector<8x8xf32> to vector<8xf32>
    %50 = vector.shape_cast %49 : vector<8xf32> to vector<8x1xf32>
    %51 = tpu.reciprocal %50 {approx = true} : vector<8x1xf32> -> vector<8x1xf32>
    %52 = vector.broadcast %51 : vector<8x1xf32> to vector<8x8xf32>
    %53 = arith.mulf %48, %52 : vector<8x8xf32>
    %54 = arith.truncf %53 : vector<8x8xf32> to vector<8x8xbf16>
    %cst_26 = arith.constant dense<0.000000e+00> : vector<8x8xf32>
    %55 = tpu.matmul %54, %42, %cst_26 {dimension_numbers = #tpu.dot_dimension_numbers<[1], [0], [0], [1], [0, 0, 1, 1], [], []>} : vector<8x8xbf16>, vector<8x8xbf16>, vector<8x8xf32> -> vector<8x8xf32>
    %56 = arith.truncf %55 : vector<8x8xf32> to vector<8x8xbf16>
    %57 = vector.extract_strided_slice %14 {offsets = [8, 0], sizes = [8, 32], strides = [1, 1]} : vector<32x32xbf16> to vector<8x32xbf16>
    %cst_27 = arith.constant dense<0.000000e+00> : vector<8x32xf32>
    %58 = tpu.matmul %56, %57, %cst_27 {dimension_numbers = #tpu.dot_dimension_numbers<[1], [0], [0], [1], [0, 0, 1, 1], [], []>} : vector<8x8xbf16>, vector<8x32xbf16>, vector<8x32xf32> -> vector<8x32xf32>
    %59 = arith.addf %36, %58 : vector<8x32xf32>
    %60 = vector.extract_strided_slice %8 {offsets = [0, 16], sizes = [8, 8], strides = [1, 1]} : vector<8x32xf32> to vector<8x8xf32>
    %61 = arith.truncf %60 : vector<8x8xf32> to vector<8x8xbf16>
    %62 = vector.extract_strided_slice %13 {offsets = [0, 16], sizes = [8, 8], strides = [1, 1]} : vector<8x64xf32> to vector<8x8xf32>
    %63 = arith.truncf %62 : vector<8x8xf32> to vector<8x8xbf16>
    %64 = vector.extract_strided_slice %13 {offsets = [0, 48], sizes = [8, 8], strides = [1, 1]} : vector<8x64xf32> to vector<8x8xf32>
    %65 = arith.truncf %64 : vector<8x8xf32> to vector<8x8xbf16>
    %cst_28 = arith.constant dense<0.000000e+00> : vector<8x8xf32>
    %66 = tpu.matmul %61, %63, %cst_28 {dimension_numbers = #tpu.dot_dimension_numbers<[1], [1], [0], [0], [0, 0, 1, 0], [], []>} : vector<8x8xbf16>, vector<8x8xbf16>, vector<8x8xf32> -> vector<8x8xf32>
    %cst_29 = arith.constant dense<0xFF800000> : vector<8xf32>
    %67 = vector.multi_reduction <maximumf>, %66, %cst_29 [1] : vector<8x8xf32> to vector<8xf32>
    %68 = vector.shape_cast %67 : vector<8xf32> to vector<8x1xf32>
    %69 = vector.broadcast %68 : vector<8x1xf32> to vector<8x8xf32>
    %70 = arith.subf %66, %69 : vector<8x8xf32>
    %71 = math.exp %70 : vector<8x8xf32>
    %cst_30 = arith.constant dense<0.000000e+00> : vector<8xf32>
    %72 = vector.multi_reduction <add>, %71, %cst_30 [1] : vector<8x8xf32> to vector<8xf32>
    %73 = vector.shape_cast %72 : vector<8xf32> to vector<8x1xf32>
    %74 = tpu.reciprocal %73 {approx = true} : vector<8x1xf32> -> vector<8x1xf32>
    %75 = vector.broadcast %74 : vector<8x1xf32> to vector<8x8xf32>
    %76 = arith.mulf %71, %75 : vector<8x8xf32>
    %77 = arith.truncf %76 : vector<8x8xf32> to vector<8x8xbf16>
    %cst_31 = arith.constant dense<0.000000e+00> : vector<8x8xf32>
    %78 = tpu.matmul %77, %65, %cst_31 {dimension_numbers = #tpu.dot_dimension_numbers<[1], [0], [0], [1], [0, 0, 1, 1], [], []>} : vector<8x8xbf16>, vector<8x8xbf16>, vector<8x8xf32> -> vector<8x8xf32>
    %79 = arith.truncf %78 : vector<8x8xf32> to vector<8x8xbf16>
    %80 = vector.extract_strided_slice %14 {offsets = [16, 0], sizes = [8, 32], strides = [1, 1]} : vector<32x32xbf16> to vector<8x32xbf16>
    %cst_32 = arith.constant dense<0.000000e+00> : vector<8x32xf32>
    %81 = tpu.matmul %79, %80, %cst_32 {dimension_numbers = #tpu.dot_dimension_numbers<[1], [0], [0], [1], [0, 0, 1, 1], [], []>} : vector<8x8xbf16>, vector<8x32xbf16>, vector<8x32xf32> -> vector<8x32xf32>
    %82 = arith.addf %59, %81 : vector<8x32xf32>
    %83 = vector.extract_strided_slice %8 {offsets = [0, 24], sizes = [8, 8], strides = [1, 1]} : vector<8x32xf32> to vector<8x8xf32>
    %84 = arith.truncf %83 : vector<8x8xf32> to vector<8x8xbf16>
    %85 = vector.extract_strided_slice %13 {offsets = [0, 24], sizes = [8, 8], strides = [1, 1]} : vector<8x64xf32> to vector<8x8xf32>
    %86 = arith.truncf %85 : vector<8x8xf32> to vector<8x8xbf16>
    %87 = vector.extract_strided_slice %13 {offsets = [0, 56], sizes = [8, 8], strides = [1, 1]} : vector<8x64xf32> to vector<8x8xf32>
    %88 = arith.truncf %87 : vector<8x8xf32> to vector<8x8xbf16>
    %cst_33 = arith.constant dense<0.000000e+00> : vector<8x8xf32>
    %89 = tpu.matmul %84, %86, %cst_33 {dimension_numbers = #tpu.dot_dimension_numbers<[1], [1], [0], [0], [0, 0, 1, 0], [], []>} : vector<8x8xbf16>, vector<8x8xbf16>, vector<8x8xf32> -> vector<8x8xf32>
    %cst_34 = arith.constant dense<0xFF800000> : vector<8xf32>
    %90 = vector.multi_reduction <maximumf>, %89, %cst_34 [1] : vector<8x8xf32> to vector<8xf32>
    %91 = vector.shape_cast %90 : vector<8xf32> to vector<8x1xf32>
    %92 = vector.broadcast %91 : vector<8x1xf32> to vector<8x8xf32>
    %93 = arith.subf %89, %92 : vector<8x8xf32>
    %94 = math.exp %93 : vector<8x8xf32>
    %cst_35 = arith.constant dense<0.000000e+00> : vector<8xf32>
    %95 = vector.multi_reduction <add>, %94, %cst_35 [1] : vector<8x8xf32> to vector<8xf32>
    %96 = vector.shape_cast %95 : vector<8xf32> to vector<8x1xf32>
    %97 = tpu.reciprocal %96 {approx = true} : vector<8x1xf32> -> vector<8x1xf32>
    %98 = vector.broadcast %97 : vector<8x1xf32> to vector<8x8xf32>
    %99 = arith.mulf %94, %98 : vector<8x8xf32>
    %100 = arith.truncf %99 : vector<8x8xf32> to vector<8x8xbf16>
    %cst_36 = arith.constant dense<0.000000e+00> : vector<8x8xf32>
    %101 = tpu.matmul %100, %88, %cst_36 {dimension_numbers = #tpu.dot_dimension_numbers<[1], [0], [0], [1], [0, 0, 1, 1], [], []>} : vector<8x8xbf16>, vector<8x8xbf16>, vector<8x8xf32> -> vector<8x8xf32>
    %102 = arith.truncf %101 : vector<8x8xf32> to vector<8x8xbf16>
    %103 = vector.extract_strided_slice %14 {offsets = [24, 0], sizes = [8, 32], strides = [1, 1]} : vector<32x32xbf16> to vector<8x32xbf16>
    %cst_37 = arith.constant dense<0.000000e+00> : vector<8x32xf32>
    %104 = tpu.matmul %102, %103, %cst_37 {dimension_numbers = #tpu.dot_dimension_numbers<[1], [0], [0], [1], [0, 0, 1, 1], [], []>} : vector<8x8xbf16>, vector<8x32xbf16>, vector<8x32xf32> -> vector<8x32xf32>
    %105 = arith.addf %82, %104 : vector<8x32xf32>
    %c0_38 = arith.constant 0 : index
    %c0_39 = arith.constant 0 : index
    %106 = vector.load %arg10[%c0_38, %c0_39] : memref<1x32xf32, #tpu.memory_space<vmem>>, vector<1x32xf32>
    %107 = vector.broadcast %106 : vector<1x32xf32> to vector<8x32xf32>
    %108 = arith.addf %105, %107 : vector<8x32xf32>
    %109 = arith.truncf %108 : vector<8x32xf32> to vector<8x32xbf16>
    %c0_40 = arith.constant 0 : index
    %c0_41 = arith.constant 0 : index
    %c0_42 = arith.constant 0 : index
    %c0_43 = arith.constant 0 : index
    %110 = vector.load %arg11[%c0_40, %c0_41, %c0_42, %c0_43] : memref<1x1x8x32xbf16, #tpu.memory_space<vmem>>, vector<1x1x8x32xbf16>
    %111 = vector.shape_cast %110 : vector<1x1x8x32xbf16> to vector<8x32xbf16>
    %112 = vector.shape_cast %109 : vector<8x32xbf16> to vector<1x1x8x32xbf16>
    tpu.vector_store %arg11[%c0_40, %c0_41, %c0_42, %c0_43], %112 {strides = array<i32>} : memref<1x1x8x32xbf16, #tpu.memory_space<vmem>>, vector<1x1x8x32xbf16>,
    return
  }
  func.func @transform_0(%arg0: i32, %arg1: i32, %arg2: i32) -> (i32, i32, i32, i32) {
    %c0_i32 = arith.constant 0 : i32
    %c0_i32_0 = arith.constant 0 : i32
    return %arg0, %arg1, %arg2, %c0_i32 : i32, i32, i32, i32
  }
  func.func @transform_1(%arg0: i32, %arg1: i32, %arg2: i32) -> (i32, i32, i32, i32) {
    %c0_i32 = arith.constant 0 : i32
    %c0_i32_0 = arith.constant 0 : i32
    %c0_i32_1 = arith.constant 0 : i32
    return %arg0, %arg1, %c0_i32, %c0_i32_0 : i32, i32, i32, i32
  }
  func.func @transform_2(%arg0: i32, %arg1: i32, %arg2: i32) -> (i32, i32) {
    %c0_i32 = arith.constant 0 : i32
    %c0_i32_0 = arith.constant 0 : i32
    %c0_i32_1 = arith.constant 0 : i32
    return %c0_i32, %c0_i32_0 : i32, i32
  }
  func.func @transform_3(%arg0: i32, %arg1: i32, %arg2: i32) -> (i32, i32) {
    %c0_i32 = arith.constant 0 : i32
    %c0_i32_0 = arith.constant 0 : i32
    %c0_i32_1 = arith.constant 0 : i32
    return %c0_i32, %c0_i32_0 : i32, i32
  }
  func.func @transform_4(%arg0: i32, %arg1: i32, %arg2: i32) -> (i32, i32) {
    %c0_i32 = arith.constant 0 : i32
    %c0_i32_0 = arith.constant 0 : i32
    %c0_i32_1 = arith.constant 0 : i32
    return %c0_i32, %c0_i32_0 : i32, i32
  }
  func.func @transform_5(%arg0: i32, %arg1: i32, %arg2: i32) -> (i32, i32) {
    %c0_i32 = arith.constant 0 : i32
    %c0_i32_0 = arith.constant 0 : i32
    %c0_i32_1 = arith.constant 0 : i32
    return %c0_i32, %c0_i32_0 : i32, i32
  }
  func.func @transform_6(%arg0: i32, %arg1: i32, %arg2: i32) -> (i32, i32) {
    %c0_i32 = arith.constant 0 : i32
    %c0_i32_0 = arith.constant 0 : i32
    %c0_i32_1 = arith.constant 0 : i32
    return %c0_i32, %c0_i32_0 : i32, i32
  }
  func.func @transform_7(%arg0: i32, %arg1: i32, %arg2: i32) -> (i32, i32) {
    %c0_i32 = arith.constant 0 : i32
    %c0_i32_0 = arith.constant 0 : i32
    %c0_i32_1 = arith.constant 0 : i32
    return %c0_i32, %c0_i32_0 : i32, i32
  }
  func.func @transform_8(%arg0: i32, %arg1: i32, %arg2: i32) -> (i32, i32, i32, i32) {
    %c0_i32 = arith.constant 0 : i32
    %c0_i32_0 = arith.constant 0 : i32
    return %arg0, %arg1, %arg2, %c0_i32 : i32, i32, i32, i32
  }
}

module attributes {stable_mosaic.version = 11 : i64} {
  func.func @_mha_kernel(%arg0: i32, %arg1: i32, %arg2: i32, %arg3: memref<1x1x8x32xbf16, #tpu.memory_space<vmem>>, %arg4: memref<1x1x8x32xbf16, #tpu.memory_space<vmem>>, %arg5: memref<32x32xbf16, #tpu.memory_space<vmem>>, %arg6: memref<1x32xf32, #tpu.memory_space<vmem>>, %arg7: memref<32x64xbf16, #tpu.memory_space<vmem>>, %arg8: memref<1x64xf32, #tpu.memory_space<vmem>>, %arg9: memref<32x32xbf16, #tpu.memory_space<vmem>>, %arg10: memref<1x32xf32, #tpu.memory_space<vmem>>, %arg11: memref<1x1x8x32xbf16, #tpu.memory_space<vmem>>) attributes {dimension_semantics = [#tpu.dimension_semantics<parallel>, #tpu.dimension_semantics<parallel>, #tpu.dimension_semantics<parallel>], iteration_bounds = array<i64: 2, 2, 1>, scalar_prefetch = 0 : i64, scratch_operands = 0 : i64, tpu.core_type = #tpu.core_type<tc>, window_params = [{transform_indices = @transform_0, window_bounds = array<i64: 1, 1, 8, 32>}, {transform_indices = @transform_1, window_bounds = array<i64: 1, 1, 8, 32>}, {pipeline_mode = #tpu.pipeline_mode<synchronous>, transform_indices = @transform_2, window_bounds = array<i64: 32, 32>}, {pipeline_mode = #tpu.pipeline_mode<synchronous>, transform_indices = @transform_3, window_bounds = array<i64: 1, 32>}, {pipeline_mode = #tpu.pipeline_mode<synchronous>, transform_indices = @transform_4, window_bounds = array<i64: 32, 64>}, {pipeline_mode = #tpu.pipeline_mode<synchronous>, transform_indices = @transform_5, window_bounds = array<i64: 1, 64>}, {pipeline_mode = #tpu.pipeline_mode<synchronous>, transform_indices = @transform_6, window_bounds = array<i64: 32, 32>}, {pipeline_mode = #tpu.pipeline_mode<synchronous>, transform_indices = @transform_7, window_bounds = array<i64: 1, 32>}, {transform_indices = @transform_8, window_bounds = array<i64: 1, 1, 8, 32>}]} {
    %c0 = arith.constant 0 : index
    %c0_0 = arith.constant 0 : index
    %c0_1 = arith.constant 0 : index
    %c0_2 = arith.constant 0 : index
    %0 = vector.load %arg3[%c0, %c0_0, %c0_1, %c0_2] : memref<1x1x8x32xbf16, #tpu.memory_space<vmem>>, vector<1x1x8x32xbf16>
    %1 = vector.shape_cast %0 : vector<1x1x8x32xbf16> to vector<8x32xbf16>
    %c0_3 = arith.constant 0 : index
    %c0_4 = arith.constant 0 : index
    %c0_5 = arith.constant 0 : index
    %c0_6 = arith.constant 0 : index
    %2 = vector.load %arg4[%c0_3, %c0_4, %c0_5, %c0_6] : memref<1x1x8x32xbf16, #tpu.memory_space<vmem>>, vector<1x1x8x32xbf16>
    %3 = vector.shape_cast %2 : vector<1x1x8x32xbf16> to vector<8x32xbf16>
    %c0_7 = arith.constant 0 : index
    %c0_8 = arith.constant 0 : index
    %4 = vector.load %arg5[%c0_7, %c0_8] : memref<32x32xbf16, #tpu.memory_space<vmem>>, vector<32x32xbf16>
    %cst = arith.constant dense<0.000000e+00> : vector<8x32xf32>
    %5 = tpu.matmul %1, %4, %cst {dimension_numbers = #tpu.dot_dimension_numbers<[1], [0], [0], [1], [0, 0, 1, 1], [], []>} : vector<8x32xbf16>, vector<32x32xbf16>, vector<8x32xf32> -> vector<8x32xf32>
    %c0_9 = arith.constant 0 : index
    %c0_10 = arith.constant 0 : index
    %6 = vector.load %arg6[%c0_9, %c0_10] : memref<1x32xf32, #tpu.memory_space<vmem>>, vector<1x32xf32>
    %7 = vector.broadcast %6 : vector<1x32xf32> to vector<8x32xf32>
    %8 = arith.addf %5, %7 : vector<8x32xf32>
    %c0_11 = arith.constant 0 : index
    %c0_12 = arith.constant 0 : index
    %9 = vector.load %arg7[%c0_11, %c0_12] : memref<32x64xbf16, #tpu.memory_space<vmem>>, vector<32x64xbf16>
    %cst_13 = arith.constant dense<0.000000e+00> : vector<8x64xf32>
    %10 = tpu.matmul %3, %9, %cst_13 {dimension_numbers = #tpu.dot_dimension_numbers<[1], [0], [0], [1], [0, 0, 1, 1], [], []>} : vector<8x32xbf16>, vector<32x64xbf16>, vector<8x64xf32> -> vector<8x64xf32>
    %c0_14 = arith.constant 0 : index
    %c0_15 = arith.constant 0 : index
    %11 = vector.load %arg8[%c0_14, %c0_15] : memref<1x64xf32, #tpu.memory_space<vmem>>, vector<1x64xf32>
    %12 = vector.broadcast %11 : vector<1x64xf32> to vector<8x64xf32>
    %13 = arith.addf %10, %12 : vector<8x64xf32>
    %c0_16 = arith.constant 0 : index
    %c0_17 = arith.constant 0 : index
    %14 = vector.load %arg9[%c0_16, %c0_17] : memref<32x32xbf16, #tpu.memory_space<vmem>>, vector<32x32xbf16>
    %15 = vector.extract_strided_slice %8 {offsets = [0, 0], sizes = [8, 8], strides = [1, 1]} : vector<8x32xf32> to vector<8x8xf32>
    %16 = arith.truncf %15 : vector<8x8xf32> to vector<8x8xbf16>
    %17 = vector.extract_strided_slice %13 {offsets = [0, 0], sizes = [8, 8], strides = [1, 1]} : vector<8x64xf32> to vector<8x8xf32>
    %18 = arith.truncf %17 : vector<8x8xf32> to vector<8x8xbf16>
    %19 = vector.extract_strided_slice %13 {offsets = [0, 32], sizes = [8, 8], strides = [1, 1]} : vector<8x64xf32> to vector<8x8xf32>
    %20 = arith.truncf %19 : vector<8x8xf32> to vector<8x8xbf16>
    %cst_18 = arith.constant dense<0.000000e+00> : vector<8x8xf32>
    %21 = tpu.matmul %16, %18, %cst_18 {dimension_numbers = #tpu.dot_dimension_numbers<[1], [1], [0], [0], [0, 0, 1, 0], [], []>} : vector<8x8xbf16>, vector<8x8xbf16>, vector<8x8xf32> -> vector<8x8xf32>
    %cst_19 = arith.constant dense<0xFF800000> : vector<8xf32>
    %22 = vector.multi_reduction <maximumf>, %21, %cst_19 [1] : vector<8x8xf32> to vector<8xf32>
    %23 = vector.shape_cast %22 : vector<8xf32> to vector<8x1xf32>
    %24 = vector.broadcast %23 : vector<8x1xf32> to vector<8x8xf32>
    %25 = arith.cmpf oge, %21, %24 : vector<8x8xf32>
    %cst_20 = arith.constant 0xFF800000 : f32
    %26 = vector.broadcast %cst_20 : f32 to vector<8x8xf32>
    %27 = arith.select %25, %26, %21 : vector<8x8xi1>, vector<8x8xf32>
    %cst_21 = arith.constant dense<0xFF800000> : vector<8xf32>
    %28 = vector.multi_reduction <maximumf>, %27, %cst_21 [1] : vector<8x8xf32> to vector<8xf32>
    %29 = vector.shape_cast %28 : vector<8xf32> to vector<8x1xf32>
    %30 = vector.broadcast %29 : vector<8x1xf32> to vector<8x8xf32>
    %31 = arith.cmpf oge, %27, %30 : vector<8x8xf32>
    %cst_22 = arith.constant 0xFF800000 : f32
    %32 = vector.broadcast %cst_22 : f32 to vector<8x8xf32>
    %33 = arith.select %31, %32, %27 : vector<8x8xi1>, vector<8x8xf32>
    %cst_23 = arith.constant dense<0xFF800000> : vector<8xf32>
    %34 = vector.multi_reduction <maximumf>, %33, %cst_23 [1] : vector<8x8xf32> to vector<8xf32>
    %35 = vector.shape_cast %34 : vector<8xf32> to vector<8x1xf32>
    %36 = vector.broadcast %35 : vector<8x1xf32> to vector<8x8xf32>
    %37 = arith.cmpf oge, %33, %36 : vector<8x8xf32>
    %cst_24 = arith.constant 0xFF800000 : f32
    %38 = vector.broadcast %cst_24 : f32 to vector<8x8xf32>
    %39 = arith.select %37, %38, %33 : vector<8x8xi1>, vector<8x8xf32>
    %cst_25 = arith.constant dense<0xFF800000> : vector<8xf32>
    %40 = vector.multi_reduction <maximumf>, %39, %cst_25 [1] : vector<8x8xf32> to vector<8xf32>
    %41 = vector.shape_cast %40 : vector<8xf32> to vector<8x1xf32>
    %42 = vector.broadcast %41 : vector<8x1xf32> to vector<8x8xf32>
    %43 = arith.cmpf oge, %21, %42 : vector<8x8xf32>
    %44 = vector.broadcast %23 : vector<8x1xf32> to vector<8x8xf32>
    %45 = arith.subf %21, %44 : vector<8x8xf32>
    %46 = math.exp %45 : vector<8x8xf32>
    %cst_26 = arith.constant 0.000000e+00 : f32
    %47 = vector.broadcast %cst_26 : f32 to vector<8x8xf32>
    %48 = arith.select %43, %46, %47 : vector<8x8xi1>, vector<8x8xf32>
    %cst_27 = arith.constant dense<0.000000e+00> : vector<8xf32>
    %49 = vector.multi_reduction <add>, %48, %cst_27 [1] : vector<8x8xf32> to vector<8xf32>
    %50 = vector.shape_cast %49 : vector<8xf32> to vector<8x1xf32>
    %51 = tpu.reciprocal %50 {approx = true} : vector<8x1xf32> -> vector<8x1xf32>
    %52 = vector.broadcast %51 : vector<8x1xf32> to vector<8x8xf32>
    %53 = arith.mulf %48, %52 : vector<8x8xf32>
    %54 = arith.truncf %53 : vector<8x8xf32> to vector<8x8xbf16>
    %cst_28 = arith.constant dense<0.000000e+00> : vector<8x8xf32>
    %55 = tpu.matmul %54, %20, %cst_28 {dimension_numbers = #tpu.dot_dimension_numbers<[1], [0], [0], [1], [0, 0, 1, 1], [], []>} : vector<8x8xbf16>, vector<8x8xbf16>, vector<8x8xf32> -> vector<8x8xf32>
    %56 = arith.truncf %55 : vector<8x8xf32> to vector<8x8xbf16>
    %57 = vector.extract_strided_slice %14 {offsets = [0, 0], sizes = [8, 32], strides = [1, 1]} : vector<32x32xbf16> to vector<8x32xbf16>
    %cst_29 = arith.constant dense<0.000000e+00> : vector<8x32xf32>
    %58 = tpu.matmul %56, %57, %cst_29 {dimension_numbers = #tpu.dot_dimension_numbers<[1], [0], [0], [1], [0, 0, 1, 1], [], []>} : vector<8x8xbf16>, vector<8x32xbf16>, vector<8x32xf32> -> vector<8x32xf32>
    %59 = vector.extract_strided_slice %8 {offsets = [0, 8], sizes = [8, 8], strides = [1, 1]} : vector<8x32xf32> to vector<8x8xf32>
    %60 = arith.truncf %59 : vector<8x8xf32> to vector<8x8xbf16>
    %61 = vector.extract_strided_slice %13 {offsets = [0, 8], sizes = [8, 8], strides = [1, 1]} : vector<8x64xf32> to vector<8x8xf32>
    %62 = arith.truncf %61 : vector<8x8xf32> to vector<8x8xbf16>
    %63 = vector.extract_strided_slice %13 {offsets = [0, 40], sizes = [8, 8], strides = [1, 1]} : vector<8x64xf32> to vector<8x8xf32>
    %64 = arith.truncf %63 : vector<8x8xf32> to vector<8x8xbf16>
    %cst_30 = arith.constant dense<0.000000e+00> : vector<8x8xf32>
    %65 = tpu.matmul %60, %62, %cst_30 {dimension_numbers = #tpu.dot_dimension_numbers<[1], [1], [0], [0], [0, 0, 1, 0], [], []>} : vector<8x8xbf16>, vector<8x8xbf16>, vector<8x8xf32> -> vector<8x8xf32>
    %cst_31 = arith.constant dense<0xFF800000> : vector<8xf32>
    %66 = vector.multi_reduction <maximumf>, %65, %cst_31 [1] : vector<8x8xf32> to vector<8xf32>
    %67 = vector.shape_cast %66 : vector<8xf32> to vector<8x1xf32>
    %68 = vector.broadcast %67 : vector<8x1xf32> to vector<8x8xf32>
    %69 = arith.cmpf oge, %65, %68 : vector<8x8xf32>
    %cst_32 = arith.constant 0xFF800000 : f32
    %70 = vector.broadcast %cst_32 : f32 to vector<8x8xf32>
    %71 = arith.select %69, %70, %65 : vector<8x8xi1>, vector<8x8xf32>
    %cst_33 = arith.constant dense<0xFF800000> : vector<8xf32>
    %72 = vector.multi_reduction <maximumf>, %71, %cst_33 [1] : vector<8x8xf32> to vector<8xf32>
    %73 = vector.shape_cast %72 : vector<8xf32> to vector<8x1xf32>
    %74 = vector.broadcast %73 : vector<8x1xf32> to vector<8x8xf32>
    %75 = arith.cmpf oge, %71, %74 : vector<8x8xf32>
    %cst_34 = arith.constant 0xFF800000 : f32
    %76 = vector.broadcast %cst_34 : f32 to vector<8x8xf32>
    %77 = arith.select %75, %76, %71 : vector<8x8xi1>, vector<8x8xf32>
    %cst_35 = arith.constant dense<0xFF800000> : vector<8xf32>
    %78 = vector.multi_reduction <maximumf>, %77, %cst_35 [1] : vector<8x8xf32> to vector<8xf32>
    %79 = vector.shape_cast %78 : vector<8xf32> to vector<8x1xf32>
    %80 = vector.broadcast %79 : vector<8x1xf32> to vector<8x8xf32>
    %81 = arith.cmpf oge, %77, %80 : vector<8x8xf32>
    %cst_36 = arith.constant 0xFF800000 : f32
    %82 = vector.broadcast %cst_36 : f32 to vector<8x8xf32>
    %83 = arith.select %81, %82, %77 : vector<8x8xi1>, vector<8x8xf32>
    %cst_37 = arith.constant dense<0xFF800000> : vector<8xf32>
    %84 = vector.multi_reduction <maximumf>, %83, %cst_37 [1] : vector<8x8xf32> to vector<8xf32>
    %85 = vector.shape_cast %84 : vector<8xf32> to vector<8x1xf32>
    %86 = vector.broadcast %85 : vector<8x1xf32> to vector<8x8xf32>
    %87 = arith.cmpf oge, %65, %86 : vector<8x8xf32>
    %88 = vector.broadcast %67 : vector<8x1xf32> to vector<8x8xf32>
    %89 = arith.subf %65, %88 : vector<8x8xf32>
    %90 = math.exp %89 : vector<8x8xf32>
    %cst_38 = arith.constant 0.000000e+00 : f32
    %91 = vector.broadcast %cst_38 : f32 to vector<8x8xf32>
    %92 = arith.select %87, %90, %91 : vector<8x8xi1>, vector<8x8xf32>
    %cst_39 = arith.constant dense<0.000000e+00> : vector<8xf32>
    %93 = vector.multi_reduction <add>, %92, %cst_39 [1] : vector<8x8xf32> to vector<8xf32>
    %94 = vector.shape_cast %93 : vector<8xf32> to vector<8x1xf32>
    %95 = tpu.reciprocal %94 {approx = true} : vector<8x1xf32> -> vector<8x1xf32>
    %96 = vector.broadcast %95 : vector<8x1xf32> to vector<8x8xf32>
    %97 = arith.mulf %92, %96 : vector<8x8xf32>
    %98 = arith.truncf %97 : vector<8x8xf32> to vector<8x8xbf16>
    %cst_40 = arith.constant dense<0.000000e+00> : vector<8x8xf32>
    %99 = tpu.matmul %98, %64, %cst_40 {dimension_numbers = #tpu.dot_dimension_numbers<[1], [0], [0], [1], [0, 0, 1, 1], [], []>} : vector<8x8xbf16>, vector<8x8xbf16>, vector<8x8xf32> -> vector<8x8xf32>
    %100 = arith.truncf %99 : vector<8x8xf32> to vector<8x8xbf16>
    %101 = vector.extract_strided_slice %14 {offsets = [8, 0], sizes = [8, 32], strides = [1, 1]} : vector<32x32xbf16> to vector<8x32xbf16>
    %cst_41 = arith.constant dense<0.000000e+00> : vector<8x32xf32>
    %102 = tpu.matmul %100, %101, %cst_41 {dimension_numbers = #tpu.dot_dimension_numbers<[1], [0], [0], [1], [0, 0, 1, 1], [], []>} : vector<8x8xbf16>, vector<8x32xbf16>, vector<8x32xf32> -> vector<8x32xf32>
    %103 = arith.addf %58, %102 : vector<8x32xf32>
    %104 = vector.extract_strided_slice %8 {offsets = [0, 16], sizes = [8, 8], strides = [1, 1]} : vector<8x32xf32> to vector<8x8xf32>
    %105 = arith.truncf %104 : vector<8x8xf32> to vector<8x8xbf16>
    %106 = vector.extract_strided_slice %13 {offsets = [0, 16], sizes = [8, 8], strides = [1, 1]} : vector<8x64xf32> to vector<8x8xf32>
    %107 = arith.truncf %106 : vector<8x8xf32> to vector<8x8xbf16>
    %108 = vector.extract_strided_slice %13 {offsets = [0, 48], sizes = [8, 8], strides = [1, 1]} : vector<8x64xf32> to vector<8x8xf32>
    %109 = arith.truncf %108 : vector<8x8xf32> to vector<8x8xbf16>
    %cst_42 = arith.constant dense<0.000000e+00> : vector<8x8xf32>
    %110 = tpu.matmul %105, %107, %cst_42 {dimension_numbers = #tpu.dot_dimension_numbers<[1], [1], [0], [0], [0, 0, 1, 0], [], []>} : vector<8x8xbf16>, vector<8x8xbf16>, vector<8x8xf32> -> vector<8x8xf32>
    %cst_43 = arith.constant dense<0xFF800000> : vector<8xf32>
    %111 = vector.multi_reduction <maximumf>, %110, %cst_43 [1] : vector<8x8xf32> to vector<8xf32>
    %112 = vector.shape_cast %111 : vector<8xf32> to vector<8x1xf32>
    %113 = vector.broadcast %112 : vector<8x1xf32> to vector<8x8xf32>
    %114 = arith.cmpf oge, %110, %113 : vector<8x8xf32>
    %cst_44 = arith.constant 0xFF800000 : f32
    %115 = vector.broadcast %cst_44 : f32 to vector<8x8xf32>
    %116 = arith.select %114, %115, %110 : vector<8x8xi1>, vector<8x8xf32>
    %cst_45 = arith.constant dense<0xFF800000> : vector<8xf32>
    %117 = vector.multi_reduction <maximumf>, %116, %cst_45 [1] : vector<8x8xf32> to vector<8xf32>
    %118 = vector.shape_cast %117 : vector<8xf32> to vector<8x1xf32>
    %119 = vector.broadcast %118 : vector<8x1xf32> to vector<8x8xf32>
    %120 = arith.cmpf oge, %116, %119 : vector<8x8xf32>
    %cst_46 = arith.constant 0xFF800000 : f32
    %121 = vector.broadcast %cst_46 : f32 to vector<8x8xf32>
    %122 = arith.select %120, %121, %116 : vector<8x8xi1>, vector<8x8xf32>
    %cst_47 = arith.constant dense<0xFF800000> : vector<8xf32>
    %123 = vector.multi_reduction <maximumf>, %122, %cst_47 [1] : vector<8x8xf32> to vector<8xf32>
    %124 = vector.shape_cast %123 : vector<8xf32> to vector<8x1xf32>
    %125 = vector.broadcast %124 : vector<8x1xf32> to vector<8x8xf32>
    %126 = arith.cmpf oge, %122, %125 : vector<8x8xf32>
    %cst_48 = arith.constant 0xFF800000 : f32
    %127 = vector.broadcast %cst_48 : f32 to vector<8x8xf32>
    %128 = arith.select %126, %127, %122 : vector<8x8xi1>, vector<8x8xf32>
    %cst_49 = arith.constant dense<0xFF800000> : vector<8xf32>
    %129 = vector.multi_reduction <maximumf>, %128, %cst_49 [1] : vector<8x8xf32> to vector<8xf32>
    %130 = vector.shape_cast %129 : vector<8xf32> to vector<8x1xf32>
    %131 = vector.broadcast %130 : vector<8x1xf32> to vector<8x8xf32>
    %132 = arith.cmpf oge, %110, %131 : vector<8x8xf32>
    %133 = vector.broadcast %112 : vector<8x1xf32> to vector<8x8xf32>
    %134 = arith.subf %110, %133 : vector<8x8xf32>
    %135 = math.exp %134 : vector<8x8xf32>
    %cst_50 = arith.constant 0.000000e+00 : f32
    %136 = vector.broadcast %cst_50 : f32 to vector<8x8xf32>
    %137 = arith.select %132, %135, %136 : vector<8x8xi1>, vector<8x8xf32>
    %cst_51 = arith.constant dense<0.000000e+00> : vector<8xf32>
    %138 = vector.multi_reduction <add>, %137, %cst_51 [1] : vector<8x8xf32> to vector<8xf32>
    %139 = vector.shape_cast %138 : vector<8xf32> to vector<8x1xf32>
    %140 = tpu.reciprocal %139 {approx = true} : vector<8x1xf32> -> vector<8x1xf32>
    %141 = vector.broadcast %140 : vector<8x1xf32> to vector<8x8xf32>
    %142 = arith.mulf %137, %141 : vector<8x8xf32>
    %143 = arith.truncf %142 : vector<8x8xf32> to vector<8x8xbf16>
    %cst_52 = arith.constant dense<0.000000e+00> : vector<8x8xf32>
    %144 = tpu.matmul %143, %109, %cst_52 {dimension_numbers = #tpu.dot_dimension_numbers<[1], [0], [0], [1], [0, 0, 1, 1], [], []>} : vector<8x8xbf16>, vector<8x8xbf16>, vector<8x8xf32> -> vector<8x8xf32>
    %145 = arith.truncf %144 : vector<8x8xf32> to vector<8x8xbf16>
    %146 = vector.extract_strided_slice %14 {offsets = [16, 0], sizes = [8, 32], strides = [1, 1]} : vector<32x32xbf16> to vector<8x32xbf16>
    %cst_53 = arith.constant dense<0.000000e+00> : vector<8x32xf32>
    %147 = tpu.matmul %145, %146, %cst_53 {dimension_numbers = #tpu.dot_dimension_numbers<[1], [0], [0], [1], [0, 0, 1, 1], [], []>} : vector<8x8xbf16>, vector<8x32xbf16>, vector<8x32xf32> -> vector<8x32xf32>
    %148 = arith.addf %103, %147 : vector<8x32xf32>
    %149 = vector.extract_strided_slice %8 {offsets = [0, 24], sizes = [8, 8], strides = [1, 1]} : vector<8x32xf32> to vector<8x8xf32>
    %150 = arith.truncf %149 : vector<8x8xf32> to vector<8x8xbf16>
    %151 = vector.extract_strided_slice %13 {offsets = [0, 24], sizes = [8, 8], strides = [1, 1]} : vector<8x64xf32> to vector<8x8xf32>
    %152 = arith.truncf %151 : vector<8x8xf32> to vector<8x8xbf16>
    %153 = vector.extract_strided_slice %13 {offsets = [0, 56], sizes = [8, 8], strides = [1, 1]} : vector<8x64xf32> to vector<8x8xf32>
    %154 = arith.truncf %153 : vector<8x8xf32> to vector<8x8xbf16>
    %cst_54 = arith.constant dense<0.000000e+00> : vector<8x8xf32>
    %155 = tpu.matmul %150, %152, %cst_54 {dimension_numbers = #tpu.dot_dimension_numbers<[1], [1], [0], [0], [0, 0, 1, 0], [], []>} : vector<8x8xbf16>, vector<8x8xbf16>, vector<8x8xf32> -> vector<8x8xf32>
    %cst_55 = arith.constant dense<0xFF800000> : vector<8xf32>
    %156 = vector.multi_reduction <maximumf>, %155, %cst_55 [1] : vector<8x8xf32> to vector<8xf32>
    %157 = vector.shape_cast %156 : vector<8xf32> to vector<8x1xf32>
    %158 = vector.broadcast %157 : vector<8x1xf32> to vector<8x8xf32>
    %159 = arith.cmpf oge, %155, %158 : vector<8x8xf32>
    %cst_56 = arith.constant 0xFF800000 : f32
    %160 = vector.broadcast %cst_56 : f32 to vector<8x8xf32>
    %161 = arith.select %159, %160, %155 : vector<8x8xi1>, vector<8x8xf32>
    %cst_57 = arith.constant dense<0xFF800000> : vector<8xf32>
    %162 = vector.multi_reduction <maximumf>, %161, %cst_57 [1] : vector<8x8xf32> to vector<8xf32>
    %163 = vector.shape_cast %162 : vector<8xf32> to vector<8x1xf32>
    %164 = vector.broadcast %163 : vector<8x1xf32> to vector<8x8xf32>
    %165 = arith.cmpf oge, %161, %164 : vector<8x8xf32>
    %cst_58 = arith.constant 0xFF800000 : f32
    %166 = vector.broadcast %cst_58 : f32 to vector<8x8xf32>
    %167 = arith.select %165, %166, %161 : vector<8x8xi1>, vector<8x8xf32>
    %cst_59 = arith.constant dense<0xFF800000> : vector<8xf32>
    %168 = vector.multi_reduction <maximumf>, %167, %cst_59 [1] : vector<8x8xf32> to vector<8xf32>
    %169 = vector.shape_cast %168 : vector<8xf32> to vector<8x1xf32>
    %170 = vector.broadcast %169 : vector<8x1xf32> to vector<8x8xf32>
    %171 = arith.cmpf oge, %167, %170 : vector<8x8xf32>
    %cst_60 = arith.constant 0xFF800000 : f32
    %172 = vector.broadcast %cst_60 : f32 to vector<8x8xf32>
    %173 = arith.select %171, %172, %167 : vector<8x8xi1>, vector<8x8xf32>
    %cst_61 = arith.constant dense<0xFF800000> : vector<8xf32>
    %174 = vector.multi_reduction <maximumf>, %173, %cst_61 [1] : vector<8x8xf32> to vector<8xf32>
    %175 = vector.shape_cast %174 : vector<8xf32> to vector<8x1xf32>
    %176 = vector.broadcast %175 : vector<8x1xf32> to vector<8x8xf32>
    %177 = arith.cmpf oge, %155, %176 : vector<8x8xf32>
    %178 = vector.broadcast %157 : vector<8x1xf32> to vector<8x8xf32>
    %179 = arith.subf %155, %178 : vector<8x8xf32>
    %180 = math.exp %179 : vector<8x8xf32>
    %cst_62 = arith.constant 0.000000e+00 : f32
    %181 = vector.broadcast %cst_62 : f32 to vector<8x8xf32>
    %182 = arith.select %177, %180, %181 : vector<8x8xi1>, vector<8x8xf32>
    %cst_63 = arith.constant dense<0.000000e+00> : vector<8xf32>
    %183 = vector.multi_reduction <add>, %182, %cst_63 [1] : vector<8x8xf32> to vector<8xf32>
    %184 = vector.shape_cast %183 : vector<8xf32> to vector<8x1xf32>
    %185 = tpu.reciprocal %184 {approx = true} : vector<8x1xf32> -> vector<8x1xf32>
    %186 = vector.broadcast %185 : vector<8x1xf32> to vector<8x8xf32>
    %187 = arith.mulf %182, %186 : vector<8x8xf32>
    %188 = arith.truncf %187 : vector<8x8xf32> to vector<8x8xbf16>
    %cst_64 = arith.constant dense<0.000000e+00> : vector<8x8xf32>
    %189 = tpu.matmul %188, %154, %cst_64 {dimension_numbers = #tpu.dot_dimension_numbers<[1], [0], [0], [1], [0, 0, 1, 1], [], []>} : vector<8x8xbf16>, vector<8x8xbf16>, vector<8x8xf32> -> vector<8x8xf32>
    %190 = arith.truncf %189 : vector<8x8xf32> to vector<8x8xbf16>
    %191 = vector.extract_strided_slice %14 {offsets = [24, 0], sizes = [8, 32], strides = [1, 1]} : vector<32x32xbf16> to vector<8x32xbf16>
    %cst_65 = arith.constant dense<0.000000e+00> : vector<8x32xf32>
    %192 = tpu.matmul %190, %191, %cst_65 {dimension_numbers = #tpu.dot_dimension_numbers<[1], [0], [0], [1], [0, 0, 1, 1], [], []>} : vector<8x8xbf16>, vector<8x32xbf16>, vector<8x32xf32> -> vector<8x32xf32>
    %193 = arith.addf %148, %192 : vector<8x32xf32>
    %c0_66 = arith.constant 0 : index
    %c0_67 = arith.constant 0 : index
    %194 = vector.load %arg10[%c0_66, %c0_67] : memref<1x32xf32, #tpu.memory_space<vmem>>, vector<1x32xf32>
    %195 = vector.broadcast %194 : vector<1x32xf32> to vector<8x32xf32>
    %196 = arith.addf %193, %195 : vector<8x32xf32>
    %197 = arith.truncf %196 : vector<8x32xf32> to vector<8x32xbf16>
    %c0_68 = arith.constant 0 : index
    %c0_69 = arith.constant 0 : index
    %c0_70 = arith.constant 0 : index
    %c0_71 = arith.constant 0 : index
    %198 = vector.load %arg11[%c0_68, %c0_69, %c0_70, %c0_71] : memref<1x1x8x32xbf16, #tpu.memory_space<vmem>>, vector<1x1x8x32xbf16>
    %199 = vector.shape_cast %198 : vector<1x1x8x32xbf16> to vector<8x32xbf16>
    %200 = vector.shape_cast %197 : vector<8x32xbf16> to vector<1x1x8x32xbf16>
    tpu.vector_store %arg11[%c0_68, %c0_69, %c0_70, %c0_71], %200 {strides = array<i32>} : memref<1x1x8x32xbf16, #tpu.memory_space<vmem>>, vector<1x1x8x32xbf16>,
    return
  }
  func.func @transform_0(%arg0: i32, %arg1: i32, %arg2: i32) -> (i32, i32, i32, i32) {
    %c0_i32 = arith.constant 0 : i32
    %c0_i32_0 = arith.constant 0 : i32
    return %arg0, %arg1, %arg2, %c0_i32 : i32, i32, i32, i32
  }
  func.func @transform_1(%arg0: i32, %arg1: i32, %arg2: i32) -> (i32, i32, i32, i32) {
    %c1_i32 = arith.constant 1 : i32
    %0 = arith.subi %c1_i32, %arg0 : i32
    %c0_i32 = arith.constant 0 : i32
    %c0_i32_0 = arith.constant 0 : i32
    %c0_i32_1 = arith.constant 0 : i32
    return %0, %arg1, %c0_i32, %c0_i32_0 : i32, i32, i32, i32
  }
  func.func @transform_2(%arg0: i32, %arg1: i32, %arg2: i32) -> (i32, i32) {
    %c0_i32 = arith.constant 0 : i32
    %c0_i32_0 = arith.constant 0 : i32
    %c0_i32_1 = arith.constant 0 : i32
    return %c0_i32, %c0_i32_0 : i32, i32
  }
  func.func @transform_3(%arg0: i32, %arg1: i32, %arg2: i32) -> (i32, i32) {
    %c0_i32 = arith.constant 0 : i32
    %c0_i32_0 = arith.constant 0 : i32
    %c0_i32_1 = arith.constant 0 : i32
    return %c0_i32, %c0_i32_0 : i32, i32
  }
  func.func @transform_4(%arg0: i32, %arg1: i32, %arg2: i32) -> (i32, i32) {
    %c0_i32 = arith.constant 0 : i32
    %c0_i32_0 = arith.constant 0 : i32
    %c0_i32_1 = arith.constant 0 : i32
    return %c0_i32, %c0_i32_0 : i32, i32
  }
  func.func @transform_5(%arg0: i32, %arg1: i32, %arg2: i32) -> (i32, i32) {
    %c0_i32 = arith.constant 0 : i32
    %c0_i32_0 = arith.constant 0 : i32
    %c0_i32_1 = arith.constant 0 : i32
    return %c0_i32, %c0_i32_0 : i32, i32
  }
  func.func @transform_6(%arg0: i32, %arg1: i32, %arg2: i32) -> (i32, i32) {
    %c0_i32 = arith.constant 0 : i32
    %c0_i32_0 = arith.constant 0 : i32
    %c0_i32_1 = arith.constant 0 : i32
    return %c0_i32, %c0_i32_0 : i32, i32
  }
  func.func @transform_7(%arg0: i32, %arg1: i32, %arg2: i32) -> (i32, i32) {
    %c0_i32 = arith.constant 0 : i32
    %c0_i32_0 = arith.constant 0 : i32
    %c0_i32_1 = arith.constant 0 : i32
    return %c0_i32, %c0_i32_0 : i32, i32
  }
  func.func @transform_8(%arg0: i32, %arg1: i32, %arg2: i32) -> (i32, i32, i32, i32) {
    %c0_i32 = arith.constant 0 : i32
    %c0_i32_0 = arith.constant 0 : i32
    return %arg0, %arg1, %arg2, %c0_i32 : i32, i32, i32, i32
  }
}

module attributes {stable_mosaic.version = 11 : i64} {
  func.func @_mlp_kernel(%arg0: i32, %arg1: i32, %arg2: i32, %arg3: memref<1x16x32xf32, #tpu.memory_space<vmem>>, %arg4: memref<1x16x32xbf16, #tpu.memory_space<vmem>>, %arg5: memref<32x64xbf16, #tpu.memory_space<vmem>>, %arg6: memref<32x64xbf16, #tpu.memory_space<vmem>>, %arg7: memref<1x64xf32, #tpu.memory_space<vmem>>, %arg8: memref<1x64xf32, #tpu.memory_space<vmem>>, %arg9: memref<1x64xf32, #tpu.memory_space<vmem>>, %arg10: memref<64x32xbf16, #tpu.memory_space<vmem>>, %arg11: memref<1x32xf32, #tpu.memory_space<vmem>>, %arg12: memref<1x16x32xf32, #tpu.memory_space<vmem>>, %arg13: memref<1x16x32xbf16, #tpu.memory_space<vmem>>, %arg14: memref<1x64xf32, #tpu.memory_space<vmem>>, %arg15: memref<1x64xf32, #tpu.memory_space<vmem>>) attributes {dimension_semantics = [#tpu.dimension_semantics<parallel>, #tpu.dimension_semantics<arbitrary>, #tpu.dimension_semantics<arbitrary>], iteration_bounds = array<i64: 2, 2, 1>, scalar_prefetch = 0 : i64, scratch_operands = 2 : i64, tpu.core_type = #tpu.core_type<tc>, window_params = [{transform_indices = @transform_0, window_bounds = array<i64: 1, 16, 32>}, {transform_indices = @transform_1, window_bounds = array<i64: 1, 16, 32>}, {pipeline_mode = #tpu.pipeline_mode<synchronous>, transform_indices = @transform_2, window_bounds = array<i64: 32, 64>}, {pipeline_mode = #tpu.pipeline_mode<synchronous>, transform_indices = @transform_3, window_bounds = array<i64: 32, 64>}, {pipeline_mode = #tpu.pipeline_mode<synchronous>, transform_indices = @transform_4, window_bounds = array<i64: 1, 64>}, {pipeline_mode = #tpu.pipeline_mode<synchronous>, transform_indices = @transform_5, window_bounds = array<i64: 1, 64>}, {pipeline_mode = #tpu.pipeline_mode<synchronous>, transform_indices = @transform_6, window_bounds = array<i64: 1, 64>}, {pipeline_mode = #tpu.pipeline_mode<synchronous>, transform_indices = @transform_7, window_bounds = array<i64: 64, 32>}, {pipeline_mode = #tpu.pipeline_mode<synchronous>, transform_indices = @transform_8, window_bounds = array<i64: 1, 32>}, {transform_indices = @transform_9, window_bounds = array<i64: 1, 16, 32>}, {transform_indices = @transform_10, window_bounds = array<i64: 1, 16, 32>}]} {
    %c0 = arith.constant 0 : index
    %c0_0 = arith.constant 0 : index
    %c0_1 = arith.constant 0 : index
    %0 = vector.load %arg3[%c0, %c0_0, %c0_1] : memref<1x16x32xf32, #tpu.memory_space<vmem>>, vector<1x16x32xf32>
    %1 = vector.shape_cast %0 : vector<1x16x32xf32> to vector<16x32xf32>
    %2 = arith.truncf %1 : vector<16x32xf32> to vector<16x32xbf16>
    %c0_2 = arith.constant 0 : index
    %c0_3 = arith.constant 0 : index
    %3 = vector.load %arg5[%c0_2, %c0_3] : memref<32x64xbf16, #tpu.memory_space<vmem>>, vector<32x64xbf16>
    %cst = arith.constant dense<0.000000e+00> : vector<16x64xf32>
    %4 = tpu.matmul %2, %3, %cst {dimension_numbers = #tpu.dot_dimension_numbers<[1], [0], [0], [1], [0, 0, 1, 1], [], []>} : vector<16x32xbf16>, vector<32x64xbf16>, vector<16x64xf32> -> vector<16x64xf32>
    %c0_4 = arith.constant 0 : index
    %c0_5 = arith.constant 0 : index
    %c0_6 = arith.constant 0 : index
    %5 = vector.load %arg4[%c0_4, %c0_5, %c0_6] : memref<1x16x32xbf16, #tpu.memory_space<vmem>>, vector<1x16x32xbf16>
    %6 = vector.shape_cast %5 : vector<1x16x32xbf16> to vector<16x32xbf16>
    %c0_7 = arith.constant 0 : index
    %c0_8 = arith.constant 0 : index
    %7 = vector.load %arg6[%c0_7, %c0_8] : memref<32x64xbf16, #tpu.memory_space<vmem>>, vector<32x64xbf16>
    %cst_9 = arith.constant dense<0.000000e+00> : vector<16x64xf32>
    %8 = tpu.matmul %6, %7, %cst_9 {dimension_numbers = #tpu.dot_dimension_numbers<[1], [0], [0], [1], [0, 0, 1, 1], [], []>} : vector<16x32xbf16>, vector<32x64xbf16>, vector<16x64xf32> -> vector<16x64xf32>
    %9 = arith.addf %4, %8 : vector<16x64xf32>
    %c0_10 = arith.constant 0 : index
    %c0_11 = arith.constant 0 : index
    %10 = vector.load %arg7[%c0_10, %c0_11] : memref<1x64xf32, #tpu.memory_space<vmem>>, vector<1x64xf32>
    %11 = vector.broadcast %10 : vector<1x64xf32> to vector<16x64xf32>
    %12 = arith.addf %9, %11 : vector<16x64xf32>
    %c0_i32 = arith.constant 0 : i32
    %13 = arith.cmpi eq, %arg1, %c0_i32 : i32
    %c0_i32_12 = arith.constant 0 : i32
    %14 = arith.cmpi eq, %arg2, %c0_i32_12 : i32
    %15 = arith.andi %13, %14 : i1
    %16 = arith.extui %15 : i1 to i32
    %c0_i32_13 = arith.constant 0 : i32
    %17 = arith.cmpi ne, %16, %c0_i32_13 : i32
    scf.if %17 {
      %cst_17 = arith.constant 0.000000e+00 : f32
      %24 = vector.broadcast %cst_17 : f32 to vector<1x64xf32>
      %c0_18 = arith.constant 0 : index
      %c0_19 = arith.constant 0 : index
      %25 = vector.load %arg14[%c0_18, %c0_19] : memref<1x64xf32, #tpu.memory_space<vmem>>, vector<1x64xf32>
      tpu.vector_store %arg14[%c0_18, %c0_19], %24 {strides = array<i32>} : memref<1x64xf32, #tpu.memory_space<vmem>>, vector<1x64xf32>,
      %cst_20 = arith.constant 0.000000e+00 : f32
      %26 = vector.broadcast %cst_20 : f32 to vector<1x64xf32>
      %c0_21 = arith.constant 0 : index
      %c0_22 = arith.constant 0 : index
      %27 = vector.load %arg15[%c0_21, %c0_22] : memref<1x64xf32, #tpu.memory_space<vmem>>, vector<1x64xf32>
      tpu.vector_store %arg15[%c0_21, %c0_22], %26 {strides = array<i32>} : memref<1x64xf32, #tpu.memory_space<vmem>>, vector<1x64xf32>,
    } else {
    }
    %c0_i32_14 = arith.constant 0 : i32
    %18 = arith.cmpi eq, %arg1, %c0_i32_14 : i32
    %19 = arith.extui %18 : i1 to i32
    %c0_i32_15 = arith.constant 0 : i32
    %20 = arith.cmpi ne, %19, %c0_i32_15 : i32
    scf.if %20 {
      %c0_17 = arith.constant 0 : index
      %c0_18 = arith.constant 0 : index
      %24 = vector.load %arg14[%c0_17, %c0_18] : memref<1x64xf32, #tpu.memory_space<vmem>>, vector<1x64xf32>
      %cst_19 = arith.constant dense<0.000000e+00> : vector<64xf32>
      %25 = vector.multi_reduction <add>, %12, %cst_19 [0] : vector<16x64xf32> to vector<64xf32>
      %26 = vector.shape_cast %25 : vector<64xf32> to vector<1x64xf32>
      %27 = arith.addf %24, %26 : vector<1x64xf32>
      %c0_20 = arith.constant 0 : index
      %c0_21 = arith.constant 0 : index
      %28 = vector.load %arg14[%c0_20, %c0_21] : memref<1x64xf32, #tpu.memory_space<vmem>>, vector<1x64xf32>
      tpu.vector_store %arg14[%c0_20, %c0_21], %27 {strides = array<i32>} : memref<1x64xf32, #tpu.memory_space<vmem>>, vector<1x64xf32>,
      %c0_22 = arith.constant 0 : index
      %c0_23 = arith.constant 0 : index
      %29 = vector.load %arg15[%c0_22, %c0_23] : memref<1x64xf32, #tpu.memory_space<vmem>>, vector<1x64xf32>
      %30 = arith.mulf %12, %12 : vector<16x64xf32>
      %cst_24 = arith.constant dense<0.000000e+00> : vector<64xf32>
      %31 = vector.multi_reduction <add>, %30, %cst_24 [0] : vector<16x64xf32> to vector<64xf32>
      %32 = vector.shape_cast %31 : vector<64xf32> to vector<1x64xf32>
      %33 = arith.addf %29, %32 : vector<1x64xf32>
      %c0_25 = arith.constant 0 : index
      %c0_26 = arith.constant 0 : index
      %34 = vector.load %arg15[%c0_25, %c0_26] : memref<1x64xf32, #tpu.memory_space<vmem>>, vector<1x64xf32>
      tpu.vector_store %arg15[%c0_25, %c0_26], %33 {strides = array<i32>} : memref<1x64xf32, #tpu.memory_space<vmem>>, vector<1x64xf32>,
    } else {
    }
    %c1_i32 = arith.constant 1 : i32
    %21 = arith.cmpi eq, %arg1, %c1_i32 : i32
    %22 = arith.extui %21 : i1 to i32
    %c0_i32_16 = arith.constant 0 : i32
    %23 = arith.cmpi ne, %22, %c0_i32_16 : i32
    scf.if %23 {
      %c0_17 = arith.constant 0 : index
      %c0_18 = arith.constant 0 : index
      %24 = vector.load %arg14[%c0_17, %c0_18] : memref<1x64xf32, #tpu.memory_space<vmem>>, vector<1x64xf32>
      %cst_19 = arith.constant 6.250000e-02 : f32
      %25 = vector.broadcast %cst_19 : f32 to vector<1x64xf32>
      %26 = arith.mulf %24, %25 : vector<1x64xf32>
      %c0_20 = arith.constant 0 : index
      %c0_21 = arith.constant 0 : index
      %27 = vector.load %arg15[%c0_20, %c0_21] : memref<1x64xf32, #tpu.memory_space<vmem>>, vector<1x64xf32>
      %cst_22 = arith.constant 6.250000e-02 : f32
      %28 = vector.broadcast %cst_22 : f32 to vector<1x64xf32>
      %29 = arith.mulf %27, %28 : vector<1x64xf32>
      %30 = arith.mulf %26, %26 : vector<1x64xf32>
      %31 = arith.subf %29, %30 : vector<1x64xf32>
      %32 = vector.broadcast %26 : vector<1x64xf32> to vector<16x64xf32>
      %33 = arith.subf %12, %32 : vector<16x64xf32>
      %cst_23 = arith.constant 9.99999974E-6 : f32
      %34 = vector.broadcast %cst_23 : f32 to vector<1x64xf32>
      %35 = arith.addf %31, %34 : vector<1x64xf32>
      %36 = math.rsqrt %35 : vector<1x64xf32>
      %37 = vector.broadcast %36 : vector<1x64xf32> to vector<16x64xf32>
      %38 = arith.mulf %33, %37 : vector<16x64xf32>
      %c0_24 = arith.constant 0 : index
      %c0_25 = arith.constant 0 : index
      %39 = vector.load %arg8[%c0_24, %c0_25] : memref<1x64xf32, #tpu.memory_space<vmem>>, vector<1x64xf32>
      %40 = vector.broadcast %39 : vector<1x64xf32> to vector<16x64xf32>
      %41 = arith.mulf %38, %40 : vector<16x64xf32>
      %c0_26 = arith.constant 0 : index
      %c0_27 = arith.constant 0 : index
      %42 = vector.load %arg9[%c0_26, %c0_27] : memref<1x64xf32, #tpu.memory_space<vmem>>, vector<1x64xf32>
      %43 = vector.broadcast %42 : vector<1x64xf32> to vector<16x64xf32>
      %44 = arith.addf %41, %43 : vector<16x64xf32>
      %cst_28 = arith.constant 0.000000e+00 : f32
      %45 = vector.broadcast %cst_28 : f32 to vector<16x64xf32>
      %46 = arith.maximumf %44, %45 : vector<16x64xf32>
      %47 = arith.truncf %46 : vector<16x64xf32> to vector<16x64xbf16>
      %c0_29 = arith.constant 0 : index
      %c0_30 = arith.constant 0 : index
      %48 = vector.load %arg10[%c0_29, %c0_30] : memref<64x32xbf16, #tpu.memory_space<vmem>>, vector<64x32xbf16>
      %cst_31 = arith.constant dense<0.000000e+00> : vector<16x32xf32>
      %49 = tpu.matmul %47, %48, %cst_31 {dimension_numbers = #tpu.dot_dimension_numbers<[1], [0], [0], [1], [0, 0, 1, 1], [], []>} : vector<16x64xbf16>, vector<64x32xbf16>, vector<16x32xf32> -> vector<16x32xf32>
      %c0_32 = arith.constant 0 : index
      %c0_33 = arith.constant 0 : index
      %50 = vector.load %arg11[%c0_32, %c0_33] : memref<1x32xf32, #tpu.memory_space<vmem>>, vector<1x32xf32>
      %51 = vector.broadcast %50 : vector<1x32xf32> to vector<16x32xf32>
      %52 = arith.addf %49, %51 : vector<16x32xf32>
      %53 = arith.addf %1, %52 : vector<16x32xf32>
      %c0_34 = arith.constant 0 : index
      %c0_35 = arith.constant 0 : index
      %c0_36 = arith.constant 0 : index
      %54 = vector.load %arg12[%c0_34, %c0_35, %c0_36] : memref<1x16x32xf32, #tpu.memory_space<vmem>>, vector<1x16x32xf32>
      %55 = vector.shape_cast %54 : vector<1x16x32xf32> to vector<16x32xf32>
      %56 = vector.shape_cast %53 : vector<16x32xf32> to vector<1x16x32xf32>
      tpu.vector_store %arg12[%c0_34, %c0_35, %c0_36], %56 {strides = array<i32>} : memref<1x16x32xf32, #tpu.memory_space<vmem>>, vector<1x16x32xf32>,
      %57 = arith.truncf %53 : vector<16x32xf32> to vector<16x32xbf16>
      %c0_37 = arith.constant 0 : index
      %c0_38 = arith.constant 0 : index
      %c0_39 = arith.constant 0 : index
      %58 = vector.load %arg13[%c0_37, %c0_38, %c0_39] : memref<1x16x32xbf16, #tpu.memory_space<vmem>>, vector<1x16x32xbf16>
      %59 = vector.shape_cast %58 : vector<1x16x32xbf16> to vector<16x32xbf16>
      %60 = vector.shape_cast %57 : vector<16x32xbf16> to vector<1x16x32xbf16>
      tpu.vector_store %arg13[%c0_37, %c0_38, %c0_39], %60 {strides = array<i32>} : memref<1x16x32xbf16, #tpu.memory_space<vmem>>, vector<1x16x32xbf16>,
    } else {
    }
    return
  }
  func.func @transform_0(%arg0: i32, %arg1: i32, %arg2: i32) -> (i32, i32, i32) {
    %c0_i32 = arith.constant 0 : i32
    %c0_i32_0 = arith.constant 0 : i32
    return %arg0, %arg2, %c0_i32 : i32, i32, i32
  }
  func.func @transform_1(%arg0: i32, %arg1: i32, %arg2: i32) -> (i32, i32, i32) {
    %c0_i32 = arith.constant 0 : i32
    %c0_i32_0 = arith.constant 0 : i32
    return %arg0, %arg2, %c0_i32 : i32, i32, i32
  }
  func.func @transform_2(%arg0: i32, %arg1: i32, %arg2: i32) -> (i32, i32) {
    %c0_i32 = arith.constant 0 : i32
    %c0_i32_0 = arith.constant 0 : i32
    %c0_i32_1 = arith.constant 0 : i32
    return %c0_i32, %c0_i32_0 : i32, i32
  }
  func.func @transform_3(%arg0: i32, %arg1: i32, %arg2: i32) -> (i32, i32) {
    %c0_i32 = arith.constant 0 : i32
    %c0_i32_0 = arith.constant 0 : i32
    %c0_i32_1 = arith.constant 0 : i32
    return %c0_i32, %c0_i32_0 : i32, i32
  }
  func.func @transform_4(%arg0: i32, %arg1: i32, %arg2: i32) -> (i32, i32) {
    %c0_i32 = arith.constant 0 : i32
    %c0_i32_0 = arith.constant 0 : i32
    %c0_i32_1 = arith.constant 0 : i32
    return %c0_i32, %c0_i32_0 : i32, i32
  }
  func.func @transform_5(%arg0: i32, %arg1: i32, %arg2: i32) -> (i32, i32) {
    %c0_i32 = arith.constant 0 : i32
    %c0_i32_0 = arith.constant 0 : i32
    %c0_i32_1 = arith.constant 0 : i32
    return %c0_i32, %c0_i32_0 : i32, i32
  }
  func.func @transform_6(%arg0: i32, %arg1: i32, %arg2: i32) -> (i32, i32) {
    %c0_i32 = arith.constant 0 : i32
    %c0_i32_0 = arith.constant 0 : i32
    %c0_i32_1 = arith.constant 0 : i32
    return %c0_i32, %c0_i32_0 : i32, i32
  }
  func.func @transform_7(%arg0: i32, %arg1: i32, %arg2: i32) -> (i32, i32) {
    %c0_i32 = arith.constant 0 : i32
    %c0_i32_0 = arith.constant 0 : i32
    %c0_i32_1 = arith.constant 0 : i32
    return %c0_i32, %c0_i32_0 : i32, i32
  }
  func.func @transform_8(%arg0: i32, %arg1: i32, %arg2: i32) -> (i32, i32) {
    %c0_i32 = arith.constant 0 : i32
    %c0_i32_0 = arith.constant 0 : i32
    %c0_i32_1 = arith.constant 0 : i32
    return %c0_i32, %c0_i32_0 : i32, i32
  }
  func.func @transform_9(%arg0: i32, %arg1: i32, %arg2: i32) -> (i32, i32, i32) {
    %0 = arith.muli %arg1, %arg2 : i32
    %c0_i32 = arith.constant 0 : i32
    %c0_i32_0 = arith.constant 0 : i32
    return %arg0, %0, %c0_i32 : i32, i32, i32
  }
  func.func @transform_10(%arg0: i32, %arg1: i32, %arg2: i32) -> (i32, i32, i32) {
    %0 = arith.muli %arg1, %arg2 : i32
    %c0_i32 = arith.constant 0 : i32
    %c0_i32_0 = arith.constant 0 : i32
    return %arg0, %0, %c0_i32 : i32, i32, i32
  }
}

</mosaic_0001>

<llo_original>
// kernel: attentional_gnn.10
$region0: #{attentional_gnn.10}
  #allocation0 [shape = 'u32[]', space=smem, size = 0x4, offset = 0x4, fixed_abs, tag = 'smem constant byte address 0x4 - core index']
  #allocation1 [shape = 'u32[72,128]{1,0:T(1,128)}', space=vmem, size = 0x9000, scoped, tag = 'internal scratch']
  %s0 = inlined_call_operand.vmem [shape: bf16[2,2,8,32], index: 0, kind: input, shape index: {}, may-alias: {0,1}]
  %s1 = inlined_call_operand.vmem [shape: bf16[2,2,8,32], index: 1, kind: input, shape index: {}, may-alias: {0,1}]
  %s2 = inlined_call_operand.vmem [shape: bf16[32,32], index: 2, kind: input, shape index: {}]
  %s3 = inlined_call_operand.vmem [shape: f32[1,32], index: 3, kind: input, shape index: {}]
  %s4 = inlined_call_operand.vmem [shape: bf16[32,64], index: 4, kind: input, shape index: {}]
  %s5 = inlined_call_operand.vmem [shape: f32[1,64], index: 5, kind: input, shape index: {}]
  %s6 = inlined_call_operand.vmem [shape: bf16[32,32], index: 6, kind: input, shape index: {}]
  %s7 = inlined_call_operand.vmem [shape: f32[1,32], index: 7, kind: input, shape index: {}]
  %s8 = inlined_call_operand.vmem [shape: bf16[2,2,8,32], index: 8, kind: output, shape index: {}]
  %s9 = sld [smem:[#allocation0]]
  $region65: #{attentional_gnn.10} parent=0
    _
  %s11 = ssub.s32 1, %s9
  %s12 = scalar_select 0, %s11, %s9
  loop: start=0, step=1, limit=6
  $region2: #{attentional_gnn.10} parent=0 // loop_pre_header
    _
  $region3: #{attentional_gnn.10} parent=0 // loop_header
    %s14 = sphi 0, %s18
    %p15 = scmp.ge.s32.totalorder %s14, 6
    %s21 = sphi 0, %s40
    %s22 = sphi 0, %s36
    %s23 = sphi 0, %s32
    %s24 = sphi 0, %s21
    %s25 = sphi 0, %s22
    %s26 = sphi 0, %s23
    %s27 = sphi 0, %s24
    %s28 = sphi 0, %s25
    %s29 = sphi 0, %s26
    %s47 = sphi 0, %s49
    %s50 = sphi 0, %s47
    %s51 = sphi 0, %s50
    %s67 = sphi 0, %s51
    %s77 = sphi 0, %s79
    %s80 = sphi 0, %s77
    %s81 = sphi 0, %s80
    %s97 = sphi 0, %s81
    %s101 = sphi 0, %s101
    %s103 = sphi 0, %s101
    %s104 = sphi 0, %s103
    %s118 = sphi 0, %s104
    %s122 = sphi 0, %s122
    %s124 = sphi 0, %s122
    %s125 = sphi 0, %s124
    %s139 = sphi 0, %s125
    %s143 = sphi 0, %s143
    %s145 = sphi 0, %s143
    %s146 = sphi 0, %s145
    %s160 = sphi 0, %s146
    %s164 = sphi 0, %s164
    %s166 = sphi 0, %s164
    %s167 = sphi 0, %s166
    %s181 = sphi 0, %s167
    %s185 = sphi 0, %s185
    %s187 = sphi 0, %s185
    %s188 = sphi 0, %s187
    %s202 = sphi 0, %s188
    %s206 = sphi 0, %s206
    %s208 = sphi 0, %s206
    %s209 = sphi 0, %s208
    %s223 = sphi 0, %s209
    %s233 = sphi 0, %s235
    %s236 = sphi 0, %s233
    %s237 = sphi 0, %s236
    %s253 = sphi 0, %s237
  $region4: #{attentional_gnn.10} parent=0 // loop_header_branch
    %17 = sbr.rel (%p15) target = $region8
  $region5: #{attentional_gnn.10} parent=0 // loop_body
    %s19 = ssub.s32 %s14, 1
    %s20 = ssub.s32 %s14, 2
    %s30 = sadd.s32 1, %s23
    %p31 = scmp.ge.s32.totalorder %s30, 1
    %s32 = scalar_select %p31, 0, %s30
    %s33 = sadd.s32 1, %s22
    %s34 = scalar_select %p31, %s33, %s22
    %p35 = scmp.ge.s32.totalorder %s34, 2
    %s36 = scalar_select %p35, 0, %s34
    %s37 = sadd.s32 1, %s21
    %s38 = scalar_select %p35, %s37, %s21
    %p39 = scmp.ge.s32.totalorder %s38, 2
    %s40 = scalar_select %p39, 0, %s38
    %s41 = ssub.s32 %s21, %s40
    %s42 = ssub.s32 %s22, %s36
    %s43 = sor.u32 %s41, %s42
    %s44 = ssub.s32 %s23, %s32
    %s45 = sor.u32 %s43, %s44
    %p46 = scmp.eq.s32.totalorder %s45, 0
    %s48 = sadd.s32 %s47, 1
    %s49 = scalar_select %p46, %s47, %s48
    %p52 = pneg %p46
    %p53 = scmp.eq.s32.totalorder %s14, 3
    %p54 = por %p52, %p53
    %p55 = scmp.ne.s32.totalorder %s47, %s50
    %p56 = scmp.eq.s32.totalorder %s14, 0
    %p57 = por %p55, %p56
    %p58 = scmp.ne.s32.totalorder %s47, %s50
    %p59 = scmp.eq.s32.totalorder %s19, 3
    %p60 = por %p58, %p59
    %p61 = scmp.ne.s32.totalorder %s50, %s51
    %p62 = scmp.eq.s32.totalorder %s19, 0
    %p63 = por %p61, %p62
    %p64 = scmp.ne.s32.totalorder %s50, %s51
    %p65 = scmp.eq.s32.totalorder %s20, 3
    %p66 = por %p64, %p65
    %p68 = scmp.ne.s32.totalorder %s51, %s67
    %p69 = scmp.eq.s32.totalorder %s20, 0
    %p70 = por %p68, %p69
    %s71 = ssub.s32 1, %s21
    %s72 = ssub.s32 1, %s40
    %s73 = ssub.s32 %s71, %s72
    %s74 = ssub.s32 %s22, %s36
    %s75 = sor.u32 %s73, %s74
    %p76 = scmp.eq.s32.totalorder %s75, 0
    %s78 = sadd.s32 %s77, 1
    %s79 = scalar_select %p76, %s77, %s78
    %p82 = pneg %p76
    %p83 = scmp.eq.s32.totalorder %s14, 3
    %p84 = por %p82, %p83
    %p85 = scmp.ne.s32.totalorder %s77, %s80
    %p86 = scmp.eq.s32.totalorder %s14, 0
    %p87 = por %p85, %p86
    %p88 = scmp.ne.s32.totalorder %s77, %s80
    %p89 = scmp.eq.s32.totalorder %s19, 3
    %p90 = por %p88, %p89
    %p91 = scmp.ne.s32.totalorder %s80, %s81
    %p92 = scmp.eq.s32.totalorder %s19, 0
    %p93 = por %p91, %p92
    %p94 = scmp.ne.s32.totalorder %s80, %s81
    %p95 = scmp.eq.s32.totalorder %s20, 3
    %p96 = por %p94, %p95
    %p98 = scmp.ne.s32.totalorder %s81, %s97
    %p99 = scmp.eq.s32.totalorder %s20, 0
    %p100 = por %p98, %p99
    %s102 = sadd.s32 %s101, 1
    %p105 = scmp.eq.s32.totalorder %s14, 3
    %p106 = scmp.ne.s32.totalorder %s101, %s103
    %p107 = scmp.eq.s32.totalorder %s14, 0
    %p108 = por %p106, %p107
    %p109 = scmp.ne.s32.totalorder %s101, %s103
    %p110 = scmp.eq.s32.totalorder %s19, 3
    %p111 = por %p109, %p110
    %p112 = scmp.ne.s32.totalorder %s103, %s104
    %p113 = scmp.eq.s32.totalorder %s19, 0
    %p114 = por %p112, %p113
    %p115 = scmp.ne.s32.totalorder %s103, %s104
    %p116 = scmp.eq.s32.totalorder %s20, 3
    %p117 = por %p115, %p116
    %p119 = scmp.ne.s32.totalorder %s104, %s118
    %p120 = scmp.eq.s32.totalorder %s20, 0
    %p121 = por %p119, %p120
    %s123 = sadd.s32 %s122, 1
    %p126 = scmp.eq.s32.totalorder %s14, 3
    %p127 = scmp.ne.s32.totalorder %s122, %s124
    %p128 = scmp.eq.s32.totalorder %s14, 0
    %p129 = por %p127, %p128
    %p130 = scmp.ne.s32.totalorder %s122, %s124
    %p131 = scmp.eq.s32.totalorder %s19, 3
    %p132 = por %p130, %p131
    %p133 = scmp.ne.s32.totalorder %s124, %s125
    %p134 = scmp.eq.s32.totalorder %s19, 0
    %p135 = por %p133, %p134
    %p136 = scmp.ne.s32.totalorder %s124, %s125
    %p137 = scmp.eq.s32.totalorder %s20, 3
    %p138 = por %p136, %p137
    %p140 = scmp.ne.s32.totalorder %s125, %s139
    %p141 = scmp.eq.s32.totalorder %s20, 0
    %p142 = por %p140, %p141
    %s144 = sadd.s32 %s143, 1
    %p147 = scmp.eq.s32.totalorder %s14, 3
    %p148 = scmp.ne.s32.totalorder %s143, %s145
    %p149 = scmp.eq.s32.totalorder %s14, 0
    %p150 = por %p148, %p149
    %p151 = scmp.ne.s32.totalorder %s143, %s145
    %p152 = scmp.eq.s32.totalorder %s19, 3
    %p153 = por %p151, %p152
    %p154 = scmp.ne.s32.totalorder %s145, %s146
    %p155 = scmp.eq.s32.totalorder %s19, 0
    %p156 = por %p154, %p155
    %p157 = scmp.ne.s32.totalorder %s145, %s146
    %p158 = scmp.eq.s32.totalorder %s20, 3
    %p159 = por %p157, %p158
    %p161 = scmp.ne.s32.totalorder %s146, %s160
    %p162 = scmp.eq.s32.totalorder %s20, 0
    %p163 = por %p161, %p162
    %s165 = sadd.s32 %s164, 1
    %p168 = scmp.eq.s32.totalorder %s14, 3
    %p169 = scmp.ne.s32.totalorder %s164, %s166
    %p170 = scmp.eq.s32.totalorder %s14, 0
    %p171 = por %p169, %p170
    %p172 = scmp.ne.s32.totalorder %s164, %s166
    %p173 = scmp.eq.s32.totalorder %s19, 3
    %p174 = por %p172, %p173
    %p175 = scmp.ne.s32.totalorder %s166, %s167
    %p176 = scmp.eq.s32.totalorder %s19, 0
    %p177 = por %p175, %p176
    %p178 = scmp.ne.s32.totalorder %s166, %s167
    %p179 = scmp.eq.s32.totalorder %s20, 3
    %p180 = por %p178, %p179
    %p182 = scmp.ne.s32.totalorder %s167, %s181
    %p183 = scmp.eq.s32.totalorder %s20, 0
    %p184 = por %p182, %p183
    %s186 = sadd.s32 %s185, 1
    %p189 = scmp.eq.s32.totalorder %s14, 3
    %p190 = scmp.ne.s32.totalorder %s185, %s187
    %p191 = scmp.eq.s32.totalorder %s14, 0
    %p192 = por %p190, %p191
    %p193 = scmp.ne.s32.totalorder %s185, %s187
    %p194 = scmp.eq.s32.totalorder %s19, 3
    %p195 = por %p193, %p194
    %p196 = scmp.ne.s32.totalorder %s187, %s188
    %p197 = scmp.eq.s32.totalorder %s19, 0
    %p198 = por %p196, %p197
    %p199 = scmp.ne.s32.totalorder %s187, %s188
    %p200 = scmp.eq.s32.totalorder %s20, 3
    %p201 = por %p199, %p200
    %p203 = scmp.ne.s32.totalorder %s188, %s202
    %p204 = scmp.eq.s32.totalorder %s20, 0
    %p205 = por %p203, %p204
    %s207 = sadd.s32 %s206, 1
    %p210 = scmp.eq.s32.totalorder %s14, 3
    %p211 = scmp.ne.s32.totalorder %s206, %s208
    %p212 = scmp.eq.s32.totalorder %s14, 0
    %p213 = por %p211, %p212
    %p214 = scmp.ne.s32.totalorder %s206, %s208
    %p215 = scmp.eq.s32.totalorder %s19, 3
    %p216 = por %p214, %p215
    %p217 = scmp.ne.s32.totalorder %s208, %s209
    %p218 = scmp.eq.s32.totalorder %s19, 0
    %p219 = por %p217, %p218
    %p220 = scmp.ne.s32.totalorder %s208, %s209
    %p221 = scmp.eq.s32.totalorder %s20, 3
    %p222 = por %p220, %p221
    %p224 = scmp.ne.s32.totalorder %s209, %s223
    %p225 = scmp.eq.s32.totalorder %s20, 0
    %p226 = por %p224, %p225
    %s227 = ssub.s32 %s21, %s40
    %s228 = ssub.s32 %s22, %s36
    %s229 = sor.u32 %s227, %s228
    %s230 = ssub.s32 %s23, %s32
    %s231 = sor.u32 %s229, %s230
    %p232 = scmp.eq.s32.totalorder %s231, 0
    %s234 = sadd.s32 %s233, 1
    %s235 = scalar_select %p232, %s233, %s234
    %p238 = pneg %p232
    %p239 = scmp.eq.s32.totalorder %s14, 3
    %p240 = por %p238, %p239
    %p241 = scmp.ne.s32.totalorder %s233, %s236
    %p242 = scmp.eq.s32.totalorder %s14, 0
    %p243 = por %p241, %p242
    %p244 = scmp.ne.s32.totalorder %s233, %s236
    %p245 = scmp.eq.s32.totalorder %s19, 3
    %p246 = por %p244, %p245
    %p247 = scmp.ne.s32.totalorder %s236, %s237
    %p248 = scmp.eq.s32.totalorder %s19, 0
    %p249 = por %p247, %p248
    %p250 = scmp.ne.s32.totalorder %s236, %s237
    %p251 = scmp.eq.s32.totalorder %s20, 3
    %p252 = por %p250, %p251
    %p254 = scmp.ne.s32.totalorder %s237, %s253
    %p255 = scmp.eq.s32.totalorder %s20, 0
    %p256 = por %p254, %p255
    %p257 = scmp.le.s32.totalorder 1, %s14
    %p258 = scmp.lt.s32.totalorder %s14, 5
    %p259 = pnand %p257, %p258
    %p260 = pneg %p259
    // Predicated region
    $region9: #{attentional_gnn.10} parent=5 // pred_check
      _
    $region10: #{attentional_gnn.10} parent=5 // pred_check_branch
      %262 = sbr.rel (%p259) target = $region12
    $region11: #{attentional_gnn.10} parent=5 // pred_region
      %s263 = ssub.s32 %s14, 1
      // Predicated region
      $region13: #{attentional_gnn.10} parent=11 // pred_check
        %p264 = pneg %p114
      $region14: #{attentional_gnn.10} parent=11 // pred_check_branch
        %266 = sbr.rel (%p264) target = $region16
      $region15: #{attentional_gnn.10} parent=11 // pred_region
        _
      $region16: #{attentional_gnn.10} parent=11 // pred_fallthru
        _
      // Predicated region
      $region17: #{attentional_gnn.10} parent=11 // pred_check
        %p267 = pneg %p135
      $region18: #{attentional_gnn.10} parent=11 // pred_check_branch
        %269 = sbr.rel (%p267) target = $region20
      $region19: #{attentional_gnn.10} parent=11 // pred_region
        _
      $region20: #{attentional_gnn.10} parent=11 // pred_fallthru
        _
      // Predicated region
      $region21: #{attentional_gnn.10} parent=11 // pred_check
        %p270 = pneg %p156
      $region22: #{attentional_gnn.10} parent=11 // pred_check_branch
        %272 = sbr.rel (%p270) target = $region24
      $region23: #{attentional_gnn.10} parent=11 // pred_region
        _
      $region24: #{attentional_gnn.10} parent=11 // pred_fallthru
        _
      // Predicated region
      $region25: #{attentional_gnn.10} parent=11 // pred_check
        %p273 = pneg %p177
      $region26: #{attentional_gnn.10} parent=11 // pred_check_branch
        %275 = sbr.rel (%p273) target = $region28
      $region27: #{attentional_gnn.10} parent=11 // pred_region
        _
      $region28: #{attentional_gnn.10} parent=11 // pred_fallthru
        _
      // Predicated region
      $region29: #{attentional_gnn.10} parent=11 // pred_check
        %p276 = pneg %p198
      $region30: #{attentional_gnn.10} parent=11 // pred_check_branch
        %278 = sbr.rel (%p276) target = $region32
      $region31: #{attentional_gnn.10} parent=11 // pred_region
        _
      $region32: #{attentional_gnn.10} parent=11 // pred_fallthru
        _
      // Predicated region
      $region33: #{attentional_gnn.10} parent=11 // pred_check
        %p279 = pneg %p219
      $region34: #{attentional_gnn.10} parent=11 // pred_check_branch
        %281 = sbr.rel (%p279) target = $region36
      $region35: #{attentional_gnn.10} parent=11 // pred_region
        _
      $region36: #{attentional_gnn.10} parent=11 // pred_fallthru
        _
    $region12: #{attentional_gnn.10} parent=5 // pred_fallthru
      _
    %p282 = scmp.lt.s32.totalorder %s14, 4
    // Predicated region
    $region37: #{attentional_gnn.10} parent=5 // pred_check
      %p283 = pneg %p282
    $region38: #{attentional_gnn.10} parent=5 // pred_check_branch
      %285 = sbr.rel (%p283) target = $region40
    $region39: #{attentional_gnn.10} parent=5 // pred_region
      // Predicated region
      $region41: #{attentional_gnn.10} parent=39 // pred_check
        %p286 = pneg %p57
      $region42: #{attentional_gnn.10} parent=39 // pred_check_branch
        %288 = sbr.rel (%p286) target = $region44
      $region43: #{attentional_gnn.10} parent=39 // pred_region
        %p289 = scmp.lt.s32.totalorder %s21, 1
        %s290 = scalar_select %p289, %s21, 1
        %p291 = scmp.lt.s32.totalorder %s22, 1
        %s292 = scalar_select %p291, %s22, 1
        %p293 = scmp.lt.s32.totalorder %s23, 0
        %s294 = scalar_select %p293, %s23, 0
        %s295 = sadd.s32 %s294, %s292
        %s296 = smul.addr %s290, 2
        %s297 = sadd.s32 %s295, %s296
        %s298 = smul.addr %s297, 4
        %s299 = scalar_lea.vmem %s0, %s298
      $region44: #{attentional_gnn.10} parent=39 // pred_fallthru
        _
      // Predicated region
      $region45: #{attentional_gnn.10} parent=39 // pred_check
        %p300 = pneg %p87
      $region46: #{attentional_gnn.10} parent=39 // pred_check_branch
        %302 = sbr.rel (%p300) target = $region48
      $region47: #{attentional_gnn.10} parent=39 // pred_region
        %s303 = ssub.s32 1, %s21
        %p304 = scmp.lt.s32.totalorder %s303, 1
        %s305 = scalar_select %p304, %s303, 1
        %p306 = scmp.lt.s32.totalorder %s22, 1
        %s307 = scalar_select %p306, %s22, 1
        %s308 = smul.addr %s305, 2
        %s309 = sadd.s32 %s307, %s308
        %s310 = smul.addr %s309, 4
        %s311 = scalar_lea.vmem %s1, %s310
        %s312 = ssub.s32 1, %s21
      $region48: #{attentional_gnn.10} parent=39 // pred_fallthru
        _
    $region40: #{attentional_gnn.10} parent=5 // pred_fallthru
      _
    %p313 = scmp.le.s32.totalorder 1, %s14
    %p314 = scmp.lt.s32.totalorder %s14, 5
    %p315 = pnand %p313, %p314
    %p316 = pneg %p315
    // Predicated region
    $region49: #{attentional_gnn.10} parent=5 // pred_check
      _
    $region50: #{attentional_gnn.10} parent=5 // pred_check_branch
      %318 = sbr.rel (%p315) target = $region52
    $region51: #{attentional_gnn.10} parent=5 // pred_region
      %s319 = ssub.s32 %s14, 1
      %p320 = scmp.lt.s32.totalorder %s24, 1
      %s321 = scalar_select %p320, %s24, 1
      %p322 = scmp.lt.s32.totalorder %s25, 1
      %s323 = scalar_select %p322, %s25, 1
      %p324 = scmp.lt.s32.totalorder %s26, 0
      %s325 = scalar_select %p324, %s26, 0
      %s326 = sadd.s32 %s325, %s323
      %s327 = smul.addr %s321, 2
      %s328 = sadd.s32 %s326, %s327
      %s329 = smul.addr %s328, 4
      %s330 = scalar_lea.vmem %s0, %s329
      %p331 = pneg %p63
      %p332 = pneg %p60
      %s333 = ssub.s32 1, %s24
      %p334 = scmp.lt.s32.totalorder %s333, 1
      %s335 = scalar_select %p334, %s333, 1
      %p336 = scmp.lt.s32.totalorder %s25, 1
      %s337 = scalar_select %p336, %s25, 1
      %s338 = smul.addr %s335, 2
      %s339 = sadd.s32 %s337, %s338
      %s340 = smul.addr %s339, 4
      %s341 = scalar_lea.vmem %s1, %s340
      %p342 = pneg %p93
      %p343 = pneg %p90
      %p344 = pneg %p114
      %p345 = pneg %p111
      %p346 = pneg %p135
      %p347 = pneg %p132
      %p348 = pneg %p156
      %p349 = pneg %p153
      %p350 = pneg %p177
      %p351 = pneg %p174
      %p352 = pneg %p198
      %p353 = pneg %p195
      %p354 = pneg %p219
      %p355 = pneg %p216
      %p356 = pneg %p249
      %p357 = pneg %p246
      %p358 = scmp.lt.s32.totalorder %s24, 1
      %s359 = scalar_select %p358, %s24, 1
      %p360 = scmp.lt.s32.totalorder %s25, 1
      %s361 = scalar_select %p360, %s25, 1
      %p362 = scmp.lt.s32.totalorder %s26, 0
      %s363 = scalar_select %p362, %s26, 0
      %s364 = sadd.s32 %s363, %s361
      %s365 = smul.addr %s359, 2
      %s366 = sadd.s32 %s364, %s365
      %s367 = smul.addr %s366, 4
      %s368 = scalar_lea.vmem %s8, %s367
      %p369 = scmp.lt.s32.totalorder %s24, 1
      %s370 = scalar_select %p369, %s24, 1
      %p371 = scmp.lt.s32.totalorder %s25, 1
      %s372 = scalar_select %p371, %s25, 1
      %p373 = scmp.lt.s32.totalorder %s26, 0
      %s374 = scalar_select %p373, %s26, 0
      %s375 = sadd.s32 %s374, %s372
      %s376 = smul.addr %s370, 2
      %s377 = sadd.s32 %s375, %s376
      %s378 = smul.addr %s377, 4
      %s379 = scalar_lea.vmem %s0, %s378
      %s380 = ssub.s32 1, %s24
      %p381 = scmp.lt.s32.totalorder %s380, 1
      %s382 = scalar_select %p381, %s380, 1
      %p383 = scmp.lt.s32.totalorder %s25, 1
      %s384 = scalar_select %p383, %s25, 1
      %s385 = smul.addr %s382, 2
      %s386 = sadd.s32 %s384, %s385
      %s387 = smul.addr %s386, 4
      %s388 = scalar_lea.vmem %s1, %s387
      %s389 = ssub.s32 1, %s24
      %p390 = scmp.lt.s32.totalorder %s24, 1
      %s391 = scalar_select %p390, %s24, 1
      %p392 = scmp.lt.s32.totalorder %s25, 1
      %s393 = scalar_select %p392, %s25, 1
      %p394 = scmp.lt.s32.totalorder %s26, 0
      %s395 = scalar_select %p394, %s26, 0
      %s396 = sadd.s32 %s395, %s393
      %s397 = smul.addr %s391, 2
      %s398 = sadd.s32 %s396, %s397
      %s399 = smul.addr %s398, 4
      %s400 = scalar_lea.vmem %s8, %s399
      %v402 = vld [vmem:[%s379] sm:$0xf]
      %v403 = vld [vmem:[%s388] sm:$0xf]
      %v404 = vld [vmem:[%s2] sm:$0xf]
      %v405 = vld [vmem:[%s2 + $0x4] sm:$0xf]
      %v406 = vld [vmem:[%s2 + $0x8] sm:$0xf]
      %v407 = vld [vmem:[%s2 + $0xc] sm:$0xf]
      %v408 = vld [vmem:[%s3] sm:$0x1]
      %v410 = vperm.slane %v408, 0
      %v416 = vunpack.c.l.b16 %v404
      %v417 = vunpack.c.l.b16 %v405
      %v418 = vunpack.c.l.b16 %v406
      %v419 = vunpack.c.l.b16 %v407
      %v420 = vpack.c.b16 %v417, %v416
      %v421 = vpack.c.b16 %v419, %v418
      %vm424 = vcmask 261120
      %v426 = vsel %vm424, %v402, 0
      %428 = vmatpush.bf16.msra.mxu0 0
      %429 = vmatpush.bf16.msra.mxu0 0
      %430 = vmatpush.bf16.msra.mxu0 0
      %431 = vmatpush.bf16.msra.mxu0 0
      %432 = vmatpush.bf16.msra.mxu0 0
      %433 = vmatpush.bf16.msra.mxu0 0
      %434 = vmatpush.bf16.msra.mxu0 %v421
      %435 = vmatpush.bf16.msra.mxu0 %v420
      %436 = vmatmul.bf16.gmra.mxu0 %v426
      %v437 = vpop.f32.mrf.mxu0
      %v438 = vadd.f32 %v410, %v437
      %v439 = vpop.f32.mrf.mxu0
      %440 = vdwg.mxu0
      %v441 = vld [vmem:[%s4] sm:$0xf]
      %v442 = vld [vmem:[%s4 + $0x4] sm:$0xf]
      %v443 = vld [vmem:[%s4 + $0x8] sm:$0xf]
      %v444 = vld [vmem:[%s4 + $0xc] sm:$0xf]
      %v445 = vld [vmem:[%s5] sm:$0x1]
      %v447 = vperm.slane %v445, 0
      %v453 = vunpack.c.l.b16 %v441
      %v454 = vunpack.c.l.b16 %v442
      %v455 = vunpack.c.l.b16 %v443
      %v456 = vunpack.c.l.b16 %v444
      %v457 = vpack.c.b16 %v454, %v453
      %v458 = vpack.c.b16 %v456, %v455
      %v462 = vsel %vm424, %v403, 0
      %464 = vmatpush.bf16.msra.mxu0 0
      %465 = vmatpush.bf16.msra.mxu0 0
      %466 = vmatpush.bf16.msra.mxu0 0
      %467 = vmatpush.bf16.msra.mxu0 0
      %468 = vmatpush.bf16.msra.mxu0 0
      %469 = vmatpush.bf16.msra.mxu0 0
      %470 = vmatpush.bf16.msra.mxu0 %v458
      %471 = vmatpush.bf16.msra.mxu0 %v457
      %472 = vmatmul.bf16.gmra.mxu0 %v462
      %v473 = vpop.f32.mrf.mxu0
      %v474 = vadd.f32 %v447, %v473
      %v475 = vpop.f32.mrf.mxu0
      %476 = vdwg.mxu0
      %v477 = vld [vmem:[%s6] sm:$0xf]
      %v478 = vld [vmem:[%s6 + $0x4] sm:$0xf]
      %v479 = vld [vmem:[%s6 + $0x8] sm:$0xf]
      %v480 = vld [vmem:[%s6 + $0xc] sm:$0xf]
      %v481 = vpack.c.bf16 %v438, %v438
      %v482 = vpack.c.bf16 %v474, %v474
      %vm483 = vcmask 64512
      %v485 = vsel %vm483, %v481, 0
      %v488 = vsel %vm483, %v482, 0
      %490 = vmatpush.bf16.xpose.msra.mxu0 0
      %491 = vmatpush.bf16.xpose.msra.mxu0 0
      %492 = vmatpush.bf16.xpose.msra.mxu0 0
      %493 = vmatpush.bf16.xpose.msra.mxu0 0
      %494 = vmatpush.bf16.xpose.msra.mxu0 0
      %495 = vmatpush.bf16.xpose.msra.mxu0 0
      %496 = vmatpush.bf16.xpose.msra.mxu0 0
      %497 = vmatpush.bf16.xpose.msra.mxu0 %v488
      %498 = vmatmul.bf16.gmra.mxu0 %v485
      %v499 = vpop.f32.mrf.mxu0
      %v500 = vadd.f32 0.0, %v499
      %v501 = vpop.f32.mrf.mxu0
      %502 = vdwg.mxu0
      %v503 = vsel %vm483, %v500, -inf
      %504 = vmax.xlane.f32.xlu0 %v503
      %v505 = vpop.xlane.xlu0 %504
      %v506 = vsub.f32 %v500, %v505
      %v507 = vmul.f32 %v506, 1.442695
      %v508 = vpow.pop %v507
      %v509 = vsel %vm483, %v508, 0.0
      %510 = vadd.xlane.f32.xlu0 %v509
      %v511 = vpop.xlane.xlu0 %510
      %v512 = vrcp.pop %v511
      %v513 = vmul.f32 %v508, %v512
      %v514 = vpack.c.bf16 %v513, %v513
      %516 = vrot.lane.b32.xlu0 %v482, 96
      %v517 = vpop.permute.xlu0 %516
      %v519 = vsel %vm483, %v514, 0
      %vm521 = vcmask 1043456
      %v523 = vsel %vm521, %v517, 0
      %525 = vmatpush.bf16.msra.mxu0 0
      %526 = vmatpush.bf16.msra.mxu0 0
      %527 = vmatpush.bf16.msra.mxu0 0
      %528 = vmatpush.bf16.msra.mxu0 0
      %529 = vmatpush.bf16.msra.mxu0 0
      %530 = vmatpush.bf16.msra.mxu0 0
      %531 = vmatpush.bf16.msra.mxu0 0
      %532 = vmatpush.bf16.msra.mxu0 %v523
      %533 = vmatmul.bf16.gmra.mxu0 %v519
      %v534 = vpop.f32.mrf.mxu0
      %v535 = vadd.f32 0.0, %v534
      %v536 = vpop.f32.mrf.mxu0
      %537 = vdwg.mxu0
      %v538 = vpack.c.bf16 %v535, %v535
      %540 = vrot.lane.b32.xlu0 %v481, 120
      %v541 = vpop.permute.xlu0 %540
      %542 = vrot.lane.b32.xlu0 %v482, 120
      %v543 = vpop.permute.xlu0 %542
      %v545 = vsel %vm483, %v541, 0
      %v548 = vsel %vm483, %v543, 0
      %550 = vmatpush.bf16.xpose.msra.mxu0 0
      %551 = vmatpush.bf16.xpose.msra.mxu0 0
      %552 = vmatpush.bf16.xpose.msra.mxu0 0
      %553 = vmatpush.bf16.xpose.msra.mxu0 0
      %554 = vmatpush.bf16.xpose.msra.mxu0 0
      %555 = vmatpush.bf16.xpose.msra.mxu0 0
      %556 = vmatpush.bf16.xpose.msra.mxu0 0
      %557 = vmatpush.bf16.xpose.msra.mxu0 %v548
      %558 = vmatmul.bf16.gmra.mxu0 %v545
      %v559 = vpop.f32.mrf.mxu0
      %v560 = vadd.f32 0.0, %v559
      %v561 = vpop.f32.mrf.mxu0
      %562 = vdwg.mxu0
      %v563 = vsel %vm483, %v560, -inf
      %564 = vmax.xlane.f32.xlu0 %v563
      %v565 = vpop.xlane.xlu0 %564
      %v566 = vsub.f32 %v560, %v565
      %v567 = vmul.f32 %v566, 1.442695
      %v568 = vpow.pop %v567
      %v569 = vsel %vm483, %v568, 0.0
      %570 = vadd.xlane.f32.xlu0 %v569
      %v571 = vpop.xlane.xlu0 %570
      %v572 = vrcp.pop %v571
      %v573 = vmul.f32 %v568, %v572
      %v574 = vpack.c.bf16 %v573, %v573
      %575 = vrot.lane.b32.xlu0 %v482, 88
      %v576 = vpop.permute.xlu0 %575
      %v578 = vsel %vm483, %v574, 0
      %v581 = vsel %vm521, %v576, 0
      %583 = vmatpush.bf16.msra.mxu0 0
      %584 = vmatpush.bf16.msra.mxu0 0
      %585 = vmatpush.bf16.msra.mxu0 0
      %586 = vmatpush.bf16.msra.mxu0 0
      %587 = vmatpush.bf16.msra.mxu0 0
      %588 = vmatpush.bf16.msra.mxu0 0
      %589 = vmatpush.bf16.msra.mxu0 0
      %590 = vmatpush.bf16.msra.mxu0 %v581
      %591 = vmatmul.bf16.gmra.mxu0 %v578
      %v592 = vpop.f32.mrf.mxu0
      %v593 = vadd.f32 0.0, %v592
      %v594 = vpop.f32.mrf.mxu0
      %595 = vdwg.mxu0
      %v596 = vpack.c.bf16 %v593, %v593
      %v598 = vsel %vm483, %v596, 0
      %v601 = vsel %vm521, %v478, 0
      %603 = vmatpush.bf16.msra.mxu0 0
      %604 = vmatpush.bf16.msra.mxu0 0
      %605 = vmatpush.bf16.msra.mxu0 0
      %606 = vmatpush.bf16.msra.mxu0 0
      %607 = vmatpush.bf16.msra.mxu0 0
      %608 = vmatpush.bf16.msra.mxu0 0
      %609 = vmatpush.bf16.msra.mxu0 0
      %610 = vmatpush.bf16.msra.mxu0 %v601
      %611 = vmatmul.bf16.gmra.mxu0 %v598
      %v612 = vpop.f32.mrf.mxu0
      %v613 = vadd.f32 0.0, %v612
      %v614 = vpop.f32.mrf.mxu0
      %615 = vdwg.mxu0
      %v617 = vsel %vm483, %v538, 0
      %v620 = vsel %vm521, %v477, 0
      %622 = vmatpush.bf16.msra.mxu0 0
      %623 = vmatpush.bf16.msra.mxu0 0
      %624 = vmatpush.bf16.msra.mxu0 0
      %625 = vmatpush.bf16.msra.mxu0 0
      %626 = vmatpush.bf16.msra.mxu0 0
      %627 = vmatpush.bf16.msra.mxu0 0
      %628 = vmatpush.bf16.msra.mxu0 0
      %629 = vmatpush.bf16.msra.mxu0 %v620
      %630 = vmatmul.bf16.gmra.mxu0 %v617
      %v631 = vpop.f32.mrf.mxu0
      %v632 = vadd.f32 %v613, %v631
      %v633 = vpop.f32.mrf.mxu0
      %634 = vdwg.mxu0
      %635 = vrot.lane.b32.xlu0 %v481, 112
      %v636 = vpop.permute.xlu0 %635
      %637 = vrot.lane.b32.xlu0 %v482, 112
      %v638 = vpop.permute.xlu0 %637
      %v640 = vsel %vm483, %v636, 0
      %v643 = vsel %vm483, %v638, 0
      %645 = vmatpush.bf16.xpose.msra.mxu0 0
      %646 = vmatpush.bf16.xpose.msra.mxu0 0
      %647 = vmatpush.bf16.xpose.msra.mxu0 0
      %648 = vmatpush.bf16.xpose.msra.mxu0 0
      %649 = vmatpush.bf16.xpose.msra.mxu0 0
      %650 = vmatpush.bf16.xpose.msra.mxu0 0
      %651 = vmatpush.bf16.xpose.msra.mxu0 0
      %652 = vmatpush.bf16.xpose.msra.mxu0 %v643
      %653 = vmatmul.bf16.gmra.mxu0 %v640
      %v654 = vpop.f32.mrf.mxu0
      %v655 = vadd.f32 0.0, %v654
      %v656 = vpop.f32.mrf.mxu0
      %657 = vdwg.mxu0
      %v658 = vsel %vm483, %v655, -inf
      %659 = vmax.xlane.f32.xlu0 %v658
      %v660 = vpop.xlane.xlu0 %659
      %v661 = vsub.f32 %v655, %v660
      %v662 = vmul.f32 %v661, 1.442695
      %v663 = vpow.pop %v662
      %v664 = vsel %vm483, %v663, 0.0
      %665 = vadd.xlane.f32.xlu0 %v664
      %v666 = vpop.xlane.xlu0 %665
      %v667 = vrcp.pop %v666
      %v668 = vmul.f32 %v663, %v667
      %v669 = vpack.c.bf16 %v668, %v668
      %670 = vrot.lane.b32.xlu0 %v482, 80
      %v671 = vpop.permute.xlu0 %670
      %v673 = vsel %vm483, %v669, 0
      %v676 = vsel %vm521, %v671, 0
      %678 = vmatpush.bf16.msra.mxu0 0
      %679 = vmatpush.bf16.msra.mxu0 0
      %680 = vmatpush.bf16.msra.mxu0 0
      %681 = vmatpush.bf16.msra.mxu0 0
      %682 = vmatpush.bf16.msra.mxu0 0
      %683 = vmatpush.bf16.msra.mxu0 0
      %684 = vmatpush.bf16.msra.mxu0 0
      %685 = vmatpush.bf16.msra.mxu0 %v676
      %686 = vmatmul.bf16.gmra.mxu0 %v673
      %v687 = vpop.f32.mrf.mxu0
      %v688 = vadd.f32 0.0, %v687
      %v689 = vpop.f32.mrf.mxu0
      %690 = vdwg.mxu0
      %v691 = vpack.c.bf16 %v688, %v688
      %v693 = vsel %vm483, %v691, 0
      %v696 = vsel %vm521, %v479, 0
      %698 = vmatpush.bf16.msra.mxu0 0
      %699 = vmatpush.bf16.msra.mxu0 0
      %700 = vmatpush.bf16.msra.mxu0 0
      %701 = vmatpush.bf16.msra.mxu0 0
      %702 = vmatpush.bf16.msra.mxu0 0
      %703 = vmatpush.bf16.msra.mxu0 0
      %704 = vmatpush.bf16.msra.mxu0 0
      %705 = vmatpush.bf16.msra.mxu0 %v696
      %706 = vmatmul.bf16.gmra.mxu0 %v693
      %v707 = vpop.f32.mrf.mxu0
      %v708 = vadd.f32 0.0, %v707
      %v709 = vpop.f32.mrf.mxu0
      %710 = vdwg.mxu0
      %v711 = vadd.f32 %v632, %v708
      %712 = vrot.lane.b32.xlu0 %v481, 104
      %v713 = vpop.permute.xlu0 %712
      %714 = vrot.lane.b32.xlu0 %v482, 104
      %v715 = vpop.permute.xlu0 %714
      %v717 = vsel %vm483, %v713, 0
      %v720 = vsel %vm483, %v715, 0
      %722 = vmatpush.bf16.xpose.msra.mxu0 0
      %723 = vmatpush.bf16.xpose.msra.mxu0 0
      %724 = vmatpush.bf16.xpose.msra.mxu0 0
      %725 = vmatpush.bf16.xpose.msra.mxu0 0
      %726 = vmatpush.bf16.xpose.msra.mxu0 0
      %727 = vmatpush.bf16.xpose.msra.mxu0 0
      %728 = vmatpush.bf16.xpose.msra.mxu0 0
      %729 = vmatpush.bf16.xpose.msra.mxu0 %v720
      %730 = vmatmul.bf16.gmra.mxu0 %v717
      %v731 = vpop.f32.mrf.mxu0
      %v732 = vadd.f32 0.0, %v731
      %v733 = vpop.f32.mrf.mxu0
      %734 = vdwg.mxu0
      %v735 = vsel %vm483, %v732, -inf
      %736 = vmax.xlane.f32.xlu0 %v735
      %v737 = vpop.xlane.xlu0 %736
      %v738 = vsub.f32 %v732, %v737
      %v739 = vmul.f32 %v738, 1.442695
      %v740 = vpow.pop %v739
      %v741 = vsel %vm483, %v740, 0.0
      %742 = vadd.xlane.f32.xlu0 %v741
      %v743 = vpop.xlane.xlu0 %742
      %v744 = vrcp.pop %v743
      %v745 = vmul.f32 %v740, %v744
      %v746 = vpack.c.bf16 %v745, %v745
      %747 = vrot.lane.b32.xlu0 %v482, 72
      %v748 = vpop.permute.xlu0 %747
      %v750 = vsel %vm483, %v746, 0
      %v753 = vsel %vm521, %v748, 0
      %755 = vmatpush.bf16.msra.mxu0 0
      %756 = vmatpush.bf16.msra.mxu0 0
      %757 = vmatpush.bf16.msra.mxu0 0
      %758 = vmatpush.bf16.msra.mxu0 0
      %759 = vmatpush.bf16.msra.mxu0 0
      %760 = vmatpush.bf16.msra.mxu0 0
      %761 = vmatpush.bf16.msra.mxu0 0
      %762 = vmatpush.bf16.msra.mxu0 %v753
      %763 = vmatmul.bf16.gmra.mxu0 %v750
      %v764 = vpop.f32.mrf.mxu0
      %v765 = vadd.f32 0.0, %v764
      %v766 = vpop.f32.mrf.mxu0
      %767 = vdwg.mxu0
      %v768 = vpack.c.bf16 %v765, %v765
      %v770 = vsel %vm483, %v768, 0
      %v773 = vsel %vm521, %v480, 0
      %775 = vmatpush.bf16.msra.mxu0 0
      %776 = vmatpush.bf16.msra.mxu0 0
      %777 = vmatpush.bf16.msra.mxu0 0
      %778 = vmatpush.bf16.msra.mxu0 0
      %779 = vmatpush.bf16.msra.mxu0 0
      %780 = vmatpush.bf16.msra.mxu0 0
      %781 = vmatpush.bf16.msra.mxu0 0
      %782 = vmatpush.bf16.msra.mxu0 %v773
      %783 = vmatmul.bf16.gmra.mxu0 %v770
      %v784 = vpop.f32.mrf.mxu0
      %v785 = vadd.f32 0.0, %v784
      %v786 = vpop.f32.mrf.mxu0
      %787 = vdwg.mxu0
      %v788 = vadd.f32 %v711, %v785
      %v789 = vld [vmem:[%s7] sm:$0x1]
      %v791 = vperm.slane %v789, 0
      %v793 = vadd.f32 %v788, %v791
      %v794 = vpack.c.bf16 %v793, %v793
      %vm795 = vcmask 257024
      %796 = vst.msk [vmem:[%s400] sm:$0xf] %vm795, %v794
      %p797 = scmp.lt.s32.totalorder %s24, 1
      %s798 = scalar_select %p797, %s24, 1
      %p799 = scmp.lt.s32.totalorder %s25, 1
      %s800 = scalar_select %p799, %s25, 1
      %p801 = scmp.lt.s32.totalorder %s26, 0
      %s802 = scalar_select %p801, %s26, 0
      %s803 = sadd.s32 %s802, %s800
      %s804 = smul.addr %s798, 2
      %s805 = sadd.s32 %s803, %s804
      %s806 = smul.addr %s805, 4
      %s807 = scalar_lea.vmem %s8, %s806
      // Predicated region
      $region53: #{attentional_gnn.10} parent=51 // pred_check
        %p808 = pneg %p246
      $region54: #{attentional_gnn.10} parent=51 // pred_check_branch
        %810 = sbr.rel (%p808) target = $region56
      $region55: #{attentional_gnn.10} parent=51 // pred_region
        _
      $region56: #{attentional_gnn.10} parent=51 // pred_fallthru
        _
    $region52: #{attentional_gnn.10} parent=5 // pred_fallthru
      _
    %p811 = scmp.le.s32.totalorder 2, %s14
    // Predicated region
    $region57: #{attentional_gnn.10} parent=5 // pred_check
      %p812 = pneg %p811
    $region58: #{attentional_gnn.10} parent=5 // pred_check_branch
      %814 = sbr.rel (%p812) target = $region60
    $region59: #{attentional_gnn.10} parent=5 // pred_region
      %s815 = ssub.s32 %s14, 2
      // Predicated region
      $region61: #{attentional_gnn.10} parent=59 // pred_check
        %p816 = pneg %p252
      $region62: #{attentional_gnn.10} parent=59 // pred_check_branch
        %818 = sbr.rel (%p816) target = $region64
      $region63: #{attentional_gnn.10} parent=59 // pred_region
        %p819 = scmp.lt.s32.totalorder %s27, 1
        %s820 = scalar_select %p819, %s27, 1
        %p821 = scmp.lt.s32.totalorder %s28, 1
        %s822 = scalar_select %p821, %s28, 1
        %p823 = scmp.lt.s32.totalorder %s29, 0
        %s824 = scalar_select %p823, %s29, 0
        %s825 = sadd.s32 %s824, %s822
        %s826 = smul.addr %s820, 2
        %s827 = sadd.s32 %s825, %s826
        %s828 = smul.addr %s827, 4
        %s829 = scalar_lea.vmem %s8, %s828
      $region64: #{attentional_gnn.10} parent=59 // pred_fallthru
        _
    $region60: #{attentional_gnn.10} parent=5 // pred_fallthru
      _
  $region6: #{attentional_gnn.10} parent=0 // loop_footer
    %s18 = sadd.s32 1, %s14
  $region7: #{attentional_gnn.10} parent=0 // loop_footer_branch
    %13 = sbr.rel target = $region3
  $region8: #{attentional_gnn.10} parent=0 // loop_exit
    _

// kernel: attentional_gnn.8
$region0: #{attentional_gnn.8}
  #allocation0 [shape = 'u32[]', space=smem, size = 0x4, offset = 0x4, fixed_abs, tag = 'smem constant byte address 0x4 - core index']
  #allocation1 [shape = 'u32[72,128]{1,0:T(1,128)}', space=vmem, size = 0x9000, scoped, tag = 'internal scratch']
  %s0 = inlined_call_operand.vmem [shape: bf16[2,2,8,32], index: 0, kind: input, shape index: {}, may-alias: {0,1}]
  %s1 = inlined_call_operand.vmem [shape: bf16[2,2,8,32], index: 1, kind: input, shape index: {}, may-alias: {0,1}]
  %s2 = inlined_call_operand.vmem [shape: bf16[32,32], index: 2, kind: input, shape index: {}]
  %s3 = inlined_call_operand.vmem [shape: f32[1,32], index: 3, kind: input, shape index: {}]
  %s4 = inlined_call_operand.vmem [shape: bf16[32,64], index: 4, kind: input, shape index: {}]
  %s5 = inlined_call_operand.vmem [shape: f32[1,64], index: 5, kind: input, shape index: {}]
  %s6 = inlined_call_operand.vmem [shape: bf16[32,32], index: 6, kind: input, shape index: {}]
  %s7 = inlined_call_operand.vmem [shape: f32[1,32], index: 7, kind: input, shape index: {}]
  %s8 = inlined_call_operand.vmem [shape: bf16[2,2,8,32], index: 8, kind: output, shape index: {}]
  %s9 = sld [smem:[#allocation0]]
  $region65: #{attentional_gnn.8} parent=0
    _
  %s11 = ssub.s32 1, %s9
  %s12 = scalar_select 0, %s11, %s9
  loop: start=0, step=1, limit=6
  $region2: #{attentional_gnn.8} parent=0 // loop_pre_header
    _
  $region3: #{attentional_gnn.8} parent=0 // loop_header
    %s14 = sphi 0, %s18
    %p15 = scmp.ge.s32.totalorder %s14, 6
    %s21 = sphi 0, %s40
    %s22 = sphi 0, %s36
    %s23 = sphi 0, %s32
    %s24 = sphi 0, %s21
    %s25 = sphi 0, %s22
    %s26 = sphi 0, %s23
    %s27 = sphi 0, %s24
    %s28 = sphi 0, %s25
    %s29 = sphi 0, %s26
    %s47 = sphi 0, %s49
    %s50 = sphi 0, %s47
    %s51 = sphi 0, %s50
    %s67 = sphi 0, %s51
    %s75 = sphi 0, %s77
    %s78 = sphi 0, %s75
    %s79 = sphi 0, %s78
    %s95 = sphi 0, %s79
    %s99 = sphi 0, %s99
    %s101 = sphi 0, %s99
    %s102 = sphi 0, %s101
    %s116 = sphi 0, %s102
    %s120 = sphi 0, %s120
    %s122 = sphi 0, %s120
    %s123 = sphi 0, %s122
    %s137 = sphi 0, %s123
    %s141 = sphi 0, %s141
    %s143 = sphi 0, %s141
    %s144 = sphi 0, %s143
    %s158 = sphi 0, %s144
    %s162 = sphi 0, %s162
    %s164 = sphi 0, %s162
    %s165 = sphi 0, %s164
    %s179 = sphi 0, %s165
    %s183 = sphi 0, %s183
    %s185 = sphi 0, %s183
    %s186 = sphi 0, %s185
    %s200 = sphi 0, %s186
    %s204 = sphi 0, %s204
    %s206 = sphi 0, %s204
    %s207 = sphi 0, %s206
    %s221 = sphi 0, %s207
    %s231 = sphi 0, %s233
    %s234 = sphi 0, %s231
    %s235 = sphi 0, %s234
    %s251 = sphi 0, %s235
  $region4: #{attentional_gnn.8} parent=0 // loop_header_branch
    %17 = sbr.rel (%p15) target = $region8
  $region5: #{attentional_gnn.8} parent=0 // loop_body
    %s19 = ssub.s32 %s14, 1
    %s20 = ssub.s32 %s14, 2
    %s30 = sadd.s32 1, %s23
    %p31 = scmp.ge.s32.totalorder %s30, 1
    %s32 = scalar_select %p31, 0, %s30
    %s33 = sadd.s32 1, %s22
    %s34 = scalar_select %p31, %s33, %s22
    %p35 = scmp.ge.s32.totalorder %s34, 2
    %s36 = scalar_select %p35, 0, %s34
    %s37 = sadd.s32 1, %s21
    %s38 = scalar_select %p35, %s37, %s21
    %p39 = scmp.ge.s32.totalorder %s38, 2
    %s40 = scalar_select %p39, 0, %s38
    %s41 = ssub.s32 %s21, %s40
    %s42 = ssub.s32 %s22, %s36
    %s43 = sor.u32 %s41, %s42
    %s44 = ssub.s32 %s23, %s32
    %s45 = sor.u32 %s43, %s44
    %p46 = scmp.eq.s32.totalorder %s45, 0
    %s48 = sadd.s32 %s47, 1
    %s49 = scalar_select %p46, %s47, %s48
    %p52 = pneg %p46
    %p53 = scmp.eq.s32.totalorder %s14, 3
    %p54 = por %p52, %p53
    %p55 = scmp.ne.s32.totalorder %s47, %s50
    %p56 = scmp.eq.s32.totalorder %s14, 0
    %p57 = por %p55, %p56
    %p58 = scmp.ne.s32.totalorder %s47, %s50
    %p59 = scmp.eq.s32.totalorder %s19, 3
    %p60 = por %p58, %p59
    %p61 = scmp.ne.s32.totalorder %s50, %s51
    %p62 = scmp.eq.s32.totalorder %s19, 0
    %p63 = por %p61, %p62
    %p64 = scmp.ne.s32.totalorder %s50, %s51
    %p65 = scmp.eq.s32.totalorder %s20, 3
    %p66 = por %p64, %p65
    %p68 = scmp.ne.s32.totalorder %s51, %s67
    %p69 = scmp.eq.s32.totalorder %s20, 0
    %p70 = por %p68, %p69
    %s71 = ssub.s32 %s21, %s40
    %s72 = ssub.s32 %s22, %s36
    %s73 = sor.u32 %s71, %s72
    %p74 = scmp.eq.s32.totalorder %s73, 0
    %s76 = sadd.s32 %s75, 1
    %s77 = scalar_select %p74, %s75, %s76
    %p80 = pneg %p74
    %p81 = scmp.eq.s32.totalorder %s14, 3
    %p82 = por %p80, %p81
    %p83 = scmp.ne.s32.totalorder %s75, %s78
    %p84 = scmp.eq.s32.totalorder %s14, 0
    %p85 = por %p83, %p84
    %p86 = scmp.ne.s32.totalorder %s75, %s78
    %p87 = scmp.eq.s32.totalorder %s19, 3
    %p88 = por %p86, %p87
    %p89 = scmp.ne.s32.totalorder %s78, %s79
    %p90 = scmp.eq.s32.totalorder %s19, 0
    %p91 = por %p89, %p90
    %p92 = scmp.ne.s32.totalorder %s78, %s79
    %p93 = scmp.eq.s32.totalorder %s20, 3
    %p94 = por %p92, %p93
    %p96 = scmp.ne.s32.totalorder %s79, %s95
    %p97 = scmp.eq.s32.totalorder %s20, 0
    %p98 = por %p96, %p97
    %s100 = sadd.s32 %s99, 1
    %p103 = scmp.eq.s32.totalorder %s14, 3
    %p104 = scmp.ne.s32.totalorder %s99, %s101
    %p105 = scmp.eq.s32.totalorder %s14, 0
    %p106 = por %p104, %p105
    %p107 = scmp.ne.s32.totalorder %s99, %s101
    %p108 = scmp.eq.s32.totalorder %s19, 3
    %p109 = por %p107, %p108
    %p110 = scmp.ne.s32.totalorder %s101, %s102
    %p111 = scmp.eq.s32.totalorder %s19, 0
    %p112 = por %p110, %p111
    %p113 = scmp.ne.s32.totalorder %s101, %s102
    %p114 = scmp.eq.s32.totalorder %s20, 3
    %p115 = por %p113, %p114
    %p117 = scmp.ne.s32.totalorder %s102, %s116
    %p118 = scmp.eq.s32.totalorder %s20, 0
    %p119 = por %p117, %p118
    %s121 = sadd.s32 %s120, 1
    %p124 = scmp.eq.s32.totalorder %s14, 3
    %p125 = scmp.ne.s32.totalorder %s120, %s122
    %p126 = scmp.eq.s32.totalorder %s14, 0
    %p127 = por %p125, %p126
    %p128 = scmp.ne.s32.totalorder %s120, %s122
    %p129 = scmp.eq.s32.totalorder %s19, 3
    %p130 = por %p128, %p129
    %p131 = scmp.ne.s32.totalorder %s122, %s123
    %p132 = scmp.eq.s32.totalorder %s19, 0
    %p133 = por %p131, %p132
    %p134 = scmp.ne.s32.totalorder %s122, %s123
    %p135 = scmp.eq.s32.totalorder %s20, 3
    %p136 = por %p134, %p135
    %p138 = scmp.ne.s32.totalorder %s123, %s137
    %p139 = scmp.eq.s32.totalorder %s20, 0
    %p140 = por %p138, %p139
    %s142 = sadd.s32 %s141, 1
    %p145 = scmp.eq.s32.totalorder %s14, 3
    %p146 = scmp.ne.s32.totalorder %s141, %s143
    %p147 = scmp.eq.s32.totalorder %s14, 0
    %p148 = por %p146, %p147
    %p149 = scmp.ne.s32.totalorder %s141, %s143
    %p150 = scmp.eq.s32.totalorder %s19, 3
    %p151 = por %p149, %p150
    %p152 = scmp.ne.s32.totalorder %s143, %s144
    %p153 = scmp.eq.s32.totalorder %s19, 0
    %p154 = por %p152, %p153
    %p155 = scmp.ne.s32.totalorder %s143, %s144
    %p156 = scmp.eq.s32.totalorder %s20, 3
    %p157 = por %p155, %p156
    %p159 = scmp.ne.s32.totalorder %s144, %s158
    %p160 = scmp.eq.s32.totalorder %s20, 0
    %p161 = por %p159, %p160
    %s163 = sadd.s32 %s162, 1
    %p166 = scmp.eq.s32.totalorder %s14, 3
    %p167 = scmp.ne.s32.totalorder %s162, %s164
    %p168 = scmp.eq.s32.totalorder %s14, 0
    %p169 = por %p167, %p168
    %p170 = scmp.ne.s32.totalorder %s162, %s164
    %p171 = scmp.eq.s32.totalorder %s19, 3
    %p172 = por %p170, %p171
    %p173 = scmp.ne.s32.totalorder %s164, %s165
    %p174 = scmp.eq.s32.totalorder %s19, 0
    %p175 = por %p173, %p174
    %p176 = scmp.ne.s32.totalorder %s164, %s165
    %p177 = scmp.eq.s32.totalorder %s20, 3
    %p178 = por %p176, %p177
    %p180 = scmp.ne.s32.totalorder %s165, %s179
    %p181 = scmp.eq.s32.totalorder %s20, 0
    %p182 = por %p180, %p181
    %s184 = sadd.s32 %s183, 1
    %p187 = scmp.eq.s32.totalorder %s14, 3
    %p188 = scmp.ne.s32.totalorder %s183, %s185
    %p189 = scmp.eq.s32.totalorder %s14, 0
    %p190 = por %p188, %p189
    %p191 = scmp.ne.s32.totalorder %s183, %s185
    %p192 = scmp.eq.s32.totalorder %s19, 3
    %p193 = por %p191, %p192
    %p194 = scmp.ne.s32.totalorder %s185, %s186
    %p195 = scmp.eq.s32.totalorder %s19, 0
    %p196 = por %p194, %p195
    %p197 = scmp.ne.s32.totalorder %s185, %s186
    %p198 = scmp.eq.s32.totalorder %s20, 3
    %p199 = por %p197, %p198
    %p201 = scmp.ne.s32.totalorder %s186, %s200
    %p202 = scmp.eq.s32.totalorder %s20, 0
    %p203 = por %p201, %p202
    %s205 = sadd.s32 %s204, 1
    %p208 = scmp.eq.s32.totalorder %s14, 3
    %p209 = scmp.ne.s32.totalorder %s204, %s206
    %p210 = scmp.eq.s32.totalorder %s14, 0
    %p211 = por %p209, %p210
    %p212 = scmp.ne.s32.totalorder %s204, %s206
    %p213 = scmp.eq.s32.totalorder %s19, 3
    %p214 = por %p212, %p213
    %p215 = scmp.ne.s32.totalorder %s206, %s207
    %p216 = scmp.eq.s32.totalorder %s19, 0
    %p217 = por %p215, %p216
    %p218 = scmp.ne.s32.totalorder %s206, %s207
    %p219 = scmp.eq.s32.totalorder %s20, 3
    %p220 = por %p218, %p219
    %p222 = scmp.ne.s32.totalorder %s207, %s221
    %p223 = scmp.eq.s32.totalorder %s20, 0
    %p224 = por %p222, %p223
    %s225 = ssub.s32 %s21, %s40
    %s226 = ssub.s32 %s22, %s36
    %s227 = sor.u32 %s225, %s226
    %s228 = ssub.s32 %s23, %s32
    %s229 = sor.u32 %s227, %s228
    %p230 = scmp.eq.s32.totalorder %s229, 0
    %s232 = sadd.s32 %s231, 1
    %s233 = scalar_select %p230, %s231, %s232
    %p236 = pneg %p230
    %p237 = scmp.eq.s32.totalorder %s14, 3
    %p238 = por %p236, %p237
    %p239 = scmp.ne.s32.totalorder %s231, %s234
    %p240 = scmp.eq.s32.totalorder %s14, 0
    %p241 = por %p239, %p240
    %p242 = scmp.ne.s32.totalorder %s231, %s234
    %p243 = scmp.eq.s32.totalorder %s19, 3
    %p244 = por %p242, %p243
    %p245 = scmp.ne.s32.totalorder %s234, %s235
    %p246 = scmp.eq.s32.totalorder %s19, 0
    %p247 = por %p245, %p246
    %p248 = scmp.ne.s32.totalorder %s234, %s235
    %p249 = scmp.eq.s32.totalorder %s20, 3
    %p250 = por %p248, %p249
    %p252 = scmp.ne.s32.totalorder %s235, %s251
    %p253 = scmp.eq.s32.totalorder %s20, 0
    %p254 = por %p252, %p253
    %p255 = scmp.le.s32.totalorder 1, %s14
    %p256 = scmp.lt.s32.totalorder %s14, 5
    %p257 = pnand %p255, %p256
    %p258 = pneg %p257
    // Predicated region
    $region9: #{attentional_gnn.8} parent=5 // pred_check
      _
    $region10: #{attentional_gnn.8} parent=5 // pred_check_branch
      %260 = sbr.rel (%p257) target = $region12
    $region11: #{attentional_gnn.8} parent=5 // pred_region
      %s261 = ssub.s32 %s14, 1
      // Predicated region
      $region13: #{attentional_gnn.8} parent=11 // pred_check
        %p262 = pneg %p112
      $region14: #{attentional_gnn.8} parent=11 // pred_check_branch
        %264 = sbr.rel (%p262) target = $region16
      $region15: #{attentional_gnn.8} parent=11 // pred_region
        _
      $region16: #{attentional_gnn.8} parent=11 // pred_fallthru
        _
      // Predicated region
      $region17: #{attentional_gnn.8} parent=11 // pred_check
        %p265 = pneg %p133
      $region18: #{attentional_gnn.8} parent=11 // pred_check_branch
        %267 = sbr.rel (%p265) target = $region20
      $region19: #{attentional_gnn.8} parent=11 // pred_region
        _
      $region20: #{attentional_gnn.8} parent=11 // pred_fallthru
        _
      // Predicated region
      $region21: #{attentional_gnn.8} parent=11 // pred_check
        %p268 = pneg %p154
      $region22: #{attentional_gnn.8} parent=11 // pred_check_branch
        %270 = sbr.rel (%p268) target = $region24
      $region23: #{attentional_gnn.8} parent=11 // pred_region
        _
      $region24: #{attentional_gnn.8} parent=11 // pred_fallthru
        _
      // Predicated region
      $region25: #{attentional_gnn.8} parent=11 // pred_check
        %p271 = pneg %p175
      $region26: #{attentional_gnn.8} parent=11 // pred_check_branch
        %273 = sbr.rel (%p271) target = $region28
      $region27: #{attentional_gnn.8} parent=11 // pred_region
        _
      $region28: #{attentional_gnn.8} parent=11 // pred_fallthru
        _
      // Predicated region
      $region29: #{attentional_gnn.8} parent=11 // pred_check
        %p274 = pneg %p196
      $region30: #{attentional_gnn.8} parent=11 // pred_check_branch
        %276 = sbr.rel (%p274) target = $region32
      $region31: #{attentional_gnn.8} parent=11 // pred_region
        _
      $region32: #{attentional_gnn.8} parent=11 // pred_fallthru
        _
      // Predicated region
      $region33: #{attentional_gnn.8} parent=11 // pred_check
        %p277 = pneg %p217
      $region34: #{attentional_gnn.8} parent=11 // pred_check_branch
        %279 = sbr.rel (%p277) target = $region36
      $region35: #{attentional_gnn.8} parent=11 // pred_region
        _
      $region36: #{attentional_gnn.8} parent=11 // pred_fallthru
        _
    $region12: #{attentional_gnn.8} parent=5 // pred_fallthru
      _
    %p280 = scmp.lt.s32.totalorder %s14, 4
    // Predicated region
    $region37: #{attentional_gnn.8} parent=5 // pred_check
      %p281 = pneg %p280
    $region38: #{attentional_gnn.8} parent=5 // pred_check_branch
      %283 = sbr.rel (%p281) target = $region40
    $region39: #{attentional_gnn.8} parent=5 // pred_region
      // Predicated region
      $region41: #{attentional_gnn.8} parent=39 // pred_check
        %p284 = pneg %p57
      $region42: #{attentional_gnn.8} parent=39 // pred_check_branch
        %286 = sbr.rel (%p284) target = $region44
      $region43: #{attentional_gnn.8} parent=39 // pred_region
        %p287 = scmp.lt.s32.totalorder %s21, 1
        %s288 = scalar_select %p287, %s21, 1
        %p289 = scmp.lt.s32.totalorder %s22, 1
        %s290 = scalar_select %p289, %s22, 1
        %p291 = scmp.lt.s32.totalorder %s23, 0
        %s292 = scalar_select %p291, %s23, 0
        %s293 = sadd.s32 %s292, %s290
        %s294 = smul.addr %s288, 2
        %s295 = sadd.s32 %s293, %s294
        %s296 = smul.addr %s295, 4
        %s297 = scalar_lea.vmem %s0, %s296
      $region44: #{attentional_gnn.8} parent=39 // pred_fallthru
        _
      // Predicated region
      $region45: #{attentional_gnn.8} parent=39 // pred_check
        %p298 = pneg %p85
      $region46: #{attentional_gnn.8} parent=39 // pred_check_branch
        %300 = sbr.rel (%p298) target = $region48
      $region47: #{attentional_gnn.8} parent=39 // pred_region
        %p301 = scmp.lt.s32.totalorder %s21, 1
        %s302 = scalar_select %p301, %s21, 1
        %p303 = scmp.lt.s32.totalorder %s22, 1
        %s304 = scalar_select %p303, %s22, 1
        %s305 = smul.addr %s302, 2
        %s306 = sadd.s32 %s304, %s305
        %s307 = smul.addr %s306, 4
        %s308 = scalar_lea.vmem %s1, %s307
      $region48: #{attentional_gnn.8} parent=39 // pred_fallthru
        _
    $region40: #{attentional_gnn.8} parent=5 // pred_fallthru
      _
    %p309 = scmp.le.s32.totalorder 1, %s14
    %p310 = scmp.lt.s32.totalorder %s14, 5
    %p311 = pnand %p309, %p310
    %p312 = pneg %p311
    // Predicated region
    $region49: #{attentional_gnn.8} parent=5 // pred_check
      _
    $region50: #{attentional_gnn.8} parent=5 // pred_check_branch
      %314 = sbr.rel (%p311) target = $region52
    $region51: #{attentional_gnn.8} parent=5 // pred_region
      %s315 = ssub.s32 %s14, 1
      %p316 = scmp.lt.s32.totalorder %s24, 1
      %s317 = scalar_select %p316, %s24, 1
      %p318 = scmp.lt.s32.totalorder %s25, 1
      %s319 = scalar_select %p318, %s25, 1
      %p320 = scmp.lt.s32.totalorder %s26, 0
      %s321 = scalar_select %p320, %s26, 0
      %s322 = sadd.s32 %s321, %s319
      %s323 = smul.addr %s317, 2
      %s324 = sadd.s32 %s322, %s323
      %s325 = smul.addr %s324, 4
      %s326 = scalar_lea.vmem %s0, %s325
      %p327 = pneg %p63
      %p328 = pneg %p60
      %p329 = scmp.lt.s32.totalorder %s24, 1
      %s330 = scalar_select %p329, %s24, 1
      %p331 = scmp.lt.s32.totalorder %s25, 1
      %s332 = scalar_select %p331, %s25, 1
      %s333 = smul.addr %s330, 2
      %s334 = sadd.s32 %s332, %s333
      %s335 = smul.addr %s334, 4
      %s336 = scalar_lea.vmem %s1, %s335
      %p337 = pneg %p91
      %p338 = pneg %p88
      %p339 = pneg %p112
      %p340 = pneg %p109
      %p341 = pneg %p133
      %p342 = pneg %p130
      %p343 = pneg %p154
      %p344 = pneg %p151
      %p345 = pneg %p175
      %p346 = pneg %p172
      %p347 = pneg %p196
      %p348 = pneg %p193
      %p349 = pneg %p217
      %p350 = pneg %p214
      %p351 = pneg %p247
      %p352 = pneg %p244
      %p353 = scmp.lt.s32.totalorder %s24, 1
      %s354 = scalar_select %p353, %s24, 1
      %p355 = scmp.lt.s32.totalorder %s25, 1
      %s356 = scalar_select %p355, %s25, 1
      %p357 = scmp.lt.s32.totalorder %s26, 0
      %s358 = scalar_select %p357, %s26, 0
      %s359 = sadd.s32 %s358, %s356
      %s360 = smul.addr %s354, 2
      %s361 = sadd.s32 %s359, %s360
      %s362 = smul.addr %s361, 4
      %s363 = scalar_lea.vmem %s8, %s362
      %p364 = scmp.lt.s32.totalorder %s24, 1
      %s365 = scalar_select %p364, %s24, 1
      %p366 = scmp.lt.s32.totalorder %s25, 1
      %s367 = scalar_select %p366, %s25, 1
      %p368 = scmp.lt.s32.totalorder %s26, 0
      %s369 = scalar_select %p368, %s26, 0
      %s370 = sadd.s32 %s369, %s367
      %s371 = smul.addr %s365, 2
      %s372 = sadd.s32 %s370, %s371
      %s373 = smul.addr %s372, 4
      %s374 = scalar_lea.vmem %s0, %s373
      %p375 = scmp.lt.s32.totalorder %s24, 1
      %s376 = scalar_select %p375, %s24, 1
      %p377 = scmp.lt.s32.totalorder %s25, 1
      %s378 = scalar_select %p377, %s25, 1
      %s379 = smul.addr %s376, 2
      %s380 = sadd.s32 %s378, %s379
      %s381 = smul.addr %s380, 4
      %s382 = scalar_lea.vmem %s1, %s381
      %p383 = scmp.lt.s32.totalorder %s24, 1
      %s384 = scalar_select %p383, %s24, 1
      %p385 = scmp.lt.s32.totalorder %s25, 1
      %s386 = scalar_select %p385, %s25, 1
      %p387 = scmp.lt.s32.totalorder %s26, 0
      %s388 = scalar_select %p387, %s26, 0
      %s389 = sadd.s32 %s388, %s386
      %s390 = smul.addr %s384, 2
      %s391 = sadd.s32 %s389, %s390
      %s392 = smul.addr %s391, 4
      %s393 = scalar_lea.vmem %s8, %s392
      %v395 = vld [vmem:[%s374] sm:$0xf]
      %v396 = vld [vmem:[%s382] sm:$0xf]
      %v397 = vld [vmem:[%s2] sm:$0xf]
      %v398 = vld [vmem:[%s2 + $0x4] sm:$0xf]
      %v399 = vld [vmem:[%s2 + $0x8] sm:$0xf]
      %v400 = vld [vmem:[%s2 + $0xc] sm:$0xf]
      %v401 = vld [vmem:[%s3] sm:$0x1]
      %v403 = vperm.slane %v401, 0
      %v409 = vunpack.c.l.b16 %v397
      %v410 = vunpack.c.l.b16 %v398
      %v411 = vunpack.c.l.b16 %v399
      %v412 = vunpack.c.l.b16 %v400
      %v413 = vpack.c.b16 %v410, %v409
      %v414 = vpack.c.b16 %v412, %v411
      %vm417 = vcmask 261120
      %v419 = vsel %vm417, %v395, 0
      %421 = vmatpush.bf16.msra.mxu0 0
      %422 = vmatpush.bf16.msra.mxu0 0
      %423 = vmatpush.bf16.msra.mxu0 0
      %424 = vmatpush.bf16.msra.mxu0 0
      %425 = vmatpush.bf16.msra.mxu0 0
      %426 = vmatpush.bf16.msra.mxu0 0
      %427 = vmatpush.bf16.msra.mxu0 %v414
      %428 = vmatpush.bf16.msra.mxu0 %v413
      %429 = vmatmul.bf16.gmra.mxu0 %v419
      %v430 = vpop.f32.mrf.mxu0
      %v431 = vadd.f32 %v403, %v430
      %v432 = vpop.f32.mrf.mxu0
      %433 = vdwg.mxu0
      %v434 = vld [vmem:[%s4] sm:$0xf]
      %v435 = vld [vmem:[%s4 + $0x4] sm:$0xf]
      %v436 = vld [vmem:[%s4 + $0x8] sm:$0xf]
      %v437 = vld [vmem:[%s4 + $0xc] sm:$0xf]
      %v438 = vld [vmem:[%s5] sm:$0x1]
      %v440 = vperm.slane %v438, 0
      %v446 = vunpack.c.l.b16 %v434
      %v447 = vunpack.c.l.b16 %v435
      %v448 = vunpack.c.l.b16 %v436
      %v449 = vunpack.c.l.b16 %v437
      %v450 = vpack.c.b16 %v447, %v446
      %v451 = vpack.c.b16 %v449, %v448
      %v455 = vsel %vm417, %v396, 0
      %457 = vmatpush.bf16.msra.mxu0 0
      %458 = vmatpush.bf16.msra.mxu0 0
      %459 = vmatpush.bf16.msra.mxu0 0
      %460 = vmatpush.bf16.msra.mxu0 0
      %461 = vmatpush.bf16.msra.mxu0 0
      %462 = vmatpush.bf16.msra.mxu0 0
      %463 = vmatpush.bf16.msra.mxu0 %v451
      %464 = vmatpush.bf16.msra.mxu0 %v450
      %465 = vmatmul.bf16.gmra.mxu0 %v455
      %v466 = vpop.f32.mrf.mxu0
      %v467 = vadd.f32 %v440, %v466
      %v468 = vpop.f32.mrf.mxu0
      %469 = vdwg.mxu0
      %v470 = vld [vmem:[%s6] sm:$0xf]
      %v471 = vld [vmem:[%s6 + $0x4] sm:$0xf]
      %v472 = vld [vmem:[%s6 + $0x8] sm:$0xf]
      %v473 = vld [vmem:[%s6 + $0xc] sm:$0xf]
      %v474 = vpack.c.bf16 %v431, %v431
      %v475 = vpack.c.bf16 %v467, %v467
      %vm476 = vcmask 64512
      %v478 = vsel %vm476, %v474, 0
      %v481 = vsel %vm476, %v475, 0
      %483 = vmatpush.bf16.xpose.msra.mxu0 0
      %484 = vmatpush.bf16.xpose.msra.mxu0 0
      %485 = vmatpush.bf16.xpose.msra.mxu0 0
      %486 = vmatpush.bf16.xpose.msra.mxu0 0
      %487 = vmatpush.bf16.xpose.msra.mxu0 0
      %488 = vmatpush.bf16.xpose.msra.mxu0 0
      %489 = vmatpush.bf16.xpose.msra.mxu0 0
      %490 = vmatpush.bf16.xpose.msra.mxu0 %v481
      %491 = vmatmul.bf16.gmra.mxu0 %v478
      %v492 = vpop.f32.mrf.mxu0
      %v493 = vadd.f32 0.0, %v492
      %v494 = vpop.f32.mrf.mxu0
      %495 = vdwg.mxu0
      %v496 = vsel %vm476, %v493, -inf
      %497 = vmax.xlane.f32.xlu0 %v496
      %v498 = vpop.xlane.xlu0 %497
      %v499 = vsub.f32 %v493, %v498
      %v500 = vmul.f32 %v499, 1.442695
      %v501 = vpow.pop %v500
      %v502 = vsel %vm476, %v501, 0.0
      %503 = vadd.xlane.f32.xlu0 %v502
      %v504 = vpop.xlane.xlu0 %503
      %v505 = vrcp.pop %v504
      %v506 = vmul.f32 %v501, %v505
      %v507 = vpack.c.bf16 %v506, %v506
      %509 = vrot.lane.b32.xlu0 %v475, 96
      %v510 = vpop.permute.xlu0 %509
      %v512 = vsel %vm476, %v507, 0
      %vm514 = vcmask 1043456
      %v516 = vsel %vm514, %v510, 0
      %518 = vmatpush.bf16.msra.mxu0 0
      %519 = vmatpush.bf16.msra.mxu0 0
      %520 = vmatpush.bf16.msra.mxu0 0
      %521 = vmatpush.bf16.msra.mxu0 0
      %522 = vmatpush.bf16.msra.mxu0 0
      %523 = vmatpush.bf16.msra.mxu0 0
      %524 = vmatpush.bf16.msra.mxu0 0
      %525 = vmatpush.bf16.msra.mxu0 %v516
      %526 = vmatmul.bf16.gmra.mxu0 %v512
      %v527 = vpop.f32.mrf.mxu0
      %v528 = vadd.f32 0.0, %v527
      %v529 = vpop.f32.mrf.mxu0
      %530 = vdwg.mxu0
      %v531 = vpack.c.bf16 %v528, %v528
      %533 = vrot.lane.b32.xlu0 %v474, 120
      %v534 = vpop.permute.xlu0 %533
      %535 = vrot.lane.b32.xlu0 %v475, 120
      %v536 = vpop.permute.xlu0 %535
      %v538 = vsel %vm476, %v534, 0
      %v541 = vsel %vm476, %v536, 0
      %543 = vmatpush.bf16.xpose.msra.mxu0 0
      %544 = vmatpush.bf16.xpose.msra.mxu0 0
      %545 = vmatpush.bf16.xpose.msra.mxu0 0
      %546 = vmatpush.bf16.xpose.msra.mxu0 0
      %547 = vmatpush.bf16.xpose.msra.mxu0 0
      %548 = vmatpush.bf16.xpose.msra.mxu0 0
      %549 = vmatpush.bf16.xpose.msra.mxu0 0
      %550 = vmatpush.bf16.xpose.msra.mxu0 %v541
      %551 = vmatmul.bf16.gmra.mxu0 %v538
      %v552 = vpop.f32.mrf.mxu0
      %v553 = vadd.f32 0.0, %v552
      %v554 = vpop.f32.mrf.mxu0
      %555 = vdwg.mxu0
      %v556 = vsel %vm476, %v553, -inf
      %557 = vmax.xlane.f32.xlu0 %v556
      %v558 = vpop.xlane.xlu0 %557
      %v559 = vsub.f32 %v553, %v558
      %v560 = vmul.f32 %v559, 1.442695
      %v561 = vpow.pop %v560
      %v562 = vsel %vm476, %v561, 0.0
      %563 = vadd.xlane.f32.xlu0 %v562
      %v564 = vpop.xlane.xlu0 %563
      %v565 = vrcp.pop %v564
      %v566 = vmul.f32 %v561, %v565
      %v567 = vpack.c.bf16 %v566, %v566
      %568 = vrot.lane.b32.xlu0 %v475, 88
      %v569 = vpop.permute.xlu0 %568
      %v571 = vsel %vm476, %v567, 0
      %v574 = vsel %vm514, %v569, 0
      %576 = vmatpush.bf16.msra.mxu0 0
      %577 = vmatpush.bf16.msra.mxu0 0
      %578 = vmatpush.bf16.msra.mxu0 0
      %579 = vmatpush.bf16.msra.mxu0 0
      %580 = vmatpush.bf16.msra.mxu0 0
      %581 = vmatpush.bf16.msra.mxu0 0
      %582 = vmatpush.bf16.msra.mxu0 0
      %583 = vmatpush.bf16.msra.mxu0 %v574
      %584 = vmatmul.bf16.gmra.mxu0 %v571
      %v585 = vpop.f32.mrf.mxu0
      %v586 = vadd.f32 0.0, %v585
      %v587 = vpop.f32.mrf.mxu0
      %588 = vdwg.mxu0
      %v589 = vpack.c.bf16 %v586, %v586
      %v591 = vsel %vm476, %v589, 0
      %v594 = vsel %vm514, %v471, 0
      %596 = vmatpush.bf16.msra.mxu0 0
      %597 = vmatpush.bf16.msra.mxu0 0
      %598 = vmatpush.bf16.msra.mxu0 0
      %599 = vmatpush.bf16.msra.mxu0 0
      %600 = vmatpush.bf16.msra.mxu0 0
      %601 = vmatpush.bf16.msra.mxu0 0
      %602 = vmatpush.bf16.msra.mxu0 0
      %603 = vmatpush.bf16.msra.mxu0 %v594
      %604 = vmatmul.bf16.gmra.mxu0 %v591
      %v605 = vpop.f32.mrf.mxu0
      %v606 = vadd.f32 0.0, %v605
      %v607 = vpop.f32.mrf.mxu0
      %608 = vdwg.mxu0
      %v610 = vsel %vm476, %v531, 0
      %v613 = vsel %vm514, %v470, 0
      %615 = vmatpush.bf16.msra.mxu0 0
      %616 = vmatpush.bf16.msra.mxu0 0
      %617 = vmatpush.bf16.msra.mxu0 0
      %618 = vmatpush.bf16.msra.mxu0 0
      %619 = vmatpush.bf16.msra.mxu0 0
      %620 = vmatpush.bf16.msra.mxu0 0
      %621 = vmatpush.bf16.msra.mxu0 0
      %622 = vmatpush.bf16.msra.mxu0 %v613
      %623 = vmatmul.bf16.gmra.mxu0 %v610
      %v624 = vpop.f32.mrf.mxu0
      %v625 = vadd.f32 %v606, %v624
      %v626 = vpop.f32.mrf.mxu0
      %627 = vdwg.mxu0
      %628 = vrot.lane.b32.xlu0 %v474, 112
      %v629 = vpop.permute.xlu0 %628
      %630 = vrot.lane.b32.xlu0 %v475, 112
      %v631 = vpop.permute.xlu0 %630
      %v633 = vsel %vm476, %v629, 0
      %v636 = vsel %vm476, %v631, 0
      %638 = vmatpush.bf16.xpose.msra.mxu0 0
      %639 = vmatpush.bf16.xpose.msra.mxu0 0
      %640 = vmatpush.bf16.xpose.msra.mxu0 0
      %641 = vmatpush.bf16.xpose.msra.mxu0 0
      %642 = vmatpush.bf16.xpose.msra.mxu0 0
      %643 = vmatpush.bf16.xpose.msra.mxu0 0
      %644 = vmatpush.bf16.xpose.msra.mxu0 0
      %645 = vmatpush.bf16.xpose.msra.mxu0 %v636
      %646 = vmatmul.bf16.gmra.mxu0 %v633
      %v647 = vpop.f32.mrf.mxu0
      %v648 = vadd.f32 0.0, %v647
      %v649 = vpop.f32.mrf.mxu0
      %650 = vdwg.mxu0
      %v651 = vsel %vm476, %v648, -inf
      %652 = vmax.xlane.f32.xlu0 %v651
      %v653 = vpop.xlane.xlu0 %652
      %v654 = vsub.f32 %v648, %v653
      %v655 = vmul.f32 %v654, 1.442695
      %v656 = vpow.pop %v655
      %v657 = vsel %vm476, %v656, 0.0
      %658 = vadd.xlane.f32.xlu0 %v657
      %v659 = vpop.xlane.xlu0 %658
      %v660 = vrcp.pop %v659
      %v661 = vmul.f32 %v656, %v660
      %v662 = vpack.c.bf16 %v661, %v661
      %663 = vrot.lane.b32.xlu0 %v475, 80
      %v664 = vpop.permute.xlu0 %663
      %v666 = vsel %vm476, %v662, 0
      %v669 = vsel %vm514, %v664, 0
      %671 = vmatpush.bf16.msra.mxu0 0
      %672 = vmatpush.bf16.msra.mxu0 0
      %673 = vmatpush.bf16.msra.mxu0 0
      %674 = vmatpush.bf16.msra.mxu0 0
      %675 = vmatpush.bf16.msra.mxu0 0
      %676 = vmatpush.bf16.msra.mxu0 0
      %677 = vmatpush.bf16.msra.mxu0 0
      %678 = vmatpush.bf16.msra.mxu0 %v669
      %679 = vmatmul.bf16.gmra.mxu0 %v666
      %v680 = vpop.f32.mrf.mxu0
      %v681 = vadd.f32 0.0, %v680
      %v682 = vpop.f32.mrf.mxu0
      %683 = vdwg.mxu0
      %v684 = vpack.c.bf16 %v681, %v681
      %v686 = vsel %vm476, %v684, 0
      %v689 = vsel %vm514, %v472, 0
      %691 = vmatpush.bf16.msra.mxu0 0
      %692 = vmatpush.bf16.msra.mxu0 0
      %693 = vmatpush.bf16.msra.mxu0 0
      %694 = vmatpush.bf16.msra.mxu0 0
      %695 = vmatpush.bf16.msra.mxu0 0
      %696 = vmatpush.bf16.msra.mxu0 0
      %697 = vmatpush.bf16.msra.mxu0 0
      %698 = vmatpush.bf16.msra.mxu0 %v689
      %699 = vmatmul.bf16.gmra.mxu0 %v686
      %v700 = vpop.f32.mrf.mxu0
      %v701 = vadd.f32 0.0, %v700
      %v702 = vpop.f32.mrf.mxu0
      %703 = vdwg.mxu0
      %v704 = vadd.f32 %v625, %v701
      %705 = vrot.lane.b32.xlu0 %v474, 104
      %v706 = vpop.permute.xlu0 %705
      %707 = vrot.lane.b32.xlu0 %v475, 104
      %v708 = vpop.permute.xlu0 %707
      %v710 = vsel %vm476, %v706, 0
      %v713 = vsel %vm476, %v708, 0
      %715 = vmatpush.bf16.xpose.msra.mxu0 0
      %716 = vmatpush.bf16.xpose.msra.mxu0 0
      %717 = vmatpush.bf16.xpose.msra.mxu0 0
      %718 = vmatpush.bf16.xpose.msra.mxu0 0
      %719 = vmatpush.bf16.xpose.msra.mxu0 0
      %720 = vmatpush.bf16.xpose.msra.mxu0 0
      %721 = vmatpush.bf16.xpose.msra.mxu0 0
      %722 = vmatpush.bf16.xpose.msra.mxu0 %v713
      %723 = vmatmul.bf16.gmra.mxu0 %v710
      %v724 = vpop.f32.mrf.mxu0
      %v725 = vadd.f32 0.0, %v724
      %v726 = vpop.f32.mrf.mxu0
      %727 = vdwg.mxu0
      %v728 = vsel %vm476, %v725, -inf
      %729 = vmax.xlane.f32.xlu0 %v728
      %v730 = vpop.xlane.xlu0 %729
      %v731 = vsub.f32 %v725, %v730
      %v732 = vmul.f32 %v731, 1.442695
      %v733 = vpow.pop %v732
      %v734 = vsel %vm476, %v733, 0.0
      %735 = vadd.xlane.f32.xlu0 %v734
      %v736 = vpop.xlane.xlu0 %735
      %v737 = vrcp.pop %v736
      %v738 = vmul.f32 %v733, %v737
      %v739 = vpack.c.bf16 %v738, %v738
      %740 = vrot.lane.b32.xlu0 %v475, 72
      %v741 = vpop.permute.xlu0 %740
      %v743 = vsel %vm476, %v739, 0
      %v746 = vsel %vm514, %v741, 0
      %748 = vmatpush.bf16.msra.mxu0 0
      %749 = vmatpush.bf16.msra.mxu0 0
      %750 = vmatpush.bf16.msra.mxu0 0
      %751 = vmatpush.bf16.msra.mxu0 0
      %752 = vmatpush.bf16.msra.mxu0 0
      %753 = vmatpush.bf16.msra.mxu0 0
      %754 = vmatpush.bf16.msra.mxu0 0
      %755 = vmatpush.bf16.msra.mxu0 %v746
      %756 = vmatmul.bf16.gmra.mxu0 %v743
      %v757 = vpop.f32.mrf.mxu0
      %v758 = vadd.f32 0.0, %v757
      %v759 = vpop.f32.mrf.mxu0
      %760 = vdwg.mxu0
      %v761 = vpack.c.bf16 %v758, %v758
      %v763 = vsel %vm476, %v761, 0
      %v766 = vsel %vm514, %v473, 0
      %768 = vmatpush.bf16.msra.mxu0 0
      %769 = vmatpush.bf16.msra.mxu0 0
      %770 = vmatpush.bf16.msra.mxu0 0
      %771 = vmatpush.bf16.msra.mxu0 0
      %772 = vmatpush.bf16.msra.mxu0 0
      %773 = vmatpush.bf16.msra.mxu0 0
      %774 = vmatpush.bf16.msra.mxu0 0
      %775 = vmatpush.bf16.msra.mxu0 %v766
      %776 = vmatmul.bf16.gmra.mxu0 %v763
      %v777 = vpop.f32.mrf.mxu0
      %v778 = vadd.f32 0.0, %v777
      %v779 = vpop.f32.mrf.mxu0
      %780 = vdwg.mxu0
      %v781 = vadd.f32 %v704, %v778
      %v782 = vld [vmem:[%s7] sm:$0x1]
      %v784 = vperm.slane %v782, 0
      %v786 = vadd.f32 %v781, %v784
      %v787 = vpack.c.bf16 %v786, %v786
      %vm788 = vcmask 257024
      %789 = vst.msk [vmem:[%s393] sm:$0xf] %vm788, %v787
      %p790 = scmp.lt.s32.totalorder %s24, 1
      %s791 = scalar_select %p790, %s24, 1
      %p792 = scmp.lt.s32.totalorder %s25, 1
      %s793 = scalar_select %p792, %s25, 1
      %p794 = scmp.lt.s32.totalorder %s26, 0
      %s795 = scalar_select %p794, %s26, 0
      %s796 = sadd.s32 %s795, %s793
      %s797 = smul.addr %s791, 2
      %s798 = sadd.s32 %s796, %s797
      %s799 = smul.addr %s798, 4
      %s800 = scalar_lea.vmem %s8, %s799
      // Predicated region
      $region53: #{attentional_gnn.8} parent=51 // pred_check
        %p801 = pneg %p244
      $region54: #{attentional_gnn.8} parent=51 // pred_check_branch
        %803 = sbr.rel (%p801) target = $region56
      $region55: #{attentional_gnn.8} parent=51 // pred_region
        _
      $region56: #{attentional_gnn.8} parent=51 // pred_fallthru
        _
    $region52: #{attentional_gnn.8} parent=5 // pred_fallthru
      _
    %p804 = scmp.le.s32.totalorder 2, %s14
    // Predicated region
    $region57: #{attentional_gnn.8} parent=5 // pred_check
      %p805 = pneg %p804
    $region58: #{attentional_gnn.8} parent=5 // pred_check_branch
      %807 = sbr.rel (%p805) target = $region60
    $region59: #{attentional_gnn.8} parent=5 // pred_region
      %s808 = ssub.s32 %s14, 2
      // Predicated region
      $region61: #{attentional_gnn.8} parent=59 // pred_check
        %p809 = pneg %p250
      $region62: #{attentional_gnn.8} parent=59 // pred_check_branch
        %811 = sbr.rel (%p809) target = $region64
      $region63: #{attentional_gnn.8} parent=59 // pred_region
        %p812 = scmp.lt.s32.totalorder %s27, 1
        %s813 = scalar_select %p812, %s27, 1
        %p814 = scmp.lt.s32.totalorder %s28, 1
        %s815 = scalar_select %p814, %s28, 1
        %p816 = scmp.lt.s32.totalorder %s29, 0
        %s817 = scalar_select %p816, %s29, 0
        %s818 = sadd.s32 %s817, %s815
        %s819 = smul.addr %s813, 2
        %s820 = sadd.s32 %s818, %s819
        %s821 = smul.addr %s820, 4
        %s822 = scalar_lea.vmem %s8, %s821
      $region64: #{attentional_gnn.8} parent=59 // pred_fallthru
        _
    $region60: #{attentional_gnn.8} parent=5 // pred_fallthru
      _
  $region6: #{attentional_gnn.8} parent=0 // loop_footer
    %s18 = sadd.s32 1, %s14
  $region7: #{attentional_gnn.8} parent=0 // loop_footer_branch
    %13 = sbr.rel target = $region3
  $region8: #{attentional_gnn.8} parent=0 // loop_exit
    _

// kernel: attentional_gnn.9
$region0: #{attentional_gnn.9}
  #allocation0 [shape = 'u32[]', space=smem, size = 0x4, offset = 0x4, fixed_abs, tag = 'smem constant byte address 0x4 - core index']
  #allocation1 [shape = 'u32[72,128]{1,0:T(1,128)}', space=vmem, size = 0x9000, scoped, tag = 'internal scratch']
  #allocation2 [shape = 'f32[1,64]{1,0:T(1,128)}', space=vmem, size = 0x200, scoped, tag = 'scratch operand']
  #allocation3 [shape = 'f32[1,64]{1,0:T(1,128)}', space=vmem, size = 0x200, scoped, tag = 'scratch operand']
  %s0 = inlined_call_operand.vmem [shape: f32[2,16,32], index: 0, kind: input, shape index: {}]
  %s1 = inlined_call_operand.vmem [shape: bf16[2,16,32], index: 1, kind: input, shape index: {}]
  %s2 = inlined_call_operand.vmem [shape: bf16[32,64], index: 2, kind: input, shape index: {}]
  %s3 = inlined_call_operand.vmem [shape: bf16[32,64], index: 3, kind: input, shape index: {}]
  %s4 = inlined_call_operand.vmem [shape: f32[1,64], index: 4, kind: input, shape index: {}]
  %s5 = inlined_call_operand.vmem [shape: f32[1,64], index: 5, kind: input, shape index: {}]
  %s6 = inlined_call_operand.vmem [shape: f32[1,64], index: 6, kind: input, shape index: {}]
  %s7 = inlined_call_operand.vmem [shape: bf16[64,32], index: 7, kind: input, shape index: {}]
  %s8 = inlined_call_operand.vmem [shape: f32[1,32], index: 8, kind: input, shape index: {}]
  %s9 = inlined_call_operand.vmem [shape: f32[2,16,32], index: 9, kind: output, shape index: {0}]
  %s10 = inlined_call_operand.vmem [shape: bf16[2,16,32], index: 10, kind: output, shape index: {1}]
  %11 = xla_tuple %s9, %s10
  %s12 = sld [smem:[#allocation0]]
  $region89: #{attentional_gnn.9} parent=0
    _
  %s14 = ssub.s32 1, %s12
  %s15 = scalar_select 0, %s14, %s12
  loop: start=0, step=1, limit=6
  $region2: #{attentional_gnn.9} parent=0 // loop_pre_header
    _
  $region3: #{attentional_gnn.9} parent=0 // loop_header
    %s17 = sphi 0, %s21
    %p18 = scmp.ge.s32.totalorder %s17, 6
    %s24 = sphi 0, %s43
    %s25 = sphi 0, %s39
    %s26 = sphi 0, %s35
    %s27 = sphi 0, %s24
    %s28 = sphi 0, %s25
    %s29 = sphi 0, %s26
    %s30 = sphi 0, %s27
    %s31 = sphi 0, %s28
    %s32 = sphi 0, %s29
    %s48 = sphi 0, %s50
    %s51 = sphi 0, %s48
    %s52 = sphi 0, %s51
    %s68 = sphi 0, %s52
    %s76 = sphi 0, %s78
    %s79 = sphi 0, %s76
    %s80 = sphi 0, %s79
    %s96 = sphi 0, %s80
    %s100 = sphi 0, %s100
    %s102 = sphi 0, %s100
    %s103 = sphi 0, %s102
    %s117 = sphi 0, %s103
    %s121 = sphi 0, %s121
    %s123 = sphi 0, %s121
    %s124 = sphi 0, %s123
    %s138 = sphi 0, %s124
    %s142 = sphi 0, %s142
    %s144 = sphi 0, %s142
    %s145 = sphi 0, %s144
    %s159 = sphi 0, %s145
    %s163 = sphi 0, %s163
    %s165 = sphi 0, %s163
    %s166 = sphi 0, %s165
    %s180 = sphi 0, %s166
    %s184 = sphi 0, %s184
    %s186 = sphi 0, %s184
    %s187 = sphi 0, %s186
    %s201 = sphi 0, %s187
    %s205 = sphi 0, %s205
    %s207 = sphi 0, %s205
    %s208 = sphi 0, %s207
    %s222 = sphi 0, %s208
    %s226 = sphi 0, %s226
    %s228 = sphi 0, %s226
    %s229 = sphi 0, %s228
    %s243 = sphi 0, %s229
    %s253 = sphi 0, %s255
    %s256 = sphi 0, %s253
    %s257 = sphi 0, %s256
    %s273 = sphi 0, %s257
    %s283 = sphi 0, %s285
    %s286 = sphi 0, %s283
    %s287 = sphi 0, %s286
    %s303 = sphi 0, %s287
  $region4: #{attentional_gnn.9} parent=0 // loop_header_branch
    %20 = sbr.rel (%p18) target = $region8
  $region5: #{attentional_gnn.9} parent=0 // loop_body
    %s22 = ssub.s32 %s17, 1
    %s23 = ssub.s32 %s17, 2
    %s33 = sadd.s32 1, %s26
    %p34 = scmp.ge.s32.totalorder %s33, 1
    %s35 = scalar_select %p34, 0, %s33
    %s36 = sadd.s32 1, %s25
    %s37 = scalar_select %p34, %s36, %s25
    %p38 = scmp.ge.s32.totalorder %s37, 2
    %s39 = scalar_select %p38, 0, %s37
    %s40 = sadd.s32 1, %s24
    %s41 = scalar_select %p38, %s40, %s24
    %p42 = scmp.ge.s32.totalorder %s41, 2
    %s43 = scalar_select %p42, 0, %s41
    %s44 = ssub.s32 %s24, %s43
    %s45 = ssub.s32 %s26, %s35
    %s46 = sor.u32 %s44, %s45
    %p47 = scmp.eq.s32.totalorder %s46, 0
    %s49 = sadd.s32 %s48, 1
    %s50 = scalar_select %p47, %s48, %s49
    %p53 = pneg %p47
    %p54 = scmp.eq.s32.totalorder %s17, 3
    %p55 = por %p53, %p54
    %p56 = scmp.ne.s32.totalorder %s48, %s51
    %p57 = scmp.eq.s32.totalorder %s17, 0
    %p58 = por %p56, %p57
    %p59 = scmp.ne.s32.totalorder %s48, %s51
    %p60 = scmp.eq.s32.totalorder %s22, 3
    %p61 = por %p59, %p60
    %p62 = scmp.ne.s32.totalorder %s51, %s52
    %p63 = scmp.eq.s32.totalorder %s22, 0
    %p64 = por %p62, %p63
    %p65 = scmp.ne.s32.totalorder %s51, %s52
    %p66 = scmp.eq.s32.totalorder %s23, 3
    %p67 = por %p65, %p66
    %p69 = scmp.ne.s32.totalorder %s52, %s68
    %p70 = scmp.eq.s32.totalorder %s23, 0
    %p71 = por %p69, %p70
    %s72 = ssub.s32 %s24, %s43
    %s73 = ssub.s32 %s26, %s35
    %s74 = sor.u32 %s72, %s73
    %p75 = scmp.eq.s32.totalorder %s74, 0
    %s77 = sadd.s32 %s76, 1
    %s78 = scalar_select %p75, %s76, %s77
    %p81 = pneg %p75
    %p82 = scmp.eq.s32.totalorder %s17, 3
    %p83 = por %p81, %p82
    %p84 = scmp.ne.s32.totalorder %s76, %s79
    %p85 = scmp.eq.s32.totalorder %s17, 0
    %p86 = por %p84, %p85
    %p87 = scmp.ne.s32.totalorder %s76, %s79
    %p88 = scmp.eq.s32.totalorder %s22, 3
    %p89 = por %p87, %p88
    %p90 = scmp.ne.s32.totalorder %s79, %s80
    %p91 = scmp.eq.s32.totalorder %s22, 0
    %p92 = por %p90, %p91
    %p93 = scmp.ne.s32.totalorder %s79, %s80
    %p94 = scmp.eq.s32.totalorder %s23, 3
    %p95 = por %p93, %p94
    %p97 = scmp.ne.s32.totalorder %s80, %s96
    %p98 = scmp.eq.s32.totalorder %s23, 0
    %p99 = por %p97, %p98
    %s101 = sadd.s32 %s100, 1
    %p104 = scmp.eq.s32.totalorder %s17, 3
    %p105 = scmp.ne.s32.totalorder %s100, %s102
    %p106 = scmp.eq.s32.totalorder %s17, 0
    %p107 = por %p105, %p106
    %p108 = scmp.ne.s32.totalorder %s100, %s102
    %p109 = scmp.eq.s32.totalorder %s22, 3
    %p110 = por %p108, %p109
    %p111 = scmp.ne.s32.totalorder %s102, %s103
    %p112 = scmp.eq.s32.totalorder %s22, 0
    %p113 = por %p111, %p112
    %p114 = scmp.ne.s32.totalorder %s102, %s103
    %p115 = scmp.eq.s32.totalorder %s23, 3
    %p116 = por %p114, %p115
    %p118 = scmp.ne.s32.totalorder %s103, %s117
    %p119 = scmp.eq.s32.totalorder %s23, 0
    %p120 = por %p118, %p119
    %s122 = sadd.s32 %s121, 1
    %p125 = scmp.eq.s32.totalorder %s17, 3
    %p126 = scmp.ne.s32.totalorder %s121, %s123
    %p127 = scmp.eq.s32.totalorder %s17, 0
    %p128 = por %p126, %p127
    %p129 = scmp.ne.s32.totalorder %s121, %s123
    %p130 = scmp.eq.s32.totalorder %s22, 3
    %p131 = por %p129, %p130
    %p132 = scmp.ne.s32.totalorder %s123, %s124
    %p133 = scmp.eq.s32.totalorder %s22, 0
    %p134 = por %p132, %p133
    %p135 = scmp.ne.s32.totalorder %s123, %s124
    %p136 = scmp.eq.s32.totalorder %s23, 3
    %p137 = por %p135, %p136
    %p139 = scmp.ne.s32.totalorder %s124, %s138
    %p140 = scmp.eq.s32.totalorder %s23, 0
    %p141 = por %p139, %p140
    %s143 = sadd.s32 %s142, 1
    %p146 = scmp.eq.s32.totalorder %s17, 3
    %p147 = scmp.ne.s32.totalorder %s142, %s144
    %p148 = scmp.eq.s32.totalorder %s17, 0
    %p149 = por %p147, %p148
    %p150 = scmp.ne.s32.totalorder %s142, %s144
    %p151 = scmp.eq.s32.totalorder %s22, 3
    %p152 = por %p150, %p151
    %p153 = scmp.ne.s32.totalorder %s144, %s145
    %p154 = scmp.eq.s32.totalorder %s22, 0
    %p155 = por %p153, %p154
    %p156 = scmp.ne.s32.totalorder %s144, %s145
    %p157 = scmp.eq.s32.totalorder %s23, 3
    %p158 = por %p156, %p157
    %p160 = scmp.ne.s32.totalorder %s145, %s159
    %p161 = scmp.eq.s32.totalorder %s23, 0
    %p162 = por %p160, %p161
    %s164 = sadd.s32 %s163, 1
    %p167 = scmp.eq.s32.totalorder %s17, 3
    %p168 = scmp.ne.s32.totalorder %s163, %s165
    %p169 = scmp.eq.s32.totalorder %s17, 0
    %p170 = por %p168, %p169
    %p171 = scmp.ne.s32.totalorder %s163, %s165
    %p172 = scmp.eq.s32.totalorder %s22, 3
    %p173 = por %p171, %p172
    %p174 = scmp.ne.s32.totalorder %s165, %s166
    %p175 = scmp.eq.s32.totalorder %s22, 0
    %p176 = por %p174, %p175
    %p177 = scmp.ne.s32.totalorder %s165, %s166
    %p178 = scmp.eq.s32.totalorder %s23, 3
    %p179 = por %p177, %p178
    %p181 = scmp.ne.s32.totalorder %s166, %s180
    %p182 = scmp.eq.s32.totalorder %s23, 0
    %p183 = por %p181, %p182
    %s185 = sadd.s32 %s184, 1
    %p188 = scmp.eq.s32.totalorder %s17, 3
    %p189 = scmp.ne.s32.totalorder %s184, %s186
    %p190 = scmp.eq.s32.totalorder %s17, 0
    %p191 = por %p189, %p190
    %p192 = scmp.ne.s32.totalorder %s184, %s186
    %p193 = scmp.eq.s32.totalorder %s22, 3
    %p194 = por %p192, %p193
    %p195 = scmp.ne.s32.totalorder %s186, %s187
    %p196 = scmp.eq.s32.totalorder %s22, 0
    %p197 = por %p195, %p196
    %p198 = scmp.ne.s32.totalorder %s186, %s187
    %p199 = scmp.eq.s32.totalorder %s23, 3
    %p200 = por %p198, %p199
    %p202 = scmp.ne.s32.totalorder %s187, %s201
    %p203 = scmp.eq.s32.totalorder %s23, 0
    %p204 = por %p202, %p203
    %s206 = sadd.s32 %s205, 1
    %p209 = scmp.eq.s32.totalorder %s17, 3
    %p210 = scmp.ne.s32.totalorder %s205, %s207
    %p211 = scmp.eq.s32.totalorder %s17, 0
    %p212 = por %p210, %p211
    %p213 = scmp.ne.s32.totalorder %s205, %s207
    %p214 = scmp.eq.s32.totalorder %s22, 3
    %p215 = por %p213, %p214
    %p216 = scmp.ne.s32.totalorder %s207, %s208
    %p217 = scmp.eq.s32.totalorder %s22, 0
    %p218 = por %p216, %p217
    %p219 = scmp.ne.s32.totalorder %s207, %s208
    %p220 = scmp.eq.s32.totalorder %s23, 3
    %p221 = por %p219, %p220
    %p223 = scmp.ne.s32.totalorder %s208, %s222
    %p224 = scmp.eq.s32.totalorder %s23, 0
    %p225 = por %p223, %p224
    %s227 = sadd.s32 %s226, 1
    %p230 = scmp.eq.s32.totalorder %s17, 3
    %p231 = scmp.ne.s32.totalorder %s226, %s228
    %p232 = scmp.eq.s32.totalorder %s17, 0
    %p233 = por %p231, %p232
    %p234 = scmp.ne.s32.totalorder %s226, %s228
    %p235 = scmp.eq.s32.totalorder %s22, 3
    %p236 = por %p234, %p235
    %p237 = scmp.ne.s32.totalorder %s228, %s229
    %p238 = scmp.eq.s32.totalorder %s22, 0
    %p239 = por %p237, %p238
    %p240 = scmp.ne.s32.totalorder %s228, %s229
    %p241 = scmp.eq.s32.totalorder %s23, 3
    %p242 = por %p240, %p241
    %p244 = scmp.ne.s32.totalorder %s229, %s243
    %p245 = scmp.eq.s32.totalorder %s23, 0
    %p246 = por %p244, %p245
    %s247 = smul.u32 %s25, %s26
    %s248 = smul.u32 %s39, %s35
    %s249 = ssub.s32 %s24, %s43
    %s250 = ssub.s32 %s247, %s248
    %s251 = sor.u32 %s249, %s250
    %p252 = scmp.eq.s32.totalorder %s251, 0
    %s254 = sadd.s32 %s253, 1
    %s255 = scalar_select %p252, %s253, %s254
    %p258 = pneg %p252
    %p259 = scmp.eq.s32.totalorder %s17, 3
    %p260 = por %p258, %p259
    %p261 = scmp.ne.s32.totalorder %s253, %s256
    %p262 = scmp.eq.s32.totalorder %s17, 0
    %p263 = por %p261, %p262
    %p264 = scmp.ne.s32.totalorder %s253, %s256
    %p265 = scmp.eq.s32.totalorder %s22, 3
    %p266 = por %p264, %p265
    %p267 = scmp.ne.s32.totalorder %s256, %s257
    %p268 = scmp.eq.s32.totalorder %s22, 0
    %p269 = por %p267, %p268
    %p270 = scmp.ne.s32.totalorder %s256, %s257
    %p271 = scmp.eq.s32.totalorder %s23, 3
    %p272 = por %p270, %p271
    %p274 = scmp.ne.s32.totalorder %s257, %s273
    %p275 = scmp.eq.s32.totalorder %s23, 0
    %p276 = por %p274, %p275
    %s277 = smul.u32 %s25, %s26
    %s278 = smul.u32 %s39, %s35
    %s279 = ssub.s32 %s24, %s43
    %s280 = ssub.s32 %s277, %s278
    %s281 = sor.u32 %s279, %s280
    %p282 = scmp.eq.s32.totalorder %s281, 0
    %s284 = sadd.s32 %s283, 1
    %s285 = scalar_select %p282, %s283, %s284
    %p288 = pneg %p282
    %p289 = scmp.eq.s32.totalorder %s17, 3
    %p290 = por %p288, %p289
    %p291 = scmp.ne.s32.totalorder %s283, %s286
    %p292 = scmp.eq.s32.totalorder %s17, 0
    %p293 = por %p291, %p292
    %p294 = scmp.ne.s32.totalorder %s283, %s286
    %p295 = scmp.eq.s32.totalorder %s22, 3
    %p296 = por %p294, %p295
    %p297 = scmp.ne.s32.totalorder %s286, %s287
    %p298 = scmp.eq.s32.totalorder %s22, 0
    %p299 = por %p297, %p298
    %p300 = scmp.ne.s32.totalorder %s286, %s287
    %p301 = scmp.eq.s32.totalorder %s23, 3
    %p302 = por %p300, %p301
    %p304 = scmp.ne.s32.totalorder %s287, %s303
    %p305 = scmp.eq.s32.totalorder %s23, 0
    %p306 = por %p304, %p305
    %p307 = scmp.le.s32.totalorder 1, %s17
    %p308 = scmp.lt.s32.totalorder %s17, 5
    %p309 = pnand %p307, %p308
    %p310 = pneg %p309
    // Predicated region
    $region9: #{attentional_gnn.9} parent=5 // pred_check
      _
    $region10: #{attentional_gnn.9} parent=5 // pred_check_branch
      %312 = sbr.rel (%p309) target = $region12
    $region11: #{attentional_gnn.9} parent=5 // pred_region
      %s313 = ssub.s32 %s17, 1
      // Predicated region
      $region13: #{attentional_gnn.9} parent=11 // pred_check
        %p314 = pneg %p113
      $region14: #{attentional_gnn.9} parent=11 // pred_check_branch
        %316 = sbr.rel (%p314) target = $region16
      $region15: #{attentional_gnn.9} parent=11 // pred_region
        _
      $region16: #{attentional_gnn.9} parent=11 // pred_fallthru
        _
      // Predicated region
      $region17: #{attentional_gnn.9} parent=11 // pred_check
        %p317 = pneg %p134
      $region18: #{attentional_gnn.9} parent=11 // pred_check_branch
        %319 = sbr.rel (%p317) target = $region20
      $region19: #{attentional_gnn.9} parent=11 // pred_region
        _
      $region20: #{attentional_gnn.9} parent=11 // pred_fallthru
        _
      // Predicated region
      $region21: #{attentional_gnn.9} parent=11 // pred_check
        %p320 = pneg %p155
      $region22: #{attentional_gnn.9} parent=11 // pred_check_branch
        %322 = sbr.rel (%p320) target = $region24
      $region23: #{attentional_gnn.9} parent=11 // pred_region
        _
      $region24: #{attentional_gnn.9} parent=11 // pred_fallthru
        _
      // Predicated region
      $region25: #{attentional_gnn.9} parent=11 // pred_check
        %p323 = pneg %p176
      $region26: #{attentional_gnn.9} parent=11 // pred_check_branch
        %325 = sbr.rel (%p323) target = $region28
      $region27: #{attentional_gnn.9} parent=11 // pred_region
        _
      $region28: #{attentional_gnn.9} parent=11 // pred_fallthru
        _
      // Predicated region
      $region29: #{attentional_gnn.9} parent=11 // pred_check
        %p326 = pneg %p197
      $region30: #{attentional_gnn.9} parent=11 // pred_check_branch
        %328 = sbr.rel (%p326) target = $region32
      $region31: #{attentional_gnn.9} parent=11 // pred_region
        _
      $region32: #{attentional_gnn.9} parent=11 // pred_fallthru
        _
      // Predicated region
      $region33: #{attentional_gnn.9} parent=11 // pred_check
        %p329 = pneg %p218
      $region34: #{attentional_gnn.9} parent=11 // pred_check_branch
        %331 = sbr.rel (%p329) target = $region36
      $region35: #{attentional_gnn.9} parent=11 // pred_region
        _
      $region36: #{attentional_gnn.9} parent=11 // pred_fallthru
        _
      // Predicated region
      $region37: #{attentional_gnn.9} parent=11 // pred_check
        %p332 = pneg %p239
      $region38: #{attentional_gnn.9} parent=11 // pred_check_branch
        %334 = sbr.rel (%p332) target = $region40
      $region39: #{attentional_gnn.9} parent=11 // pred_region
        _
      $region40: #{attentional_gnn.9} parent=11 // pred_fallthru
        _
    $region12: #{attentional_gnn.9} parent=5 // pred_fallthru
      _
    %p335 = scmp.lt.s32.totalorder %s17, 4
    // Predicated region
    $region41: #{attentional_gnn.9} parent=5 // pred_check
      %p336 = pneg %p335
    $region42: #{attentional_gnn.9} parent=5 // pred_check_branch
      %338 = sbr.rel (%p336) target = $region44
    $region43: #{attentional_gnn.9} parent=5 // pred_region
      // Predicated region
      $region45: #{attentional_gnn.9} parent=43 // pred_check
        %p339 = pneg %p58
      $region46: #{attentional_gnn.9} parent=43 // pred_check_branch
        %341 = sbr.rel (%p339) target = $region48
      $region47: #{attentional_gnn.9} parent=43 // pred_region
        %s342 = smul.u32 2, %s26
        %p343 = scmp.lt.s32.totalorder %s24, 1
        %s344 = scalar_select %p343, %s24, 1
        %p345 = scmp.lt.s32.totalorder %s342, 1
        %s346 = scalar_select %p345, %s342, 1
        %s347 = smul.addr %s344, 2
        %s348 = sadd.s32 %s346, %s347
        %s349 = smul.addr %s348, 8
        %s350 = scalar_lea.vmem %s0, %s349
        %s351 = smul.u32 2, %s26
      $region48: #{attentional_gnn.9} parent=43 // pred_fallthru
        _
      // Predicated region
      $region49: #{attentional_gnn.9} parent=43 // pred_check
        %p352 = pneg %p86
      $region50: #{attentional_gnn.9} parent=43 // pred_check_branch
        %354 = sbr.rel (%p352) target = $region52
      $region51: #{attentional_gnn.9} parent=43 // pred_region
        %s355 = smul.u32 2, %s26
        %p356 = scmp.lt.s32.totalorder %s24, 1
        %s357 = scalar_select %p356, %s24, 1
        %p358 = scmp.lt.s32.totalorder %s355, 1
        %s359 = scalar_select %p358, %s355, 1
        %s360 = smul.addr %s357, 2
        %s361 = sadd.s32 %s359, %s360
        %s362 = smul.addr %s361, 4
        %s363 = scalar_lea.vmem %s1, %s362
        %s364 = smul.u32 2, %s26
      $region52: #{attentional_gnn.9} parent=43 // pred_fallthru
        _
    $region44: #{attentional_gnn.9} parent=5 // pred_fallthru
      _
    %p365 = scmp.le.s32.totalorder 1, %s17
    %p366 = scmp.lt.s32.totalorder %s17, 5
    %p367 = pnand %p365, %p366
    %p368 = pneg %p367
    // Predicated region
    $region53: #{attentional_gnn.9} parent=5 // pred_check
      _
    $region54: #{attentional_gnn.9} parent=5 // pred_check_branch
      %370 = sbr.rel (%p367) target = $region56
    $region55: #{attentional_gnn.9} parent=5 // pred_region
      %s371 = ssub.s32 %s17, 1
      %s372 = smul.u32 2, %s29
      %p373 = scmp.lt.s32.totalorder %s27, 1
      %s374 = scalar_select %p373, %s27, 1
      %p375 = scmp.lt.s32.totalorder %s372, 1
      %s376 = scalar_select %p375, %s372, 1
      %s377 = smul.addr %s374, 2
      %s378 = sadd.s32 %s376, %s377
      %s379 = smul.addr %s378, 8
      %s380 = scalar_lea.vmem %s0, %s379
      %p381 = pneg %p64
      %p382 = pneg %p61
      %s383 = smul.u32 2, %s29
      %p384 = scmp.lt.s32.totalorder %s27, 1
      %s385 = scalar_select %p384, %s27, 1
      %p386 = scmp.lt.s32.totalorder %s383, 1
      %s387 = scalar_select %p386, %s383, 1
      %s388 = smul.addr %s385, 2
      %s389 = sadd.s32 %s387, %s388
      %s390 = smul.addr %s389, 4
      %s391 = scalar_lea.vmem %s1, %s390
      %p392 = pneg %p92
      %p393 = pneg %p89
      %p394 = pneg %p113
      %p395 = pneg %p110
      %p396 = pneg %p134
      %p397 = pneg %p131
      %p398 = pneg %p155
      %p399 = pneg %p152
      %p400 = pneg %p176
      %p401 = pneg %p173
      %p402 = pneg %p197
      %p403 = pneg %p194
      %p404 = pneg %p218
      %p405 = pneg %p215
      %p406 = pneg %p239
      %p407 = pneg %p236
      %p408 = pneg %p269
      %p409 = pneg %p266
      %s410 = smul.u32 %s28, %s29
      %s411 = smul.u32 2, %s410
      %p412 = scmp.lt.s32.totalorder %s27, 1
      %s413 = scalar_select %p412, %s27, 1
      %p414 = scmp.lt.s32.totalorder %s411, 1
      %s415 = scalar_select %p414, %s411, 1
      %s416 = smul.addr %s413, 2
      %s417 = sadd.s32 %s415, %s416
      %s418 = smul.addr %s417, 8
      %s419 = scalar_lea.vmem %s9, %s418
      %p420 = pneg %p299
      %p421 = pneg %p296
      %s422 = smul.u32 %s28, %s29
      %s423 = smul.u32 2, %s422
      %p424 = scmp.lt.s32.totalorder %s27, 1
      %s425 = scalar_select %p424, %s27, 1
      %p426 = scmp.lt.s32.totalorder %s423, 1
      %s427 = scalar_select %p426, %s423, 1
      %s428 = smul.addr %s425, 2
      %s429 = sadd.s32 %s427, %s428
      %s430 = smul.addr %s429, 4
      %s431 = scalar_lea.vmem %s10, %s430
      %s432 = smul.u32 2, %s29
      %p433 = scmp.lt.s32.totalorder %s27, 1
      %s434 = scalar_select %p433, %s27, 1
      %p435 = scmp.lt.s32.totalorder %s432, 1
      %s436 = scalar_select %p435, %s432, 1
      %s437 = smul.addr %s434, 2
      %s438 = sadd.s32 %s436, %s437
      %s439 = smul.addr %s438, 8
      %s440 = scalar_lea.vmem %s0, %s439
      %s441 = smul.u32 2, %s29
      %s442 = smul.u32 2, %s29
      %p443 = scmp.lt.s32.totalorder %s27, 1
      %s444 = scalar_select %p443, %s27, 1
      %p445 = scmp.lt.s32.totalorder %s442, 1
      %s446 = scalar_select %p445, %s442, 1
      %s447 = smul.addr %s444, 2
      %s448 = sadd.s32 %s446, %s447
      %s449 = smul.addr %s448, 4
      %s450 = scalar_lea.vmem %s1, %s449
      %s451 = smul.u32 2, %s29
      %s452 = smul.u32 %s28, %s29
      %s453 = smul.u32 2, %s452
      %p454 = scmp.lt.s32.totalorder %s27, 1
      %s455 = scalar_select %p454, %s27, 1
      %p456 = scmp.lt.s32.totalorder %s453, 1
      %s457 = scalar_select %p456, %s453, 1
      %s458 = smul.addr %s455, 2
      %s459 = sadd.s32 %s457, %s458
      %s460 = smul.addr %s459, 8
      %s461 = scalar_lea.vmem %s9, %s460
      %s462 = smul.u32 %s28, %s29
      %s463 = smul.u32 2, %s462
      %s464 = smul.u32 %s28, %s29
      %s465 = smul.u32 2, %s464
      %p466 = scmp.lt.s32.totalorder %s27, 1
      %s467 = scalar_select %p466, %s27, 1
      %p468 = scmp.lt.s32.totalorder %s465, 1
      %s469 = scalar_select %p468, %s465, 1
      %s470 = smul.addr %s467, 2
      %s471 = sadd.s32 %s469, %s470
      %s472 = smul.addr %s471, 4
      %s473 = scalar_lea.vmem %s10, %s472
      %s474 = smul.u32 %s28, %s29
      %s475 = smul.u32 2, %s474
      %v477 = vld [vmem:[%s440] sm:$0xff]
      %v478 = vld [vmem:[%s440 + $0x8] sm:$0xff]
      %v479 = vpack.c.bf16 %v478, %v477
      %v480 = vld [vmem:[%s2] sm:$0xf]
      %v481 = vld [vmem:[%s2 + $0x4] sm:$0xf]
      %v482 = vld [vmem:[%s2 + $0x8] sm:$0xf]
      %v483 = vld [vmem:[%s2 + $0xc] sm:$0xf]
      %v484 = vld [vmem:[%s450] sm:$0xf]
      %v485 = vld [vmem:[%s450 + $0x4] sm:$0xf]
      %v486 = vld [vmem:[%s3] sm:$0xf]
      %v487 = vld [vmem:[%s3 + $0x4] sm:$0xf]
      %v488 = vld [vmem:[%s3 + $0x8] sm:$0xf]
      %v489 = vld [vmem:[%s3 + $0xc] sm:$0xf]
      %v492 = vunpack.c.l.b16 %v484
      %v493 = vunpack.c.l.b16 %v485
      %v494 = vpack.c.b16 %v493, %v492
      %v499 = vunpack.c.l.b16 %v486
      %v500 = vunpack.c.l.b16 %v487
      %v501 = vunpack.c.l.b16 %v488
      %v502 = vunpack.c.l.b16 %v489
      %v503 = vpack.c.b16 %v500, %v499
      %v504 = vpack.c.b16 %v502, %v501
      %vm507 = vcmask 261120
      %v509 = vsel %vm507, %v494, 0
      %511 = vmatpush.bf16.msra.mxu0 0
      %512 = vmatpush.bf16.msra.mxu0 0
      %513 = vmatpush.bf16.msra.mxu0 0
      %514 = vmatpush.bf16.msra.mxu0 0
      %515 = vmatpush.bf16.msra.mxu0 0
      %516 = vmatpush.bf16.msra.mxu0 0
      %517 = vmatpush.bf16.msra.mxu0 %v504
      %518 = vmatpush.bf16.msra.mxu0 %v503
      %519 = vmatmul.bf16.gmra.mxu0 %v509
      %v520 = vpop.f32.mrf.mxu0
      %v521 = vadd.f32 0.0, %v520
      %v522 = vpop.f32.mrf.mxu0
      %v523 = vadd.f32 0.0, %v522
      %524 = vdwg.mxu0
      %v529 = vunpack.c.l.b16 %v480
      %v530 = vunpack.c.l.b16 %v481
      %v531 = vunpack.c.l.b16 %v482
      %v532 = vunpack.c.l.b16 %v483
      %v533 = vpack.c.b16 %v530, %v529
      %v534 = vpack.c.b16 %v532, %v531
      %v538 = vsel %vm507, %v479, 0
      %540 = vmatpush.bf16.msra.mxu0 0
      %541 = vmatpush.bf16.msra.mxu0 0
      %542 = vmatpush.bf16.msra.mxu0 0
      %543 = vmatpush.bf16.msra.mxu0 0
      %544 = vmatpush.bf16.msra.mxu0 0
      %545 = vmatpush.bf16.msra.mxu0 0
      %546 = vmatpush.bf16.msra.mxu0 %v534
      %547 = vmatpush.bf16.msra.mxu0 %v533
      %548 = vmatmul.bf16.gmra.mxu0 %v538
      %v549 = vpop.f32.mrf.mxu0
      %v550 = vadd.f32 %v521, %v549
      %v551 = vpop.f32.mrf.mxu0
      %v552 = vadd.f32 %v523, %v551
      %553 = vdwg.mxu0
      %v554 = vld [vmem:[%s4] sm:$0x1]
      %v556 = vperm.slane %v554, 0
      %v558 = vadd.f32 %v550, %v556
      %v559 = vadd.f32 %v552, %v556
      %p560 = scmp.eq.s32.totalorder %s28, 0
      %p561 = scmp.eq.s32.totalorder %s29, 0
      %p562 = pnand %p560, %p561
      %p563 = pneg %p562
      // Predicated region
      $region57: #{attentional_gnn.9} parent=55 // pred_check
        _
      $region58: #{attentional_gnn.9} parent=55 // pred_check_branch
        %565 = sbr.rel (%p562) target = $region60
      $region59: #{attentional_gnn.9} parent=55 // pred_region
        %vm566 = vcmask 516096
        %567 = vst.msk [vmem:[#allocation2] sm:$0x1] %vm566, 0.0
        %568 = vst.msk [vmem:[#allocation3] sm:$0x1] %vm566, 0.0
      $region60: #{attentional_gnn.9} parent=55 // pred_fallthru
        _
      // Predicated region
      $region61: #{attentional_gnn.9} parent=55 // pred_check
        %p569 = pneg %p560
      $region62: #{attentional_gnn.9} parent=55 // pred_check_branch
        %571 = sbr.rel (%p569) target = $region64
      $region63: #{attentional_gnn.9} parent=55 // pred_region
        %v572 = vld [vmem:[#allocation2] sm:$0x1]
        %vm573 = vcmask 523264
        %v574 = vsel %vm573, %v558, 0.0
        %v575 = vsel %vm573, %v559, 0.0
        %v576 = vadd.f32 %v574, %v575
        %v577 = vrot.slane %v576, 4
        %v578 = vadd.f32 %v576, %v577
        %v579 = vrot.slane %v578, 2
        %v580 = vadd.f32 %v578, %v579
        %v581 = vrot.slane %v580, 1
        %v582 = vadd.f32 %v580, %v581
        %v583 = vadd.f32 %v572, %v582
        %vm584 = vcmask 516096
        %585 = vst.msk [vmem:[#allocation2] sm:$0x1] %vm584, %v583
        %v586 = vld [vmem:[#allocation3] sm:$0x1]
        %v587 = vmul.f32 %v558, %v558
        %v588 = vmul.f32 %v559, %v559
        %v589 = vsel %vm573, %v587, 0.0
        %v590 = vsel %vm573, %v588, 0.0
        %v591 = vadd.f32 %v589, %v590
        %v592 = vrot.slane %v591, 4
        %v593 = vadd.f32 %v591, %v592
        %v594 = vrot.slane %v593, 2
        %v595 = vadd.f32 %v593, %v594
        %v596 = vrot.slane %v595, 1
        %v597 = vadd.f32 %v595, %v596
        %v598 = vadd.f32 %v586, %v597
        %599 = vst.msk [vmem:[#allocation3] sm:$0x1] %vm584, %v598
      $region64: #{attentional_gnn.9} parent=55 // pred_fallthru
        _
      %p600 = scmp.eq.s32.totalorder %s28, 1
      // Predicated region
      $region65: #{attentional_gnn.9} parent=55 // pred_check
        %p601 = pneg %p600
      $region66: #{attentional_gnn.9} parent=55 // pred_check_branch
        %603 = sbr.rel (%p601) target = $region68
      $region67: #{attentional_gnn.9} parent=55 // pred_region
        %v604 = vld [vmem:[#allocation2] sm:$0x1]
        %v605 = vmul.f32 %v604, 0.0625
        %v606 = vld [vmem:[#allocation3] sm:$0x1]
        %v607 = vmul.f32 %v606, 0.0625
        %v608 = vmul.f32 %v605, %v605
        %v609 = vsub.f32 %v607, %v608
        %v611 = vperm.slane %v605, 0
        %v613 = vsub.f32 %v558, %v611
        %v614 = vsub.f32 %v559, %v611
        %v615 = vadd.f32 %v609, 1e-05
        %v616 = vrsqrt.pop %v615
        %v617 = vmul.f32 %v616, %v615
        %v618 = vmul.f32 %v617, %v616
        %v619 = vmul.f32 0.5, %v618
        %v620 = vsub.f32 1.5, %v619
        %v621 = vmul.f32 %v616, %v620
        %vm622 = vweird.f32 %v615
        %vm623 = vweird.f32 %v616
        %vm624 = vmor %vm622, %vm623
        %v625 = vsel %vm624, %v616, %v621
        %v627 = vperm.slane %v625, 0
        %v629 = vmul.f32 %v613, %v627
        %v630 = vmul.f32 %v614, %v627
        %v631 = vld [vmem:[%s5] sm:$0x1]
        %v633 = vperm.slane %v631, 0
        %v635 = vmul.f32 %v629, %v633
        %v636 = vmul.f32 %v630, %v633
        %v637 = vld [vmem:[%s6] sm:$0x1]
        %v639 = vperm.slane %v637, 0
        %v641 = vadd.f32 %v635, %v639
        %v642 = vadd.f32 %v636, %v639
        %v643 = vmax.f32 %v641, 0.0
        %v644 = vmax.f32 %v642, 0.0
        %v645 = vpack.c.bf16 %v644, %v643
        %v646 = vld [vmem:[%s7] sm:$0xf]
        %v647 = vld [vmem:[%s7 + $0x4] sm:$0xf]
        %v648 = vld [vmem:[%s7 + $0x8] sm:$0xf]
        %v649 = vld [vmem:[%s7 + $0xc] sm:$0xf]
        %v650 = vld [vmem:[%s7 + $0x10] sm:$0xf]
        %v651 = vld [vmem:[%s7 + $0x14] sm:$0xf]
        %v652 = vld [vmem:[%s7 + $0x18] sm:$0xf]
        %v653 = vld [vmem:[%s7 + $0x1c] sm:$0xf]
        %v654 = vld [vmem:[%s8] sm:$0x1]
        %v656 = vperm.slane %v654, 0
        %v666 = vunpack.c.l.b16 %v646
        %v667 = vunpack.c.l.b16 %v647
        %v668 = vunpack.c.l.b16 %v648
        %v669 = vunpack.c.l.b16 %v649
        %v670 = vunpack.c.l.b16 %v650
        %v671 = vunpack.c.l.b16 %v651
        %v672 = vunpack.c.l.b16 %v652
        %v673 = vunpack.c.l.b16 %v653
        %v674 = vpack.c.b16 %v667, %v666
        %v675 = vpack.c.b16 %v669, %v668
        %v676 = vpack.c.b16 %v671, %v670
        %v677 = vpack.c.b16 %v673, %v672
        %vm682 = vcmask 523264
        %v684 = vsel %vm682, %v645, 0
        %686 = vmatpush.bf16.msra.mxu0 0
        %687 = vmatpush.bf16.msra.mxu0 0
        %688 = vmatpush.bf16.msra.mxu0 0
        %689 = vmatpush.bf16.msra.mxu0 0
        %690 = vmatpush.bf16.msra.mxu0 %v677
        %691 = vmatpush.bf16.msra.mxu0 %v676
        %692 = vmatpush.bf16.msra.mxu0 %v675
        %693 = vmatpush.bf16.msra.mxu0 %v674
        %694 = vmatmul.bf16.gmra.mxu0 %v684
        %v695 = vpop.f32.mrf.mxu0
        %v696 = vadd.f32 %v656, %v695
        %v697 = vpop.f32.mrf.mxu0
        %v698 = vadd.f32 %v656, %v697
        %699 = vdwg.mxu0
        %v700 = vadd.f32 %v477, %v696
        %v701 = vadd.f32 %v478, %v698
        %702 = vst.msk [vmem:[%s461] sm:$0xff] %vm507, %v700
        %703 = vst.msk [vmem:[%s461 + $0x8] sm:$0xff] %vm507, %v701
        %v704 = vpack.c.bf16 %v700, %v700
        %v705 = vpack.c.bf16 %v701, %v701
        %vm706 = vcmask 257024
        %707 = vst.msk [vmem:[%s473] sm:$0xf] %vm706, %v704
        %708 = vst.msk [vmem:[%s473 + $0x4] sm:$0xf] %vm706, %v705
      $region68: #{attentional_gnn.9} parent=55 // pred_fallthru
        _
      %s709 = smul.u32 %s28, %s29
      %s710 = smul.u32 2, %s709
      %p711 = scmp.lt.s32.totalorder %s27, 1
      %s712 = scalar_select %p711, %s27, 1
      %p713 = scmp.lt.s32.totalorder %s710, 1
      %s714 = scalar_select %p713, %s710, 1
      %s715 = smul.addr %s712, 2
      %s716 = sadd.s32 %s714, %s715
      %s717 = smul.addr %s716, 8
      %s718 = scalar_lea.vmem %s9, %s717
      %s719 = smul.u32 %s28, %s29
      %s720 = smul.u32 2, %s719
      %p721 = scmp.lt.s32.totalorder %s27, 1
      %s722 = scalar_select %p721, %s27, 1
      %p723 = scmp.lt.s32.totalorder %s720, 1
      %s724 = scalar_select %p723, %s720, 1
      %s725 = smul.addr %s722, 2
      %s726 = sadd.s32 %s724, %s725
      %s727 = smul.addr %s726, 4
      %s728 = scalar_lea.vmem %s10, %s727
      // Predicated region
      $region69: #{attentional_gnn.9} parent=55 // pred_check
        %p729 = pneg %p266
      $region70: #{attentional_gnn.9} parent=55 // pred_check_branch
        %731 = sbr.rel (%p729) target = $region72
      $region71: #{attentional_gnn.9} parent=55 // pred_region
        %s732 = smul.u32 %s28, %s29
        %s733 = smul.u32 2, %s732
      $region72: #{attentional_gnn.9} parent=55 // pred_fallthru
        _
      // Predicated region
      $region73: #{attentional_gnn.9} parent=55 // pred_check
        %p734 = pneg %p296
      $region74: #{attentional_gnn.9} parent=55 // pred_check_branch
        %736 = sbr.rel (%p734) target = $region76
      $region75: #{attentional_gnn.9} parent=55 // pred_region
        %s737 = smul.u32 %s28, %s29
        %s738 = smul.u32 2, %s737
      $region76: #{attentional_gnn.9} parent=55 // pred_fallthru
        _
    $region56: #{attentional_gnn.9} parent=5 // pred_fallthru
      _
    %p739 = scmp.le.s32.totalorder 2, %s17
    // Predicated region
    $region77: #{attentional_gnn.9} parent=5 // pred_check
      %p740 = pneg %p739
    $region78: #{attentional_gnn.9} parent=5 // pred_check_branch
      %742 = sbr.rel (%p740) target = $region80
    $region79: #{attentional_gnn.9} parent=5 // pred_region
      %s743 = ssub.s32 %s17, 2
      // Predicated region
      $region81: #{attentional_gnn.9} parent=79 // pred_check
        %p744 = pneg %p272
      $region82: #{attentional_gnn.9} parent=79 // pred_check_branch
        %746 = sbr.rel (%p744) target = $region84
      $region83: #{attentional_gnn.9} parent=79 // pred_region
        %s747 = smul.u32 %s31, %s32
        %s748 = smul.u32 2, %s747
        %p749 = scmp.lt.s32.totalorder %s30, 1
        %s750 = scalar_select %p749, %s30, 1
        %p751 = scmp.lt.s32.totalorder %s748, 1
        %s752 = scalar_select %p751, %s748, 1
        %s753 = smul.addr %s750, 2
        %s754 = sadd.s32 %s752, %s753
        %s755 = smul.addr %s754, 8
        %s756 = scalar_lea.vmem %s9, %s755
      $region84: #{attentional_gnn.9} parent=79 // pred_fallthru
        _
      // Predicated region
      $region85: #{attentional_gnn.9} parent=79 // pred_check
        %p757 = pneg %p302
      $region86: #{attentional_gnn.9} parent=79 // pred_check_branch
        %759 = sbr.rel (%p757) target = $region88
      $region87: #{attentional_gnn.9} parent=79 // pred_region
        %s760 = smul.u32 %s31, %s32
        %s761 = smul.u32 2, %s760
        %p762 = scmp.lt.s32.totalorder %s30, 1
        %s763 = scalar_select %p762, %s30, 1
        %p764 = scmp.lt.s32.totalorder %s761, 1
        %s765 = scalar_select %p764, %s761, 1
        %s766 = smul.addr %s763, 2
        %s767 = sadd.s32 %s765, %s766
        %s768 = smul.addr %s767, 4
        %s769 = scalar_lea.vmem %s10, %s768
      $region88: #{attentional_gnn.9} parent=79 // pred_fallthru
        _
    $region80: #{attentional_gnn.9} parent=5 // pred_fallthru
      _
  $region6: #{attentional_gnn.9} parent=0 // loop_footer
    %s21 = sadd.s32 1, %s17
  $region7: #{attentional_gnn.9} parent=0 // loop_footer_branch
    %16 = sbr.rel target = $region3
  $region8: #{attentional_gnn.9} parent=0 // loop_exit
    _

// kernel: attentional_gnn.12
$region0: #{attentional_gnn.12}
  #allocation0 [shape = 'u32[]', space=smem, size = 0x4, offset = 0x4, fixed_abs, tag = 'smem constant byte address 0x4 - core index']
  #allocation1 [shape = 'u32[72,128]{1,0:T(1,128)}', space=vmem, size = 0x9000, scoped, tag = 'internal scratch']
  %s0 = inlined_call_operand.vmem [shape: bf16[2,2,8,32], index: 0, kind: input, shape index: {}, may-alias: {0,1}]
  %s1 = inlined_call_operand.vmem [shape: bf16[2,2,8,32], index: 1, kind: input, shape index: {}, may-alias: {0,1}]
  %s2 = inlined_call_operand.vmem [shape: bf16[32,32], index: 2, kind: input, shape index: {}]
  %s3 = inlined_call_operand.vmem [shape: f32[1,32], index: 3, kind: input, shape index: {}]
  %s4 = inlined_call_operand.hbm [shape: bf16[32,64], index: 4, kind: input, shape index: {}]
  %s5 = inlined_call_operand.vmem [shape: f32[1,64], index: 5, kind: input, shape index: {}]
  %s6 = inlined_call_operand.hbm [shape: bf16[32,32], index: 6, kind: input, shape index: {}]
  %s7 = inlined_call_operand.vmem [shape: f32[1,32], index: 7, kind: input, shape index: {}]
  %s8 = inlined_call_operand.vmem [shape: bf16[2,2,8,32], index: 8, kind: output, shape index: {}]
  %s9 = sld [smem:[#allocation0]]
  $region73: #{attentional_gnn.12} parent=0
    _
  %s11 = ssub.s32 1, %s9
  %s12 = scalar_select 0, %s11, %s9
  $region1: #{attentional_gnn.12} parent=0
    #allocation2 [shape = 'u8[8192]{0}', space=vmem, size = 0x2000, scoped, tag = 'input window, operand 4, single buffered']
    #allocation3 [shape = 's32[2]{0}', space=sflag, size = 0x8, scoped, tag = 'scoped memory for attentional_gnn.12']
    #allocation4 [shape = 'u8[8192]{0}', space=vmem, size = 0x2000, scoped, tag = 'input window, operand 6, single buffered']
    #allocation5 [shape = 's32[1]{0}', space=sflag, size = 0x4, scoped, tag = 'scoped memory for attentional_gnn.12']
    %13 = vsyncpa [#allocation3], 0
    %14 = vsyncpa [#allocation5], 0
    loop: start=0, step=1, limit=6
    $region2: #{attentional_gnn.12} parent=1 // loop_pre_header
      _
    $region3: #{attentional_gnn.12} parent=1 // loop_header
      %s16 = sphi 0, %s20
      %p17 = scmp.ge.s32.totalorder %s16, 6
      %s23 = sphi 0, %s42
      %s24 = sphi 0, %s38
      %s25 = sphi 0, %s34
      %s26 = sphi 0, %s23
      %s27 = sphi 0, %s24
      %s28 = sphi 0, %s25
      %s29 = sphi 0, %s26
      %s30 = sphi 0, %s27
      %s31 = sphi 0, %s28
      %s49 = sphi 0, %s51
      %s52 = sphi 0, %s49
      %s53 = sphi 0, %s52
      %s69 = sphi 0, %s53
      %s77 = sphi 0, %s79
      %s80 = sphi 0, %s77
      %s81 = sphi 0, %s80
      %s97 = sphi 0, %s81
      %s101 = sphi 0, %s101
      %s103 = sphi 0, %s101
      %s104 = sphi 0, %s103
      %s118 = sphi 0, %s104
      %s122 = sphi 0, %s122
      %s124 = sphi 0, %s122
      %s125 = sphi 0, %s124
      %s139 = sphi 0, %s125
      %s143 = sphi 0, %s143
      %s145 = sphi 0, %s143
      %s146 = sphi 0, %s145
      %s160 = sphi 0, %s146
      %s164 = sphi 0, %s164
      %s166 = sphi 0, %s164
      %s167 = sphi 0, %s166
      %s181 = sphi 0, %s167
      %s185 = sphi 0, %s185
      %s187 = sphi 0, %s185
      %s188 = sphi 0, %s187
      %s202 = sphi 0, %s188
      %s206 = sphi 0, %s206
      %s208 = sphi 0, %s206
      %s209 = sphi 0, %s208
      %s223 = sphi 0, %s209
      %s233 = sphi 0, %s235
      %s236 = sphi 0, %s233
      %s237 = sphi 0, %s236
      %s253 = sphi 0, %s237
    $region4: #{attentional_gnn.12} parent=1 // loop_header_branch
      %19 = sbr.rel (%p17) target = $region8
    $region5: #{attentional_gnn.12} parent=1 // loop_body
      %s21 = ssub.s32 %s16, 1
      %s22 = ssub.s32 %s16, 2
      %s32 = sadd.s32 1, %s25
      %p33 = scmp.ge.s32.totalorder %s32, 1
      %s34 = scalar_select %p33, 0, %s32
      %s35 = sadd.s32 1, %s24
      %s36 = scalar_select %p33, %s35, %s24
      %p37 = scmp.ge.s32.totalorder %s36, 2
      %s38 = scalar_select %p37, 0, %s36
      %s39 = sadd.s32 1, %s23
      %s40 = scalar_select %p37, %s39, %s23
      %p41 = scmp.ge.s32.totalorder %s40, 2
      %s42 = scalar_select %p41, 0, %s40
      %s43 = ssub.s32 %s23, %s42
      %s44 = ssub.s32 %s24, %s38
      %s45 = sor.u32 %s43, %s44
      %s46 = ssub.s32 %s25, %s34
      %s47 = sor.u32 %s45, %s46
      %p48 = scmp.eq.s32.totalorder %s47, 0
      %s50 = sadd.s32 %s49, 1
      %s51 = scalar_select %p48, %s49, %s50
      %p54 = pneg %p48
      %p55 = scmp.eq.s32.totalorder %s16, 3
      %p56 = por %p54, %p55
      %p57 = scmp.ne.s32.totalorder %s49, %s52
      %p58 = scmp.eq.s32.totalorder %s16, 0
      %p59 = por %p57, %p58
      %p60 = scmp.ne.s32.totalorder %s49, %s52
      %p61 = scmp.eq.s32.totalorder %s21, 3
      %p62 = por %p60, %p61
      %p63 = scmp.ne.s32.totalorder %s52, %s53
      %p64 = scmp.eq.s32.totalorder %s21, 0
      %p65 = por %p63, %p64
      %p66 = scmp.ne.s32.totalorder %s52, %s53
      %p67 = scmp.eq.s32.totalorder %s22, 3
      %p68 = por %p66, %p67
      %p70 = scmp.ne.s32.totalorder %s53, %s69
      %p71 = scmp.eq.s32.totalorder %s22, 0
      %p72 = por %p70, %p71
      %s73 = ssub.s32 %s23, %s42
      %s74 = ssub.s32 %s24, %s38
      %s75 = sor.u32 %s73, %s74
      %p76 = scmp.eq.s32.totalorder %s75, 0
      %s78 = sadd.s32 %s77, 1
      %s79 = scalar_select %p76, %s77, %s78
      %p82 = pneg %p76
      %p83 = scmp.eq.s32.totalorder %s16, 3
      %p84 = por %p82, %p83
      %p85 = scmp.ne.s32.totalorder %s77, %s80
      %p86 = scmp.eq.s32.totalorder %s16, 0
      %p87 = por %p85, %p86
      %p88 = scmp.ne.s32.totalorder %s77, %s80
      %p89 = scmp.eq.s32.totalorder %s21, 3
      %p90 = por %p88, %p89
      %p91 = scmp.ne.s32.totalorder %s80, %s81
      %p92 = scmp.eq.s32.totalorder %s21, 0
      %p93 = por %p91, %p92
      %p94 = scmp.ne.s32.totalorder %s80, %s81
      %p95 = scmp.eq.s32.totalorder %s22, 3
      %p96 = por %p94, %p95
      %p98 = scmp.ne.s32.totalorder %s81, %s97
      %p99 = scmp.eq.s32.totalorder %s22, 0
      %p100 = por %p98, %p99
      %s102 = sadd.s32 %s101, 1
      %p105 = scmp.eq.s32.totalorder %s16, 3
      %p106 = scmp.ne.s32.totalorder %s101, %s103
      %p107 = scmp.eq.s32.totalorder %s16, 0
      %p108 = por %p106, %p107
      %p109 = scmp.ne.s32.totalorder %s101, %s103
      %p110 = scmp.eq.s32.totalorder %s21, 3
      %p111 = por %p109, %p110
      %p112 = scmp.ne.s32.totalorder %s103, %s104
      %p113 = scmp.eq.s32.totalorder %s21, 0
      %p114 = por %p112, %p113
      %p115 = scmp.ne.s32.totalorder %s103, %s104
      %p116 = scmp.eq.s32.totalorder %s22, 3
      %p117 = por %p115, %p116
      %p119 = scmp.ne.s32.totalorder %s104, %s118
      %p120 = scmp.eq.s32.totalorder %s22, 0
      %p121 = por %p119, %p120
      %s123 = sadd.s32 %s122, 1
      %p126 = scmp.eq.s32.totalorder %s16, 3
      %p127 = scmp.ne.s32.totalorder %s122, %s124
      %p128 = scmp.eq.s32.totalorder %s16, 0
      %p129 = por %p127, %p128
      %p130 = scmp.ne.s32.totalorder %s122, %s124
      %p131 = scmp.eq.s32.totalorder %s21, 3
      %p132 = por %p130, %p131
      %p133 = scmp.ne.s32.totalorder %s124, %s125
      %p134 = scmp.eq.s32.totalorder %s21, 0
      %p135 = por %p133, %p134
      %p136 = scmp.ne.s32.totalorder %s124, %s125
      %p137 = scmp.eq.s32.totalorder %s22, 3
      %p138 = por %p136, %p137
      %p140 = scmp.ne.s32.totalorder %s125, %s139
      %p141 = scmp.eq.s32.totalorder %s22, 0
      %p142 = por %p140, %p141
      %s144 = sadd.s32 %s143, 1
      %p147 = scmp.eq.s32.totalorder %s16, 3
      %p148 = scmp.ne.s32.totalorder %s143, %s145
      %p149 = scmp.eq.s32.totalorder %s16, 0
      %p150 = por %p148, %p149
      %p151 = scmp.ne.s32.totalorder %s143, %s145
      %p152 = scmp.eq.s32.totalorder %s21, 3
      %p153 = por %p151, %p152
      %p154 = scmp.ne.s32.totalorder %s145, %s146
      %p155 = scmp.eq.s32.totalorder %s21, 0
      %p156 = por %p154, %p155
      %p157 = scmp.ne.s32.totalorder %s145, %s146
      %p158 = scmp.eq.s32.totalorder %s22, 3
      %p159 = por %p157, %p158
      %p161 = scmp.ne.s32.totalorder %s146, %s160
      %p162 = scmp.eq.s32.totalorder %s22, 0
      %p163 = por %p161, %p162
      %s165 = sadd.s32 %s164, 1
      %p168 = scmp.eq.s32.totalorder %s16, 3
      %p169 = scmp.ne.s32.totalorder %s164, %s166
      %p170 = scmp.eq.s32.totalorder %s16, 0
      %p171 = por %p169, %p170
      %p172 = scmp.ne.s32.totalorder %s164, %s166
      %p173 = scmp.eq.s32.totalorder %s21, 3
      %p174 = por %p172, %p173
      %p175 = scmp.ne.s32.totalorder %s166, %s167
      %p176 = scmp.eq.s32.totalorder %s21, 0
      %p177 = por %p175, %p176
      %p178 = scmp.ne.s32.totalorder %s166, %s167
      %p179 = scmp.eq.s32.totalorder %s22, 3
      %p180 = por %p178, %p179
      %p182 = scmp.ne.s32.totalorder %s167, %s181
      %p183 = scmp.eq.s32.totalorder %s22, 0
      %p184 = por %p182, %p183
      %s186 = sadd.s32 %s185, 1
      %p189 = scmp.eq.s32.totalorder %s16, 3
      %p190 = scmp.ne.s32.totalorder %s185, %s187
      %p191 = scmp.eq.s32.totalorder %s16, 0
      %p192 = por %p190, %p191
      %p193 = scmp.ne.s32.totalorder %s185, %s187
      %p194 = scmp.eq.s32.totalorder %s21, 3
      %p195 = por %p193, %p194
      %p196 = scmp.ne.s32.totalorder %s187, %s188
      %p197 = scmp.eq.s32.totalorder %s21, 0
      %p198 = por %p196, %p197
      %p199 = scmp.ne.s32.totalorder %s187, %s188
      %p200 = scmp.eq.s32.totalorder %s22, 3
      %p201 = por %p199, %p200
      %p203 = scmp.ne.s32.totalorder %s188, %s202
      %p204 = scmp.eq.s32.totalorder %s22, 0
      %p205 = por %p203, %p204
      %s207 = sadd.s32 %s206, 1
      %p210 = scmp.eq.s32.totalorder %s16, 3
      %p211 = scmp.ne.s32.totalorder %s206, %s208
      %p212 = scmp.eq.s32.totalorder %s16, 0
      %p213 = por %p211, %p212
      %p214 = scmp.ne.s32.totalorder %s206, %s208
      %p215 = scmp.eq.s32.totalorder %s21, 3
      %p216 = por %p214, %p215
      %p217 = scmp.ne.s32.totalorder %s208, %s209
      %p218 = scmp.eq.s32.totalorder %s21, 0
      %p219 = por %p217, %p218
      %p220 = scmp.ne.s32.totalorder %s208, %s209
      %p221 = scmp.eq.s32.totalorder %s22, 3
      %p222 = por %p220, %p221
      %p224 = scmp.ne.s32.totalorder %s209, %s223
      %p225 = scmp.eq.s32.totalorder %s22, 0
      %p226 = por %p224, %p225
      %s227 = ssub.s32 %s23, %s42
      %s228 = ssub.s32 %s24, %s38
      %s229 = sor.u32 %s227, %s228
      %s230 = ssub.s32 %s25, %s34
      %s231 = sor.u32 %s229, %s230
      %p232 = scmp.eq.s32.totalorder %s231, 0
      %s234 = sadd.s32 %s233, 1
      %s235 = scalar_select %p232, %s233, %s234
      %p238 = pneg %p232
      %p239 = scmp.eq.s32.totalorder %s16, 3
      %p240 = por %p238, %p239
      %p241 = scmp.ne.s32.totalorder %s233, %s236
      %p242 = scmp.eq.s32.totalorder %s16, 0
      %p243 = por %p241, %p242
      %p244 = scmp.ne.s32.totalorder %s233, %s236
      %p245 = scmp.eq.s32.totalorder %s21, 3
      %p246 = por %p244, %p245
      %p247 = scmp.ne.s32.totalorder %s236, %s237
      %p248 = scmp.eq.s32.totalorder %s21, 0
      %p249 = por %p247, %p248
      %p250 = scmp.ne.s32.totalorder %s236, %s237
      %p251 = scmp.eq.s32.totalorder %s22, 3
      %p252 = por %p250, %p251
      %p254 = scmp.ne.s32.totalorder %s237, %s253
      %p255 = scmp.eq.s32.totalorder %s22, 0
      %p256 = por %p254, %p255
      %p257 = scmp.le.s32.totalorder 1, %s16
      %p258 = scmp.lt.s32.totalorder %s16, 5
      %p259 = pnand %p257, %p258
      %p260 = pneg %p259
      // Predicated region
      $region9: #{attentional_gnn.12} parent=5 // pred_check
        _
      $region10: #{attentional_gnn.12} parent=5 // pred_check_branch
        %262 = sbr.rel (%p259) target = $region12
      $region11: #{attentional_gnn.12} parent=5 // pred_region
        %s263 = ssub.s32 %s16, 1
        // Predicated region
        $region13: #{attentional_gnn.12} parent=11 // pred_check
          %p264 = pneg %p114
        $region14: #{attentional_gnn.12} parent=11 // pred_check_branch
          %266 = sbr.rel (%p264) target = $region16
        $region15: #{attentional_gnn.12} parent=11 // pred_region
          _
        $region16: #{attentional_gnn.12} parent=11 // pred_fallthru
          _
        // Predicated region
        $region17: #{attentional_gnn.12} parent=11 // pred_check
          %p267 = pneg %p135
        $region18: #{attentional_gnn.12} parent=11 // pred_check_branch
          %269 = sbr.rel (%p267) target = $region20
        $region19: #{attentional_gnn.12} parent=11 // pred_region
          _
        $region20: #{attentional_gnn.12} parent=11 // pred_fallthru
          _
        // Predicated region
        $region21: #{attentional_gnn.12} parent=11 // pred_check
          %p270 = pneg %p156
        $region22: #{attentional_gnn.12} parent=11 // pred_check_branch
          %272 = sbr.rel (%p270) target = $region24
        $region23: #{attentional_gnn.12} parent=11 // pred_region
          %274 = vsyncadd [#allocation3], 0
          %s275 = sshll.u32 %s4, 4
          %s276 = int_to_ptr.hbm [resolvable:$true] %s275
          %s277 = sshll.u32 [#allocation2], 4
          %s278 = int_to_ptr.vmem [resolvable:$true] %s277
          %283 = dma.hbm_to_vmem [thread:$0]  %s276, 256, %s278, [#allocation3], 64, 64, 4
        $region24: #{attentional_gnn.12} parent=11 // pred_fallthru
          _
        // Predicated region
        $region25: #{attentional_gnn.12} parent=11 // pred_check
          %p284 = pneg %p177
        $region26: #{attentional_gnn.12} parent=11 // pred_check_branch
          %286 = sbr.rel (%p284) target = $region28
        $region27: #{attentional_gnn.12} parent=11 // pred_region
          _
        $region28: #{attentional_gnn.12} parent=11 // pred_fallthru
          _
        // Predicated region
        $region29: #{attentional_gnn.12} parent=11 // pred_check
          %p287 = pneg %p198
        $region30: #{attentional_gnn.12} parent=11 // pred_check_branch
          %289 = sbr.rel (%p287) target = $region32
        $region31: #{attentional_gnn.12} parent=11 // pred_region
          %291 = vsyncadd [#allocation5], 0
          %s292 = sshll.u32 %s6, 4
          %s293 = int_to_ptr.hbm [resolvable:$true] %s292
          %s294 = sshll.u32 [#allocation4], 4
          %s295 = int_to_ptr.vmem [resolvable:$true] %s294
          %300 = dma.hbm_to_vmem [thread:$0]  %s293, 256, %s295, [#allocation5], 64, 64, 4
        $region32: #{attentional_gnn.12} parent=11 // pred_fallthru
          _
        // Predicated region
        $region33: #{attentional_gnn.12} parent=11 // pred_check
          %p301 = pneg %p219
        $region34: #{attentional_gnn.12} parent=11 // pred_check_branch
          %303 = sbr.rel (%p301) target = $region36
        $region35: #{attentional_gnn.12} parent=11 // pred_region
          _
        $region36: #{attentional_gnn.12} parent=11 // pred_fallthru
          _
      $region12: #{attentional_gnn.12} parent=5 // pred_fallthru
        _
      %p304 = scmp.lt.s32.totalorder %s16, 4
      // Predicated region
      $region37: #{attentional_gnn.12} parent=5 // pred_check
        %p305 = pneg %p304
      $region38: #{attentional_gnn.12} parent=5 // pred_check_branch
        %307 = sbr.rel (%p305) target = $region40
      $region39: #{attentional_gnn.12} parent=5 // pred_region
        // Predicated region
        $region41: #{attentional_gnn.12} parent=39 // pred_check
          %p308 = pneg %p59
        $region42: #{attentional_gnn.12} parent=39 // pred_check_branch
          %310 = sbr.rel (%p308) target = $region44
        $region43: #{attentional_gnn.12} parent=39 // pred_region
          %p311 = scmp.lt.s32.totalorder %s23, 1
          %s312 = scalar_select %p311, %s23, 1
          %p313 = scmp.lt.s32.totalorder %s24, 1
          %s314 = scalar_select %p313, %s24, 1
          %p315 = scmp.lt.s32.totalorder %s25, 0
          %s316 = scalar_select %p315, %s25, 0
          %s317 = sadd.s32 %s316, %s314
          %s318 = smul.addr %s312, 2
          %s319 = sadd.s32 %s317, %s318
          %s320 = smul.addr %s319, 4
          %s321 = scalar_lea.vmem %s0, %s320
        $region44: #{attentional_gnn.12} parent=39 // pred_fallthru
          _
        // Predicated region
        $region45: #{attentional_gnn.12} parent=39 // pred_check
          %p322 = pneg %p87
        $region46: #{attentional_gnn.12} parent=39 // pred_check_branch
          %324 = sbr.rel (%p322) target = $region48
        $region47: #{attentional_gnn.12} parent=39 // pred_region
          %p325 = scmp.lt.s32.totalorder %s23, 1
          %s326 = scalar_select %p325, %s23, 1
          %p327 = scmp.lt.s32.totalorder %s24, 1
          %s328 = scalar_select %p327, %s24, 1
          %s329 = smul.addr %s326, 2
          %s330 = sadd.s32 %s328, %s329
          %s331 = smul.addr %s330, 4
          %s332 = scalar_lea.vmem %s1, %s331
        $region48: #{attentional_gnn.12} parent=39 // pred_fallthru
          _
      $region40: #{attentional_gnn.12} parent=5 // pred_fallthru
        _
      %p333 = scmp.le.s32.totalorder 1, %s16
      %p334 = scmp.lt.s32.totalorder %s16, 5
      %p335 = pnand %p333, %p334
      %p336 = pneg %p335
      // Predicated region
      $region49: #{attentional_gnn.12} parent=5 // pred_check
        _
      $region50: #{attentional_gnn.12} parent=5 // pred_check_branch
        %338 = sbr.rel (%p335) target = $region52
      $region51: #{attentional_gnn.12} parent=5 // pred_region
        %s339 = ssub.s32 %s16, 1
        // Predicated region
        $region53: #{attentional_gnn.12} parent=51 // pred_check
          %p340 = pneg %p156
        $region54: #{attentional_gnn.12} parent=51 // pred_check_branch
          %342 = sbr.rel (%p340) target = $region56
        $region55: #{attentional_gnn.12} parent=51 // pred_region
          %344 = dma.done [#allocation3], 256
        $region56: #{attentional_gnn.12} parent=51 // pred_fallthru
          _
        // Predicated region
        $region57: #{attentional_gnn.12} parent=51 // pred_check
          %p345 = pneg %p198
        $region58: #{attentional_gnn.12} parent=51 // pred_check_branch
          %347 = sbr.rel (%p345) target = $region60
        $region59: #{attentional_gnn.12} parent=51 // pred_region
          %349 = dma.done [#allocation5], 256
        $region60: #{attentional_gnn.12} parent=51 // pred_fallthru
          _
        %p350 = scmp.lt.s32.totalorder %s26, 1
        %s351 = scalar_select %p350, %s26, 1
        %p352 = scmp.lt.s32.totalorder %s27, 1
        %s353 = scalar_select %p352, %s27, 1
        %p354 = scmp.lt.s32.totalorder %s28, 0
        %s355 = scalar_select %p354, %s28, 0
        %s356 = sadd.s32 %s355, %s353
        %s357 = smul.addr %s351, 2
        %s358 = sadd.s32 %s356, %s357
        %s359 = smul.addr %s358, 4
        %s360 = scalar_lea.vmem %s0, %s359
        %p361 = pneg %p65
        %p362 = pneg %p62
        %p363 = scmp.lt.s32.totalorder %s26, 1
        %s364 = scalar_select %p363, %s26, 1
        %p365 = scmp.lt.s32.totalorder %s27, 1
        %s366 = scalar_select %p365, %s27, 1
        %s367 = smul.addr %s364, 2
        %s368 = sadd.s32 %s366, %s367
        %s369 = smul.addr %s368, 4
        %s370 = scalar_lea.vmem %s1, %s369
        %p371 = pneg %p93
        %p372 = pneg %p90
        %p373 = pneg %p114
        %p374 = pneg %p111
        %p375 = pneg %p135
        %p376 = pneg %p132
        %p377 = pneg %p156
        %p378 = pneg %p153
        %p379 = pneg %p177
        %p380 = pneg %p174
        %p381 = pneg %p198
        %p382 = pneg %p195
        %p383 = pneg %p219
        %p384 = pneg %p216
        %p385 = pneg %p249
        %p386 = pneg %p246
        %p387 = scmp.lt.s32.totalorder %s26, 1
        %s388 = scalar_select %p387, %s26, 1
        %p389 = scmp.lt.s32.totalorder %s27, 1
        %s390 = scalar_select %p389, %s27, 1
        %p391 = scmp.lt.s32.totalorder %s28, 0
        %s392 = scalar_select %p391, %s28, 0
        %s393 = sadd.s32 %s392, %s390
        %s394 = smul.addr %s388, 2
        %s395 = sadd.s32 %s393, %s394
        %s396 = smul.addr %s395, 4
        %s397 = scalar_lea.vmem %s8, %s396
        %p398 = scmp.lt.s32.totalorder %s26, 1
        %s399 = scalar_select %p398, %s26, 1
        %p400 = scmp.lt.s32.totalorder %s27, 1
        %s401 = scalar_select %p400, %s27, 1
        %p402 = scmp.lt.s32.totalorder %s28, 0
        %s403 = scalar_select %p402, %s28, 0
        %s404 = sadd.s32 %s403, %s401
        %s405 = smul.addr %s399, 2
        %s406 = sadd.s32 %s404, %s405
        %s407 = smul.addr %s406, 4
        %s408 = scalar_lea.vmem %s0, %s407
        %p409 = scmp.lt.s32.totalorder %s26, 1
        %s410 = scalar_select %p409, %s26, 1
        %p411 = scmp.lt.s32.totalorder %s27, 1
        %s412 = scalar_select %p411, %s27, 1
        %s413 = smul.addr %s410, 2
        %s414 = sadd.s32 %s412, %s413
        %s415 = smul.addr %s414, 4
        %s416 = scalar_lea.vmem %s1, %s415
        %p417 = scmp.lt.s32.totalorder %s26, 1
        %s418 = scalar_select %p417, %s26, 1
        %p419 = scmp.lt.s32.totalorder %s27, 1
        %s420 = scalar_select %p419, %s27, 1
        %p421 = scmp.lt.s32.totalorder %s28, 0
        %s422 = scalar_select %p421, %s28, 0
        %s423 = sadd.s32 %s422, %s420
        %s424 = smul.addr %s418, 2
        %s425 = sadd.s32 %s423, %s424
        %s426 = smul.addr %s425, 4
        %s427 = scalar_lea.vmem %s8, %s426
        %v429 = vld [vmem:[%s408] sm:$0xf]
        %v430 = vld [vmem:[%s416] sm:$0xf]
        %v431 = vld [vmem:[%s2] sm:$0xf]
        %v432 = vld [vmem:[%s2 + $0x4] sm:$0xf]
        %v433 = vld [vmem:[%s2 + $0x8] sm:$0xf]
        %v434 = vld [vmem:[%s2 + $0xc] sm:$0xf]
        %v435 = vld [vmem:[%s3] sm:$0x1]
        %v437 = vperm.slane %v435, 0
        %v443 = vunpack.c.l.b16 %v431
        %v444 = vunpack.c.l.b16 %v432
        %v445 = vunpack.c.l.b16 %v433
        %v446 = vunpack.c.l.b16 %v434
        %v447 = vpack.c.b16 %v444, %v443
        %v448 = vpack.c.b16 %v446, %v445
        %vm451 = vcmask 261120
        %v453 = vsel %vm451, %v429, 0
        %455 = vmatpush.bf16.msra.mxu0 0
        %456 = vmatpush.bf16.msra.mxu0 0
        %457 = vmatpush.bf16.msra.mxu0 0
        %458 = vmatpush.bf16.msra.mxu0 0
        %459 = vmatpush.bf16.msra.mxu0 0
        %460 = vmatpush.bf16.msra.mxu0 0
        %461 = vmatpush.bf16.msra.mxu0 %v448
        %462 = vmatpush.bf16.msra.mxu0 %v447
        %463 = vmatmul.bf16.gmra.mxu0 %v453
        %v464 = vpop.f32.mrf.mxu0
        %v465 = vadd.f32 %v437, %v464
        %v466 = vpop.f32.mrf.mxu0
        %467 = vdwg.mxu0
        %v468 = vld [vmem:[#allocation2] sm:$0xf]
        %v469 = vld [vmem:[#allocation2 + $0x4] sm:$0xf]
        %v470 = vld [vmem:[#allocation2 + $0x8] sm:$0xf]
        %v471 = vld [vmem:[#allocation2 + $0xc] sm:$0xf]
        %v472 = vld [vmem:[%s5] sm:$0x1]
        %v474 = vperm.slane %v472, 0
        %v480 = vunpack.c.l.b16 %v468
        %v481 = vunpack.c.l.b16 %v469
        %v482 = vunpack.c.l.b16 %v470
        %v483 = vunpack.c.l.b16 %v471
        %v484 = vpack.c.b16 %v481, %v480
        %v485 = vpack.c.b16 %v483, %v482
        %v489 = vsel %vm451, %v430, 0
        %491 = vmatpush.bf16.msra.mxu0 0
        %492 = vmatpush.bf16.msra.mxu0 0
        %493 = vmatpush.bf16.msra.mxu0 0
        %494 = vmatpush.bf16.msra.mxu0 0
        %495 = vmatpush.bf16.msra.mxu0 0
        %496 = vmatpush.bf16.msra.mxu0 0
        %497 = vmatpush.bf16.msra.mxu0 %v485
        %498 = vmatpush.bf16.msra.mxu0 %v484
        %499 = vmatmul.bf16.gmra.mxu0 %v489
        %v500 = vpop.f32.mrf.mxu0
        %v501 = vadd.f32 %v474, %v500
        %v502 = vpop.f32.mrf.mxu0
        %503 = vdwg.mxu0
        %v504 = vld [vmem:[#allocation4] sm:$0xf]
        %v505 = vld [vmem:[#allocation4 + $0x4] sm:$0xf]
        %v506 = vld [vmem:[#allocation4 + $0x8] sm:$0xf]
        %v507 = vld [vmem:[#allocation4 + $0xc] sm:$0xf]
        %v508 = vpack.c.bf16 %v465, %v465
        %v509 = vpack.c.bf16 %v501, %v501
        %vm510 = vcmask 64512
        %v512 = vsel %vm510, %v508, 0
        %v515 = vsel %vm510, %v509, 0
        %517 = vmatpush.bf16.xpose.msra.mxu0 0
        %518 = vmatpush.bf16.xpose.msra.mxu0 0
        %519 = vmatpush.bf16.xpose.msra.mxu0 0
        %520 = vmatpush.bf16.xpose.msra.mxu0 0
        %521 = vmatpush.bf16.xpose.msra.mxu0 0
        %522 = vmatpush.bf16.xpose.msra.mxu0 0
        %523 = vmatpush.bf16.xpose.msra.mxu0 0
        %524 = vmatpush.bf16.xpose.msra.mxu0 %v515
        %525 = vmatmul.bf16.gmra.mxu0 %v512
        %v526 = vpop.f32.mrf.mxu0
        %v527 = vadd.f32 0.0, %v526
        %v528 = vpop.f32.mrf.mxu0
        %529 = vdwg.mxu0
        %v530 = vsel %vm510, %v527, -inf
        %531 = vmax.xlane.f32.xlu0 %v530
        %v532 = vpop.xlane.xlu0 %531
        %v533 = vsub.f32 %v527, %v532
        %v534 = vmul.f32 %v533, 1.442695
        %v535 = vpow.pop %v534
        %v536 = vsel %vm510, %v535, 0.0
        %537 = vadd.xlane.f32.xlu0 %v536
        %v538 = vpop.xlane.xlu0 %537
        %v539 = vrcp.pop %v538
        %v540 = vmul.f32 %v535, %v539
        %v541 = vpack.c.bf16 %v540, %v540
        %543 = vrot.lane.b32.xlu0 %v509, 96
        %v544 = vpop.permute.xlu0 %543
        %v546 = vsel %vm510, %v541, 0
        %vm548 = vcmask 1043456
        %v550 = vsel %vm548, %v544, 0
        %552 = vmatpush.bf16.msra.mxu0 0
        %553 = vmatpush.bf16.msra.mxu0 0
        %554 = vmatpush.bf16.msra.mxu0 0
        %555 = vmatpush.bf16.msra.mxu0 0
        %556 = vmatpush.bf16.msra.mxu0 0
        %557 = vmatpush.bf16.msra.mxu0 0
        %558 = vmatpush.bf16.msra.mxu0 0
        %559 = vmatpush.bf16.msra.mxu0 %v550
        %560 = vmatmul.bf16.gmra.mxu0 %v546
        %v561 = vpop.f32.mrf.mxu0
        %v562 = vadd.f32 0.0, %v561
        %v563 = vpop.f32.mrf.mxu0
        %564 = vdwg.mxu0
        %v565 = vpack.c.bf16 %v562, %v562
        %567 = vrot.lane.b32.xlu0 %v508, 120
        %v568 = vpop.permute.xlu0 %567
        %569 = vrot.lane.b32.xlu0 %v509, 120
        %v570 = vpop.permute.xlu0 %569
        %v572 = vsel %vm510, %v568, 0
        %v575 = vsel %vm510, %v570, 0
        %577 = vmatpush.bf16.xpose.msra.mxu0 0
        %578 = vmatpush.bf16.xpose.msra.mxu0 0
        %579 = vmatpush.bf16.xpose.msra.mxu0 0
        %580 = vmatpush.bf16.xpose.msra.mxu0 0
        %581 = vmatpush.bf16.xpose.msra.mxu0 0
        %582 = vmatpush.bf16.xpose.msra.mxu0 0
        %583 = vmatpush.bf16.xpose.msra.mxu0 0
        %584 = vmatpush.bf16.xpose.msra.mxu0 %v575
        %585 = vmatmul.bf16.gmra.mxu0 %v572
        %v586 = vpop.f32.mrf.mxu0
        %v587 = vadd.f32 0.0, %v586
        %v588 = vpop.f32.mrf.mxu0
        %589 = vdwg.mxu0
        %v590 = vsel %vm510, %v587, -inf
        %591 = vmax.xlane.f32.xlu0 %v590
        %v592 = vpop.xlane.xlu0 %591
        %v593 = vsub.f32 %v587, %v592
        %v594 = vmul.f32 %v593, 1.442695
        %v595 = vpow.pop %v594
        %v596 = vsel %vm510, %v595, 0.0
        %597 = vadd.xlane.f32.xlu0 %v596
        %v598 = vpop.xlane.xlu0 %597
        %v599 = vrcp.pop %v598
        %v600 = vmul.f32 %v595, %v599
        %v601 = vpack.c.bf16 %v600, %v600
        %602 = vrot.lane.b32.xlu0 %v509, 88
        %v603 = vpop.permute.xlu0 %602
        %v605 = vsel %vm510, %v601, 0
        %v608 = vsel %vm548, %v603, 0
        %610 = vmatpush.bf16.msra.mxu0 0
        %611 = vmatpush.bf16.msra.mxu0 0
        %612 = vmatpush.bf16.msra.mxu0 0
        %613 = vmatpush.bf16.msra.mxu0 0
        %614 = vmatpush.bf16.msra.mxu0 0
        %615 = vmatpush.bf16.msra.mxu0 0
        %616 = vmatpush.bf16.msra.mxu0 0
        %617 = vmatpush.bf16.msra.mxu0 %v608
        %618 = vmatmul.bf16.gmra.mxu0 %v605
        %v619 = vpop.f32.mrf.mxu0
        %v620 = vadd.f32 0.0, %v619
        %v621 = vpop.f32.mrf.mxu0
        %622 = vdwg.mxu0
        %v623 = vpack.c.bf16 %v620, %v620
        %v625 = vsel %vm510, %v623, 0
        %v628 = vsel %vm548, %v505, 0
        %630 = vmatpush.bf16.msra.mxu0 0
        %631 = vmatpush.bf16.msra.mxu0 0
        %632 = vmatpush.bf16.msra.mxu0 0
        %633 = vmatpush.bf16.msra.mxu0 0
        %634 = vmatpush.bf16.msra.mxu0 0
        %635 = vmatpush.bf16.msra.mxu0 0
        %636 = vmatpush.bf16.msra.mxu0 0
        %637 = vmatpush.bf16.msra.mxu0 %v628
        %638 = vmatmul.bf16.gmra.mxu0 %v625
        %v639 = vpop.f32.mrf.mxu0
        %v640 = vadd.f32 0.0, %v639
        %v641 = vpop.f32.mrf.mxu0
        %642 = vdwg.mxu0
        %v644 = vsel %vm510, %v565, 0
        %v647 = vsel %vm548, %v504, 0
        %649 = vmatpush.bf16.msra.mxu0 0
        %650 = vmatpush.bf16.msra.mxu0 0
        %651 = vmatpush.bf16.msra.mxu0 0
        %652 = vmatpush.bf16.msra.mxu0 0
        %653 = vmatpush.bf16.msra.mxu0 0
        %654 = vmatpush.bf16.msra.mxu0 0
        %655 = vmatpush.bf16.msra.mxu0 0
        %656 = vmatpush.bf16.msra.mxu0 %v647
        %657 = vmatmul.bf16.gmra.mxu0 %v644
        %v658 = vpop.f32.mrf.mxu0
        %v659 = vadd.f32 %v640, %v658
        %v660 = vpop.f32.mrf.mxu0
        %661 = vdwg.mxu0
        %662 = vrot.lane.b32.xlu0 %v508, 112
        %v663 = vpop.permute.xlu0 %662
        %664 = vrot.lane.b32.xlu0 %v509, 112
        %v665 = vpop.permute.xlu0 %664
        %v667 = vsel %vm510, %v663, 0
        %v670 = vsel %vm510, %v665, 0
        %672 = vmatpush.bf16.xpose.msra.mxu0 0
        %673 = vmatpush.bf16.xpose.msra.mxu0 0
        %674 = vmatpush.bf16.xpose.msra.mxu0 0
        %675 = vmatpush.bf16.xpose.msra.mxu0 0
        %676 = vmatpush.bf16.xpose.msra.mxu0 0
        %677 = vmatpush.bf16.xpose.msra.mxu0 0
        %678 = vmatpush.bf16.xpose.msra.mxu0 0
        %679 = vmatpush.bf16.xpose.msra.mxu0 %v670
        %680 = vmatmul.bf16.gmra.mxu0 %v667
        %v681 = vpop.f32.mrf.mxu0
        %v682 = vadd.f32 0.0, %v681
        %v683 = vpop.f32.mrf.mxu0
        %684 = vdwg.mxu0
        %v685 = vsel %vm510, %v682, -inf
        %686 = vmax.xlane.f32.xlu0 %v685
        %v687 = vpop.xlane.xlu0 %686
        %v688 = vsub.f32 %v682, %v687
        %v689 = vmul.f32 %v688, 1.442695
        %v690 = vpow.pop %v689
        %v691 = vsel %vm510, %v690, 0.0
        %692 = vadd.xlane.f32.xlu0 %v691
        %v693 = vpop.xlane.xlu0 %692
        %v694 = vrcp.pop %v693
        %v695 = vmul.f32 %v690, %v694
        %v696 = vpack.c.bf16 %v695, %v695
        %697 = vrot.lane.b32.xlu0 %v509, 80
        %v698 = vpop.permute.xlu0 %697
        %v700 = vsel %vm510, %v696, 0
        %v703 = vsel %vm548, %v698, 0
        %705 = vmatpush.bf16.msra.mxu0 0
        %706 = vmatpush.bf16.msra.mxu0 0
        %707 = vmatpush.bf16.msra.mxu0 0
        %708 = vmatpush.bf16.msra.mxu0 0
        %709 = vmatpush.bf16.msra.mxu0 0
        %710 = vmatpush.bf16.msra.mxu0 0
        %711 = vmatpush.bf16.msra.mxu0 0
        %712 = vmatpush.bf16.msra.mxu0 %v703
        %713 = vmatmul.bf16.gmra.mxu0 %v700
        %v714 = vpop.f32.mrf.mxu0
        %v715 = vadd.f32 0.0, %v714
        %v716 = vpop.f32.mrf.mxu0
        %717 = vdwg.mxu0
        %v718 = vpack.c.bf16 %v715, %v715
        %v720 = vsel %vm510, %v718, 0
        %v723 = vsel %vm548, %v506, 0
        %725 = vmatpush.bf16.msra.mxu0 0
        %726 = vmatpush.bf16.msra.mxu0 0
        %727 = vmatpush.bf16.msra.mxu0 0
        %728 = vmatpush.bf16.msra.mxu0 0
        %729 = vmatpush.bf16.msra.mxu0 0
        %730 = vmatpush.bf16.msra.mxu0 0
        %731 = vmatpush.bf16.msra.mxu0 0
        %732 = vmatpush.bf16.msra.mxu0 %v723
        %733 = vmatmul.bf16.gmra.mxu0 %v720
        %v734 = vpop.f32.mrf.mxu0
        %v735 = vadd.f32 0.0, %v734
        %v736 = vpop.f32.mrf.mxu0
        %737 = vdwg.mxu0
        %v738 = vadd.f32 %v659, %v735
        %739 = vrot.lane.b32.xlu0 %v508, 104
        %v740 = vpop.permute.xlu0 %739
        %741 = vrot.lane.b32.xlu0 %v509, 104
        %v742 = vpop.permute.xlu0 %741
        %v744 = vsel %vm510, %v740, 0
        %v747 = vsel %vm510, %v742, 0
        %749 = vmatpush.bf16.xpose.msra.mxu0 0
        %750 = vmatpush.bf16.xpose.msra.mxu0 0
        %751 = vmatpush.bf16.xpose.msra.mxu0 0
        %752 = vmatpush.bf16.xpose.msra.mxu0 0
        %753 = vmatpush.bf16.xpose.msra.mxu0 0
        %754 = vmatpush.bf16.xpose.msra.mxu0 0
        %755 = vmatpush.bf16.xpose.msra.mxu0 0
        %756 = vmatpush.bf16.xpose.msra.mxu0 %v747
        %757 = vmatmul.bf16.gmra.mxu0 %v744
        %v758 = vpop.f32.mrf.mxu0
        %v759 = vadd.f32 0.0, %v758
        %v760 = vpop.f32.mrf.mxu0
        %761 = vdwg.mxu0
        %v762 = vsel %vm510, %v759, -inf
        %763 = vmax.xlane.f32.xlu0 %v762
        %v764 = vpop.xlane.xlu0 %763
        %v765 = vsub.f32 %v759, %v764
        %v766 = vmul.f32 %v765, 1.442695
        %v767 = vpow.pop %v766
        %v768 = vsel %vm510, %v767, 0.0
        %769 = vadd.xlane.f32.xlu0 %v768
        %v770 = vpop.xlane.xlu0 %769
        %v771 = vrcp.pop %v770
        %v772 = vmul.f32 %v767, %v771
        %v773 = vpack.c.bf16 %v772, %v772
        %774 = vrot.lane.b32.xlu0 %v509, 72
        %v775 = vpop.permute.xlu0 %774
        %v777 = vsel %vm510, %v773, 0
        %v780 = vsel %vm548, %v775, 0
        %782 = vmatpush.bf16.msra.mxu0 0
        %783 = vmatpush.bf16.msra.mxu0 0
        %784 = vmatpush.bf16.msra.mxu0 0
        %785 = vmatpush.bf16.msra.mxu0 0
        %786 = vmatpush.bf16.msra.mxu0 0
        %787 = vmatpush.bf16.msra.mxu0 0
        %788 = vmatpush.bf16.msra.mxu0 0
        %789 = vmatpush.bf16.msra.mxu0 %v780
        %790 = vmatmul.bf16.gmra.mxu0 %v777
        %v791 = vpop.f32.mrf.mxu0
        %v792 = vadd.f32 0.0, %v791
        %v793 = vpop.f32.mrf.mxu0
        %794 = vdwg.mxu0
        %v795 = vpack.c.bf16 %v792, %v792
        %v797 = vsel %vm510, %v795, 0
        %v800 = vsel %vm548, %v507, 0
        %802 = vmatpush.bf16.msra.mxu0 0
        %803 = vmatpush.bf16.msra.mxu0 0
        %804 = vmatpush.bf16.msra.mxu0 0
        %805 = vmatpush.bf16.msra.mxu0 0
        %806 = vmatpush.bf16.msra.mxu0 0
        %807 = vmatpush.bf16.msra.mxu0 0
        %808 = vmatpush.bf16.msra.mxu0 0
        %809 = vmatpush.bf16.msra.mxu0 %v800
        %810 = vmatmul.bf16.gmra.mxu0 %v797
        %v811 = vpop.f32.mrf.mxu0
        %v812 = vadd.f32 0.0, %v811
        %v813 = vpop.f32.mrf.mxu0
        %814 = vdwg.mxu0
        %v815 = vadd.f32 %v738, %v812
        %v816 = vld [vmem:[%s7] sm:$0x1]
        %v818 = vperm.slane %v816, 0
        %v820 = vadd.f32 %v815, %v818
        %v821 = vpack.c.bf16 %v820, %v820
        %vm822 = vcmask 257024
        %823 = vst.msk [vmem:[%s427] sm:$0xf] %vm822, %v821
        %p824 = scmp.lt.s32.totalorder %s26, 1
        %s825 = scalar_select %p824, %s26, 1
        %p826 = scmp.lt.s32.totalorder %s27, 1
        %s827 = scalar_select %p826, %s27, 1
        %p828 = scmp.lt.s32.totalorder %s28, 0
        %s829 = scalar_select %p828, %s28, 0
        %s830 = sadd.s32 %s829, %s827
        %s831 = smul.addr %s825, 2
        %s832 = sadd.s32 %s830, %s831
        %s833 = smul.addr %s832, 4
        %s834 = scalar_lea.vmem %s8, %s833
        // Predicated region
        $region61: #{attentional_gnn.12} parent=51 // pred_check
          %p835 = pneg %p246
        $region62: #{attentional_gnn.12} parent=51 // pred_check_branch
          %837 = sbr.rel (%p835) target = $region64
        $region63: #{attentional_gnn.12} parent=51 // pred_region
          _
        $region64: #{attentional_gnn.12} parent=51 // pred_fallthru
          _
      $region52: #{attentional_gnn.12} parent=5 // pred_fallthru
        _
      %p838 = scmp.le.s32.totalorder 2, %s16
      // Predicated region
      $region65: #{attentional_gnn.12} parent=5 // pred_check
        %p839 = pneg %p838
      $region66: #{attentional_gnn.12} parent=5 // pred_check_branch
        %841 = sbr.rel (%p839) target = $region68
      $region67: #{attentional_gnn.12} parent=5 // pred_region
        %s842 = ssub.s32 %s16, 2
        // Predicated region
        $region69: #{attentional_gnn.12} parent=67 // pred_check
          %p843 = pneg %p252
        $region70: #{attentional_gnn.12} parent=67 // pred_check_branch
          %845 = sbr.rel (%p843) target = $region72
        $region71: #{attentional_gnn.12} parent=67 // pred_region
          %p846 = scmp.lt.s32.totalorder %s29, 1
          %s847 = scalar_select %p846, %s29, 1
          %p848 = scmp.lt.s32.totalorder %s30, 1
          %s849 = scalar_select %p848, %s30, 1
          %p850 = scmp.lt.s32.totalorder %s31, 0
          %s851 = scalar_select %p850, %s31, 0
          %s852 = sadd.s32 %s851, %s849
          %s853 = smul.addr %s847, 2
          %s854 = sadd.s32 %s852, %s853
          %s855 = smul.addr %s854, 4
          %s856 = scalar_lea.vmem %s8, %s855
        $region72: #{attentional_gnn.12} parent=67 // pred_fallthru
          _
      $region68: #{attentional_gnn.12} parent=5 // pred_fallthru
        _
    $region6: #{attentional_gnn.12} parent=1 // loop_footer
      %s20 = sadd.s32 1, %s16
    $region7: #{attentional_gnn.12} parent=1 // loop_footer_branch
      %15 = sbr.rel target = $region3
    $region8: #{attentional_gnn.12} parent=1 // loop_exit
      _
    %857 = vsyncpa [#allocation3], 1
    %s858 = scalar_lea.sflag [#allocation3], 1
    %859 = vsyncpa %s858, 1
    %860 = vsyncpa [#allocation5], 1

// kernel: attentional_gnn.15
$region0: #{attentional_gnn.15}
  #allocation0 [shape = 'u32[]', space=smem, size = 0x4, offset = 0x4, fixed_abs, tag = 'smem constant byte address 0x4 - core index']
  #allocation1 [shape = 'u32[72,128]{1,0:T(1,128)}', space=vmem, size = 0x9000, scoped, tag = 'internal scratch']
  #allocation2 [shape = 'f32[1,64]{1,0:T(1,128)}', space=vmem, size = 0x200, scoped, tag = 'scratch operand']
  #allocation3 [shape = 'f32[1,64]{1,0:T(1,128)}', space=vmem, size = 0x200, scoped, tag = 'scratch operand']
  %s0 = inlined_call_operand.vmem [shape: f32[2,16,32], index: 0, kind: input, shape index: {}]
  %s1 = inlined_call_operand.vmem [shape: bf16[2,16,32], index: 1, kind: input, shape index: {}]
  %s2 = inlined_call_operand.vmem [shape: bf16[32,64], index: 2, kind: input, shape index: {}]
  %s3 = inlined_call_operand.vmem [shape: bf16[32,64], index: 3, kind: input, shape index: {}]
  %s4 = inlined_call_operand.vmem [shape: f32[1,64], index: 4, kind: input, shape index: {}]
  %s5 = inlined_call_operand.vmem [shape: f32[1,64], index: 5, kind: input, shape index: {}]
  %s6 = inlined_call_operand.vmem [shape: f32[1,64], index: 6, kind: input, shape index: {}]
  %s7 = inlined_call_operand.vmem [shape: bf16[64,32], index: 7, kind: input, shape index: {}]
  %s8 = inlined_call_operand.vmem [shape: f32[1,32], index: 8, kind: input, shape index: {}]
  %s9 = inlined_call_operand.vmem [shape: f32[2,16,32], index: 9, kind: output, shape index: {0}]
  %s10 = inlined_call_operand.hbm [shape: bf16[2,16,32], index: 10, kind: output, shape index: {1}]
  %11 = xla_tuple %s9, %s10
  %s12 = sld [smem:[#allocation0]]
  $region89: #{attentional_gnn.15} parent=0
    _
  %s14 = ssub.s32 1, %s12
  %s15 = scalar_select 0, %s14, %s12
  $region1: #{attentional_gnn.15} parent=0
    #allocation4 [shape = 'u8[8192]{0}', space=vmem, size = 0x2000, scoped, tag = 'output window, operand 1']
    #allocation5 [shape = 's32[2]{0}', space=sflag, size = 0x8, scoped, tag = 'scoped memory for attentional_gnn.15']
    %16 = vsyncpa [#allocation5], 0
    %s17 = scalar_lea.sflag [#allocation5], 1
    %18 = vsyncpa %s17, 0
    loop: start=0, step=1, limit=6
    $region2: #{attentional_gnn.15} parent=1 // loop_pre_header
      _
    $region3: #{attentional_gnn.15} parent=1 // loop_header
      %s20 = sphi 0, %s24
      %p21 = scmp.ge.s32.totalorder %s20, 6
      %s27 = sphi 0, %s46
      %s28 = sphi 0, %s42
      %s29 = sphi 0, %s38
      %s30 = sphi 0, %s27
      %s31 = sphi 0, %s28
      %s32 = sphi 0, %s29
      %s33 = sphi 0, %s30
      %s34 = sphi 0, %s31
      %s35 = sphi 0, %s32
      %s51 = sphi 0, %s53
      %s54 = sphi 0, %s51
      %s55 = sphi 0, %s54
      %s71 = sphi 0, %s55
      %s79 = sphi 0, %s81
      %s82 = sphi 0, %s79
      %s83 = sphi 0, %s82
      %s99 = sphi 0, %s83
      %s103 = sphi 0, %s103
      %s105 = sphi 0, %s103
      %s106 = sphi 0, %s105
      %s120 = sphi 0, %s106
      %s124 = sphi 0, %s124
      %s126 = sphi 0, %s124
      %s127 = sphi 0, %s126
      %s141 = sphi 0, %s127
      %s145 = sphi 0, %s145
      %s147 = sphi 0, %s145
      %s148 = sphi 0, %s147
      %s162 = sphi 0, %s148
      %s166 = sphi 0, %s166
      %s168 = sphi 0, %s166
      %s169 = sphi 0, %s168
      %s183 = sphi 0, %s169
      %s187 = sphi 0, %s187
      %s189 = sphi 0, %s187
      %s190 = sphi 0, %s189
      %s204 = sphi 0, %s190
      %s208 = sphi 0, %s208
      %s210 = sphi 0, %s208
      %s211 = sphi 0, %s210
      %s225 = sphi 0, %s211
      %s229 = sphi 0, %s229
      %s231 = sphi 0, %s229
      %s232 = sphi 0, %s231
      %s246 = sphi 0, %s232
      %s256 = sphi 0, %s258
      %s259 = sphi 0, %s256
      %s260 = sphi 0, %s259
      %s276 = sphi 0, %s260
      %s286 = sphi 0, %s288
      %s289 = sphi 0, %s286
      %s290 = sphi 0, %s289
      %s306 = sphi 0, %s290
    $region4: #{attentional_gnn.15} parent=1 // loop_header_branch
      %23 = sbr.rel (%p21) target = $region8
    $region5: #{attentional_gnn.15} parent=1 // loop_body
      %s25 = ssub.s32 %s20, 1
      %s26 = ssub.s32 %s20, 2
      %s36 = sadd.s32 1, %s29
      %p37 = scmp.ge.s32.totalorder %s36, 1
      %s38 = scalar_select %p37, 0, %s36
      %s39 = sadd.s32 1, %s28
      %s40 = scalar_select %p37, %s39, %s28
      %p41 = scmp.ge.s32.totalorder %s40, 2
      %s42 = scalar_select %p41, 0, %s40
      %s43 = sadd.s32 1, %s27
      %s44 = scalar_select %p41, %s43, %s27
      %p45 = scmp.ge.s32.totalorder %s44, 2
      %s46 = scalar_select %p45, 0, %s44
      %s47 = ssub.s32 %s27, %s46
      %s48 = ssub.s32 %s29, %s38
      %s49 = sor.u32 %s47, %s48
      %p50 = scmp.eq.s32.totalorder %s49, 0
      %s52 = sadd.s32 %s51, 1
      %s53 = scalar_select %p50, %s51, %s52
      %p56 = pneg %p50
      %p57 = scmp.eq.s32.totalorder %s20, 3
      %p58 = por %p56, %p57
      %p59 = scmp.ne.s32.totalorder %s51, %s54
      %p60 = scmp.eq.s32.totalorder %s20, 0
      %p61 = por %p59, %p60
      %p62 = scmp.ne.s32.totalorder %s51, %s54
      %p63 = scmp.eq.s32.totalorder %s25, 3
      %p64 = por %p62, %p63
      %p65 = scmp.ne.s32.totalorder %s54, %s55
      %p66 = scmp.eq.s32.totalorder %s25, 0
      %p67 = por %p65, %p66
      %p68 = scmp.ne.s32.totalorder %s54, %s55
      %p69 = scmp.eq.s32.totalorder %s26, 3
      %p70 = por %p68, %p69
      %p72 = scmp.ne.s32.totalorder %s55, %s71
      %p73 = scmp.eq.s32.totalorder %s26, 0
      %p74 = por %p72, %p73
      %s75 = ssub.s32 %s27, %s46
      %s76 = ssub.s32 %s29, %s38
      %s77 = sor.u32 %s75, %s76
      %p78 = scmp.eq.s32.totalorder %s77, 0
      %s80 = sadd.s32 %s79, 1
      %s81 = scalar_select %p78, %s79, %s80
      %p84 = pneg %p78
      %p85 = scmp.eq.s32.totalorder %s20, 3
      %p86 = por %p84, %p85
      %p87 = scmp.ne.s32.totalorder %s79, %s82
      %p88 = scmp.eq.s32.totalorder %s20, 0
      %p89 = por %p87, %p88
      %p90 = scmp.ne.s32.totalorder %s79, %s82
      %p91 = scmp.eq.s32.totalorder %s25, 3
      %p92 = por %p90, %p91
      %p93 = scmp.ne.s32.totalorder %s82, %s83
      %p94 = scmp.eq.s32.totalorder %s25, 0
      %p95 = por %p93, %p94
      %p96 = scmp.ne.s32.totalorder %s82, %s83
      %p97 = scmp.eq.s32.totalorder %s26, 3
      %p98 = por %p96, %p97
      %p100 = scmp.ne.s32.totalorder %s83, %s99
      %p101 = scmp.eq.s32.totalorder %s26, 0
      %p102 = por %p100, %p101
      %s104 = sadd.s32 %s103, 1
      %p107 = scmp.eq.s32.totalorder %s20, 3
      %p108 = scmp.ne.s32.totalorder %s103, %s105
      %p109 = scmp.eq.s32.totalorder %s20, 0
      %p110 = por %p108, %p109
      %p111 = scmp.ne.s32.totalorder %s103, %s105
      %p112 = scmp.eq.s32.totalorder %s25, 3
      %p113 = por %p111, %p112
      %p114 = scmp.ne.s32.totalorder %s105, %s106
      %p115 = scmp.eq.s32.totalorder %s25, 0
      %p116 = por %p114, %p115
      %p117 = scmp.ne.s32.totalorder %s105, %s106
      %p118 = scmp.eq.s32.totalorder %s26, 3
      %p119 = por %p117, %p118
      %p121 = scmp.ne.s32.totalorder %s106, %s120
      %p122 = scmp.eq.s32.totalorder %s26, 0
      %p123 = por %p121, %p122
      %s125 = sadd.s32 %s124, 1
      %p128 = scmp.eq.s32.totalorder %s20, 3
      %p129 = scmp.ne.s32.totalorder %s124, %s126
      %p130 = scmp.eq.s32.totalorder %s20, 0
      %p131 = por %p129, %p130
      %p132 = scmp.ne.s32.totalorder %s124, %s126
      %p133 = scmp.eq.s32.totalorder %s25, 3
      %p134 = por %p132, %p133
      %p135 = scmp.ne.s32.totalorder %s126, %s127
      %p136 = scmp.eq.s32.totalorder %s25, 0
      %p137 = por %p135, %p136
      %p138 = scmp.ne.s32.totalorder %s126, %s127
      %p139 = scmp.eq.s32.totalorder %s26, 3
      %p140 = por %p138, %p139
      %p142 = scmp.ne.s32.totalorder %s127, %s141
      %p143 = scmp.eq.s32.totalorder %s26, 0
      %p144 = por %p142, %p143
      %s146 = sadd.s32 %s145, 1
      %p149 = scmp.eq.s32.totalorder %s20, 3
      %p150 = scmp.ne.s32.totalorder %s145, %s147
      %p151 = scmp.eq.s32.totalorder %s20, 0
      %p152 = por %p150, %p151
      %p153 = scmp.ne.s32.totalorder %s145, %s147
      %p154 = scmp.eq.s32.totalorder %s25, 3
      %p155 = por %p153, %p154
      %p156 = scmp.ne.s32.totalorder %s147, %s148
      %p157 = scmp.eq.s32.totalorder %s25, 0
      %p158 = por %p156, %p157
      %p159 = scmp.ne.s32.totalorder %s147, %s148
      %p160 = scmp.eq.s32.totalorder %s26, 3
      %p161 = por %p159, %p160
      %p163 = scmp.ne.s32.totalorder %s148, %s162
      %p164 = scmp.eq.s32.totalorder %s26, 0
      %p165 = por %p163, %p164
      %s167 = sadd.s32 %s166, 1
      %p170 = scmp.eq.s32.totalorder %s20, 3
      %p171 = scmp.ne.s32.totalorder %s166, %s168
      %p172 = scmp.eq.s32.totalorder %s20, 0
      %p173 = por %p171, %p172
      %p174 = scmp.ne.s32.totalorder %s166, %s168
      %p175 = scmp.eq.s32.totalorder %s25, 3
      %p176 = por %p174, %p175
      %p177 = scmp.ne.s32.totalorder %s168, %s169
      %p178 = scmp.eq.s32.totalorder %s25, 0
      %p179 = por %p177, %p178
      %p180 = scmp.ne.s32.totalorder %s168, %s169
      %p181 = scmp.eq.s32.totalorder %s26, 3
      %p182 = por %p180, %p181
      %p184 = scmp.ne.s32.totalorder %s169, %s183
      %p185 = scmp.eq.s32.totalorder %s26, 0
      %p186 = por %p184, %p185
      %s188 = sadd.s32 %s187, 1
      %p191 = scmp.eq.s32.totalorder %s20, 3
      %p192 = scmp.ne.s32.totalorder %s187, %s189
      %p193 = scmp.eq.s32.totalorder %s20, 0
      %p194 = por %p192, %p193
      %p195 = scmp.ne.s32.totalorder %s187, %s189
      %p196 = scmp.eq.s32.totalorder %s25, 3
      %p197 = por %p195, %p196
      %p198 = scmp.ne.s32.totalorder %s189, %s190
      %p199 = scmp.eq.s32.totalorder %s25, 0
      %p200 = por %p198, %p199
      %p201 = scmp.ne.s32.totalorder %s189, %s190
      %p202 = scmp.eq.s32.totalorder %s26, 3
      %p203 = por %p201, %p202
      %p205 = scmp.ne.s32.totalorder %s190, %s204
      %p206 = scmp.eq.s32.totalorder %s26, 0
      %p207 = por %p205, %p206
      %s209 = sadd.s32 %s208, 1
      %p212 = scmp.eq.s32.totalorder %s20, 3
      %p213 = scmp.ne.s32.totalorder %s208, %s210
      %p214 = scmp.eq.s32.totalorder %s20, 0
      %p215 = por %p213, %p214
      %p216 = scmp.ne.s32.totalorder %s208, %s210
      %p217 = scmp.eq.s32.totalorder %s25, 3
      %p218 = por %p216, %p217
      %p219 = scmp.ne.s32.totalorder %s210, %s211
      %p220 = scmp.eq.s32.totalorder %s25, 0
      %p221 = por %p219, %p220
      %p222 = scmp.ne.s32.totalorder %s210, %s211
      %p223 = scmp.eq.s32.totalorder %s26, 3
      %p224 = por %p222, %p223
      %p226 = scmp.ne.s32.totalorder %s211, %s225
      %p227 = scmp.eq.s32.totalorder %s26, 0
      %p228 = por %p226, %p227
      %s230 = sadd.s32 %s229, 1
      %p233 = scmp.eq.s32.totalorder %s20, 3
      %p234 = scmp.ne.s32.totalorder %s229, %s231
      %p235 = scmp.eq.s32.totalorder %s20, 0
      %p236 = por %p234, %p235
      %p237 = scmp.ne.s32.totalorder %s229, %s231
      %p238 = scmp.eq.s32.totalorder %s25, 3
      %p239 = por %p237, %p238
      %p240 = scmp.ne.s32.totalorder %s231, %s232
      %p241 = scmp.eq.s32.totalorder %s25, 0
      %p242 = por %p240, %p241
      %p243 = scmp.ne.s32.totalorder %s231, %s232
      %p244 = scmp.eq.s32.totalorder %s26, 3
      %p245 = por %p243, %p244
      %p247 = scmp.ne.s32.totalorder %s232, %s246
      %p248 = scmp.eq.s32.totalorder %s26, 0
      %p249 = por %p247, %p248
      %s250 = smul.u32 %s28, %s29
      %s251 = smul.u32 %s42, %s38
      %s252 = ssub.s32 %s27, %s46
      %s253 = ssub.s32 %s250, %s251
      %s254 = sor.u32 %s252, %s253
      %p255 = scmp.eq.s32.totalorder %s254, 0
      %s257 = sadd.s32 %s256, 1
      %s258 = scalar_select %p255, %s256, %s257
      %p261 = pneg %p255
      %p262 = scmp.eq.s32.totalorder %s20, 3
      %p263 = por %p261, %p262
      %p264 = scmp.ne.s32.totalorder %s256, %s259
      %p265 = scmp.eq.s32.totalorder %s20, 0
      %p266 = por %p264, %p265
      %p267 = scmp.ne.s32.totalorder %s256, %s259
      %p268 = scmp.eq.s32.totalorder %s25, 3
      %p269 = por %p267, %p268
      %p270 = scmp.ne.s32.totalorder %s259, %s260
      %p271 = scmp.eq.s32.totalorder %s25, 0
      %p272 = por %p270, %p271
      %p273 = scmp.ne.s32.totalorder %s259, %s260
      %p274 = scmp.eq.s32.totalorder %s26, 3
      %p275 = por %p273, %p274
      %p277 = scmp.ne.s32.totalorder %s260, %s276
      %p278 = scmp.eq.s32.totalorder %s26, 0
      %p279 = por %p277, %p278
      %s280 = smul.u32 %s28, %s29
      %s281 = smul.u32 %s42, %s38
      %s282 = ssub.s32 %s27, %s46
      %s283 = ssub.s32 %s280, %s281
      %s284 = sor.u32 %s282, %s283
      %p285 = scmp.eq.s32.totalorder %s284, 0
      %s287 = sadd.s32 %s286, 1
      %s288 = scalar_select %p285, %s286, %s287
      %p291 = pneg %p285
      %p292 = scmp.eq.s32.totalorder %s20, 3
      %p293 = por %p291, %p292
      %p294 = scmp.ne.s32.totalorder %s286, %s289
      %p295 = scmp.eq.s32.totalorder %s20, 0
      %p296 = por %p294, %p295
      %p297 = scmp.ne.s32.totalorder %s286, %s289
      %p298 = scmp.eq.s32.totalorder %s25, 3
      %p299 = por %p297, %p298
      %p300 = scmp.ne.s32.totalorder %s289, %s290
      %p301 = scmp.eq.s32.totalorder %s25, 0
      %p302 = por %p300, %p301
      %p303 = scmp.ne.s32.totalorder %s289, %s290
      %p304 = scmp.eq.s32.totalorder %s26, 3
      %p305 = por %p303, %p304
      %p307 = scmp.ne.s32.totalorder %s290, %s306
      %p308 = scmp.eq.s32.totalorder %s26, 0
      %p309 = por %p307, %p308
      %p310 = scmp.le.s32.totalorder 1, %s20
      %p311 = scmp.lt.s32.totalorder %s20, 5
      %p312 = pnand %p310, %p311
      %p313 = pneg %p312
      // Predicated region
      $region9: #{attentional_gnn.15} parent=5 // pred_check
        _
      $region10: #{attentional_gnn.15} parent=5 // pred_check_branch
        %315 = sbr.rel (%p312) target = $region12
      $region11: #{attentional_gnn.15} parent=5 // pred_region
        %s316 = ssub.s32 %s20, 1
        // Predicated region
        $region13: #{attentional_gnn.15} parent=11 // pred_check
          %p317 = pneg %p116
        $region14: #{attentional_gnn.15} parent=11 // pred_check_branch
          %319 = sbr.rel (%p317) target = $region16
        $region15: #{attentional_gnn.15} parent=11 // pred_region
          _
        $region16: #{attentional_gnn.15} parent=11 // pred_fallthru
          _
        // Predicated region
        $region17: #{attentional_gnn.15} parent=11 // pred_check
          %p320 = pneg %p137
        $region18: #{attentional_gnn.15} parent=11 // pred_check_branch
          %322 = sbr.rel (%p320) target = $region20
        $region19: #{attentional_gnn.15} parent=11 // pred_region
          _
        $region20: #{attentional_gnn.15} parent=11 // pred_fallthru
          _
        // Predicated region
        $region21: #{attentional_gnn.15} parent=11 // pred_check
          %p323 = pneg %p158
        $region22: #{attentional_gnn.15} parent=11 // pred_check_branch
          %325 = sbr.rel (%p323) target = $region24
        $region23: #{attentional_gnn.15} parent=11 // pred_region
          _
        $region24: #{attentional_gnn.15} parent=11 // pred_fallthru
          _
        // Predicated region
        $region25: #{attentional_gnn.15} parent=11 // pred_check
          %p326 = pneg %p179
        $region26: #{attentional_gnn.15} parent=11 // pred_check_branch
          %328 = sbr.rel (%p326) target = $region28
        $region27: #{attentional_gnn.15} parent=11 // pred_region
          _
        $region28: #{attentional_gnn.15} parent=11 // pred_fallthru
          _
        // Predicated region
        $region29: #{attentional_gnn.15} parent=11 // pred_check
          %p329 = pneg %p200
        $region30: #{attentional_gnn.15} parent=11 // pred_check_branch
          %331 = sbr.rel (%p329) target = $region32
        $region31: #{attentional_gnn.15} parent=11 // pred_region
          _
        $region32: #{attentional_gnn.15} parent=11 // pred_fallthru
          _
        // Predicated region
        $region33: #{attentional_gnn.15} parent=11 // pred_check
          %p332 = pneg %p221
        $region34: #{attentional_gnn.15} parent=11 // pred_check_branch
          %334 = sbr.rel (%p332) target = $region36
        $region35: #{attentional_gnn.15} parent=11 // pred_region
          _
        $region36: #{attentional_gnn.15} parent=11 // pred_fallthru
          _
        // Predicated region
        $region37: #{attentional_gnn.15} parent=11 // pred_check
          %p335 = pneg %p242
        $region38: #{attentional_gnn.15} parent=11 // pred_check_branch
          %337 = sbr.rel (%p335) target = $region40
        $region39: #{attentional_gnn.15} parent=11 // pred_region
          _
        $region40: #{attentional_gnn.15} parent=11 // pred_fallthru
          _
      $region12: #{attentional_gnn.15} parent=5 // pred_fallthru
        _
      %p338 = scmp.lt.s32.totalorder %s20, 4
      // Predicated region
      $region41: #{attentional_gnn.15} parent=5 // pred_check
        %p339 = pneg %p338
      $region42: #{attentional_gnn.15} parent=5 // pred_check_branch
        %341 = sbr.rel (%p339) target = $region44
      $region43: #{attentional_gnn.15} parent=5 // pred_region
        // Predicated region
        $region45: #{attentional_gnn.15} parent=43 // pred_check
          %p342 = pneg %p61
        $region46: #{attentional_gnn.15} parent=43 // pred_check_branch
          %344 = sbr.rel (%p342) target = $region48
        $region47: #{attentional_gnn.15} parent=43 // pred_region
          %s345 = smul.u32 2, %s29
          %p346 = scmp.lt.s32.totalorder %s27, 1
          %s347 = scalar_select %p346, %s27, 1
          %p348 = scmp.lt.s32.totalorder %s345, 1
          %s349 = scalar_select %p348, %s345, 1
          %s350 = smul.addr %s347, 2
          %s351 = sadd.s32 %s349, %s350
          %s352 = smul.addr %s351, 8
          %s353 = scalar_lea.vmem %s0, %s352
          %s354 = smul.u32 2, %s29
        $region48: #{attentional_gnn.15} parent=43 // pred_fallthru
          _
        // Predicated region
        $region49: #{attentional_gnn.15} parent=43 // pred_check
          %p355 = pneg %p89
        $region50: #{attentional_gnn.15} parent=43 // pred_check_branch
          %357 = sbr.rel (%p355) target = $region52
        $region51: #{attentional_gnn.15} parent=43 // pred_region
          %s358 = smul.u32 2, %s29
          %p359 = scmp.lt.s32.totalorder %s27, 1
          %s360 = scalar_select %p359, %s27, 1
          %p361 = scmp.lt.s32.totalorder %s358, 1
          %s362 = scalar_select %p361, %s358, 1
          %s363 = smul.addr %s360, 2
          %s364 = sadd.s32 %s362, %s363
          %s365 = smul.addr %s364, 4
          %s366 = scalar_lea.vmem %s1, %s365
          %s367 = smul.u32 2, %s29
        $region52: #{attentional_gnn.15} parent=43 // pred_fallthru
          _
      $region44: #{attentional_gnn.15} parent=5 // pred_fallthru
        _
      %p368 = scmp.le.s32.totalorder 1, %s20
      %p369 = scmp.lt.s32.totalorder %s20, 5
      %p370 = pnand %p368, %p369
      %p371 = pneg %p370
      // Predicated region
      $region53: #{attentional_gnn.15} parent=5 // pred_check
        _
      $region54: #{attentional_gnn.15} parent=5 // pred_check_branch
        %373 = sbr.rel (%p370) target = $region56
      $region55: #{attentional_gnn.15} parent=5 // pred_region
        %s374 = ssub.s32 %s20, 1
        %s375 = smul.u32 2, %s32
        %p376 = scmp.lt.s32.totalorder %s30, 1
        %s377 = scalar_select %p376, %s30, 1
        %p378 = scmp.lt.s32.totalorder %s375, 1
        %s379 = scalar_select %p378, %s375, 1
        %s380 = smul.addr %s377, 2
        %s381 = sadd.s32 %s379, %s380
        %s382 = smul.addr %s381, 8
        %s383 = scalar_lea.vmem %s0, %s382
        %p384 = pneg %p67
        %p385 = pneg %p64
        %s386 = smul.u32 2, %s32
        %p387 = scmp.lt.s32.totalorder %s30, 1
        %s388 = scalar_select %p387, %s30, 1
        %p389 = scmp.lt.s32.totalorder %s386, 1
        %s390 = scalar_select %p389, %s386, 1
        %s391 = smul.addr %s388, 2
        %s392 = sadd.s32 %s390, %s391
        %s393 = smul.addr %s392, 4
        %s394 = scalar_lea.vmem %s1, %s393
        %p395 = pneg %p95
        %p396 = pneg %p92
        %p397 = pneg %p116
        %p398 = pneg %p113
        %p399 = pneg %p137
        %p400 = pneg %p134
        %p401 = pneg %p158
        %p402 = pneg %p155
        %p403 = pneg %p179
        %p404 = pneg %p176
        %p405 = pneg %p200
        %p406 = pneg %p197
        %p407 = pneg %p221
        %p408 = pneg %p218
        %p409 = pneg %p242
        %p410 = pneg %p239
        %p411 = pneg %p272
        %p412 = pneg %p269
        %s413 = smul.u32 %s31, %s32
        %s414 = smul.u32 2, %s413
        %p415 = scmp.lt.s32.totalorder %s30, 1
        %s416 = scalar_select %p415, %s30, 1
        %p417 = scmp.lt.s32.totalorder %s414, 1
        %s418 = scalar_select %p417, %s414, 1
        %s419 = smul.addr %s416, 2
        %s420 = sadd.s32 %s418, %s419
        %s421 = smul.addr %s420, 8
        %s422 = scalar_lea.vmem %s9, %s421
        %p423 = pneg %p302
        %p424 = pneg %p299
        %s425 = sand.u32 %s289, 1
        %s426 = scalar_lea.sflag [#allocation5], %s425
        %s427 = sand.u32 %s289, 1
        %s428 = smul.addr %s427, 8
        %s429 = scalar_lea.vmem [#allocation4], %s428
        %s430 = smul.u32 2, %s32
        %p431 = scmp.lt.s32.totalorder %s30, 1
        %s432 = scalar_select %p431, %s30, 1
        %p433 = scmp.lt.s32.totalorder %s430, 1
        %s434 = scalar_select %p433, %s430, 1
        %s435 = smul.addr %s432, 2
        %s436 = sadd.s32 %s434, %s435
        %s437 = smul.addr %s436, 8
        %s438 = scalar_lea.vmem %s0, %s437
        %s439 = smul.u32 2, %s32
        %s440 = smul.u32 2, %s32
        %p441 = scmp.lt.s32.totalorder %s30, 1
        %s442 = scalar_select %p441, %s30, 1
        %p443 = scmp.lt.s32.totalorder %s440, 1
        %s444 = scalar_select %p443, %s440, 1
        %s445 = smul.addr %s442, 2
        %s446 = sadd.s32 %s444, %s445
        %s447 = smul.addr %s446, 4
        %s448 = scalar_lea.vmem %s1, %s447
        %s449 = smul.u32 2, %s32
        %s450 = smul.u32 %s31, %s32
        %s451 = smul.u32 2, %s450
        %p452 = scmp.lt.s32.totalorder %s30, 1
        %s453 = scalar_select %p452, %s30, 1
        %p454 = scmp.lt.s32.totalorder %s451, 1
        %s455 = scalar_select %p454, %s451, 1
        %s456 = smul.addr %s453, 2
        %s457 = sadd.s32 %s455, %s456
        %s458 = smul.addr %s457, 8
        %s459 = scalar_lea.vmem %s9, %s458
        %s460 = smul.u32 %s31, %s32
        %s461 = smul.u32 2, %s460
        %s462 = smul.u32 %s31, %s32
        %s463 = smul.u32 2, %s462
        %v465 = vld [vmem:[%s438] sm:$0xff]
        %v466 = vld [vmem:[%s438 + $0x8] sm:$0xff]
        %v467 = vpack.c.bf16 %v466, %v465
        %v468 = vld [vmem:[%s2] sm:$0xf]
        %v469 = vld [vmem:[%s2 + $0x4] sm:$0xf]
        %v470 = vld [vmem:[%s2 + $0x8] sm:$0xf]
        %v471 = vld [vmem:[%s2 + $0xc] sm:$0xf]
        %v472 = vld [vmem:[%s448] sm:$0xf]
        %v473 = vld [vmem:[%s448 + $0x4] sm:$0xf]
        %v474 = vld [vmem:[%s3] sm:$0xf]
        %v475 = vld [vmem:[%s3 + $0x4] sm:$0xf]
        %v476 = vld [vmem:[%s3 + $0x8] sm:$0xf]
        %v477 = vld [vmem:[%s3 + $0xc] sm:$0xf]
        %v480 = vunpack.c.l.b16 %v472
        %v481 = vunpack.c.l.b16 %v473
        %v482 = vpack.c.b16 %v481, %v480
        %v487 = vunpack.c.l.b16 %v474
        %v488 = vunpack.c.l.b16 %v475
        %v489 = vunpack.c.l.b16 %v476
        %v490 = vunpack.c.l.b16 %v477
        %v491 = vpack.c.b16 %v488, %v487
        %v492 = vpack.c.b16 %v490, %v489
        %vm495 = vcmask 261120
        %v497 = vsel %vm495, %v482, 0
        %499 = vmatpush.bf16.msra.mxu0 0
        %500 = vmatpush.bf16.msra.mxu0 0
        %501 = vmatpush.bf16.msra.mxu0 0
        %502 = vmatpush.bf16.msra.mxu0 0
        %503 = vmatpush.bf16.msra.mxu0 0
        %504 = vmatpush.bf16.msra.mxu0 0
        %505 = vmatpush.bf16.msra.mxu0 %v492
        %506 = vmatpush.bf16.msra.mxu0 %v491
        %507 = vmatmul.bf16.gmra.mxu0 %v497
        %v508 = vpop.f32.mrf.mxu0
        %v509 = vadd.f32 0.0, %v508
        %v510 = vpop.f32.mrf.mxu0
        %v511 = vadd.f32 0.0, %v510
        %512 = vdwg.mxu0
        %v517 = vunpack.c.l.b16 %v468
        %v518 = vunpack.c.l.b16 %v469
        %v519 = vunpack.c.l.b16 %v470
        %v520 = vunpack.c.l.b16 %v471
        %v521 = vpack.c.b16 %v518, %v517
        %v522 = vpack.c.b16 %v520, %v519
        %v526 = vsel %vm495, %v467, 0
        %528 = vmatpush.bf16.msra.mxu0 0
        %529 = vmatpush.bf16.msra.mxu0 0
        %530 = vmatpush.bf16.msra.mxu0 0
        %531 = vmatpush.bf16.msra.mxu0 0
        %532 = vmatpush.bf16.msra.mxu0 0
        %533 = vmatpush.bf16.msra.mxu0 0
        %534 = vmatpush.bf16.msra.mxu0 %v522
        %535 = vmatpush.bf16.msra.mxu0 %v521
        %536 = vmatmul.bf16.gmra.mxu0 %v526
        %v537 = vpop.f32.mrf.mxu0
        %v538 = vadd.f32 %v509, %v537
        %v539 = vpop.f32.mrf.mxu0
        %v540 = vadd.f32 %v511, %v539
        %541 = vdwg.mxu0
        %v542 = vld [vmem:[%s4] sm:$0x1]
        %v544 = vperm.slane %v542, 0
        %v546 = vadd.f32 %v538, %v544
        %v547 = vadd.f32 %v540, %v544
        %p548 = scmp.eq.s32.totalorder %s31, 0
        %p549 = scmp.eq.s32.totalorder %s32, 0
        %p550 = pnand %p548, %p549
        %p551 = pneg %p550
        // Predicated region
        $region57: #{attentional_gnn.15} parent=55 // pred_check
          _
        $region58: #{attentional_gnn.15} parent=55 // pred_check_branch
          %553 = sbr.rel (%p550) target = $region60
        $region59: #{attentional_gnn.15} parent=55 // pred_region
          %vm554 = vcmask 516096
          %555 = vst.msk [vmem:[#allocation2] sm:$0x1] %vm554, 0.0
          %556 = vst.msk [vmem:[#allocation3] sm:$0x1] %vm554, 0.0
        $region60: #{attentional_gnn.15} parent=55 // pred_fallthru
          _
        // Predicated region
        $region61: #{attentional_gnn.15} parent=55 // pred_check
          %p557 = pneg %p548
        $region62: #{attentional_gnn.15} parent=55 // pred_check_branch
          %559 = sbr.rel (%p557) target = $region64
        $region63: #{attentional_gnn.15} parent=55 // pred_region
          %v560 = vld [vmem:[#allocation2] sm:$0x1]
          %vm561 = vcmask 523264
          %v562 = vsel %vm561, %v546, 0.0
          %v563 = vsel %vm561, %v547, 0.0
          %v564 = vadd.f32 %v562, %v563
          %v565 = vrot.slane %v564, 4
          %v566 = vadd.f32 %v564, %v565
          %v567 = vrot.slane %v566, 2
          %v568 = vadd.f32 %v566, %v567
          %v569 = vrot.slane %v568, 1
          %v570 = vadd.f32 %v568, %v569
          %v571 = vadd.f32 %v560, %v570
          %vm572 = vcmask 516096
          %573 = vst.msk [vmem:[#allocation2] sm:$0x1] %vm572, %v571
          %v574 = vld [vmem:[#allocation3] sm:$0x1]
          %v575 = vmul.f32 %v546, %v546
          %v576 = vmul.f32 %v547, %v547
          %v577 = vsel %vm561, %v575, 0.0
          %v578 = vsel %vm561, %v576, 0.0
          %v579 = vadd.f32 %v577, %v578
          %v580 = vrot.slane %v579, 4
          %v581 = vadd.f32 %v579, %v580
          %v582 = vrot.slane %v581, 2
          %v583 = vadd.f32 %v581, %v582
          %v584 = vrot.slane %v583, 1
          %v585 = vadd.f32 %v583, %v584
          %v586 = vadd.f32 %v574, %v585
          %587 = vst.msk [vmem:[#allocation3] sm:$0x1] %vm572, %v586
        $region64: #{attentional_gnn.15} parent=55 // pred_fallthru
          _
        %p588 = scmp.eq.s32.totalorder %s31, 1
        // Predicated region
        $region65: #{attentional_gnn.15} parent=55 // pred_check
          %p589 = pneg %p588
        $region66: #{attentional_gnn.15} parent=55 // pred_check_branch
          %591 = sbr.rel (%p589) target = $region68
        $region67: #{attentional_gnn.15} parent=55 // pred_region
          %v592 = vld [vmem:[#allocation2] sm:$0x1]
          %v593 = vmul.f32 %v592, 0.0625
          %v594 = vld [vmem:[#allocation3] sm:$0x1]
          %v595 = vmul.f32 %v594, 0.0625
          %v596 = vmul.f32 %v593, %v593
          %v597 = vsub.f32 %v595, %v596
          %v599 = vperm.slane %v593, 0
          %v601 = vsub.f32 %v546, %v599
          %v602 = vsub.f32 %v547, %v599
          %v603 = vadd.f32 %v597, 1e-05
          %v604 = vrsqrt.pop %v603
          %v605 = vmul.f32 %v604, %v603
          %v606 = vmul.f32 %v605, %v604
          %v607 = vmul.f32 0.5, %v606
          %v608 = vsub.f32 1.5, %v607
          %v609 = vmul.f32 %v604, %v608
          %vm610 = vweird.f32 %v603
          %vm611 = vweird.f32 %v604
          %vm612 = vmor %vm610, %vm611
          %v613 = vsel %vm612, %v604, %v609
          %v615 = vperm.slane %v613, 0
          %v617 = vmul.f32 %v601, %v615
          %v618 = vmul.f32 %v602, %v615
          %v619 = vld [vmem:[%s5] sm:$0x1]
          %v621 = vperm.slane %v619, 0
          %v623 = vmul.f32 %v617, %v621
          %v624 = vmul.f32 %v618, %v621
          %v625 = vld [vmem:[%s6] sm:$0x1]
          %v627 = vperm.slane %v625, 0
          %v629 = vadd.f32 %v623, %v627
          %v630 = vadd.f32 %v624, %v627
          %v631 = vmax.f32 %v629, 0.0
          %v632 = vmax.f32 %v630, 0.0
          %v633 = vpack.c.bf16 %v632, %v631
          %v634 = vld [vmem:[%s7] sm:$0xf]
          %v635 = vld [vmem:[%s7 + $0x4] sm:$0xf]
          %v636 = vld [vmem:[%s7 + $0x8] sm:$0xf]
          %v637 = vld [vmem:[%s7 + $0xc] sm:$0xf]
          %v638 = vld [vmem:[%s7 + $0x10] sm:$0xf]
          %v639 = vld [vmem:[%s7 + $0x14] sm:$0xf]
          %v640 = vld [vmem:[%s7 + $0x18] sm:$0xf]
          %v641 = vld [vmem:[%s7 + $0x1c] sm:$0xf]
          %v642 = vld [vmem:[%s8] sm:$0x1]
          %v644 = vperm.slane %v642, 0
          %v654 = vunpack.c.l.b16 %v634
          %v655 = vunpack.c.l.b16 %v635
          %v656 = vunpack.c.l.b16 %v636
          %v657 = vunpack.c.l.b16 %v637
          %v658 = vunpack.c.l.b16 %v638
          %v659 = vunpack.c.l.b16 %v639
          %v660 = vunpack.c.l.b16 %v640
          %v661 = vunpack.c.l.b16 %v641
          %v662 = vpack.c.b16 %v655, %v654
          %v663 = vpack.c.b16 %v657, %v656
          %v664 = vpack.c.b16 %v659, %v658
          %v665 = vpack.c.b16 %v661, %v660
          %vm670 = vcmask 523264
          %v672 = vsel %vm670, %v633, 0
          %674 = vmatpush.bf16.msra.mxu0 0
          %675 = vmatpush.bf16.msra.mxu0 0
          %676 = vmatpush.bf16.msra.mxu0 0
          %677 = vmatpush.bf16.msra.mxu0 0
          %678 = vmatpush.bf16.msra.mxu0 %v665
          %679 = vmatpush.bf16.msra.mxu0 %v664
          %680 = vmatpush.bf16.msra.mxu0 %v663
          %681 = vmatpush.bf16.msra.mxu0 %v662
          %682 = vmatmul.bf16.gmra.mxu0 %v672
          %v683 = vpop.f32.mrf.mxu0
          %v684 = vadd.f32 %v644, %v683
          %v685 = vpop.f32.mrf.mxu0
          %v686 = vadd.f32 %v644, %v685
          %687 = vdwg.mxu0
          %v688 = vadd.f32 %v465, %v684
          %v689 = vadd.f32 %v466, %v686
          %690 = vst.msk [vmem:[%s459] sm:$0xff] %vm495, %v688
          %691 = vst.msk [vmem:[%s459 + $0x8] sm:$0xff] %vm495, %v689
          %v692 = vpack.c.bf16 %v688, %v688
          %v693 = vpack.c.bf16 %v689, %v689
          %vm694 = vcmask 257024
          %695 = vst.msk [vmem:[%s429] sm:$0xf] %vm694, %v692
          %696 = vst.msk [vmem:[%s429 + $0x4] sm:$0xf] %vm694, %v693
        $region68: #{attentional_gnn.15} parent=55 // pred_fallthru
          _
        %s697 = smul.u32 %s31, %s32
        %s698 = smul.u32 2, %s697
        %p699 = scmp.lt.s32.totalorder %s30, 1
        %s700 = scalar_select %p699, %s30, 1
        %p701 = scmp.lt.s32.totalorder %s698, 1
        %s702 = scalar_select %p701, %s698, 1
        %s703 = smul.addr %s700, 2
        %s704 = sadd.s32 %s702, %s703
        %s705 = smul.addr %s704, 8
        %s706 = scalar_lea.vmem %s9, %s705
        %s707 = sand.u32 %s289, 1
        %s708 = scalar_lea.sflag [#allocation5], %s707
        %s709 = sand.u32 %s289, 1
        %s710 = smul.addr %s709, 8
        %s711 = scalar_lea.vmem [#allocation4], %s710
        // Predicated region
        $region69: #{attentional_gnn.15} parent=55 // pred_check
          %p712 = pneg %p269
        $region70: #{attentional_gnn.15} parent=55 // pred_check_branch
          %714 = sbr.rel (%p712) target = $region72
        $region71: #{attentional_gnn.15} parent=55 // pred_region
          %s715 = smul.u32 %s31, %s32
          %s716 = smul.u32 2, %s715
        $region72: #{attentional_gnn.15} parent=55 // pred_fallthru
          _
        // Predicated region
        $region73: #{attentional_gnn.15} parent=55 // pred_check
          %p717 = pneg %p299
        $region74: #{attentional_gnn.15} parent=55 // pred_check_branch
          %719 = sbr.rel (%p717) target = $region76
        $region75: #{attentional_gnn.15} parent=55 // pred_region
          %s720 = smul.u32 %s31, %s32
          %s721 = smul.u32 2, %s720
          %723 = vsyncadd %s708, 0
          %s724 = smul.addr %s30, 2
          %s725 = sadd.s32 %s721, %s724
          %s726 = smul.addr %s725, 4
          %s727 = scalar_lea.hbm %s10, %s726
          %s728 = sshll.u32 %s711, 4
          %s729 = int_to_ptr.vmem [resolvable:$true] %s728
          %s730 = sshll.u32 %s727, 4
          %s731 = int_to_ptr.hbm [resolvable:$true] %s730
          %736 = dma.vmem_to_hbm [thread:$0]  %s729, 128, %s731, %s708, 64, 64, 4
        $region76: #{attentional_gnn.15} parent=55 // pred_fallthru
          _
      $region56: #{attentional_gnn.15} parent=5 // pred_fallthru
        _
      %p737 = scmp.le.s32.totalorder 2, %s20
      // Predicated region
      $region77: #{attentional_gnn.15} parent=5 // pred_check
        %p738 = pneg %p737
      $region78: #{attentional_gnn.15} parent=5 // pred_check_branch
        %740 = sbr.rel (%p738) target = $region80
      $region79: #{attentional_gnn.15} parent=5 // pred_region
        %s741 = ssub.s32 %s20, 2
        // Predicated region
        $region81: #{attentional_gnn.15} parent=79 // pred_check
          %p742 = pneg %p275
        $region82: #{attentional_gnn.15} parent=79 // pred_check_branch
          %744 = sbr.rel (%p742) target = $region84
        $region83: #{attentional_gnn.15} parent=79 // pred_region
          %s745 = smul.u32 %s34, %s35
          %s746 = smul.u32 2, %s745
          %p747 = scmp.lt.s32.totalorder %s33, 1
          %s748 = scalar_select %p747, %s33, 1
          %p749 = scmp.lt.s32.totalorder %s746, 1
          %s750 = scalar_select %p749, %s746, 1
          %s751 = smul.addr %s748, 2
          %s752 = sadd.s32 %s750, %s751
          %s753 = smul.addr %s752, 8
          %s754 = scalar_lea.vmem %s9, %s753
        $region84: #{attentional_gnn.15} parent=79 // pred_fallthru
          _
        // Predicated region
        $region85: #{attentional_gnn.15} parent=79 // pred_check
          %p755 = pneg %p305
        $region86: #{attentional_gnn.15} parent=79 // pred_check_branch
          %757 = sbr.rel (%p755) target = $region88
        $region87: #{attentional_gnn.15} parent=79 // pred_region
          %s758 = sand.u32 %s290, 1
          %s759 = scalar_lea.sflag [#allocation5], %s758
          %s760 = sand.u32 %s290, 1
          %s761 = smul.addr %s760, 8
          %s762 = scalar_lea.vmem [#allocation4], %s761
          %764 = dma.done %s759, 128
        $region88: #{attentional_gnn.15} parent=79 // pred_fallthru
          _
      $region80: #{attentional_gnn.15} parent=5 // pred_fallthru
        _
    $region6: #{attentional_gnn.15} parent=1 // loop_footer
      %s24 = sadd.s32 1, %s20
    $region7: #{attentional_gnn.15} parent=1 // loop_footer_branch
      %19 = sbr.rel target = $region3
    $region8: #{attentional_gnn.15} parent=1 // loop_exit
      _
    %765 = vsyncpa [#allocation5], 1
    %s766 = scalar_lea.sflag [#allocation5], 1
    %767 = vsyncpa %s766, 1

// kernel: attentional_gnn.14
$region0: #{attentional_gnn.14}
  #allocation0 [shape = 'u32[]', space=smem, size = 0x4, offset = 0x4, fixed_abs, tag = 'smem constant byte address 0x4 - core index']
  #allocation1 [shape = 'u32[72,128]{1,0:T(1,128)}', space=vmem, size = 0x9000, scoped, tag = 'internal scratch']
  %s0 = inlined_call_operand.vmem [shape: bf16[2,2,8,32], index: 0, kind: input, shape index: {}, may-alias: {0,1}]
  %s1 = inlined_call_operand.vmem [shape: bf16[2,2,8,32], index: 1, kind: input, shape index: {}, may-alias: {0,1}]
  %s2 = inlined_call_operand.hbm [shape: bf16[32,32], index: 2, kind: input, shape index: {}]
  %s3 = inlined_call_operand.vmem [shape: f32[1,32], index: 3, kind: input, shape index: {}]
  %s4 = inlined_call_operand.hbm [shape: bf16[32,64], index: 4, kind: input, shape index: {}]
  %s5 = inlined_call_operand.vmem [shape: f32[1,64], index: 5, kind: input, shape index: {}]
  %s6 = inlined_call_operand.hbm [shape: bf16[32,32], index: 6, kind: input, shape index: {}]
  %s7 = inlined_call_operand.hbm [shape: f32[1,32], index: 7, kind: input, shape index: {}]
  %s8 = inlined_call_operand.vmem [shape: bf16[2,2,8,32], index: 8, kind: output, shape index: {}]
  %s9 = sld [smem:[#allocation0]]
  $region81: #{attentional_gnn.14} parent=0
    _
  %s11 = ssub.s32 1, %s9
  %s12 = scalar_select 0, %s11, %s9
  $region1: #{attentional_gnn.14} parent=0
    #allocation2 [shape = 'u8[8192]{0}', space=vmem, size = 0x2000, scoped, tag = 'input window, operand 2, single buffered']
    #allocation3 [shape = 's32[2]{0}', space=sflag, size = 0x8, scoped, tag = 'scoped memory for attentional_gnn.14']
    #allocation4 [shape = 'u8[8192]{0}', space=vmem, size = 0x2000, scoped, tag = 'input window, operand 4, single buffered']
    #allocation5 [shape = 's32[1]{0}', space=sflag, size = 0x4, scoped, tag = 'scoped memory for attentional_gnn.14']
    #allocation6 [shape = 'u8[8192]{0}', space=vmem, size = 0x2000, scoped, tag = 'input window, operand 6, single buffered']
    #allocation7 [shape = 'u8[512]{0}', space=vmem, size = 0x400, scoped, tag = 'input window, operand 7, single buffered']
    #allocation8 [shape = 's32[1]{0}', space=sflag, size = 0x4, scoped, tag = 'scoped memory for attentional_gnn.14']
    %13 = vsyncpa [#allocation3], 0
    %14 = vsyncpa [#allocation5], 0
    %15 = vsyncpa [#allocation8], 0
    loop: start=0, step=1, limit=6
    $region2: #{attentional_gnn.14} parent=1 // loop_pre_header
      _
    $region3: #{attentional_gnn.14} parent=1 // loop_header
      %s17 = sphi 0, %s21
      %p18 = scmp.ge.s32.totalorder %s17, 6
      %s24 = sphi 0, %s43
      %s25 = sphi 0, %s39
      %s26 = sphi 0, %s35
      %s27 = sphi 0, %s24
      %s28 = sphi 0, %s25
      %s29 = sphi 0, %s26
      %s30 = sphi 0, %s27
      %s31 = sphi 0, %s28
      %s32 = sphi 0, %s29
      %s50 = sphi 0, %s52
      %s53 = sphi 0, %s50
      %s54 = sphi 0, %s53
      %s70 = sphi 0, %s54
      %s80 = sphi 0, %s82
      %s83 = sphi 0, %s80
      %s84 = sphi 0, %s83
      %s100 = sphi 0, %s84
      %s104 = sphi 0, %s104
      %s106 = sphi 0, %s104
      %s107 = sphi 0, %s106
      %s121 = sphi 0, %s107
      %s125 = sphi 0, %s125
      %s127 = sphi 0, %s125
      %s128 = sphi 0, %s127
      %s142 = sphi 0, %s128
      %s146 = sphi 0, %s146
      %s148 = sphi 0, %s146
      %s149 = sphi 0, %s148
      %s163 = sphi 0, %s149
      %s167 = sphi 0, %s167
      %s169 = sphi 0, %s167
      %s170 = sphi 0, %s169
      %s184 = sphi 0, %s170
      %s188 = sphi 0, %s188
      %s190 = sphi 0, %s188
      %s191 = sphi 0, %s190
      %s205 = sphi 0, %s191
      %s209 = sphi 0, %s209
      %s211 = sphi 0, %s209
      %s212 = sphi 0, %s211
      %s226 = sphi 0, %s212
      %s236 = sphi 0, %s238
      %s239 = sphi 0, %s236
      %s240 = sphi 0, %s239
      %s256 = sphi 0, %s240
    $region4: #{attentional_gnn.14} parent=1 // loop_header_branch
      %20 = sbr.rel (%p18) target = $region8
    $region5: #{attentional_gnn.14} parent=1 // loop_body
      %s22 = ssub.s32 %s17, 1
      %s23 = ssub.s32 %s17, 2
      %s33 = sadd.s32 1, %s26
      %p34 = scmp.ge.s32.totalorder %s33, 1
      %s35 = scalar_select %p34, 0, %s33
      %s36 = sadd.s32 1, %s25
      %s37 = scalar_select %p34, %s36, %s25
      %p38 = scmp.ge.s32.totalorder %s37, 2
      %s39 = scalar_select %p38, 0, %s37
      %s40 = sadd.s32 1, %s24
      %s41 = scalar_select %p38, %s40, %s24
      %p42 = scmp.ge.s32.totalorder %s41, 2
      %s43 = scalar_select %p42, 0, %s41
      %s44 = ssub.s32 %s24, %s43
      %s45 = ssub.s32 %s25, %s39
      %s46 = sor.u32 %s44, %s45
      %s47 = ssub.s32 %s26, %s35
      %s48 = sor.u32 %s46, %s47
      %p49 = scmp.eq.s32.totalorder %s48, 0
      %s51 = sadd.s32 %s50, 1
      %s52 = scalar_select %p49, %s50, %s51
      %p55 = pneg %p49
      %p56 = scmp.eq.s32.totalorder %s17, 3
      %p57 = por %p55, %p56
      %p58 = scmp.ne.s32.totalorder %s50, %s53
      %p59 = scmp.eq.s32.totalorder %s17, 0
      %p60 = por %p58, %p59
      %p61 = scmp.ne.s32.totalorder %s50, %s53
      %p62 = scmp.eq.s32.totalorder %s22, 3
      %p63 = por %p61, %p62
      %p64 = scmp.ne.s32.totalorder %s53, %s54
      %p65 = scmp.eq.s32.totalorder %s22, 0
      %p66 = por %p64, %p65
      %p67 = scmp.ne.s32.totalorder %s53, %s54
      %p68 = scmp.eq.s32.totalorder %s23, 3
      %p69 = por %p67, %p68
      %p71 = scmp.ne.s32.totalorder %s54, %s70
      %p72 = scmp.eq.s32.totalorder %s23, 0
      %p73 = por %p71, %p72
      %s74 = ssub.s32 1, %s24
      %s75 = ssub.s32 1, %s43
      %s76 = ssub.s32 %s74, %s75
      %s77 = ssub.s32 %s25, %s39
      %s78 = sor.u32 %s76, %s77
      %p79 = scmp.eq.s32.totalorder %s78, 0
      %s81 = sadd.s32 %s80, 1
      %s82 = scalar_select %p79, %s80, %s81
      %p85 = pneg %p79
      %p86 = scmp.eq.s32.totalorder %s17, 3
      %p87 = por %p85, %p86
      %p88 = scmp.ne.s32.totalorder %s80, %s83
      %p89 = scmp.eq.s32.totalorder %s17, 0
      %p90 = por %p88, %p89
      %p91 = scmp.ne.s32.totalorder %s80, %s83
      %p92 = scmp.eq.s32.totalorder %s22, 3
      %p93 = por %p91, %p92
      %p94 = scmp.ne.s32.totalorder %s83, %s84
      %p95 = scmp.eq.s32.totalorder %s22, 0
      %p96 = por %p94, %p95
      %p97 = scmp.ne.s32.totalorder %s83, %s84
      %p98 = scmp.eq.s32.totalorder %s23, 3
      %p99 = por %p97, %p98
      %p101 = scmp.ne.s32.totalorder %s84, %s100
      %p102 = scmp.eq.s32.totalorder %s23, 0
      %p103 = por %p101, %p102
      %s105 = sadd.s32 %s104, 1
      %p108 = scmp.eq.s32.totalorder %s17, 3
      %p109 = scmp.ne.s32.totalorder %s104, %s106
      %p110 = scmp.eq.s32.totalorder %s17, 0
      %p111 = por %p109, %p110
      %p112 = scmp.ne.s32.totalorder %s104, %s106
      %p113 = scmp.eq.s32.totalorder %s22, 3
      %p114 = por %p112, %p113
      %p115 = scmp.ne.s32.totalorder %s106, %s107
      %p116 = scmp.eq.s32.totalorder %s22, 0
      %p117 = por %p115, %p116
      %p118 = scmp.ne.s32.totalorder %s106, %s107
      %p119 = scmp.eq.s32.totalorder %s23, 3
      %p120 = por %p118, %p119
      %p122 = scmp.ne.s32.totalorder %s107, %s121
      %p123 = scmp.eq.s32.totalorder %s23, 0
      %p124 = por %p122, %p123
      %s126 = sadd.s32 %s125, 1
      %p129 = scmp.eq.s32.totalorder %s17, 3
      %p130 = scmp.ne.s32.totalorder %s125, %s127
      %p131 = scmp.eq.s32.totalorder %s17, 0
      %p132 = por %p130, %p131
      %p133 = scmp.ne.s32.totalorder %s125, %s127
      %p134 = scmp.eq.s32.totalorder %s22, 3
      %p135 = por %p133, %p134
      %p136 = scmp.ne.s32.totalorder %s127, %s128
      %p137 = scmp.eq.s32.totalorder %s22, 0
      %p138 = por %p136, %p137
      %p139 = scmp.ne.s32.totalorder %s127, %s128
      %p140 = scmp.eq.s32.totalorder %s23, 3
      %p141 = por %p139, %p140
      %p143 = scmp.ne.s32.totalorder %s128, %s142
      %p144 = scmp.eq.s32.totalorder %s23, 0
      %p145 = por %p143, %p144
      %s147 = sadd.s32 %s146, 1
      %p150 = scmp.eq.s32.totalorder %s17, 3
      %p151 = scmp.ne.s32.totalorder %s146, %s148
      %p152 = scmp.eq.s32.totalorder %s17, 0
      %p153 = por %p151, %p152
      %p154 = scmp.ne.s32.totalorder %s146, %s148
      %p155 = scmp.eq.s32.totalorder %s22, 3
      %p156 = por %p154, %p155
      %p157 = scmp.ne.s32.totalorder %s148, %s149
      %p158 = scmp.eq.s32.totalorder %s22, 0
      %p159 = por %p157, %p158
      %p160 = scmp.ne.s32.totalorder %s148, %s149
      %p161 = scmp.eq.s32.totalorder %s23, 3
      %p162 = por %p160, %p161
      %p164 = scmp.ne.s32.totalorder %s149, %s163
      %p165 = scmp.eq.s32.totalorder %s23, 0
      %p166 = por %p164, %p165
      %s168 = sadd.s32 %s167, 1
      %p171 = scmp.eq.s32.totalorder %s17, 3
      %p172 = scmp.ne.s32.totalorder %s167, %s169
      %p173 = scmp.eq.s32.totalorder %s17, 0
      %p174 = por %p172, %p173
      %p175 = scmp.ne.s32.totalorder %s167, %s169
      %p176 = scmp.eq.s32.totalorder %s22, 3
      %p177 = por %p175, %p176
      %p178 = scmp.ne.s32.totalorder %s169, %s170
      %p179 = scmp.eq.s32.totalorder %s22, 0
      %p180 = por %p178, %p179
      %p181 = scmp.ne.s32.totalorder %s169, %s170
      %p182 = scmp.eq.s32.totalorder %s23, 3
      %p183 = por %p181, %p182
      %p185 = scmp.ne.s32.totalorder %s170, %s184
      %p186 = scmp.eq.s32.totalorder %s23, 0
      %p187 = por %p185, %p186
      %s189 = sadd.s32 %s188, 1
      %p192 = scmp.eq.s32.totalorder %s17, 3
      %p193 = scmp.ne.s32.totalorder %s188, %s190
      %p194 = scmp.eq.s32.totalorder %s17, 0
      %p195 = por %p193, %p194
      %p196 = scmp.ne.s32.totalorder %s188, %s190
      %p197 = scmp.eq.s32.totalorder %s22, 3
      %p198 = por %p196, %p197
      %p199 = scmp.ne.s32.totalorder %s190, %s191
      %p200 = scmp.eq.s32.totalorder %s22, 0
      %p201 = por %p199, %p200
      %p202 = scmp.ne.s32.totalorder %s190, %s191
      %p203 = scmp.eq.s32.totalorder %s23, 3
      %p204 = por %p202, %p203
      %p206 = scmp.ne.s32.totalorder %s191, %s205
      %p207 = scmp.eq.s32.totalorder %s23, 0
      %p208 = por %p206, %p207
      %s210 = sadd.s32 %s209, 1
      %p213 = scmp.eq.s32.totalorder %s17, 3
      %p214 = scmp.ne.s32.totalorder %s209, %s211
      %p215 = scmp.eq.s32.totalorder %s17, 0
      %p216 = por %p214, %p215
      %p217 = scmp.ne.s32.totalorder %s209, %s211
      %p218 = scmp.eq.s32.totalorder %s22, 3
      %p219 = por %p217, %p218
      %p220 = scmp.ne.s32.totalorder %s211, %s212
      %p221 = scmp.eq.s32.totalorder %s22, 0
      %p222 = por %p220, %p221
      %p223 = scmp.ne.s32.totalorder %s211, %s212
      %p224 = scmp.eq.s32.totalorder %s23, 3
      %p225 = por %p223, %p224
      %p227 = scmp.ne.s32.totalorder %s212, %s226
      %p228 = scmp.eq.s32.totalorder %s23, 0
      %p229 = por %p227, %p228
      %s230 = ssub.s32 %s24, %s43
      %s231 = ssub.s32 %s25, %s39
      %s232 = sor.u32 %s230, %s231
      %s233 = ssub.s32 %s26, %s35
      %s234 = sor.u32 %s232, %s233
      %p235 = scmp.eq.s32.totalorder %s234, 0
      %s237 = sadd.s32 %s236, 1
      %s238 = scalar_select %p235, %s236, %s237
      %p241 = pneg %p235
      %p242 = scmp.eq.s32.totalorder %s17, 3
      %p243 = por %p241, %p242
      %p244 = scmp.ne.s32.totalorder %s236, %s239
      %p245 = scmp.eq.s32.totalorder %s17, 0
      %p246 = por %p244, %p245
      %p247 = scmp.ne.s32.totalorder %s236, %s239
      %p248 = scmp.eq.s32.totalorder %s22, 3
      %p249 = por %p247, %p248
      %p250 = scmp.ne.s32.totalorder %s239, %s240
      %p251 = scmp.eq.s32.totalorder %s22, 0
      %p252 = por %p250, %p251
      %p253 = scmp.ne.s32.totalorder %s239, %s240
      %p254 = scmp.eq.s32.totalorder %s23, 3
      %p255 = por %p253, %p254
      %p257 = scmp.ne.s32.totalorder %s240, %s256
      %p258 = scmp.eq.s32.totalorder %s23, 0
      %p259 = por %p257, %p258
      %p260 = scmp.le.s32.totalorder 1, %s17
      %p261 = scmp.lt.s32.totalorder %s17, 5
      %p262 = pnand %p260, %p261
      %p263 = pneg %p262
      // Predicated region
      $region9: #{attentional_gnn.14} parent=5 // pred_check
        _
      $region10: #{attentional_gnn.14} parent=5 // pred_check_branch
        %265 = sbr.rel (%p262) target = $region12
      $region11: #{attentional_gnn.14} parent=5 // pred_region
        %s266 = ssub.s32 %s17, 1
        // Predicated region
        $region13: #{attentional_gnn.14} parent=11 // pred_check
          %p267 = pneg %p117
        $region14: #{attentional_gnn.14} parent=11 // pred_check_branch
          %269 = sbr.rel (%p267) target = $region16
        $region15: #{attentional_gnn.14} parent=11 // pred_region
          %271 = vsyncadd [#allocation3], 0
          %s272 = sshll.u32 %s2, 4
          %s273 = int_to_ptr.hbm [resolvable:$true] %s272
          %s274 = sshll.u32 [#allocation2], 4
          %s275 = int_to_ptr.vmem [resolvable:$true] %s274
          %280 = dma.hbm_to_vmem [thread:$0]  %s273, 256, %s275, [#allocation3], 64, 64, 4
        $region16: #{attentional_gnn.14} parent=11 // pred_fallthru
          _
        // Predicated region
        $region17: #{attentional_gnn.14} parent=11 // pred_check
          %p281 = pneg %p138
        $region18: #{attentional_gnn.14} parent=11 // pred_check_branch
          %283 = sbr.rel (%p281) target = $region20
        $region19: #{attentional_gnn.14} parent=11 // pred_region
          _
        $region20: #{attentional_gnn.14} parent=11 // pred_fallthru
          _
        // Predicated region
        $region21: #{attentional_gnn.14} parent=11 // pred_check
          %p284 = pneg %p159
        $region22: #{attentional_gnn.14} parent=11 // pred_check_branch
          %286 = sbr.rel (%p284) target = $region24
        $region23: #{attentional_gnn.14} parent=11 // pred_region
          %288 = vsyncadd [#allocation5], 0
          %s289 = sshll.u32 %s4, 4
          %s290 = int_to_ptr.hbm [resolvable:$true] %s289
          %s291 = sshll.u32 [#allocation4], 4
          %s292 = int_to_ptr.vmem [resolvable:$true] %s291
          %297 = dma.hbm_to_vmem [thread:$0]  %s290, 256, %s292, [#allocation5], 64, 64, 4
        $region24: #{attentional_gnn.14} parent=11 // pred_fallthru
          _
        // Predicated region
        $region25: #{attentional_gnn.14} parent=11 // pred_check
          %p298 = pneg %p180
        $region26: #{attentional_gnn.14} parent=11 // pred_check_branch
          %300 = sbr.rel (%p298) target = $region28
        $region27: #{attentional_gnn.14} parent=11 // pred_region
          _
        $region28: #{attentional_gnn.14} parent=11 // pred_fallthru
          _
        // Predicated region
        $region29: #{attentional_gnn.14} parent=11 // pred_check
          %p301 = pneg %p201
        $region30: #{attentional_gnn.14} parent=11 // pred_check_branch
          %303 = sbr.rel (%p301) target = $region32
        $region31: #{attentional_gnn.14} parent=11 // pred_region
          %305 = vsyncadd [#allocation5], 0
          %s306 = sshll.u32 %s6, 4
          %s307 = int_to_ptr.hbm [resolvable:$true] %s306
          %s308 = sshll.u32 [#allocation6], 4
          %s309 = int_to_ptr.vmem [resolvable:$true] %s308
          %314 = dma.hbm_to_vmem [thread:$0]  %s307, 256, %s309, [#allocation5], 64, 64, 4
        $region32: #{attentional_gnn.14} parent=11 // pred_fallthru
          _
        // Predicated region
        $region33: #{attentional_gnn.14} parent=11 // pred_check
          %p315 = pneg %p222
        $region34: #{attentional_gnn.14} parent=11 // pred_check_branch
          %317 = sbr.rel (%p315) target = $region36
        $region35: #{attentional_gnn.14} parent=11 // pred_region
          %319 = vsyncadd [#allocation8], 0
          %s321 = sshll.u32 %s7, 4
          %s322 = int_to_ptr.hbm [resolvable:$true] %s321
          %s323 = sshll.u32 [#allocation7], 4
          %s324 = int_to_ptr.vmem [resolvable:$true] %s323
          %326 = dma.hbm_to_vmem [thread:$0]  %s322, 16, %s324, [#allocation8]
        $region36: #{attentional_gnn.14} parent=11 // pred_fallthru
          _
      $region12: #{attentional_gnn.14} parent=5 // pred_fallthru
        _
      %p327 = scmp.lt.s32.totalorder %s17, 4
      // Predicated region
      $region37: #{attentional_gnn.14} parent=5 // pred_check
        %p328 = pneg %p327
      $region38: #{attentional_gnn.14} parent=5 // pred_check_branch
        %330 = sbr.rel (%p328) target = $region40
      $region39: #{attentional_gnn.14} parent=5 // pred_region
        // Predicated region
        $region41: #{attentional_gnn.14} parent=39 // pred_check
          %p331 = pneg %p60
        $region42: #{attentional_gnn.14} parent=39 // pred_check_branch
          %333 = sbr.rel (%p331) target = $region44
        $region43: #{attentional_gnn.14} parent=39 // pred_region
          %p334 = scmp.lt.s32.totalorder %s24, 1
          %s335 = scalar_select %p334, %s24, 1
          %p336 = scmp.lt.s32.totalorder %s25, 1
          %s337 = scalar_select %p336, %s25, 1
          %p338 = scmp.lt.s32.totalorder %s26, 0
          %s339 = scalar_select %p338, %s26, 0
          %s340 = sadd.s32 %s339, %s337
          %s341 = smul.addr %s335, 2
          %s342 = sadd.s32 %s340, %s341
          %s343 = smul.addr %s342, 4
          %s344 = scalar_lea.vmem %s0, %s343
        $region44: #{attentional_gnn.14} parent=39 // pred_fallthru
          _
        // Predicated region
        $region45: #{attentional_gnn.14} parent=39 // pred_check
          %p345 = pneg %p90
        $region46: #{attentional_gnn.14} parent=39 // pred_check_branch
          %347 = sbr.rel (%p345) target = $region48
        $region47: #{attentional_gnn.14} parent=39 // pred_region
          %s348 = ssub.s32 1, %s24
          %p349 = scmp.lt.s32.totalorder %s348, 1
          %s350 = scalar_select %p349, %s348, 1
          %p351 = scmp.lt.s32.totalorder %s25, 1
          %s352 = scalar_select %p351, %s25, 1
          %s353 = smul.addr %s350, 2
          %s354 = sadd.s32 %s352, %s353
          %s355 = smul.addr %s354, 4
          %s356 = scalar_lea.vmem %s1, %s355
          %s357 = ssub.s32 1, %s24
        $region48: #{attentional_gnn.14} parent=39 // pred_fallthru
          _
      $region40: #{attentional_gnn.14} parent=5 // pred_fallthru
        _
      %p358 = scmp.le.s32.totalorder 1, %s17
      %p359 = scmp.lt.s32.totalorder %s17, 5
      %p360 = pnand %p358, %p359
      %p361 = pneg %p360
      // Predicated region
      $region49: #{attentional_gnn.14} parent=5 // pred_check
        _
      $region50: #{attentional_gnn.14} parent=5 // pred_check_branch
        %363 = sbr.rel (%p360) target = $region52
      $region51: #{attentional_gnn.14} parent=5 // pred_region
        %s364 = ssub.s32 %s17, 1
        // Predicated region
        $region53: #{attentional_gnn.14} parent=51 // pred_check
          %p365 = pneg %p117
        $region54: #{attentional_gnn.14} parent=51 // pred_check_branch
          %367 = sbr.rel (%p365) target = $region56
        $region55: #{attentional_gnn.14} parent=51 // pred_region
          %369 = dma.done [#allocation3], 256
        $region56: #{attentional_gnn.14} parent=51 // pred_fallthru
          _
        // Predicated region
        $region57: #{attentional_gnn.14} parent=51 // pred_check
          %p370 = pneg %p159
        $region58: #{attentional_gnn.14} parent=51 // pred_check_branch
          %372 = sbr.rel (%p370) target = $region60
        $region59: #{attentional_gnn.14} parent=51 // pred_region
          %374 = dma.done [#allocation5], 256
        $region60: #{attentional_gnn.14} parent=51 // pred_fallthru
          _
        // Predicated region
        $region61: #{attentional_gnn.14} parent=51 // pred_check
          %p375 = pneg %p201
        $region62: #{attentional_gnn.14} parent=51 // pred_check_branch
          %377 = sbr.rel (%p375) target = $region64
        $region63: #{attentional_gnn.14} parent=51 // pred_region
          %379 = dma.done [#allocation5], 256
        $region64: #{attentional_gnn.14} parent=51 // pred_fallthru
          _
        // Predicated region
        $region65: #{attentional_gnn.14} parent=51 // pred_check
          %p380 = pneg %p222
        $region66: #{attentional_gnn.14} parent=51 // pred_check_branch
          %382 = sbr.rel (%p380) target = $region68
        $region67: #{attentional_gnn.14} parent=51 // pred_region
          %384 = dma.done [#allocation8], 16
        $region68: #{attentional_gnn.14} parent=51 // pred_fallthru
          _
        %p385 = scmp.lt.s32.totalorder %s27, 1
        %s386 = scalar_select %p385, %s27, 1
        %p387 = scmp.lt.s32.totalorder %s28, 1
        %s388 = scalar_select %p387, %s28, 1
        %p389 = scmp.lt.s32.totalorder %s29, 0
        %s390 = scalar_select %p389, %s29, 0
        %s391 = sadd.s32 %s390, %s388
        %s392 = smul.addr %s386, 2
        %s393 = sadd.s32 %s391, %s392
        %s394 = smul.addr %s393, 4
        %s395 = scalar_lea.vmem %s0, %s394
        %p396 = pneg %p66
        %p397 = pneg %p63
        %s398 = ssub.s32 1, %s27
        %p399 = scmp.lt.s32.totalorder %s398, 1
        %s400 = scalar_select %p399, %s398, 1
        %p401 = scmp.lt.s32.totalorder %s28, 1
        %s402 = scalar_select %p401, %s28, 1
        %s403 = smul.addr %s400, 2
        %s404 = sadd.s32 %s402, %s403
        %s405 = smul.addr %s404, 4
        %s406 = scalar_lea.vmem %s1, %s405
        %p407 = pneg %p96
        %p408 = pneg %p93
        %p409 = pneg %p117
        %p410 = pneg %p114
        %p411 = pneg %p138
        %p412 = pneg %p135
        %p413 = pneg %p159
        %p414 = pneg %p156
        %p415 = pneg %p180
        %p416 = pneg %p177
        %p417 = pneg %p201
        %p418 = pneg %p198
        %p419 = pneg %p222
        %p420 = pneg %p219
        %p421 = pneg %p252
        %p422 = pneg %p249
        %p423 = scmp.lt.s32.totalorder %s27, 1
        %s424 = scalar_select %p423, %s27, 1
        %p425 = scmp.lt.s32.totalorder %s28, 1
        %s426 = scalar_select %p425, %s28, 1
        %p427 = scmp.lt.s32.totalorder %s29, 0
        %s428 = scalar_select %p427, %s29, 0
        %s429 = sadd.s32 %s428, %s426
        %s430 = smul.addr %s424, 2
        %s431 = sadd.s32 %s429, %s430
        %s432 = smul.addr %s431, 4
        %s433 = scalar_lea.vmem %s8, %s432
        %p434 = scmp.lt.s32.totalorder %s27, 1
        %s435 = scalar_select %p434, %s27, 1
        %p436 = scmp.lt.s32.totalorder %s28, 1
        %s437 = scalar_select %p436, %s28, 1
        %p438 = scmp.lt.s32.totalorder %s29, 0
        %s439 = scalar_select %p438, %s29, 0
        %s440 = sadd.s32 %s439, %s437
        %s441 = smul.addr %s435, 2
        %s442 = sadd.s32 %s440, %s441
        %s443 = smul.addr %s442, 4
        %s444 = scalar_lea.vmem %s0, %s443
        %s445 = ssub.s32 1, %s27
        %p446 = scmp.lt.s32.totalorder %s445, 1
        %s447 = scalar_select %p446, %s445, 1
        %p448 = scmp.lt.s32.totalorder %s28, 1
        %s449 = scalar_select %p448, %s28, 1
        %s450 = smul.addr %s447, 2
        %s451 = sadd.s32 %s449, %s450
        %s452 = smul.addr %s451, 4
        %s453 = scalar_lea.vmem %s1, %s452
        %s454 = ssub.s32 1, %s27
        %p455 = scmp.lt.s32.totalorder %s27, 1
        %s456 = scalar_select %p455, %s27, 1
        %p457 = scmp.lt.s32.totalorder %s28, 1
        %s458 = scalar_select %p457, %s28, 1
        %p459 = scmp.lt.s32.totalorder %s29, 0
        %s460 = scalar_select %p459, %s29, 0
        %s461 = sadd.s32 %s460, %s458
        %s462 = smul.addr %s456, 2
        %s463 = sadd.s32 %s461, %s462
        %s464 = smul.addr %s463, 4
        %s465 = scalar_lea.vmem %s8, %s464
        %v467 = vld [vmem:[%s444] sm:$0xf]
        %v468 = vld [vmem:[%s453] sm:$0xf]
        %v469 = vld [vmem:[#allocation2] sm:$0xf]
        %v470 = vld [vmem:[#allocation2 + $0x4] sm:$0xf]
        %v471 = vld [vmem:[#allocation2 + $0x8] sm:$0xf]
        %v472 = vld [vmem:[#allocation2 + $0xc] sm:$0xf]
        %v473 = vld [vmem:[%s3] sm:$0x1]
        %v475 = vperm.slane %v473, 0
        %v481 = vunpack.c.l.b16 %v469
        %v482 = vunpack.c.l.b16 %v470
        %v483 = vunpack.c.l.b16 %v471
        %v484 = vunpack.c.l.b16 %v472
        %v485 = vpack.c.b16 %v482, %v481
        %v486 = vpack.c.b16 %v484, %v483
        %vm489 = vcmask 261120
        %v491 = vsel %vm489, %v467, 0
        %493 = vmatpush.bf16.msra.mxu0 0
        %494 = vmatpush.bf16.msra.mxu0 0
        %495 = vmatpush.bf16.msra.mxu0 0
        %496 = vmatpush.bf16.msra.mxu0 0
        %497 = vmatpush.bf16.msra.mxu0 0
        %498 = vmatpush.bf16.msra.mxu0 0
        %499 = vmatpush.bf16.msra.mxu0 %v486
        %500 = vmatpush.bf16.msra.mxu0 %v485
        %501 = vmatmul.bf16.gmra.mxu0 %v491
        %v502 = vpop.f32.mrf.mxu0
        %v503 = vadd.f32 %v475, %v502
        %v504 = vpop.f32.mrf.mxu0
        %505 = vdwg.mxu0
        %v506 = vld [vmem:[#allocation4] sm:$0xf]
        %v507 = vld [vmem:[#allocation4 + $0x4] sm:$0xf]
        %v508 = vld [vmem:[#allocation4 + $0x8] sm:$0xf]
        %v509 = vld [vmem:[#allocation4 + $0xc] sm:$0xf]
        %v510 = vld [vmem:[%s5] sm:$0x1]
        %v512 = vperm.slane %v510, 0
        %v518 = vunpack.c.l.b16 %v506
        %v519 = vunpack.c.l.b16 %v507
        %v520 = vunpack.c.l.b16 %v508
        %v521 = vunpack.c.l.b16 %v509
        %v522 = vpack.c.b16 %v519, %v518
        %v523 = vpack.c.b16 %v521, %v520
        %v527 = vsel %vm489, %v468, 0
        %529 = vmatpush.bf16.msra.mxu0 0
        %530 = vmatpush.bf16.msra.mxu0 0
        %531 = vmatpush.bf16.msra.mxu0 0
        %532 = vmatpush.bf16.msra.mxu0 0
        %533 = vmatpush.bf16.msra.mxu0 0
        %534 = vmatpush.bf16.msra.mxu0 0
        %535 = vmatpush.bf16.msra.mxu0 %v523
        %536 = vmatpush.bf16.msra.mxu0 %v522
        %537 = vmatmul.bf16.gmra.mxu0 %v527
        %v538 = vpop.f32.mrf.mxu0
        %v539 = vadd.f32 %v512, %v538
        %v540 = vpop.f32.mrf.mxu0
        %541 = vdwg.mxu0
        %v542 = vld [vmem:[#allocation6] sm:$0xf]
        %v543 = vld [vmem:[#allocation6 + $0x4] sm:$0xf]
        %v544 = vld [vmem:[#allocation6 + $0x8] sm:$0xf]
        %v545 = vld [vmem:[#allocation6 + $0xc] sm:$0xf]
        %v546 = vpack.c.bf16 %v503, %v503
        %v547 = vpack.c.bf16 %v539, %v539
        %vm548 = vcmask 64512
        %v550 = vsel %vm548, %v546, 0
        %v553 = vsel %vm548, %v547, 0
        %555 = vmatpush.bf16.xpose.msra.mxu0 0
        %556 = vmatpush.bf16.xpose.msra.mxu0 0
        %557 = vmatpush.bf16.xpose.msra.mxu0 0
        %558 = vmatpush.bf16.xpose.msra.mxu0 0
        %559 = vmatpush.bf16.xpose.msra.mxu0 0
        %560 = vmatpush.bf16.xpose.msra.mxu0 0
        %561 = vmatpush.bf16.xpose.msra.mxu0 0
        %562 = vmatpush.bf16.xpose.msra.mxu0 %v553
        %563 = vmatmul.bf16.gmra.mxu0 %v550
        %v564 = vpop.f32.mrf.mxu0
        %v565 = vadd.f32 0.0, %v564
        %v566 = vpop.f32.mrf.mxu0
        %567 = vdwg.mxu0
        %v568 = vsel %vm548, %v565, -inf
        %569 = vmax.xlane.f32.xlu0 %v568
        %v570 = vpop.xlane.xlu0 %569
        %vm571 = vcmp.ge.f32.partialorder %v565, %v570
        %v572 = vsel %vm571, -inf, %v565
        %v573 = vsel %vm548, %v572, -inf
        %574 = vmax.xlane.f32.xlu0 %v573
        %v575 = vpop.xlane.xlu0 %574
        %vm576 = vcmp.ge.f32.partialorder %v572, %v575
        %v577 = vsel %vm576, -inf, %v572
        %v578 = vsel %vm548, %v577, -inf
        %579 = vmax.xlane.f32.xlu0 %v578
        %v580 = vpop.xlane.xlu0 %579
        %vm581 = vcmp.ge.f32.partialorder %v577, %v580
        %v582 = vsel %vm581, -inf, %v577
        %v583 = vsel %vm548, %v582, -inf
        %584 = vmax.xlane.f32.xlu0 %v583
        %v585 = vpop.xlane.xlu0 %584
        %vm586 = vcmp.ge.f32.partialorder %v565, %v585
        %v587 = vsub.f32 %v565, %v570
        %v588 = vmul.f32 %v587, 1.442695
        %v589 = vpow.pop %v588
        %v590 = vsel %vm586, %v589, 0.0
        %v591 = vsel %vm548, %v590, 0.0
        %592 = vadd.xlane.f32.xlu0 %v591
        %v593 = vpop.xlane.xlu0 %592
        %v594 = vrcp.pop %v593
        %v595 = vmul.f32 %v590, %v594
        %v596 = vpack.c.bf16 %v595, %v595
        %598 = vrot.lane.b32.xlu0 %v547, 96
        %v599 = vpop.permute.xlu0 %598
        %v601 = vsel %vm548, %v596, 0
        %vm603 = vcmask 1043456
        %v605 = vsel %vm603, %v599, 0
        %607 = vmatpush.bf16.msra.mxu0 0
        %608 = vmatpush.bf16.msra.mxu0 0
        %609 = vmatpush.bf16.msra.mxu0 0
        %610 = vmatpush.bf16.msra.mxu0 0
        %611 = vmatpush.bf16.msra.mxu0 0
        %612 = vmatpush.bf16.msra.mxu0 0
        %613 = vmatpush.bf16.msra.mxu0 0
        %614 = vmatpush.bf16.msra.mxu0 %v605
        %615 = vmatmul.bf16.gmra.mxu0 %v601
        %v616 = vpop.f32.mrf.mxu0
        %v617 = vadd.f32 0.0, %v616
        %v618 = vpop.f32.mrf.mxu0
        %619 = vdwg.mxu0
        %v620 = vpack.c.bf16 %v617, %v617
        %622 = vrot.lane.b32.xlu0 %v546, 120
        %v623 = vpop.permute.xlu0 %622
        %624 = vrot.lane.b32.xlu0 %v547, 120
        %v625 = vpop.permute.xlu0 %624
        %v627 = vsel %vm548, %v623, 0
        %v630 = vsel %vm548, %v625, 0
        %632 = vmatpush.bf16.xpose.msra.mxu0 0
        %633 = vmatpush.bf16.xpose.msra.mxu0 0
        %634 = vmatpush.bf16.xpose.msra.mxu0 0
        %635 = vmatpush.bf16.xpose.msra.mxu0 0
        %636 = vmatpush.bf16.xpose.msra.mxu0 0
        %637 = vmatpush.bf16.xpose.msra.mxu0 0
        %638 = vmatpush.bf16.xpose.msra.mxu0 0
        %639 = vmatpush.bf16.xpose.msra.mxu0 %v630
        %640 = vmatmul.bf16.gmra.mxu0 %v627
        %v641 = vpop.f32.mrf.mxu0
        %v642 = vadd.f32 0.0, %v641
        %v643 = vpop.f32.mrf.mxu0
        %644 = vdwg.mxu0
        %v645 = vsel %vm548, %v642, -inf
        %646 = vmax.xlane.f32.xlu0 %v645
        %v647 = vpop.xlane.xlu0 %646
        %vm648 = vcmp.ge.f32.partialorder %v642, %v647
        %v649 = vsel %vm648, -inf, %v642
        %v650 = vsel %vm548, %v649, -inf
        %651 = vmax.xlane.f32.xlu0 %v650
        %v652 = vpop.xlane.xlu0 %651
        %vm653 = vcmp.ge.f32.partialorder %v649, %v652
        %v654 = vsel %vm653, -inf, %v649
        %v655 = vsel %vm548, %v654, -inf
        %656 = vmax.xlane.f32.xlu0 %v655
        %v657 = vpop.xlane.xlu0 %656
        %vm658 = vcmp.ge.f32.partialorder %v654, %v657
        %v659 = vsel %vm658, -inf, %v654
        %v660 = vsel %vm548, %v659, -inf
        %661 = vmax.xlane.f32.xlu0 %v660
        %v662 = vpop.xlane.xlu0 %661
        %vm663 = vcmp.ge.f32.partialorder %v642, %v662
        %v664 = vsub.f32 %v642, %v647
        %v665 = vmul.f32 %v664, 1.442695
        %v666 = vpow.pop %v665
        %v667 = vsel %vm663, %v666, 0.0
        %v668 = vsel %vm548, %v667, 0.0
        %669 = vadd.xlane.f32.xlu0 %v668
        %v670 = vpop.xlane.xlu0 %669
        %v671 = vrcp.pop %v670
        %v672 = vmul.f32 %v667, %v671
        %v673 = vpack.c.bf16 %v672, %v672
        %674 = vrot.lane.b32.xlu0 %v547, 88
        %v675 = vpop.permute.xlu0 %674
        %v677 = vsel %vm548, %v673, 0
        %v680 = vsel %vm603, %v675, 0
        %682 = vmatpush.bf16.msra.mxu0 0
        %683 = vmatpush.bf16.msra.mxu0 0
        %684 = vmatpush.bf16.msra.mxu0 0
        %685 = vmatpush.bf16.msra.mxu0 0
        %686 = vmatpush.bf16.msra.mxu0 0
        %687 = vmatpush.bf16.msra.mxu0 0
        %688 = vmatpush.bf16.msra.mxu0 0
        %689 = vmatpush.bf16.msra.mxu0 %v680
        %690 = vmatmul.bf16.gmra.mxu0 %v677
        %v691 = vpop.f32.mrf.mxu0
        %v692 = vadd.f32 0.0, %v691
        %v693 = vpop.f32.mrf.mxu0
        %694 = vdwg.mxu0
        %v695 = vpack.c.bf16 %v692, %v692
        %v697 = vsel %vm548, %v695, 0
        %v700 = vsel %vm603, %v543, 0
        %702 = vmatpush.bf16.msra.mxu0 0
        %703 = vmatpush.bf16.msra.mxu0 0
        %704 = vmatpush.bf16.msra.mxu0 0
        %705 = vmatpush.bf16.msra.mxu0 0
        %706 = vmatpush.bf16.msra.mxu0 0
        %707 = vmatpush.bf16.msra.mxu0 0
        %708 = vmatpush.bf16.msra.mxu0 0
        %709 = vmatpush.bf16.msra.mxu0 %v700
        %710 = vmatmul.bf16.gmra.mxu0 %v697
        %v711 = vpop.f32.mrf.mxu0
        %v712 = vadd.f32 0.0, %v711
        %v713 = vpop.f32.mrf.mxu0
        %714 = vdwg.mxu0
        %v716 = vsel %vm548, %v620, 0
        %v719 = vsel %vm603, %v542, 0
        %721 = vmatpush.bf16.msra.mxu0 0
        %722 = vmatpush.bf16.msra.mxu0 0
        %723 = vmatpush.bf16.msra.mxu0 0
        %724 = vmatpush.bf16.msra.mxu0 0
        %725 = vmatpush.bf16.msra.mxu0 0
        %726 = vmatpush.bf16.msra.mxu0 0
        %727 = vmatpush.bf16.msra.mxu0 0
        %728 = vmatpush.bf16.msra.mxu0 %v719
        %729 = vmatmul.bf16.gmra.mxu0 %v716
        %v730 = vpop.f32.mrf.mxu0
        %v731 = vadd.f32 %v712, %v730
        %v732 = vpop.f32.mrf.mxu0
        %733 = vdwg.mxu0
        %734 = vrot.lane.b32.xlu0 %v546, 112
        %v735 = vpop.permute.xlu0 %734
        %736 = vrot.lane.b32.xlu0 %v547, 112
        %v737 = vpop.permute.xlu0 %736
        %v739 = vsel %vm548, %v735, 0
        %v742 = vsel %vm548, %v737, 0
        %744 = vmatpush.bf16.xpose.msra.mxu0 0
        %745 = vmatpush.bf16.xpose.msra.mxu0 0
        %746 = vmatpush.bf16.xpose.msra.mxu0 0
        %747 = vmatpush.bf16.xpose.msra.mxu0 0
        %748 = vmatpush.bf16.xpose.msra.mxu0 0
        %749 = vmatpush.bf16.xpose.msra.mxu0 0
        %750 = vmatpush.bf16.xpose.msra.mxu0 0
        %751 = vmatpush.bf16.xpose.msra.mxu0 %v742
        %752 = vmatmul.bf16.gmra.mxu0 %v739
        %v753 = vpop.f32.mrf.mxu0
        %v754 = vadd.f32 0.0, %v753
        %v755 = vpop.f32.mrf.mxu0
        %756 = vdwg.mxu0
        %v757 = vsel %vm548, %v754, -inf
        %758 = vmax.xlane.f32.xlu0 %v757
        %v759 = vpop.xlane.xlu0 %758
        %vm760 = vcmp.ge.f32.partialorder %v754, %v759
        %v761 = vsel %vm760, -inf, %v754
        %v762 = vsel %vm548, %v761, -inf
        %763 = vmax.xlane.f32.xlu0 %v762
        %v764 = vpop.xlane.xlu0 %763
        %vm765 = vcmp.ge.f32.partialorder %v761, %v764
        %v766 = vsel %vm765, -inf, %v761
        %v767 = vsel %vm548, %v766, -inf
        %768 = vmax.xlane.f32.xlu0 %v767
        %v769 = vpop.xlane.xlu0 %768
        %vm770 = vcmp.ge.f32.partialorder %v766, %v769
        %v771 = vsel %vm770, -inf, %v766
        %v772 = vsel %vm548, %v771, -inf
        %773 = vmax.xlane.f32.xlu0 %v772
        %v774 = vpop.xlane.xlu0 %773
        %vm775 = vcmp.ge.f32.partialorder %v754, %v774
        %v776 = vsub.f32 %v754, %v759
        %v777 = vmul.f32 %v776, 1.442695
        %v778 = vpow.pop %v777
        %v779 = vsel %vm775, %v778, 0.0
        %v780 = vsel %vm548, %v779, 0.0
        %781 = vadd.xlane.f32.xlu0 %v780
        %v782 = vpop.xlane.xlu0 %781
        %v783 = vrcp.pop %v782
        %v784 = vmul.f32 %v779, %v783
        %v785 = vpack.c.bf16 %v784, %v784
        %786 = vrot.lane.b32.xlu0 %v547, 80
        %v787 = vpop.permute.xlu0 %786
        %v789 = vsel %vm548, %v785, 0
        %v792 = vsel %vm603, %v787, 0
        %794 = vmatpush.bf16.msra.mxu0 0
        %795 = vmatpush.bf16.msra.mxu0 0
        %796 = vmatpush.bf16.msra.mxu0 0
        %797 = vmatpush.bf16.msra.mxu0 0
        %798 = vmatpush.bf16.msra.mxu0 0
        %799 = vmatpush.bf16.msra.mxu0 0
        %800 = vmatpush.bf16.msra.mxu0 0
        %801 = vmatpush.bf16.msra.mxu0 %v792
        %802 = vmatmul.bf16.gmra.mxu0 %v789
        %v803 = vpop.f32.mrf.mxu0
        %v804 = vadd.f32 0.0, %v803
        %v805 = vpop.f32.mrf.mxu0
        %806 = vdwg.mxu0
        %v807 = vpack.c.bf16 %v804, %v804
        %v809 = vsel %vm548, %v807, 0
        %v812 = vsel %vm603, %v544, 0
        %814 = vmatpush.bf16.msra.mxu0 0
        %815 = vmatpush.bf16.msra.mxu0 0
        %816 = vmatpush.bf16.msra.mxu0 0
        %817 = vmatpush.bf16.msra.mxu0 0
        %818 = vmatpush.bf16.msra.mxu0 0
        %819 = vmatpush.bf16.msra.mxu0 0
        %820 = vmatpush.bf16.msra.mxu0 0
        %821 = vmatpush.bf16.msra.mxu0 %v812
        %822 = vmatmul.bf16.gmra.mxu0 %v809
        %v823 = vpop.f32.mrf.mxu0
        %v824 = vadd.f32 0.0, %v823
        %v825 = vpop.f32.mrf.mxu0
        %826 = vdwg.mxu0
        %v827 = vadd.f32 %v731, %v824
        %828 = vrot.lane.b32.xlu0 %v546, 104
        %v829 = vpop.permute.xlu0 %828
        %830 = vrot.lane.b32.xlu0 %v547, 104
        %v831 = vpop.permute.xlu0 %830
        %v833 = vsel %vm548, %v829, 0
        %v836 = vsel %vm548, %v831, 0
        %838 = vmatpush.bf16.xpose.msra.mxu0 0
        %839 = vmatpush.bf16.xpose.msra.mxu0 0
        %840 = vmatpush.bf16.xpose.msra.mxu0 0
        %841 = vmatpush.bf16.xpose.msra.mxu0 0
        %842 = vmatpush.bf16.xpose.msra.mxu0 0
        %843 = vmatpush.bf16.xpose.msra.mxu0 0
        %844 = vmatpush.bf16.xpose.msra.mxu0 0
        %845 = vmatpush.bf16.xpose.msra.mxu0 %v836
        %846 = vmatmul.bf16.gmra.mxu0 %v833
        %v847 = vpop.f32.mrf.mxu0
        %v848 = vadd.f32 0.0, %v847
        %v849 = vpop.f32.mrf.mxu0
        %850 = vdwg.mxu0
        %v851 = vsel %vm548, %v848, -inf
        %852 = vmax.xlane.f32.xlu0 %v851
        %v853 = vpop.xlane.xlu0 %852
        %vm854 = vcmp.ge.f32.partialorder %v848, %v853
        %v855 = vsel %vm854, -inf, %v848
        %v856 = vsel %vm548, %v855, -inf
        %857 = vmax.xlane.f32.xlu0 %v856
        %v858 = vpop.xlane.xlu0 %857
        %vm859 = vcmp.ge.f32.partialorder %v855, %v858
        %v860 = vsel %vm859, -inf, %v855
        %v861 = vsel %vm548, %v860, -inf
        %862 = vmax.xlane.f32.xlu0 %v861
        %v863 = vpop.xlane.xlu0 %862
        %vm864 = vcmp.ge.f32.partialorder %v860, %v863
        %v865 = vsel %vm864, -inf, %v860
        %v866 = vsel %vm548, %v865, -inf
        %867 = vmax.xlane.f32.xlu0 %v866
        %v868 = vpop.xlane.xlu0 %867
        %vm869 = vcmp.ge.f32.partialorder %v848, %v868
        %v870 = vsub.f32 %v848, %v853
        %v871 = vmul.f32 %v870, 1.442695
        %v872 = vpow.pop %v871
        %v873 = vsel %vm869, %v872, 0.0
        %v874 = vsel %vm548, %v873, 0.0
        %875 = vadd.xlane.f32.xlu0 %v874
        %v876 = vpop.xlane.xlu0 %875
        %v877 = vrcp.pop %v876
        %v878 = vmul.f32 %v873, %v877
        %v879 = vpack.c.bf16 %v878, %v878
        %880 = vrot.lane.b32.xlu0 %v547, 72
        %v881 = vpop.permute.xlu0 %880
        %v883 = vsel %vm548, %v879, 0
        %v886 = vsel %vm603, %v881, 0
        %888 = vmatpush.bf16.msra.mxu0 0
        %889 = vmatpush.bf16.msra.mxu0 0
        %890 = vmatpush.bf16.msra.mxu0 0
        %891 = vmatpush.bf16.msra.mxu0 0
        %892 = vmatpush.bf16.msra.mxu0 0
        %893 = vmatpush.bf16.msra.mxu0 0
        %894 = vmatpush.bf16.msra.mxu0 0
        %895 = vmatpush.bf16.msra.mxu0 %v886
        %896 = vmatmul.bf16.gmra.mxu0 %v883
        %v897 = vpop.f32.mrf.mxu0
        %v898 = vadd.f32 0.0, %v897
        %v899 = vpop.f32.mrf.mxu0
        %900 = vdwg.mxu0
        %v901 = vpack.c.bf16 %v898, %v898
        %v903 = vsel %vm548, %v901, 0
        %v906 = vsel %vm603, %v545, 0
        %908 = vmatpush.bf16.msra.mxu0 0
        %909 = vmatpush.bf16.msra.mxu0 0
        %910 = vmatpush.bf16.msra.mxu0 0
        %911 = vmatpush.bf16.msra.mxu0 0
        %912 = vmatpush.bf16.msra.mxu0 0
        %913 = vmatpush.bf16.msra.mxu0 0
        %914 = vmatpush.bf16.msra.mxu0 0
        %915 = vmatpush.bf16.msra.mxu0 %v906
        %916 = vmatmul.bf16.gmra.mxu0 %v903
        %v917 = vpop.f32.mrf.mxu0
        %v918 = vadd.f32 0.0, %v917
        %v919 = vpop.f32.mrf.mxu0
        %920 = vdwg.mxu0
        %v921 = vadd.f32 %v827, %v918
        %v922 = vld [vmem:[#allocation7] sm:$0x1]
        %v924 = vperm.slane %v922, 0
        %v926 = vadd.f32 %v921, %v924
        %v927 = vpack.c.bf16 %v926, %v926
        %vm928 = vcmask 257024
        %929 = vst.msk [vmem:[%s465] sm:$0xf] %vm928, %v927
        %p930 = scmp.lt.s32.totalorder %s27, 1
        %s931 = scalar_select %p930, %s27, 1
        %p932 = scmp.lt.s32.totalorder %s28, 1
        %s933 = scalar_select %p932, %s28, 1
        %p934 = scmp.lt.s32.totalorder %s29, 0
        %s935 = scalar_select %p934, %s29, 0
        %s936 = sadd.s32 %s935, %s933
        %s937 = smul.addr %s931, 2
        %s938 = sadd.s32 %s936, %s937
        %s939 = smul.addr %s938, 4
        %s940 = scalar_lea.vmem %s8, %s939
        // Predicated region
        $region69: #{attentional_gnn.14} parent=51 // pred_check
          %p941 = pneg %p249
        $region70: #{attentional_gnn.14} parent=51 // pred_check_branch
          %943 = sbr.rel (%p941) target = $region72
        $region71: #{attentional_gnn.14} parent=51 // pred_region
          _
        $region72: #{attentional_gnn.14} parent=51 // pred_fallthru
          _
      $region52: #{attentional_gnn.14} parent=5 // pred_fallthru
        _
      %p944 = scmp.le.s32.totalorder 2, %s17
      // Predicated region
      $region73: #{attentional_gnn.14} parent=5 // pred_check
        %p945 = pneg %p944
      $region74: #{attentional_gnn.14} parent=5 // pred_check_branch
        %947 = sbr.rel (%p945) target = $region76
      $region75: #{attentional_gnn.14} parent=5 // pred_region
        %s948 = ssub.s32 %s17, 2
        // Predicated region
        $region77: #{attentional_gnn.14} parent=75 // pred_check
          %p949 = pneg %p255
        $region78: #{attentional_gnn.14} parent=75 // pred_check_branch
          %951 = sbr.rel (%p949) target = $region80
        $region79: #{attentional_gnn.14} parent=75 // pred_region
          %p952 = scmp.lt.s32.totalorder %s30, 1
          %s953 = scalar_select %p952, %s30, 1
          %p954 = scmp.lt.s32.totalorder %s31, 1
          %s955 = scalar_select %p954, %s31, 1
          %p956 = scmp.lt.s32.totalorder %s32, 0
          %s957 = scalar_select %p956, %s32, 0
          %s958 = sadd.s32 %s957, %s955
          %s959 = smul.addr %s953, 2
          %s960 = sadd.s32 %s958, %s959
          %s961 = smul.addr %s960, 4
          %s962 = scalar_lea.vmem %s8, %s961
        $region80: #{attentional_gnn.14} parent=75 // pred_fallthru
          _
      $region76: #{attentional_gnn.14} parent=5 // pred_fallthru
        _
    $region6: #{attentional_gnn.14} parent=1 // loop_footer
      %s21 = sadd.s32 1, %s17
    $region7: #{attentional_gnn.14} parent=1 // loop_footer_branch
      %16 = sbr.rel target = $region3
    $region8: #{attentional_gnn.14} parent=1 // loop_exit
      _
    %963 = vsyncpa [#allocation3], 1
    %s964 = scalar_lea.sflag [#allocation3], 1
    %965 = vsyncpa %s964, 1
    %966 = vsyncpa [#allocation5], 1
    %967 = vsyncpa [#allocation8], 1

</llo_original>
